<compile_context>
chip_gen: v7x
topology: tpu7x:2x2x1
jax: 0.10.0
libtpu: 0.0.40
codegen_flags: <defaults>
</compile_context>

<pallas_src>
import functools
import math

import jax
import jax.numpy as jnp
from jax import lax
from jax.experimental import pallas as pl
from jax.experimental.pallas import tpu as pltpu

D_MODEL = 32                 # d_model (PyTorch default 512, kept small)
NUM_HEADS = 4                # num_heads (d_model % num_heads == 0)
HEAD_DIM = D_MODEL // NUM_HEADS
D_FF = 4 * D_MODEL
NUM_LAYERS = 2               # stacked DecoderLayers (PyTorch default 6)
LN_EPS = 1e-5
NEG_INF = -1e30              # finite "minus infinity" for additive masks


# ----------------------------- in-kernel math --------------------------------
def _layernorm(y, g, b):
    """LayerNorm over the last dim. g, b: (1, E) broadcast over rows."""
    mu = jnp.mean(y, axis=-1, keepdims=True)
    var = jnp.mean(jnp.square(y - mu), axis=-1, keepdims=True)
    return (y - mu) * lax.rsqrt(var + LN_EPS) * g + b


def _softmax_rows(s):
    """Numerically-stable softmax over the last axis (f32 in/out)."""
    m = jnp.max(s, axis=-1, keepdims=True)
    e = jnp.exp(s - m)
    # EUP approximate reciprocal: free bundle slot vs. a VPU divide.
    return e * pl.reciprocal(jnp.sum(e, axis=-1, keepdims=True), approx=True)


def _mha(q, k, v, w_o_t, b_o, bias, nb, lq, lk):
    """Per-sequence multi-head attention on batch-folded projections.

    q: (nb*lq, E) f32, already projected AND pre-scaled by 1/sqrt(head_dim).
    k, v: (nb*lk, E) f32, already projected (bias added).
    w_o_t: (E, E) bf16 pre-transposed out_proj weight.  b_o: (1, E) f32.
    bias: None, or (lq, lk) additive mask broadcast over the nb sequences.
    """
    bf16 = jnp.bfloat16
    E, H, dh = D_MODEL, NUM_HEADS, HEAD_DIM
    # Split the folded row axis back into (sequence, position): major-axis
    # reshape only (last dim untouched), so no lane reflow.
    q3 = q.reshape(nb, lq, E)
    k3 = k.reshape(nb, lk, E)
    v3 = v.reshape(nb, lk, E)

    ctxs = []
    for h in range(H):                       # static unroll, H = 4
        sl = slice(h * dh, (h + 1) * dh)
        # Batched per-sequence scores: (nb, lq, lk).  No cross-sequence work.
        s = jnp.einsum('bqd,bkd->bqk',
                       q3[:, :, sl].astype(bf16), k3[:, :, sl].astype(bf16),
                       preferred_element_type=jnp.float32)
        if bias is not None:
            s = s + bias                     # (lq, lk) broadcast over nb
        p = _softmax_rows(s)
        ctxs.append(jnp.einsum('bqk,bkd->bqd',
                               p.astype(bf16), v3[:, :, sl].astype(bf16),
                               preferred_element_type=jnp.float32))
    # Single consolidated out-projection (K = E) instead of H tiny K=dh ones.
    ctx = jnp.concatenate(ctxs, axis=-1).reshape(nb * lq, E)
    return jnp.dot(ctx.astype(bf16), w_o_t,
                   preferred_element_type=jnp.float32) + b_o


def _decoder_stack_kernel(
    # inputs
    x_ref, enc_ref,
    w_qkv1_ref, b_qkv1_ref, w_o1_ref, b_o1_ref, g1_ref, be1_ref,
    w_q2_ref, b_q2_ref, w_kv2_ref, b_kv2_ref, w_o2_ref, b_o2_ref, g2_ref, be2_ref,
    w_f1_ref, b_f1_ref, w_f2_ref, b_f2_ref, g3_ref, be3_ref,
    # outputs
    o_ref,
    # scratch
    act_ref,
    *, nb, lq, lk,
):
    E = D_MODEL
    bf16 = jnp.bfloat16
    layer = pl.program_id(1)

    # Fresh activation for this batch block at the first layer; afterwards the
    # activation stays resident in VMEM scratch across the whole layer stack.
    @pl.when(layer == 0)
    def _():
        act_ref[...] = x_ref[...]

    x = act_ref[...]          # (nb*lq, E) f32, rows ordered (pos within seq)
    enc = enc_ref[...]        # (nb*lk, E) f32

    # Causal additive mask built in-kernel (cheap iota compares, no DMA).
    row = lax.broadcasted_iota(jnp.int32, (lq, lq), 0)
    col = lax.broadcasted_iota(jnp.int32, (lq, lq), 1)
    causal_bias = jnp.where(col <= row, 0.0, NEG_INF).astype(jnp.float32)

    # ---- masked self-attention: fused QKV = one (nb*lq, E) x (E, 3E) matmul.
    # The 1/sqrt(head_dim) scale is already folded into the Q weight columns.
    qkv = jnp.dot(x.astype(bf16), w_qkv1_ref[...],
                  preferred_element_type=jnp.float32) + b_qkv1_ref[...]
    a1 = _mha(qkv[:, :E], qkv[:, E:2 * E], qkv[:, 2 * E:],
              w_o1_ref[...], b_o1_ref[...], causal_bias, nb, lq, lq)
    x = _layernorm(a1 + x, g1_ref[...], be1_ref[...])

    # ---- cross-attention: Q from x (scale pre-folded), fused KV from encoder.
    q2 = jnp.dot(x.astype(bf16), w_q2_ref[...],
                 preferred_element_type=jnp.float32) + b_q2_ref[...]
    kv2 = jnp.dot(enc.astype(bf16), w_kv2_ref[...],
                  preferred_element_type=jnp.float32) + b_kv2_ref[...]
    a2 = _mha(q2, kv2[:, :E], kv2[:, E:],
              w_o2_ref[...], b_o2_ref[...], None, nb, lq, lk)
    x = _layernorm(a2 + x, g2_ref[...], be2_ref[...])

    # ---- FFN: Linear(E->4E) -> ReLU -> Linear(4E->E) ----
    h = jnp.dot(x.astype(bf16), w_f1_ref[...],
                preferred_element_type=jnp.float32) + b_f1_ref[...]
    h = jnp.maximum(h, 0.0)
    f = jnp.dot(h.astype(bf16), w_f2_ref[...],
                preferred_element_type=jnp.float32) + b_f2_ref[...]
    x = _layernorm(f + x, g3_ref[...], be3_ref[...])

    act_ref[...] = x

    # Only the final layer's result goes back to HBM.
    @pl.when(layer == pl.num_programs(1) - 1)
    def _():
        o_ref[...] = x


# ------------------------------- wrapper --------------------------------------
def _prep_and_stack_params(layer_params_list):
    """PyTorch-layout per-layer params -> per-tensor stacks over the layers.

    Matmul weights are pre-transposed to (in, out) and cast to bf16 (MXU
    inputs, halved weight DMA); the 1/sqrt(head_dim) attention scale is folded
    into the Q projection weight/bias (constant fold, zero runtime cost).
    """
    bf = jnp.bfloat16
    E = D_MODEL
    scale = 1.0 / math.sqrt(HEAD_DIM)
    per_layer = []
    for params in layer_params_list:
        (w_in1, b_in1, w_out1, b_out1, g1, be1,
         w_in2, b_in2, w_out2, b_out2, g2, be2,
         w_ff1, b_ff1, w_ff2, b_ff2, g3, be3) = params
        # Self-attention: fused QKV, Q columns pre-scaled.
        w_qkv1 = jnp.concatenate([w_in1[:E].T * scale, w_in1[E:].T], axis=1)
        b_qkv1 = jnp.concatenate([b_in1[:, :E] * scale, b_in1[:, E:]], axis=1)
        # Cross-attention: split Q (from x) and fused KV (from enc) so the
        # kernel never slices weight columns.
        w_q2 = w_in2[:E].T * scale
        b_q2 = b_in2[:, :E] * scale
        w_kv2 = w_in2[E:].T
        b_kv2 = b_in2[:, E:]
        per_layer.append([
            w_qkv1.astype(bf), b_qkv1, w_out1.T.astype(bf), b_out1, g1, be1,
            w_q2.astype(bf), b_q2, w_kv2.astype(bf), b_kv2,
            w_out2.T.astype(bf), b_out2, g2, be2,
            w_ff1.T.astype(bf), b_ff1, w_ff2.T.astype(bf), b_ff2, g3, be3,
        ])
    # Stack each tensor across layers -> leading 'layer' axis for the grid.
    return [jnp.stack([lp[i] for lp in per_layer], axis=0)
            for i in range(len(per_layer[0]))]


def transformer_decoder(x, enc, layer_params_list, *, nb=4):
    """x: (L, N, E) time-major, enc: (S, N, E)  ->  (L, N, E)."""
    L, N, E = x.shape
    S = enc.shape[0]
    assert E == D_MODEL
    assert N % nb == 0, "batch must be divisible by the per-program batch"
    nprog = N // nb
    num_layers = len(layer_params_list)

    # One-time layout change for the WHOLE stack: time-major -> batch-major
    # flat (N*L, E).  All intermediate activations stay in VMEM (fused stack).
    xf = jnp.transpose(x, (1, 0, 2)).reshape(N * L, E)
    ef = jnp.transpose(enc, (1, 0, 2)).reshape(N * S, E)

    stacked = _prep_and_stack_params(layer_params_list)

    # Weights: constant across the batch axis, indexed by the layer axis.
    weight_specs = [
        pl.BlockSpec((None,) + tuple(p.shape[1:]), lambda b, l: (l, 0, 0))
        for p in stacked
    ]
    in_specs = [
        pl.BlockSpec((nb * L, E), lambda b, l: (b, 0)),   # x: per batch block
        pl.BlockSpec((nb * S, E), lambda b, l: (b, 0)),   # enc: per batch block
    ] + weight_specs

    kernel = functools.partial(_decoder_stack_kernel, nb=nb, lq=L, lk=S)

    out = pl.pallas_call(
        kernel,
        out_shape=jax.ShapeDtypeStruct((N * L, E), jnp.float32),
        grid_spec=pltpu.PrefetchScalarGridSpec(
            num_scalar_prefetch=0,
            # Batch blocks first ("parallel": v7x shards them across its two
            # TensorCores; on v5e/v6e it is a serial loop).  Layer axis last
            # ("arbitrary": carries the VMEM-resident activation).
            grid=(nprog, num_layers),
            in_specs=in_specs,
            out_specs=pl.BlockSpec((nb * L, E), lambda b, l: (b, 0)),
            scratch_shapes=[pltpu.VMEM((nb * L, E), jnp.float32)],
        ),
        compiler_params=pltpu.CompilerParams(
            dimension_semantics=("parallel", "arbitrary"),
            vmem_limit_bytes=32 * 1024 * 1024,
        ),
    )(xf, ef, *stacked)

    return jnp.transpose(out.reshape(N, L, E), (1, 0, 2))


# ------------------------- params + independent reference --------------------
def init_layer_params(key):
    """Parameters in PyTorch layout for one DecoderLayer."""
    E, F = D_MODEL, D_FF
    ks = jax.random.split(key, 18)

    def w(k, shape, scale=0.08):
        return (scale * jax.random.normal(k, shape)).astype(jnp.float32)

    def gamma(k):
        return (1.0 + 0.1 * jax.random.normal(k, (1, E))).astype(jnp.float32)

    def beta(k):
        return (0.1 * jax.random.normal(k, (1, E))).astype(jnp.float32)

    return [
        # masked self-attention: in_proj_weight/bias, out_proj w/b, norm1 g/b
        w(ks[0], (3 * E, E)), w(ks[1], (1, 3 * E)), w(ks[2], (E, E)),
        w(ks[3], (1, E)), gamma(ks[4]), beta(ks[5]),
        # cross-attention + norm2
        w(ks[6], (3 * E, E)), w(ks[7], (1, 3 * E)), w(ks[8], (E, E)),
        w(ks[9], (1, E)), gamma(ks[10]), beta(ks[11]),
        # FFN (E->4E, 4E->E) + norm3
        w(ks[12], (F, E)), w(ks[13], (1, F)), w(ks[14], (E, F)),
        w(ks[15], (1, E)), gamma(ks[16]), beta(ks[17]),
    ]


def reference(x, enc, layer_params_list):
    """Independent pure-JAX reference (full-tensor einsum formulation).

    Uses the same bf16-at-dot-inputs / f32-accumulate policy as the kernel so
    the comparison isolates the Pallas lowering, not the quantization choice.
    """
    bf = jnp.bfloat16
    E, H, DH = D_MODEL, NUM_HEADS, HEAD_DIM

    def linear(t, w, b):                      # w: (out, in) PyTorch layout
        return jnp.einsum('...i,oi->...o', t.astype(bf), w.astype(bf),
                          preferred_element_type=jnp.float32) + b[0]

    def layernorm(t, g, b):
        mu = jnp.mean(t, axis=-1, keepdims=True)
        var = jnp.mean((t - mu) ** 2, axis=-1, keepdims=True)
        return (t - mu) / jnp.sqrt(var + LN_EPS) * g[0] + b[0]

    def mha(q_in, kv_in, w_in, b_in, w_o, b_o, causal):
        Lq, N, _ = q_in.shape
        Lk = kv_in.shape[0]
        q = linear(q_in, w_in[:E], b_in[:, :E]).reshape(Lq, N, H, DH)
        k = linear(kv_in, w_in[E:2 * E], b_in[:, E:2 * E]).reshape(Lk, N, H, DH)
        v = linear(kv_in, w_in[2 * E:], b_in[:, 2 * E:]).reshape(Lk, N, H, DH)
        s = jnp.einsum('qnhd,knhd->nhqk', q.astype(bf), k.astype(bf),
                       preferred_element_type=jnp.float32) * (1.0 / math.sqrt(DH))
        if causal:
            qi = jnp.arange(Lq)[:, None]
            ki = jnp.arange(Lk)[None, :]
            s = jnp.where(ki > qi, -jnp.inf, s)
        p = jax.nn.softmax(s, axis=-1)
        ctx = jnp.einsum('nhqk,knhd->qnhd', p.astype(bf), v.astype(bf),
                         preferred_element_type=jnp.float32).reshape(Lq, N, E)
        return linear(ctx, w_o, b_o)

    for params in layer_params_list:
        (w1, b1, wo1, bo1, g1, be1, w2, b2, wo2, bo2, g2, be2,
         wf1, bf1, wf2, bf2, g3, be3) = params
        a1 = mha(x, x, w1, b1, wo1, bo1, True)
        x = layernorm(a1 + x, g1, be1)
        a2 = mha(x, enc, w2, b2, wo2, bo2, False)
        x = layernorm(a2 + x, g2, be2)
        h = jnp.maximum(linear(x, wf1, bf1), 0.0)
        f = linear(h, wf2, bf2)
        x = layernorm(f + x, g3, be3)
    return x


if __name__ == "__main__":
    key = jax.random.PRNGKey(0)
    kx, ke, kp = jax.random.split(key, 3)

    L, S, N = 8, 8, 8          # target len, encoder len, batch (nb=4 -> 2 blocks)
    x = jax.random.normal(kx, (L, N, D_MODEL), jnp.float32)
    enc = jax.random.normal(ke, (S, N, D_MODEL), jnp.float32)
    params_list = [init_layer_params(k) for k in jax.random.split(kp, NUM_LAYERS)]

    run = jax.jit(lambda a, b: transformer_decoder(a, b, params_list, nb=4))
    out = jax.block_until_ready(run(x, enc))
    ref = jax.block_until_ready(jax.jit(lambda a, b: reference(a, b, params_list))(x, enc))

    assert out.shape == (L, N, D_MODEL), out.shape
    assert bool(jnp.all(jnp.isfinite(out)))
    # Tolerance accounts for bf16 matmul inputs, the pre-folded Q scale, and
    # the approximate reciprocal in the kernel's softmax vs. exact division.
    max_diff = float(jnp.max(jnp.abs(out - ref)))
    assert jnp.allclose(out, ref, atol=2e-2, rtol=2e-2), max_diff
    print("KERNEL_OK")
</pallas_src>

<mosaic_0001>
module attributes {stable_mosaic.version = 11 : i64} {
  func.func @_decoder_stack_kernel(%arg0: i32, %arg1: i32, %arg2: memref<32x32xf32, #tpu.memory_space<vmem>>, %arg3: memref<32x32xf32, #tpu.memory_space<vmem>>, %arg4: memref<1x32x96xbf16, #tpu.memory_space<vmem>>, %arg5: memref<1x1x96xf32, #tpu.memory_space<vmem>>, %arg6: memref<1x32x32xbf16, #tpu.memory_space<vmem>>, %arg7: memref<1x1x32xf32, #tpu.memory_space<vmem>>, %arg8: memref<1x1x32xf32, #tpu.memory_space<vmem>>, %arg9: memref<1x1x32xf32, #tpu.memory_space<vmem>>, %arg10: memref<1x32x32xbf16, #tpu.memory_space<vmem>>, %arg11: memref<1x1x32xf32, #tpu.memory_space<vmem>>, %arg12: memref<1x32x64xbf16, #tpu.memory_space<vmem>>, %arg13: memref<1x1x64xf32, #tpu.memory_space<vmem>>, %arg14: memref<1x32x32xbf16, #tpu.memory_space<vmem>>, %arg15: memref<1x1x32xf32, #tpu.memory_space<vmem>>, %arg16: memref<1x1x32xf32, #tpu.memory_space<vmem>>, %arg17: memref<1x1x32xf32, #tpu.memory_space<vmem>>, %arg18: memref<1x32x128xbf16, #tpu.memory_space<vmem>>, %arg19: memref<1x1x128xf32, #tpu.memory_space<vmem>>, %arg20: memref<1x128x32xbf16, #tpu.memory_space<vmem>>, %arg21: memref<1x1x32xf32, #tpu.memory_space<vmem>>, %arg22: memref<1x1x32xf32, #tpu.memory_space<vmem>>, %arg23: memref<1x1x32xf32, #tpu.memory_space<vmem>>, %arg24: memref<32x32xf32, #tpu.memory_space<vmem>>, %arg25: memref<32x32xf32, #tpu.memory_space<vmem>>) attributes {dimension_semantics = [#tpu.dimension_semantics<parallel>, #tpu.dimension_semantics<arbitrary>], iteration_bounds = array<i64: 2, 2>, scalar_prefetch = 0 : i64, scratch_operands = 1 : i64, tpu.core_type = #tpu.core_type<tc>, window_params = [{transform_indices = @transform_0, window_bounds = array<i64: 32, 32>}, {transform_indices = @transform_1, window_bounds = array<i64: 32, 32>}, {transform_indices = @transform_2, window_bounds = array<i64: 1, 32, 96>}, {transform_indices = @transform_3, window_bounds = array<i64: 1, 1, 96>}, {transform_indices = @transform_4, window_bounds = array<i64: 1, 32, 32>}, {transform_indices = @transform_5, window_bounds = array<i64: 1, 1, 32>}, {transform_indices = @transform_6, window_bounds = array<i64: 1, 1, 32>}, {transform_indices = @transform_7, window_bounds = array<i64: 1, 1, 32>}, {transform_indices = @transform_8, window_bounds = array<i64: 1, 32, 32>}, {transform_indices = @transform_9, window_bounds = array<i64: 1, 1, 32>}, {transform_indices = @transform_10, window_bounds = array<i64: 1, 32, 64>}, {transform_indices = @transform_11, window_bounds = array<i64: 1, 1, 64>}, {transform_indices = @transform_12, window_bounds = array<i64: 1, 32, 32>}, {transform_indices = @transform_13, window_bounds = array<i64: 1, 1, 32>}, {transform_indices = @transform_14, window_bounds = array<i64: 1, 1, 32>}, {transform_indices = @transform_15, window_bounds = array<i64: 1, 1, 32>}, {transform_indices = @transform_16, window_bounds = array<i64: 1, 32, 128>}, {transform_indices = @transform_17, window_bounds = array<i64: 1, 1, 128>}, {transform_indices = @transform_18, window_bounds = array<i64: 1, 128, 32>}, {transform_indices = @transform_19, window_bounds = array<i64: 1, 1, 32>}, {transform_indices = @transform_20, window_bounds = array<i64: 1, 1, 32>}, {transform_indices = @transform_21, window_bounds = array<i64: 1, 1, 32>}, {transform_indices = @transform_22, window_bounds = array<i64: 32, 32>}]} {
    %c0_i32 = arith.constant 0 : i32
    %0 = arith.cmpi eq, %arg1, %c0_i32 : i32
    %1 = arith.extui %0 : i1 to i32
    %c0_i32_0 = arith.constant 0 : i32
    %2 = arith.cmpi ne, %1, %c0_i32_0 : i32
    scf.if %2 {
      %c0_123 = arith.constant 0 : index
      %c0_124 = arith.constant 0 : index
      %333 = vector.load %arg2[%c0_123, %c0_124] : memref<32x32xf32, #tpu.memory_space<vmem>>, vector<32x32xf32>
      %c0_125 = arith.constant 0 : index
      %c0_126 = arith.constant 0 : index
      %334 = vector.load %arg25[%c0_125, %c0_126] : memref<32x32xf32, #tpu.memory_space<vmem>>, vector<32x32xf32>
      tpu.vector_store %arg25[%c0_125, %c0_126], %333 {strides = array<i32>} : memref<32x32xf32, #tpu.memory_space<vmem>>, vector<32x32xf32>,
    } else {
    }
    %c0 = arith.constant 0 : index
    %c0_1 = arith.constant 0 : index
    %3 = vector.load %arg25[%c0, %c0_1] : memref<32x32xf32, #tpu.memory_space<vmem>>, vector<32x32xf32>
    %c0_2 = arith.constant 0 : index
    %c0_3 = arith.constant 0 : index
    %4 = vector.load %arg3[%c0_2, %c0_3] : memref<32x32xf32, #tpu.memory_space<vmem>>, vector<32x32xf32>
    %5 = tpu.iota {dimensions = array<i32: 0>} : vector<8x8xi32>
    %6 = tpu.iota {dimensions = array<i32: 1>} : vector<8x8xi32>
    %7 = arith.cmpi sle, %6, %5 : vector<8x8xi32>
    %cst = arith.constant 0.000000e+00 : f32
    %cst_4 = arith.constant -1.000000e+30 : f32
    %8 = vector.broadcast %cst : f32 to vector<8x8xf32>
    %9 = vector.broadcast %cst_4 : f32 to vector<8x8xf32>
    %10 = arith.select %7, %8, %9 : vector<8x8xi1>, vector<8x8xf32>
    %11 = arith.truncf %3 : vector<32x32xf32> to vector<32x32xbf16>
    %c0_5 = arith.constant 0 : index
    %c0_6 = arith.constant 0 : index
    %c0_7 = arith.constant 0 : index
    %12 = vector.load %arg4[%c0_5, %c0_6, %c0_7] : memref<1x32x96xbf16, #tpu.memory_space<vmem>>, vector<1x32x96xbf16>
    %13 = vector.shape_cast %12 : vector<1x32x96xbf16> to vector<32x96xbf16>
    %cst_8 = arith.constant dense<0.000000e+00> : vector<32x96xf32>
    %14 = tpu.matmul %11, %13, %cst_8 {dimension_numbers = #tpu.dot_dimension_numbers<[1], [0], [0], [1], [0, 0, 1, 1], [], []>} : vector<32x32xbf16>, vector<32x96xbf16>, vector<32x96xf32> -> vector<32x96xf32>
    %c0_9 = arith.constant 0 : index
    %c0_10 = arith.constant 0 : index
    %c0_11 = arith.constant 0 : index
    %15 = vector.load %arg5[%c0_9, %c0_10, %c0_11] : memref<1x1x96xf32, #tpu.memory_space<vmem>>, vector<1x1x96xf32>
    %16 = vector.shape_cast %15 : vector<1x1x96xf32> to vector<1x96xf32>
    %17 = vector.broadcast %16 : vector<1x96xf32> to vector<32x96xf32>
    %18 = arith.addf %14, %17 : vector<32x96xf32>
    %19 = vector.extract_strided_slice %18 {offsets = [0, 0], sizes = [32, 32], strides = [1, 1]} : vector<32x96xf32> to vector<32x32xf32>
    %20 = vector.extract_strided_slice %18 {offsets = [0, 32], sizes = [32, 32], strides = [1, 1]} : vector<32x96xf32> to vector<32x32xf32>
    %21 = vector.extract_strided_slice %18 {offsets = [0, 64], sizes = [32, 32], strides = [1, 1]} : vector<32x96xf32> to vector<32x32xf32>
    %c0_12 = arith.constant 0 : index
    %c0_13 = arith.constant 0 : index
    %c0_14 = arith.constant 0 : index
    %22 = vector.load %arg6[%c0_12, %c0_13, %c0_14] : memref<1x32x32xbf16, #tpu.memory_space<vmem>>, vector<1x32x32xbf16>
    %23 = vector.shape_cast %22 : vector<1x32x32xbf16> to vector<32x32xbf16>
    %c0_15 = arith.constant 0 : index
    %c0_16 = arith.constant 0 : index
    %c0_17 = arith.constant 0 : index
    %24 = vector.load %arg7[%c0_15, %c0_16, %c0_17] : memref<1x1x32xf32, #tpu.memory_space<vmem>>, vector<1x1x32xf32>
    %25 = vector.shape_cast %24 : vector<1x1x32xf32> to vector<1x32xf32>
    %26 = vector.shape_cast %19 : vector<32x32xf32> to vector<4x8x32xf32>
    %27 = vector.shape_cast %20 : vector<32x32xf32> to vector<4x8x32xf32>
    %28 = vector.shape_cast %21 : vector<32x32xf32> to vector<4x8x32xf32>
    %29 = vector.extract_strided_slice %26 {offsets = [0, 0, 0], sizes = [4, 8, 8], strides = [1, 1, 1]} : vector<4x8x32xf32> to vector<4x8x8xf32>
    %30 = arith.truncf %29 : vector<4x8x8xf32> to vector<4x8x8xbf16>
    %31 = vector.extract_strided_slice %27 {offsets = [0, 0, 0], sizes = [4, 8, 8], strides = [1, 1, 1]} : vector<4x8x32xf32> to vector<4x8x8xf32>
    %32 = arith.truncf %31 : vector<4x8x8xf32> to vector<4x8x8xbf16>
    "tpu.trace_start"() <{level = 10 : i32, message = "bqd,bkd->bqk"}> : () -> ()
    %cst_18 = arith.constant dense<0.000000e+00> : vector<4x8x8xf32>
    %33 = tpu.matmul %30, %32, %cst_18 {dimension_numbers = #tpu.dot_dimension_numbers<[2], [2], [1], [1], [0, 0, 0, 1, 1, 1], [0], [0]>} : vector<4x8x8xbf16>, vector<4x8x8xbf16>, vector<4x8x8xf32> -> vector<4x8x8xf32>
    "tpu.trace_stop"() : () -> ()
    %34 = vector.shape_cast %10 : vector<8x8xf32> to vector<1x8x8xf32>
    %35 = vector.broadcast %34 : vector<1x8x8xf32> to vector<4x8x8xf32>
    %36 = arith.addf %33, %35 : vector<4x8x8xf32>
    %cst_19 = arith.constant dense<0xFF800000> : vector<4x8xf32>
    %37 = vector.multi_reduction <maximumf>, %36, %cst_19 [2] : vector<4x8x8xf32> to vector<4x8xf32>
    %38 = vector.shape_cast %37 : vector<4x8xf32> to vector<4x8x1xf32>
    %39 = vector.broadcast %38 : vector<4x8x1xf32> to vector<4x8x8xf32>
    %40 = arith.subf %36, %39 : vector<4x8x8xf32>
    %41 = math.exp %40 : vector<4x8x8xf32>
    %cst_20 = arith.constant dense<0.000000e+00> : vector<4x8xf32>
    %42 = vector.multi_reduction <add>, %41, %cst_20 [2] : vector<4x8x8xf32> to vector<4x8xf32>
    %43 = vector.shape_cast %42 : vector<4x8xf32> to vector<4x8x1xf32>
    %44 = tpu.reciprocal %43 {approx = true} : vector<4x8x1xf32> -> vector<4x8x1xf32>
    %45 = vector.broadcast %44 : vector<4x8x1xf32> to vector<4x8x8xf32>
    %46 = arith.mulf %41, %45 : vector<4x8x8xf32>
    %47 = arith.truncf %46 : vector<4x8x8xf32> to vector<4x8x8xbf16>
    %48 = vector.extract_strided_slice %28 {offsets = [0, 0, 0], sizes = [4, 8, 8], strides = [1, 1, 1]} : vector<4x8x32xf32> to vector<4x8x8xf32>
    %49 = arith.truncf %48 : vector<4x8x8xf32> to vector<4x8x8xbf16>
    "tpu.trace_start"() <{level = 10 : i32, message = "bqk,bkd->bqd"}> : () -> ()
    %cst_21 = arith.constant dense<0.000000e+00> : vector<4x8x8xf32>
    %50 = tpu.matmul %47, %49, %cst_21 {dimension_numbers = #tpu.dot_dimension_numbers<[2], [1], [1], [2], [0, 0, 0, 1, 1, 2], [0], [0]>} : vector<4x8x8xbf16>, vector<4x8x8xbf16>, vector<4x8x8xf32> -> vector<4x8x8xf32>
    "tpu.trace_stop"() : () -> ()
    %51 = vector.extract_strided_slice %26 {offsets = [0, 0, 8], sizes = [4, 8, 8], strides = [1, 1, 1]} : vector<4x8x32xf32> to vector<4x8x8xf32>
    %52 = arith.truncf %51 : vector<4x8x8xf32> to vector<4x8x8xbf16>
    %53 = vector.extract_strided_slice %27 {offsets = [0, 0, 8], sizes = [4, 8, 8], strides = [1, 1, 1]} : vector<4x8x32xf32> to vector<4x8x8xf32>
    %54 = arith.truncf %53 : vector<4x8x8xf32> to vector<4x8x8xbf16>
    "tpu.trace_start"() <{level = 10 : i32, message = "bqd,bkd->bqk"}> : () -> ()
    %cst_22 = arith.constant dense<0.000000e+00> : vector<4x8x8xf32>
    %55 = tpu.matmul %52, %54, %cst_22 {dimension_numbers = #tpu.dot_dimension_numbers<[2], [2], [1], [1], [0, 0, 0, 1, 1, 1], [0], [0]>} : vector<4x8x8xbf16>, vector<4x8x8xbf16>, vector<4x8x8xf32> -> vector<4x8x8xf32>
    "tpu.trace_stop"() : () -> ()
    %56 = vector.shape_cast %10 : vector<8x8xf32> to vector<1x8x8xf32>
    %57 = vector.broadcast %56 : vector<1x8x8xf32> to vector<4x8x8xf32>
    %58 = arith.addf %55, %57 : vector<4x8x8xf32>
    %cst_23 = arith.constant dense<0xFF800000> : vector<4x8xf32>
    %59 = vector.multi_reduction <maximumf>, %58, %cst_23 [2] : vector<4x8x8xf32> to vector<4x8xf32>
    %60 = vector.shape_cast %59 : vector<4x8xf32> to vector<4x8x1xf32>
    %61 = vector.broadcast %60 : vector<4x8x1xf32> to vector<4x8x8xf32>
    %62 = arith.subf %58, %61 : vector<4x8x8xf32>
    %63 = math.exp %62 : vector<4x8x8xf32>
    %cst_24 = arith.constant dense<0.000000e+00> : vector<4x8xf32>
    %64 = vector.multi_reduction <add>, %63, %cst_24 [2] : vector<4x8x8xf32> to vector<4x8xf32>
    %65 = vector.shape_cast %64 : vector<4x8xf32> to vector<4x8x1xf32>
    %66 = tpu.reciprocal %65 {approx = true} : vector<4x8x1xf32> -> vector<4x8x1xf32>
    %67 = vector.broadcast %66 : vector<4x8x1xf32> to vector<4x8x8xf32>
    %68 = arith.mulf %63, %67 : vector<4x8x8xf32>
    %69 = arith.truncf %68 : vector<4x8x8xf32> to vector<4x8x8xbf16>
    %70 = vector.extract_strided_slice %28 {offsets = [0, 0, 8], sizes = [4, 8, 8], strides = [1, 1, 1]} : vector<4x8x32xf32> to vector<4x8x8xf32>
    %71 = arith.truncf %70 : vector<4x8x8xf32> to vector<4x8x8xbf16>
    "tpu.trace_start"() <{level = 10 : i32, message = "bqk,bkd->bqd"}> : () -> ()
    %cst_25 = arith.constant dense<0.000000e+00> : vector<4x8x8xf32>
    %72 = tpu.matmul %69, %71, %cst_25 {dimension_numbers = #tpu.dot_dimension_numbers<[2], [1], [1], [2], [0, 0, 0, 1, 1, 2], [0], [0]>} : vector<4x8x8xbf16>, vector<4x8x8xbf16>, vector<4x8x8xf32> -> vector<4x8x8xf32>
    "tpu.trace_stop"() : () -> ()
    %73 = vector.extract_strided_slice %26 {offsets = [0, 0, 16], sizes = [4, 8, 8], strides = [1, 1, 1]} : vector<4x8x32xf32> to vector<4x8x8xf32>
    %74 = arith.truncf %73 : vector<4x8x8xf32> to vector<4x8x8xbf16>
    %75 = vector.extract_strided_slice %27 {offsets = [0, 0, 16], sizes = [4, 8, 8], strides = [1, 1, 1]} : vector<4x8x32xf32> to vector<4x8x8xf32>
    %76 = arith.truncf %75 : vector<4x8x8xf32> to vector<4x8x8xbf16>
    "tpu.trace_start"() <{level = 10 : i32, message = "bqd,bkd->bqk"}> : () -> ()
    %cst_26 = arith.constant dense<0.000000e+00> : vector<4x8x8xf32>
    %77 = tpu.matmul %74, %76, %cst_26 {dimension_numbers = #tpu.dot_dimension_numbers<[2], [2], [1], [1], [0, 0, 0, 1, 1, 1], [0], [0]>} : vector<4x8x8xbf16>, vector<4x8x8xbf16>, vector<4x8x8xf32> -> vector<4x8x8xf32>
    "tpu.trace_stop"() : () -> ()
    %78 = vector.shape_cast %10 : vector<8x8xf32> to vector<1x8x8xf32>
    %79 = vector.broadcast %78 : vector<1x8x8xf32> to vector<4x8x8xf32>
    %80 = arith.addf %77, %79 : vector<4x8x8xf32>
    %cst_27 = arith.constant dense<0xFF800000> : vector<4x8xf32>
    %81 = vector.multi_reduction <maximumf>, %80, %cst_27 [2] : vector<4x8x8xf32> to vector<4x8xf32>
    %82 = vector.shape_cast %81 : vector<4x8xf32> to vector<4x8x1xf32>
    %83 = vector.broadcast %82 : vector<4x8x1xf32> to vector<4x8x8xf32>
    %84 = arith.subf %80, %83 : vector<4x8x8xf32>
    %85 = math.exp %84 : vector<4x8x8xf32>
    %cst_28 = arith.constant dense<0.000000e+00> : vector<4x8xf32>
    %86 = vector.multi_reduction <add>, %85, %cst_28 [2] : vector<4x8x8xf32> to vector<4x8xf32>
    %87 = vector.shape_cast %86 : vector<4x8xf32> to vector<4x8x1xf32>
    %88 = tpu.reciprocal %87 {approx = true} : vector<4x8x1xf32> -> vector<4x8x1xf32>
    %89 = vector.broadcast %88 : vector<4x8x1xf32> to vector<4x8x8xf32>
    %90 = arith.mulf %85, %89 : vector<4x8x8xf32>
    %91 = arith.truncf %90 : vector<4x8x8xf32> to vector<4x8x8xbf16>
    %92 = vector.extract_strided_slice %28 {offsets = [0, 0, 16], sizes = [4, 8, 8], strides = [1, 1, 1]} : vector<4x8x32xf32> to vector<4x8x8xf32>
    %93 = arith.truncf %92 : vector<4x8x8xf32> to vector<4x8x8xbf16>
    "tpu.trace_start"() <{level = 10 : i32, message = "bqk,bkd->bqd"}> : () -> ()
    %cst_29 = arith.constant dense<0.000000e+00> : vector<4x8x8xf32>
    %94 = tpu.matmul %91, %93, %cst_29 {dimension_numbers = #tpu.dot_dimension_numbers<[2], [1], [1], [2], [0, 0, 0, 1, 1, 2], [0], [0]>} : vector<4x8x8xbf16>, vector<4x8x8xbf16>, vector<4x8x8xf32> -> vector<4x8x8xf32>
    "tpu.trace_stop"() : () -> ()
    %95 = vector.extract_strided_slice %26 {offsets = [0, 0, 24], sizes = [4, 8, 8], strides = [1, 1, 1]} : vector<4x8x32xf32> to vector<4x8x8xf32>
    %96 = arith.truncf %95 : vector<4x8x8xf32> to vector<4x8x8xbf16>
    %97 = vector.extract_strided_slice %27 {offsets = [0, 0, 24], sizes = [4, 8, 8], strides = [1, 1, 1]} : vector<4x8x32xf32> to vector<4x8x8xf32>
    %98 = arith.truncf %97 : vector<4x8x8xf32> to vector<4x8x8xbf16>
    "tpu.trace_start"() <{level = 10 : i32, message = "bqd,bkd->bqk"}> : () -> ()
    %cst_30 = arith.constant dense<0.000000e+00> : vector<4x8x8xf32>
    %99 = tpu.matmul %96, %98, %cst_30 {dimension_numbers = #tpu.dot_dimension_numbers<[2], [2], [1], [1], [0, 0, 0, 1, 1, 1], [0], [0]>} : vector<4x8x8xbf16>, vector<4x8x8xbf16>, vector<4x8x8xf32> -> vector<4x8x8xf32>
    "tpu.trace_stop"() : () -> ()
    %100 = vector.shape_cast %10 : vector<8x8xf32> to vector<1x8x8xf32>
    %101 = vector.broadcast %100 : vector<1x8x8xf32> to vector<4x8x8xf32>
    %102 = arith.addf %99, %101 : vector<4x8x8xf32>
    %cst_31 = arith.constant dense<0xFF800000> : vector<4x8xf32>
    %103 = vector.multi_reduction <maximumf>, %102, %cst_31 [2] : vector<4x8x8xf32> to vector<4x8xf32>
    %104 = vector.shape_cast %103 : vector<4x8xf32> to vector<4x8x1xf32>
    %105 = vector.broadcast %104 : vector<4x8x1xf32> to vector<4x8x8xf32>
    %106 = arith.subf %102, %105 : vector<4x8x8xf32>
    %107 = math.exp %106 : vector<4x8x8xf32>
    %cst_32 = arith.constant dense<0.000000e+00> : vector<4x8xf32>
    %108 = vector.multi_reduction <add>, %107, %cst_32 [2] : vector<4x8x8xf32> to vector<4x8xf32>
    %109 = vector.shape_cast %108 : vector<4x8xf32> to vector<4x8x1xf32>
    %110 = tpu.reciprocal %109 {approx = true} : vector<4x8x1xf32> -> vector<4x8x1xf32>
    %111 = vector.broadcast %110 : vector<4x8x1xf32> to vector<4x8x8xf32>
    %112 = arith.mulf %107, %111 : vector<4x8x8xf32>
    %113 = arith.truncf %112 : vector<4x8x8xf32> to vector<4x8x8xbf16>
    %114 = vector.extract_strided_slice %28 {offsets = [0, 0, 24], sizes = [4, 8, 8], strides = [1, 1, 1]} : vector<4x8x32xf32> to vector<4x8x8xf32>
    %115 = arith.truncf %114 : vector<4x8x8xf32> to vector<4x8x8xbf16>
    "tpu.trace_start"() <{level = 10 : i32, message = "bqk,bkd->bqd"}> : () -> ()
    %cst_33 = arith.constant dense<0.000000e+00> : vector<4x8x8xf32>
    %116 = tpu.matmul %113, %115, %cst_33 {dimension_numbers = #tpu.dot_dimension_numbers<[2], [1], [1], [2], [0, 0, 0, 1, 1, 2], [0], [0]>} : vector<4x8x8xbf16>, vector<4x8x8xbf16>, vector<4x8x8xf32> -> vector<4x8x8xf32>
    "tpu.trace_stop"() : () -> ()
    %117 = tpu.concatenate %50, %72, %94, %116 in 2 : vector<4x8x8xf32>, vector<4x8x8xf32>, vector<4x8x8xf32>, vector<4x8x8xf32> -> vector<4x8x32xf32>
    %118 = vector.shape_cast %117 : vector<4x8x32xf32> to vector<32x32xf32>
    %119 = arith.truncf %118 : vector<32x32xf32> to vector<32x32xbf16>
    %cst_34 = arith.constant dense<0.000000e+00> : vector<32x32xf32>
    %120 = tpu.matmul %119, %23, %cst_34 {dimension_numbers = #tpu.dot_dimension_numbers<[1], [0], [0], [1], [0, 0, 1, 1], [], []>} : vector<32x32xbf16>, vector<32x32xbf16>, vector<32x32xf32> -> vector<32x32xf32>
    %121 = vector.broadcast %25 : vector<1x32xf32> to vector<32x32xf32>
    %122 = arith.addf %120, %121 : vector<32x32xf32>
    %123 = arith.addf %122, %3 : vector<32x32xf32>
    %c0_35 = arith.constant 0 : index
    %c0_36 = arith.constant 0 : index
    %c0_37 = arith.constant 0 : index
    %124 = vector.load %arg8[%c0_35, %c0_36, %c0_37] : memref<1x1x32xf32, #tpu.memory_space<vmem>>, vector<1x1x32xf32>
    %125 = vector.shape_cast %124 : vector<1x1x32xf32> to vector<1x32xf32>
    %c0_38 = arith.constant 0 : index
    %c0_39 = arith.constant 0 : index
    %c0_40 = arith.constant 0 : index
    %126 = vector.load %arg9[%c0_38, %c0_39, %c0_40] : memref<1x1x32xf32, #tpu.memory_space<vmem>>, vector<1x1x32xf32>
    %127 = vector.shape_cast %126 : vector<1x1x32xf32> to vector<1x32xf32>
    %cst_41 = arith.constant dense<0.000000e+00> : vector<32xf32>
    %128 = vector.multi_reduction <add>, %123, %cst_41 [1] : vector<32x32xf32> to vector<32xf32>
    %129 = vector.shape_cast %128 : vector<32xf32> to vector<32x1xf32>
    %cst_42 = arith.constant 3.200000e+01 : f32
    %130 = vector.broadcast %cst_42 : f32 to vector<32x1xf32>
    %131 = arith.divf %129, %130 : vector<32x1xf32>
    %132 = vector.broadcast %131 : vector<32x1xf32> to vector<32x32xf32>
    %133 = arith.subf %123, %132 : vector<32x32xf32>
    %134 = arith.mulf %133, %133 : vector<32x32xf32>
    %cst_43 = arith.constant dense<0.000000e+00> : vector<32xf32>
    %135 = vector.multi_reduction <add>, %134, %cst_43 [1] : vector<32x32xf32> to vector<32xf32>
    %136 = vector.shape_cast %135 : vector<32xf32> to vector<32x1xf32>
    %cst_44 = arith.constant 3.200000e+01 : f32
    %137 = vector.broadcast %cst_44 : f32 to vector<32x1xf32>
    %138 = arith.divf %136, %137 : vector<32x1xf32>
    %139 = vector.broadcast %131 : vector<32x1xf32> to vector<32x32xf32>
    %140 = arith.subf %123, %139 : vector<32x32xf32>
    %cst_45 = arith.constant 9.99999974E-6 : f32
    %141 = vector.broadcast %cst_45 : f32 to vector<32x1xf32>
    %142 = arith.addf %138, %141 : vector<32x1xf32>
    %143 = math.rsqrt %142 : vector<32x1xf32>
    %144 = vector.broadcast %143 : vector<32x1xf32> to vector<32x32xf32>
    %145 = arith.mulf %140, %144 : vector<32x32xf32>
    %146 = vector.broadcast %125 : vector<1x32xf32> to vector<32x32xf32>
    %147 = arith.mulf %145, %146 : vector<32x32xf32>
    %148 = vector.broadcast %127 : vector<1x32xf32> to vector<32x32xf32>
    %149 = arith.addf %147, %148 : vector<32x32xf32>
    %150 = arith.truncf %149 : vector<32x32xf32> to vector<32x32xbf16>
    %c0_46 = arith.constant 0 : index
    %c0_47 = arith.constant 0 : index
    %c0_48 = arith.constant 0 : index
    %151 = vector.load %arg10[%c0_46, %c0_47, %c0_48] : memref<1x32x32xbf16, #tpu.memory_space<vmem>>, vector<1x32x32xbf16>
    %152 = vector.shape_cast %151 : vector<1x32x32xbf16> to vector<32x32xbf16>
    %cst_49 = arith.constant dense<0.000000e+00> : vector<32x32xf32>
    %153 = tpu.matmul %150, %152, %cst_49 {dimension_numbers = #tpu.dot_dimension_numbers<[1], [0], [0], [1], [0, 0, 1, 1], [], []>} : vector<32x32xbf16>, vector<32x32xbf16>, vector<32x32xf32> -> vector<32x32xf32>
    %c0_50 = arith.constant 0 : index
    %c0_51 = arith.constant 0 : index
    %c0_52 = arith.constant 0 : index
    %154 = vector.load %arg11[%c0_50, %c0_51, %c0_52] : memref<1x1x32xf32, #tpu.memory_space<vmem>>, vector<1x1x32xf32>
    %155 = vector.shape_cast %154 : vector<1x1x32xf32> to vector<1x32xf32>
    %156 = vector.broadcast %155 : vector<1x32xf32> to vector<32x32xf32>
    %157 = arith.addf %153, %156 : vector<32x32xf32>
    %158 = arith.truncf %4 : vector<32x32xf32> to vector<32x32xbf16>
    %c0_53 = arith.constant 0 : index
    %c0_54 = arith.constant 0 : index
    %c0_55 = arith.constant 0 : index
    %159 = vector.load %arg12[%c0_53, %c0_54, %c0_55] : memref<1x32x64xbf16, #tpu.memory_space<vmem>>, vector<1x32x64xbf16>
    %160 = vector.shape_cast %159 : vector<1x32x64xbf16> to vector<32x64xbf16>
    %cst_56 = arith.constant dense<0.000000e+00> : vector<32x64xf32>
    %161 = tpu.matmul %158, %160, %cst_56 {dimension_numbers = #tpu.dot_dimension_numbers<[1], [0], [0], [1], [0, 0, 1, 1], [], []>} : vector<32x32xbf16>, vector<32x64xbf16>, vector<32x64xf32> -> vector<32x64xf32>
    %c0_57 = arith.constant 0 : index
    %c0_58 = arith.constant 0 : index
    %c0_59 = arith.constant 0 : index
    %162 = vector.load %arg13[%c0_57, %c0_58, %c0_59] : memref<1x1x64xf32, #tpu.memory_space<vmem>>, vector<1x1x64xf32>
    %163 = vector.shape_cast %162 : vector<1x1x64xf32> to vector<1x64xf32>
    %164 = vector.broadcast %163 : vector<1x64xf32> to vector<32x64xf32>
    %165 = arith.addf %161, %164 : vector<32x64xf32>
    %166 = vector.extract_strided_slice %165 {offsets = [0, 0], sizes = [32, 32], strides = [1, 1]} : vector<32x64xf32> to vector<32x32xf32>
    %167 = vector.extract_strided_slice %165 {offsets = [0, 32], sizes = [32, 32], strides = [1, 1]} : vector<32x64xf32> to vector<32x32xf32>
    %c0_60 = arith.constant 0 : index
    %c0_61 = arith.constant 0 : index
    %c0_62 = arith.constant 0 : index
    %168 = vector.load %arg14[%c0_60, %c0_61, %c0_62] : memref<1x32x32xbf16, #tpu.memory_space<vmem>>, vector<1x32x32xbf16>
    %169 = vector.shape_cast %168 : vector<1x32x32xbf16> to vector<32x32xbf16>
    %c0_63 = arith.constant 0 : index
    %c0_64 = arith.constant 0 : index
    %c0_65 = arith.constant 0 : index
    %170 = vector.load %arg15[%c0_63, %c0_64, %c0_65] : memref<1x1x32xf32, #tpu.memory_space<vmem>>, vector<1x1x32xf32>
    %171 = vector.shape_cast %170 : vector<1x1x32xf32> to vector<1x32xf32>
    %172 = vector.shape_cast %157 : vector<32x32xf32> to vector<4x8x32xf32>
    %173 = vector.shape_cast %166 : vector<32x32xf32> to vector<4x8x32xf32>
    %174 = vector.shape_cast %167 : vector<32x32xf32> to vector<4x8x32xf32>
    %175 = vector.extract_strided_slice %172 {offsets = [0, 0, 0], sizes = [4, 8, 8], strides = [1, 1, 1]} : vector<4x8x32xf32> to vector<4x8x8xf32>
    %176 = arith.truncf %175 : vector<4x8x8xf32> to vector<4x8x8xbf16>
    %177 = vector.extract_strided_slice %173 {offsets = [0, 0, 0], sizes = [4, 8, 8], strides = [1, 1, 1]} : vector<4x8x32xf32> to vector<4x8x8xf32>
    %178 = arith.truncf %177 : vector<4x8x8xf32> to vector<4x8x8xbf16>
    "tpu.trace_start"() <{level = 10 : i32, message = "bqd,bkd->bqk"}> : () -> ()
    %cst_66 = arith.constant dense<0.000000e+00> : vector<4x8x8xf32>
    %179 = tpu.matmul %176, %178, %cst_66 {dimension_numbers = #tpu.dot_dimension_numbers<[2], [2], [1], [1], [0, 0, 0, 1, 1, 1], [0], [0]>} : vector<4x8x8xbf16>, vector<4x8x8xbf16>, vector<4x8x8xf32> -> vector<4x8x8xf32>
    "tpu.trace_stop"() : () -> ()
    %cst_67 = arith.constant dense<0xFF800000> : vector<4x8xf32>
    %180 = vector.multi_reduction <maximumf>, %179, %cst_67 [2] : vector<4x8x8xf32> to vector<4x8xf32>
    %181 = vector.shape_cast %180 : vector<4x8xf32> to vector<4x8x1xf32>
    %182 = vector.broadcast %181 : vector<4x8x1xf32> to vector<4x8x8xf32>
    %183 = arith.subf %179, %182 : vector<4x8x8xf32>
    %184 = math.exp %183 : vector<4x8x8xf32>
    %cst_68 = arith.constant dense<0.000000e+00> : vector<4x8xf32>
    %185 = vector.multi_reduction <add>, %184, %cst_68 [2] : vector<4x8x8xf32> to vector<4x8xf32>
    %186 = vector.shape_cast %185 : vector<4x8xf32> to vector<4x8x1xf32>
    %187 = tpu.reciprocal %186 {approx = true} : vector<4x8x1xf32> -> vector<4x8x1xf32>
    %188 = vector.broadcast %187 : vector<4x8x1xf32> to vector<4x8x8xf32>
    %189 = arith.mulf %184, %188 : vector<4x8x8xf32>
    %190 = arith.truncf %189 : vector<4x8x8xf32> to vector<4x8x8xbf16>
    %191 = vector.extract_strided_slice %174 {offsets = [0, 0, 0], sizes = [4, 8, 8], strides = [1, 1, 1]} : vector<4x8x32xf32> to vector<4x8x8xf32>
    %192 = arith.truncf %191 : vector<4x8x8xf32> to vector<4x8x8xbf16>
    "tpu.trace_start"() <{level = 10 : i32, message = "bqk,bkd->bqd"}> : () -> ()
    %cst_69 = arith.constant dense<0.000000e+00> : vector<4x8x8xf32>
    %193 = tpu.matmul %190, %192, %cst_69 {dimension_numbers = #tpu.dot_dimension_numbers<[2], [1], [1], [2], [0, 0, 0, 1, 1, 2], [0], [0]>} : vector<4x8x8xbf16>, vector<4x8x8xbf16>, vector<4x8x8xf32> -> vector<4x8x8xf32>
    "tpu.trace_stop"() : () -> ()
    %194 = vector.extract_strided_slice %172 {offsets = [0, 0, 8], sizes = [4, 8, 8], strides = [1, 1, 1]} : vector<4x8x32xf32> to vector<4x8x8xf32>
    %195 = arith.truncf %194 : vector<4x8x8xf32> to vector<4x8x8xbf16>
    %196 = vector.extract_strided_slice %173 {offsets = [0, 0, 8], sizes = [4, 8, 8], strides = [1, 1, 1]} : vector<4x8x32xf32> to vector<4x8x8xf32>
    %197 = arith.truncf %196 : vector<4x8x8xf32> to vector<4x8x8xbf16>
    "tpu.trace_start"() <{level = 10 : i32, message = "bqd,bkd->bqk"}> : () -> ()
    %cst_70 = arith.constant dense<0.000000e+00> : vector<4x8x8xf32>
    %198 = tpu.matmul %195, %197, %cst_70 {dimension_numbers = #tpu.dot_dimension_numbers<[2], [2], [1], [1], [0, 0, 0, 1, 1, 1], [0], [0]>} : vector<4x8x8xbf16>, vector<4x8x8xbf16>, vector<4x8x8xf32> -> vector<4x8x8xf32>
    "tpu.trace_stop"() : () -> ()
    %cst_71 = arith.constant dense<0xFF800000> : vector<4x8xf32>
    %199 = vector.multi_reduction <maximumf>, %198, %cst_71 [2] : vector<4x8x8xf32> to vector<4x8xf32>
    %200 = vector.shape_cast %199 : vector<4x8xf32> to vector<4x8x1xf32>
    %201 = vector.broadcast %200 : vector<4x8x1xf32> to vector<4x8x8xf32>
    %202 = arith.subf %198, %201 : vector<4x8x8xf32>
    %203 = math.exp %202 : vector<4x8x8xf32>
    %cst_72 = arith.constant dense<0.000000e+00> : vector<4x8xf32>
    %204 = vector.multi_reduction <add>, %203, %cst_72 [2] : vector<4x8x8xf32> to vector<4x8xf32>
    %205 = vector.shape_cast %204 : vector<4x8xf32> to vector<4x8x1xf32>
    %206 = tpu.reciprocal %205 {approx = true} : vector<4x8x1xf32> -> vector<4x8x1xf32>
    %207 = vector.broadcast %206 : vector<4x8x1xf32> to vector<4x8x8xf32>
    %208 = arith.mulf %203, %207 : vector<4x8x8xf32>
    %209 = arith.truncf %208 : vector<4x8x8xf32> to vector<4x8x8xbf16>
    %210 = vector.extract_strided_slice %174 {offsets = [0, 0, 8], sizes = [4, 8, 8], strides = [1, 1, 1]} : vector<4x8x32xf32> to vector<4x8x8xf32>
    %211 = arith.truncf %210 : vector<4x8x8xf32> to vector<4x8x8xbf16>
    "tpu.trace_start"() <{level = 10 : i32, message = "bqk,bkd->bqd"}> : () -> ()
    %cst_73 = arith.constant dense<0.000000e+00> : vector<4x8x8xf32>
    %212 = tpu.matmul %209, %211, %cst_73 {dimension_numbers = #tpu.dot_dimension_numbers<[2], [1], [1], [2], [0, 0, 0, 1, 1, 2], [0], [0]>} : vector<4x8x8xbf16>, vector<4x8x8xbf16>, vector<4x8x8xf32> -> vector<4x8x8xf32>
    "tpu.trace_stop"() : () -> ()
    %213 = vector.extract_strided_slice %172 {offsets = [0, 0, 16], sizes = [4, 8, 8], strides = [1, 1, 1]} : vector<4x8x32xf32> to vector<4x8x8xf32>
    %214 = arith.truncf %213 : vector<4x8x8xf32> to vector<4x8x8xbf16>
    %215 = vector.extract_strided_slice %173 {offsets = [0, 0, 16], sizes = [4, 8, 8], strides = [1, 1, 1]} : vector<4x8x32xf32> to vector<4x8x8xf32>
    %216 = arith.truncf %215 : vector<4x8x8xf32> to vector<4x8x8xbf16>
    "tpu.trace_start"() <{level = 10 : i32, message = "bqd,bkd->bqk"}> : () -> ()
    %cst_74 = arith.constant dense<0.000000e+00> : vector<4x8x8xf32>
    %217 = tpu.matmul %214, %216, %cst_74 {dimension_numbers = #tpu.dot_dimension_numbers<[2], [2], [1], [1], [0, 0, 0, 1, 1, 1], [0], [0]>} : vector<4x8x8xbf16>, vector<4x8x8xbf16>, vector<4x8x8xf32> -> vector<4x8x8xf32>
    "tpu.trace_stop"() : () -> ()
    %cst_75 = arith.constant dense<0xFF800000> : vector<4x8xf32>
    %218 = vector.multi_reduction <maximumf>, %217, %cst_75 [2] : vector<4x8x8xf32> to vector<4x8xf32>
    %219 = vector.shape_cast %218 : vector<4x8xf32> to vector<4x8x1xf32>
    %220 = vector.broadcast %219 : vector<4x8x1xf32> to vector<4x8x8xf32>
    %221 = arith.subf %217, %220 : vector<4x8x8xf32>
    %222 = math.exp %221 : vector<4x8x8xf32>
    %cst_76 = arith.constant dense<0.000000e+00> : vector<4x8xf32>
    %223 = vector.multi_reduction <add>, %222, %cst_76 [2] : vector<4x8x8xf32> to vector<4x8xf32>
    %224 = vector.shape_cast %223 : vector<4x8xf32> to vector<4x8x1xf32>
    %225 = tpu.reciprocal %224 {approx = true} : vector<4x8x1xf32> -> vector<4x8x1xf32>
    %226 = vector.broadcast %225 : vector<4x8x1xf32> to vector<4x8x8xf32>
    %227 = arith.mulf %222, %226 : vector<4x8x8xf32>
    %228 = arith.truncf %227 : vector<4x8x8xf32> to vector<4x8x8xbf16>
    %229 = vector.extract_strided_slice %174 {offsets = [0, 0, 16], sizes = [4, 8, 8], strides = [1, 1, 1]} : vector<4x8x32xf32> to vector<4x8x8xf32>
    %230 = arith.truncf %229 : vector<4x8x8xf32> to vector<4x8x8xbf16>
    "tpu.trace_start"() <{level = 10 : i32, message = "bqk,bkd->bqd"}> : () -> ()
    %cst_77 = arith.constant dense<0.000000e+00> : vector<4x8x8xf32>
    %231 = tpu.matmul %228, %230, %cst_77 {dimension_numbers = #tpu.dot_dimension_numbers<[2], [1], [1], [2], [0, 0, 0, 1, 1, 2], [0], [0]>} : vector<4x8x8xbf16>, vector<4x8x8xbf16>, vector<4x8x8xf32> -> vector<4x8x8xf32>
    "tpu.trace_stop"() : () -> ()
    %232 = vector.extract_strided_slice %172 {offsets = [0, 0, 24], sizes = [4, 8, 8], strides = [1, 1, 1]} : vector<4x8x32xf32> to vector<4x8x8xf32>
    %233 = arith.truncf %232 : vector<4x8x8xf32> to vector<4x8x8xbf16>
    %234 = vector.extract_strided_slice %173 {offsets = [0, 0, 24], sizes = [4, 8, 8], strides = [1, 1, 1]} : vector<4x8x32xf32> to vector<4x8x8xf32>
    %235 = arith.truncf %234 : vector<4x8x8xf32> to vector<4x8x8xbf16>
    "tpu.trace_start"() <{level = 10 : i32, message = "bqd,bkd->bqk"}> : () -> ()
    %cst_78 = arith.constant dense<0.000000e+00> : vector<4x8x8xf32>
    %236 = tpu.matmul %233, %235, %cst_78 {dimension_numbers = #tpu.dot_dimension_numbers<[2], [2], [1], [1], [0, 0, 0, 1, 1, 1], [0], [0]>} : vector<4x8x8xbf16>, vector<4x8x8xbf16>, vector<4x8x8xf32> -> vector<4x8x8xf32>
    "tpu.trace_stop"() : () -> ()
    %cst_79 = arith.constant dense<0xFF800000> : vector<4x8xf32>
    %237 = vector.multi_reduction <maximumf>, %236, %cst_79 [2] : vector<4x8x8xf32> to vector<4x8xf32>
    %238 = vector.shape_cast %237 : vector<4x8xf32> to vector<4x8x1xf32>
    %239 = vector.broadcast %238 : vector<4x8x1xf32> to vector<4x8x8xf32>
    %240 = arith.subf %236, %239 : vector<4x8x8xf32>
    %241 = math.exp %240 : vector<4x8x8xf32>
    %cst_80 = arith.constant dense<0.000000e+00> : vector<4x8xf32>
    %242 = vector.multi_reduction <add>, %241, %cst_80 [2] : vector<4x8x8xf32> to vector<4x8xf32>
    %243 = vector.shape_cast %242 : vector<4x8xf32> to vector<4x8x1xf32>
    %244 = tpu.reciprocal %243 {approx = true} : vector<4x8x1xf32> -> vector<4x8x1xf32>
    %245 = vector.broadcast %244 : vector<4x8x1xf32> to vector<4x8x8xf32>
    %246 = arith.mulf %241, %245 : vector<4x8x8xf32>
    %247 = arith.truncf %246 : vector<4x8x8xf32> to vector<4x8x8xbf16>
    %248 = vector.extract_strided_slice %174 {offsets = [0, 0, 24], sizes = [4, 8, 8], strides = [1, 1, 1]} : vector<4x8x32xf32> to vector<4x8x8xf32>
    %249 = arith.truncf %248 : vector<4x8x8xf32> to vector<4x8x8xbf16>
    "tpu.trace_start"() <{level = 10 : i32, message = "bqk,bkd->bqd"}> : () -> ()
    %cst_81 = arith.constant dense<0.000000e+00> : vector<4x8x8xf32>
    %250 = tpu.matmul %247, %249, %cst_81 {dimension_numbers = #tpu.dot_dimension_numbers<[2], [1], [1], [2], [0, 0, 0, 1, 1, 2], [0], [0]>} : vector<4x8x8xbf16>, vector<4x8x8xbf16>, vector<4x8x8xf32> -> vector<4x8x8xf32>
    "tpu.trace_stop"() : () -> ()
    %251 = tpu.concatenate %193, %212, %231, %250 in 2 : vector<4x8x8xf32>, vector<4x8x8xf32>, vector<4x8x8xf32>, vector<4x8x8xf32> -> vector<4x8x32xf32>
    %252 = vector.shape_cast %251 : vector<4x8x32xf32> to vector<32x32xf32>
    %253 = arith.truncf %252 : vector<32x32xf32> to vector<32x32xbf16>
    %cst_82 = arith.constant dense<0.000000e+00> : vector<32x32xf32>
    %254 = tpu.matmul %253, %169, %cst_82 {dimension_numbers = #tpu.dot_dimension_numbers<[1], [0], [0], [1], [0, 0, 1, 1], [], []>} : vector<32x32xbf16>, vector<32x32xbf16>, vector<32x32xf32> -> vector<32x32xf32>
    %255 = vector.broadcast %171 : vector<1x32xf32> to vector<32x32xf32>
    %256 = arith.addf %254, %255 : vector<32x32xf32>
    %257 = arith.addf %256, %149 : vector<32x32xf32>
    %c0_83 = arith.constant 0 : index
    %c0_84 = arith.constant 0 : index
    %c0_85 = arith.constant 0 : index
    %258 = vector.load %arg16[%c0_83, %c0_84, %c0_85] : memref<1x1x32xf32, #tpu.memory_space<vmem>>, vector<1x1x32xf32>
    %259 = vector.shape_cast %258 : vector<1x1x32xf32> to vector<1x32xf32>
    %c0_86 = arith.constant 0 : index
    %c0_87 = arith.constant 0 : index
    %c0_88 = arith.constant 0 : index
    %260 = vector.load %arg17[%c0_86, %c0_87, %c0_88] : memref<1x1x32xf32, #tpu.memory_space<vmem>>, vector<1x1x32xf32>
    %261 = vector.shape_cast %260 : vector<1x1x32xf32> to vector<1x32xf32>
    %cst_89 = arith.constant dense<0.000000e+00> : vector<32xf32>
    %262 = vector.multi_reduction <add>, %257, %cst_89 [1] : vector<32x32xf32> to vector<32xf32>
    %263 = vector.shape_cast %262 : vector<32xf32> to vector<32x1xf32>
    %cst_90 = arith.constant 3.200000e+01 : f32
    %264 = vector.broadcast %cst_90 : f32 to vector<32x1xf32>
    %265 = arith.divf %263, %264 : vector<32x1xf32>
    %266 = vector.broadcast %265 : vector<32x1xf32> to vector<32x32xf32>
    %267 = arith.subf %257, %266 : vector<32x32xf32>
    %268 = arith.mulf %267, %267 : vector<32x32xf32>
    %cst_91 = arith.constant dense<0.000000e+00> : vector<32xf32>
    %269 = vector.multi_reduction <add>, %268, %cst_91 [1] : vector<32x32xf32> to vector<32xf32>
    %270 = vector.shape_cast %269 : vector<32xf32> to vector<32x1xf32>
    %cst_92 = arith.constant 3.200000e+01 : f32
    %271 = vector.broadcast %cst_92 : f32 to vector<32x1xf32>
    %272 = arith.divf %270, %271 : vector<32x1xf32>
    %273 = vector.broadcast %265 : vector<32x1xf32> to vector<32x32xf32>
    %274 = arith.subf %257, %273 : vector<32x32xf32>
    %cst_93 = arith.constant 9.99999974E-6 : f32
    %275 = vector.broadcast %cst_93 : f32 to vector<32x1xf32>
    %276 = arith.addf %272, %275 : vector<32x1xf32>
    %277 = math.rsqrt %276 : vector<32x1xf32>
    %278 = vector.broadcast %277 : vector<32x1xf32> to vector<32x32xf32>
    %279 = arith.mulf %274, %278 : vector<32x32xf32>
    %280 = vector.broadcast %259 : vector<1x32xf32> to vector<32x32xf32>
    %281 = arith.mulf %279, %280 : vector<32x32xf32>
    %282 = vector.broadcast %261 : vector<1x32xf32> to vector<32x32xf32>
    %283 = arith.addf %281, %282 : vector<32x32xf32>
    %284 = arith.truncf %283 : vector<32x32xf32> to vector<32x32xbf16>
    %c0_94 = arith.constant 0 : index
    %c0_95 = arith.constant 0 : index
    %c0_96 = arith.constant 0 : index
    %285 = vector.load %arg18[%c0_94, %c0_95, %c0_96] : memref<1x32x128xbf16, #tpu.memory_space<vmem>>, vector<1x32x128xbf16>
    %286 = vector.shape_cast %285 : vector<1x32x128xbf16> to vector<32x128xbf16>
    %cst_97 = arith.constant dense<0.000000e+00> : vector<32x128xf32>
    %287 = tpu.matmul %284, %286, %cst_97 {dimension_numbers = #tpu.dot_dimension_numbers<[1], [0], [0], [1], [0, 0, 1, 1], [], []>} : vector<32x32xbf16>, vector<32x128xbf16>, vector<32x128xf32> -> vector<32x128xf32>
    %c0_98 = arith.constant 0 : index
    %c0_99 = arith.constant 0 : index
    %c0_100 = arith.constant 0 : index
    %288 = vector.load %arg19[%c0_98, %c0_99, %c0_100] : memref<1x1x128xf32, #tpu.memory_space<vmem>>, vector<1x1x128xf32>
    %289 = vector.shape_cast %288 : vector<1x1x128xf32> to vector<1x128xf32>
    %290 = vector.broadcast %289 : vector<1x128xf32> to vector<32x128xf32>
    %291 = arith.addf %287, %290 : vector<32x128xf32>
    %cst_101 = arith.constant 0.000000e+00 : f32
    %292 = vector.broadcast %cst_101 : f32 to vector<32x128xf32>
    %293 = arith.maximumf %291, %292 : vector<32x128xf32>
    %294 = arith.truncf %293 : vector<32x128xf32> to vector<32x128xbf16>
    %c0_102 = arith.constant 0 : index
    %c0_103 = arith.constant 0 : index
    %c0_104 = arith.constant 0 : index
    %295 = vector.load %arg20[%c0_102, %c0_103, %c0_104] : memref<1x128x32xbf16, #tpu.memory_space<vmem>>, vector<1x128x32xbf16>
    %296 = vector.shape_cast %295 : vector<1x128x32xbf16> to vector<128x32xbf16>
    %cst_105 = arith.constant dense<0.000000e+00> : vector<32x32xf32>
    %297 = tpu.matmul %294, %296, %cst_105 {dimension_numbers = #tpu.dot_dimension_numbers<[1], [0], [0], [1], [0, 0, 1, 1], [], []>} : vector<32x128xbf16>, vector<128x32xbf16>, vector<32x32xf32> -> vector<32x32xf32>
    %c0_106 = arith.constant 0 : index
    %c0_107 = arith.constant 0 : index
    %c0_108 = arith.constant 0 : index
    %298 = vector.load %arg21[%c0_106, %c0_107, %c0_108] : memref<1x1x32xf32, #tpu.memory_space<vmem>>, vector<1x1x32xf32>
    %299 = vector.shape_cast %298 : vector<1x1x32xf32> to vector<1x32xf32>
    %300 = vector.broadcast %299 : vector<1x32xf32> to vector<32x32xf32>
    %301 = arith.addf %297, %300 : vector<32x32xf32>
    %302 = arith.addf %301, %283 : vector<32x32xf32>
    %c0_109 = arith.constant 0 : index
    %c0_110 = arith.constant 0 : index
    %c0_111 = arith.constant 0 : index
    %303 = vector.load %arg22[%c0_109, %c0_110, %c0_111] : memref<1x1x32xf32, #tpu.memory_space<vmem>>, vector<1x1x32xf32>
    %304 = vector.shape_cast %303 : vector<1x1x32xf32> to vector<1x32xf32>
    %c0_112 = arith.constant 0 : index
    %c0_113 = arith.constant 0 : index
    %c0_114 = arith.constant 0 : index
    %305 = vector.load %arg23[%c0_112, %c0_113, %c0_114] : memref<1x1x32xf32, #tpu.memory_space<vmem>>, vector<1x1x32xf32>
    %306 = vector.shape_cast %305 : vector<1x1x32xf32> to vector<1x32xf32>
    %cst_115 = arith.constant dense<0.000000e+00> : vector<32xf32>
    %307 = vector.multi_reduction <add>, %302, %cst_115 [1] : vector<32x32xf32> to vector<32xf32>
    %308 = vector.shape_cast %307 : vector<32xf32> to vector<32x1xf32>
    %cst_116 = arith.constant 3.200000e+01 : f32
    %309 = vector.broadcast %cst_116 : f32 to vector<32x1xf32>
    %310 = arith.divf %308, %309 : vector<32x1xf32>
    %311 = vector.broadcast %310 : vector<32x1xf32> to vector<32x32xf32>
    %312 = arith.subf %302, %311 : vector<32x32xf32>
    %313 = arith.mulf %312, %312 : vector<32x32xf32>
    %cst_117 = arith.constant dense<0.000000e+00> : vector<32xf32>
    %314 = vector.multi_reduction <add>, %313, %cst_117 [1] : vector<32x32xf32> to vector<32xf32>
    %315 = vector.shape_cast %314 : vector<32xf32> to vector<32x1xf32>
    %cst_118 = arith.constant 3.200000e+01 : f32
    %316 = vector.broadcast %cst_118 : f32 to vector<32x1xf32>
    %317 = arith.divf %315, %316 : vector<32x1xf32>
    %318 = vector.broadcast %310 : vector<32x1xf32> to vector<32x32xf32>
    %319 = arith.subf %302, %318 : vector<32x32xf32>
    %cst_119 = arith.constant 9.99999974E-6 : f32
    %320 = vector.broadcast %cst_119 : f32 to vector<32x1xf32>
    %321 = arith.addf %317, %320 : vector<32x1xf32>
    %322 = math.rsqrt %321 : vector<32x1xf32>
    %323 = vector.broadcast %322 : vector<32x1xf32> to vector<32x32xf32>
    %324 = arith.mulf %319, %323 : vector<32x32xf32>
    %325 = vector.broadcast %304 : vector<1x32xf32> to vector<32x32xf32>
    %326 = arith.mulf %324, %325 : vector<32x32xf32>
    %327 = vector.broadcast %306 : vector<1x32xf32> to vector<32x32xf32>
    %328 = arith.addf %326, %327 : vector<32x32xf32>
    %c0_120 = arith.constant 0 : index
    %c0_121 = arith.constant 0 : index
    %329 = vector.load %arg25[%c0_120, %c0_121] : memref<32x32xf32, #tpu.memory_space<vmem>>, vector<32x32xf32>
    tpu.vector_store %arg25[%c0_120, %c0_121], %328 {strides = array<i32>} : memref<32x32xf32, #tpu.memory_space<vmem>>, vector<32x32xf32>,
    %c1_i32 = arith.constant 1 : i32
    %330 = arith.cmpi eq, %arg1, %c1_i32 : i32
    %331 = arith.extui %330 : i1 to i32
    %c0_i32_122 = arith.constant 0 : i32
    %332 = arith.cmpi ne, %331, %c0_i32_122 : i32
    scf.if %332 {
      %c0_123 = arith.constant 0 : index
      %c0_124 = arith.constant 0 : index
      %333 = vector.load %arg24[%c0_123, %c0_124] : memref<32x32xf32, #tpu.memory_space<vmem>>, vector<32x32xf32>
      tpu.vector_store %arg24[%c0_123, %c0_124], %328 {strides = array<i32>} : memref<32x32xf32, #tpu.memory_space<vmem>>, vector<32x32xf32>,
    } else {
    }
    return
  }
  func.func @transform_0(%arg0: i32, %arg1: i32) -> (i32, i32) {
    %c0_i32 = arith.constant 0 : i32
    %c0_i32_0 = arith.constant 0 : i32
    return %arg0, %c0_i32 : i32, i32
  }
  func.func @transform_1(%arg0: i32, %arg1: i32) -> (i32, i32) {
    %c0_i32 = arith.constant 0 : i32
    %c0_i32_0 = arith.constant 0 : i32
    return %arg0, %c0_i32 : i32, i32
  }
  func.func @transform_2(%arg0: i32, %arg1: i32) -> (i32, i32, i32) {
    %c0_i32 = arith.constant 0 : i32
    %c0_i32_0 = arith.constant 0 : i32
    %c0_i32_1 = arith.constant 0 : i32
    return %arg1, %c0_i32, %c0_i32_0 : i32, i32, i32
  }
  func.func @transform_3(%arg0: i32, %arg1: i32) -> (i32, i32, i32) {
    %c0_i32 = arith.constant 0 : i32
    %c0_i32_0 = arith.constant 0 : i32
    %c0_i32_1 = arith.constant 0 : i32
    return %arg1, %c0_i32, %c0_i32_0 : i32, i32, i32
  }
  func.func @transform_4(%arg0: i32, %arg1: i32) -> (i32, i32, i32) {
    %c0_i32 = arith.constant 0 : i32
    %c0_i32_0 = arith.constant 0 : i32
    %c0_i32_1 = arith.constant 0 : i32
    return %arg1, %c0_i32, %c0_i32_0 : i32, i32, i32
  }
  func.func @transform_5(%arg0: i32, %arg1: i32) -> (i32, i32, i32) {
    %c0_i32 = arith.constant 0 : i32
    %c0_i32_0 = arith.constant 0 : i32
    %c0_i32_1 = arith.constant 0 : i32
    return %arg1, %c0_i32, %c0_i32_0 : i32, i32, i32
  }
  func.func @transform_6(%arg0: i32, %arg1: i32) -> (i32, i32, i32) {
    %c0_i32 = arith.constant 0 : i32
    %c0_i32_0 = arith.constant 0 : i32
    %c0_i32_1 = arith.constant 0 : i32
    return %arg1, %c0_i32, %c0_i32_0 : i32, i32, i32
  }
  func.func @transform_7(%arg0: i32, %arg1: i32) -> (i32, i32, i32) {
    %c0_i32 = arith.constant 0 : i32
    %c0_i32_0 = arith.constant 0 : i32
    %c0_i32_1 = arith.constant 0 : i32
    return %arg1, %c0_i32, %c0_i32_0 : i32, i32, i32
  }
  func.func @transform_8(%arg0: i32, %arg1: i32) -> (i32, i32, i32) {
    %c0_i32 = arith.constant 0 : i32
    %c0_i32_0 = arith.constant 0 : i32
    %c0_i32_1 = arith.constant 0 : i32
    return %arg1, %c0_i32, %c0_i32_0 : i32, i32, i32
  }
  func.func @transform_9(%arg0: i32, %arg1: i32) -> (i32, i32, i32) {
    %c0_i32 = arith.constant 0 : i32
    %c0_i32_0 = arith.constant 0 : i32
    %c0_i32_1 = arith.constant 0 : i32
    return %arg1, %c0_i32, %c0_i32_0 : i32, i32, i32
  }
  func.func @transform_10(%arg0: i32, %arg1: i32) -> (i32, i32, i32) {
    %c0_i32 = arith.constant 0 : i32
    %c0_i32_0 = arith.constant 0 : i32
    %c0_i32_1 = arith.constant 0 : i32
    return %arg1, %c0_i32, %c0_i32_0 : i32, i32, i32
  }
  func.func @transform_11(%arg0: i32, %arg1: i32) -> (i32, i32, i32) {
    %c0_i32 = arith.constant 0 : i32
    %c0_i32_0 = arith.constant 0 : i32
    %c0_i32_1 = arith.constant 0 : i32
    return %arg1, %c0_i32, %c0_i32_0 : i32, i32, i32
  }
  func.func @transform_12(%arg0: i32, %arg1: i32) -> (i32, i32, i32) {
    %c0_i32 = arith.constant 0 : i32
    %c0_i32_0 = arith.constant 0 : i32
    %c0_i32_1 = arith.constant 0 : i32
    return %arg1, %c0_i32, %c0_i32_0 : i32, i32, i32
  }
  func.func @transform_13(%arg0: i32, %arg1: i32) -> (i32, i32, i32) {
    %c0_i32 = arith.constant 0 : i32
    %c0_i32_0 = arith.constant 0 : i32
    %c0_i32_1 = arith.constant 0 : i32
    return %arg1, %c0_i32, %c0_i32_0 : i32, i32, i32
  }
  func.func @transform_14(%arg0: i32, %arg1: i32) -> (i32, i32, i32) {
    %c0_i32 = arith.constant 0 : i32
    %c0_i32_0 = arith.constant 0 : i32
    %c0_i32_1 = arith.constant 0 : i32
    return %arg1, %c0_i32, %c0_i32_0 : i32, i32, i32
  }
  func.func @transform_15(%arg0: i32, %arg1: i32) -> (i32, i32, i32) {
    %c0_i32 = arith.constant 0 : i32
    %c0_i32_0 = arith.constant 0 : i32
    %c0_i32_1 = arith.constant 0 : i32
    return %arg1, %c0_i32, %c0_i32_0 : i32, i32, i32
  }
  func.func @transform_16(%arg0: i32, %arg1: i32) -> (i32, i32, i32) {
    %c0_i32 = arith.constant 0 : i32
    %c0_i32_0 = arith.constant 0 : i32
    %c0_i32_1 = arith.constant 0 : i32
    return %arg1, %c0_i32, %c0_i32_0 : i32, i32, i32
  }
  func.func @transform_17(%arg0: i32, %arg1: i32) -> (i32, i32, i32) {
    %c0_i32 = arith.constant 0 : i32
    %c0_i32_0 = arith.constant 0 : i32
    %c0_i32_1 = arith.constant 0 : i32
    return %arg1, %c0_i32, %c0_i32_0 : i32, i32, i32
  }
  func.func @transform_18(%arg0: i32, %arg1: i32) -> (i32, i32, i32) {
    %c0_i32 = arith.constant 0 : i32
    %c0_i32_0 = arith.constant 0 : i32
    %c0_i32_1 = arith.constant 0 : i32
    return %arg1, %c0_i32, %c0_i32_0 : i32, i32, i32
  }
  func.func @transform_19(%arg0: i32, %arg1: i32) -> (i32, i32, i32) {
    %c0_i32 = arith.constant 0 : i32
    %c0_i32_0 = arith.constant 0 : i32
    %c0_i32_1 = arith.constant 0 : i32
    return %arg1, %c0_i32, %c0_i32_0 : i32, i32, i32
  }
  func.func @transform_20(%arg0: i32, %arg1: i32) -> (i32, i32, i32) {
    %c0_i32 = arith.constant 0 : i32
    %c0_i32_0 = arith.constant 0 : i32
    %c0_i32_1 = arith.constant 0 : i32
    return %arg1, %c0_i32, %c0_i32_0 : i32, i32, i32
  }
  func.func @transform_21(%arg0: i32, %arg1: i32) -> (i32, i32, i32) {
    %c0_i32 = arith.constant 0 : i32
    %c0_i32_0 = arith.constant 0 : i32
    %c0_i32_1 = arith.constant 0 : i32
    return %arg1, %c0_i32, %c0_i32_0 : i32, i32, i32
  }
  func.func @transform_22(%arg0: i32, %arg1: i32) -> (i32, i32) {
    %c0_i32 = arith.constant 0 : i32
    %c0_i32_0 = arith.constant 0 : i32
    return %arg0, %c0_i32 : i32, i32
  }
}

</mosaic_0001>

<llo_original>
// kernel: _lambda_.1
$region0: #{_lambda_.1}
  #allocation0 [shape = 'u32[]', space=smem, size = 0x4, offset = 0x4, fixed_abs, tag = 'smem constant byte address 0x4 - core index']
  #allocation1 [shape = 'u32[144,128]{1,0:T(1,128)}', space=vmem, size = 0x12000, scoped, tag = 'internal scratch']
  #allocation2 [shape = 'f32[32,32]{1,0:T(8,128)}', space=vmem, size = 0x4000, scoped, tag = 'scratch operand']
  %s0 = inlined_call_operand.vmem [shape: f32[64,32], index: 0, kind: input, shape index: {}]
  %s1 = inlined_call_operand.vmem [shape: f32[64,32], index: 1, kind: input, shape index: {}]
  %s2 = inlined_call_operand.vmem [shape: bf16[2,32,96], index: 2, kind: input, shape index: {}]
  %s3 = inlined_call_operand.vmem [shape: f32[2,1,96], index: 3, kind: input, shape index: {}]
  %s4 = inlined_call_operand.vmem [shape: bf16[2,32,32], index: 4, kind: input, shape index: {}]
  %s5 = inlined_call_operand.vmem [shape: f32[2,1,32], index: 5, kind: input, shape index: {}]
  %s6 = inlined_call_operand.vmem [shape: f32[2,1,32], index: 6, kind: input, shape index: {}]
  %s7 = inlined_call_operand.vmem [shape: f32[2,1,32], index: 7, kind: input, shape index: {}]
  %s8 = inlined_call_operand.vmem [shape: bf16[2,32,32], index: 8, kind: input, shape index: {}]
  %s9 = inlined_call_operand.vmem [shape: f32[2,1,32], index: 9, kind: input, shape index: {}]
  %s10 = inlined_call_operand.vmem [shape: bf16[2,32,64], index: 10, kind: input, shape index: {}]
  %s11 = inlined_call_operand.hbm [shape: f32[2,1,64], index: 11, kind: input, shape index: {}]
  %s12 = inlined_call_operand.vmem [shape: bf16[2,32,32], index: 12, kind: input, shape index: {}]
  %s13 = inlined_call_operand.hbm [shape: f32[2,1,32], index: 13, kind: input, shape index: {}]
  %s14 = inlined_call_operand.hbm [shape: f32[2,1,32], index: 14, kind: input, shape index: {}]
  %s15 = inlined_call_operand.hbm [shape: f32[2,1,32], index: 15, kind: input, shape index: {}]
  %s16 = inlined_call_operand.vmem [shape: bf16[2,32,128], index: 16, kind: input, shape index: {}]
  %s17 = inlined_call_operand.hbm [shape: f32[2,1,128], index: 17, kind: input, shape index: {}]
  %s18 = inlined_call_operand.vmem [shape: bf16[2,128,32], index: 18, kind: input, shape index: {}]
  %s19 = inlined_call_operand.hbm [shape: f32[2,1,32], index: 19, kind: input, shape index: {}]
  %s20 = inlined_call_operand.hbm [shape: f32[2,1,32], index: 20, kind: input, shape index: {}]
  %s21 = inlined_call_operand.hbm [shape: f32[2,1,32], index: 21, kind: input, shape index: {}]
  %s22 = inlined_call_operand.vmem [shape: f32[64,32], index: 22, kind: output, shape index: {}]
  %s23 = sld [smem:[#allocation0]]
  $region161: #{_lambda_.1} parent=0
    _
  %s25 = ssub.s32 1, %s23
  %s26 = scalar_select 0, %s25, %s23
  $region1: #{_lambda_.1} parent=0
    #allocation3 [shape = 'u8[1024]{0}', space=vmem, size = 0x400, scoped, tag = 'input window, operand 11']
    #allocation4 [shape = 's32[2]{0}', space=sflag, size = 0x8, scoped, tag = 'scoped memory for _lambda_.1']
    #allocation5 [shape = 'u8[1024]{0}', space=vmem, size = 0x400, scoped, tag = 'input window, operand 13']
    #allocation6 [shape = 's32[2]{0}', space=sflag, size = 0x8, scoped, tag = 'scoped memory for _lambda_.1']
    #allocation7 [shape = 'u8[1024]{0}', space=vmem, size = 0x400, scoped, tag = 'input window, operand 14']
    #allocation8 [shape = 'u8[1024]{0}', space=vmem, size = 0x400, scoped, tag = 'input window, operand 15']
    #allocation9 [shape = 's32[2]{0}', space=sflag, size = 0x8, scoped, tag = 'scoped memory for _lambda_.1']
    #allocation10 [shape = 'u8[1024]{0}', space=vmem, size = 0x400, scoped, tag = 'input window, operand 17']
    #allocation11 [shape = 'u8[1024]{0}', space=vmem, size = 0x400, scoped, tag = 'input window, operand 19']
    #allocation12 [shape = 's32[2]{0}', space=sflag, size = 0x8, scoped, tag = 'scoped memory for _lambda_.1']
    #allocation13 [shape = 'u8[1024]{0}', space=vmem, size = 0x400, scoped, tag = 'input window, operand 20']
    #allocation14 [shape = 'u8[1024]{0}', space=vmem, size = 0x400, scoped, tag = 'input window, operand 21']
    #allocation15 [shape = 's32[2]{0}', space=sflag, size = 0x8, scoped, tag = 'scoped memory for _lambda_.1']
    %27 = vsyncpa [#allocation4], 0
    %s28 = scalar_lea.sflag [#allocation4], 1
    %29 = vsyncpa %s28, 0
    %30 = vsyncpa [#allocation6], 0
    %s31 = scalar_lea.sflag [#allocation6], 1
    %32 = vsyncpa %s31, 0
    %33 = vsyncpa [#allocation9], 0
    %s34 = scalar_lea.sflag [#allocation9], 1
    %35 = vsyncpa %s34, 0
    %36 = vsyncpa [#allocation12], 0
    %s37 = scalar_lea.sflag [#allocation12], 1
    %38 = vsyncpa %s37, 0
    %39 = vsyncpa [#allocation15], 0
    %s40 = scalar_lea.sflag [#allocation15], 1
    %41 = vsyncpa %s40, 0
    loop: start=0, step=1, limit=6
    $region2: #{_lambda_.1} parent=1 // loop_pre_header
      _
    $region3: #{_lambda_.1} parent=1 // loop_header
      %s43 = sphi 0, %s47
      %p44 = scmp.ge.s32.totalorder %s43, 6
      %s50 = sphi 0, %s62
      %s51 = sphi 0, %s58
      %s52 = sphi 0, %s50
      %s53 = sphi 0, %s51
      %s54 = sphi 0, %s52
      %s55 = sphi 0, %s53
      %s65 = sphi 0, %s67
      %s68 = sphi 0, %s65
      %s69 = sphi 0, %s68
      %s85 = sphi 0, %s69
      %s91 = sphi 0, %s93
      %s94 = sphi 0, %s91
      %s95 = sphi 0, %s94
      %s111 = sphi 0, %s95
      %s117 = sphi 0, %s119
      %s120 = sphi 0, %s117
      %s121 = sphi 0, %s120
      %s137 = sphi 0, %s121
      %s143 = sphi 0, %s145
      %s146 = sphi 0, %s143
      %s147 = sphi 0, %s146
      %s163 = sphi 0, %s147
      %s169 = sphi 0, %s171
      %s172 = sphi 0, %s169
      %s173 = sphi 0, %s172
      %s189 = sphi 0, %s173
      %s195 = sphi 0, %s197
      %s198 = sphi 0, %s195
      %s199 = sphi 0, %s198
      %s215 = sphi 0, %s199
      %s221 = sphi 0, %s223
      %s224 = sphi 0, %s221
      %s225 = sphi 0, %s224
      %s241 = sphi 0, %s225
      %s247 = sphi 0, %s249
      %s250 = sphi 0, %s247
      %s251 = sphi 0, %s250
      %s267 = sphi 0, %s251
      %s273 = sphi 0, %s275
      %s276 = sphi 0, %s273
      %s277 = sphi 0, %s276
      %s293 = sphi 0, %s277
      %s299 = sphi 0, %s301
      %s302 = sphi 0, %s299
      %s303 = sphi 0, %s302
      %s319 = sphi 0, %s303
      %s325 = sphi 0, %s327
      %s328 = sphi 0, %s325
      %s329 = sphi 0, %s328
      %s345 = sphi 0, %s329
      %s351 = sphi 0, %s353
      %s354 = sphi 0, %s351
      %s355 = sphi 0, %s354
      %s371 = sphi 0, %s355
      %s377 = sphi 0, %s379
      %s380 = sphi 0, %s377
      %s381 = sphi 0, %s380
      %s397 = sphi 0, %s381
      %s403 = sphi 0, %s405
      %s406 = sphi 0, %s403
      %s407 = sphi 0, %s406
      %s423 = sphi 0, %s407
      %s429 = sphi 0, %s431
      %s432 = sphi 0, %s429
      %s433 = sphi 0, %s432
      %s449 = sphi 0, %s433
      %s455 = sphi 0, %s457
      %s458 = sphi 0, %s455
      %s459 = sphi 0, %s458
      %s475 = sphi 0, %s459
      %s481 = sphi 0, %s483
      %s484 = sphi 0, %s481
      %s485 = sphi 0, %s484
      %s501 = sphi 0, %s485
      %s507 = sphi 0, %s509
      %s510 = sphi 0, %s507
      %s511 = sphi 0, %s510
      %s527 = sphi 0, %s511
      %s533 = sphi 0, %s535
      %s536 = sphi 0, %s533
      %s537 = sphi 0, %s536
      %s553 = sphi 0, %s537
      %s559 = sphi 0, %s561
      %s562 = sphi 0, %s559
      %s563 = sphi 0, %s562
      %s579 = sphi 0, %s563
      %s585 = sphi 0, %s587
      %s588 = sphi 0, %s585
      %s589 = sphi 0, %s588
      %s605 = sphi 0, %s589
      %s611 = sphi 0, %s613
      %s614 = sphi 0, %s611
      %s615 = sphi 0, %s614
      %s631 = sphi 0, %s615
      %s637 = sphi 0, %s639
      %s640 = sphi 0, %s637
      %s641 = sphi 0, %s640
      %s657 = sphi 0, %s641
    $region4: #{_lambda_.1} parent=1 // loop_header_branch
      %46 = sbr.rel (%p44) target = $region8
    $region5: #{_lambda_.1} parent=1 // loop_body
      %s48 = ssub.s32 %s43, 1
      %s49 = ssub.s32 %s43, 2
      %s56 = sadd.s32 1, %s51
      %p57 = scmp.ge.s32.totalorder %s56, 2
      %s58 = scalar_select %p57, 0, %s56
      %s59 = sadd.s32 1, %s50
      %s60 = scalar_select %p57, %s59, %s50
      %p61 = scmp.ge.s32.totalorder %s60, 2
      %s62 = scalar_select %p61, 0, %s60
      %s63 = ssub.s32 %s50, %s62
      %p64 = scmp.eq.s32.totalorder %s63, 0
      %s66 = sadd.s32 %s65, 1
      %s67 = scalar_select %p64, %s65, %s66
      %p70 = pneg %p64
      %p71 = scmp.eq.s32.totalorder %s43, 3
      %p72 = por %p70, %p71
      %p73 = scmp.ne.s32.totalorder %s65, %s68
      %p74 = scmp.eq.s32.totalorder %s43, 0
      %p75 = por %p73, %p74
      %p76 = scmp.ne.s32.totalorder %s65, %s68
      %p77 = scmp.eq.s32.totalorder %s48, 3
      %p78 = por %p76, %p77
      %p79 = scmp.ne.s32.totalorder %s68, %s69
      %p80 = scmp.eq.s32.totalorder %s48, 0
      %p81 = por %p79, %p80
      %p82 = scmp.ne.s32.totalorder %s68, %s69
      %p83 = scmp.eq.s32.totalorder %s49, 3
      %p84 = por %p82, %p83
      %p86 = scmp.ne.s32.totalorder %s69, %s85
      %p87 = scmp.eq.s32.totalorder %s49, 0
      %p88 = por %p86, %p87
      %s89 = ssub.s32 %s50, %s62
      %p90 = scmp.eq.s32.totalorder %s89, 0
      %s92 = sadd.s32 %s91, 1
      %s93 = scalar_select %p90, %s91, %s92
      %p96 = pneg %p90
      %p97 = scmp.eq.s32.totalorder %s43, 3
      %p98 = por %p96, %p97
      %p99 = scmp.ne.s32.totalorder %s91, %s94
      %p100 = scmp.eq.s32.totalorder %s43, 0
      %p101 = por %p99, %p100
      %p102 = scmp.ne.s32.totalorder %s91, %s94
      %p103 = scmp.eq.s32.totalorder %s48, 3
      %p104 = por %p102, %p103
      %p105 = scmp.ne.s32.totalorder %s94, %s95
      %p106 = scmp.eq.s32.totalorder %s48, 0
      %p107 = por %p105, %p106
      %p108 = scmp.ne.s32.totalorder %s94, %s95
      %p109 = scmp.eq.s32.totalorder %s49, 3
      %p110 = por %p108, %p109
      %p112 = scmp.ne.s32.totalorder %s95, %s111
      %p113 = scmp.eq.s32.totalorder %s49, 0
      %p114 = por %p112, %p113
      %s115 = ssub.s32 %s51, %s58
      %p116 = scmp.eq.s32.totalorder %s115, 0
      %s118 = sadd.s32 %s117, 1
      %s119 = scalar_select %p116, %s117, %s118
      %p122 = pneg %p116
      %p123 = scmp.eq.s32.totalorder %s43, 3
      %p124 = por %p122, %p123
      %p125 = scmp.ne.s32.totalorder %s117, %s120
      %p126 = scmp.eq.s32.totalorder %s43, 0
      %p127 = por %p125, %p126
      %p128 = scmp.ne.s32.totalorder %s117, %s120
      %p129 = scmp.eq.s32.totalorder %s48, 3
      %p130 = por %p128, %p129
      %p131 = scmp.ne.s32.totalorder %s120, %s121
      %p132 = scmp.eq.s32.totalorder %s48, 0
      %p133 = por %p131, %p132
      %p134 = scmp.ne.s32.totalorder %s120, %s121
      %p135 = scmp.eq.s32.totalorder %s49, 3
      %p136 = por %p134, %p135
      %p138 = scmp.ne.s32.totalorder %s121, %s137
      %p139 = scmp.eq.s32.totalorder %s49, 0
      %p140 = por %p138, %p139
      %s141 = ssub.s32 %s51, %s58
      %p142 = scmp.eq.s32.totalorder %s141, 0
      %s144 = sadd.s32 %s143, 1
      %s145 = scalar_select %p142, %s143, %s144
      %p148 = pneg %p142
      %p149 = scmp.eq.s32.totalorder %s43, 3
      %p150 = por %p148, %p149
      %p151 = scmp.ne.s32.totalorder %s143, %s146
      %p152 = scmp.eq.s32.totalorder %s43, 0
      %p153 = por %p151, %p152
      %p154 = scmp.ne.s32.totalorder %s143, %s146
      %p155 = scmp.eq.s32.totalorder %s48, 3
      %p156 = por %p154, %p155
      %p157 = scmp.ne.s32.totalorder %s146, %s147
      %p158 = scmp.eq.s32.totalorder %s48, 0
      %p159 = por %p157, %p158
      %p160 = scmp.ne.s32.totalorder %s146, %s147
      %p161 = scmp.eq.s32.totalorder %s49, 3
      %p162 = por %p160, %p161
      %p164 = scmp.ne.s32.totalorder %s147, %s163
      %p165 = scmp.eq.s32.totalorder %s49, 0
      %p166 = por %p164, %p165
      %s167 = ssub.s32 %s51, %s58
      %p168 = scmp.eq.s32.totalorder %s167, 0
      %s170 = sadd.s32 %s169, 1
      %s171 = scalar_select %p168, %s169, %s170
      %p174 = pneg %p168
      %p175 = scmp.eq.s32.totalorder %s43, 3
      %p176 = por %p174, %p175
      %p177 = scmp.ne.s32.totalorder %s169, %s172
      %p178 = scmp.eq.s32.totalorder %s43, 0
      %p179 = por %p177, %p178
      %p180 = scmp.ne.s32.totalorder %s169, %s172
      %p181 = scmp.eq.s32.totalorder %s48, 3
      %p182 = por %p180, %p181
      %p183 = scmp.ne.s32.totalorder %s172, %s173
      %p184 = scmp.eq.s32.totalorder %s48, 0
      %p185 = por %p183, %p184
      %p186 = scmp.ne.s32.totalorder %s172, %s173
      %p187 = scmp.eq.s32.totalorder %s49, 3
      %p188 = por %p186, %p187
      %p190 = scmp.ne.s32.totalorder %s173, %s189
      %p191 = scmp.eq.s32.totalorder %s49, 0
      %p192 = por %p190, %p191
      %s193 = ssub.s32 %s51, %s58
      %p194 = scmp.eq.s32.totalorder %s193, 0
      %s196 = sadd.s32 %s195, 1
      %s197 = scalar_select %p194, %s195, %s196
      %p200 = pneg %p194
      %p201 = scmp.eq.s32.totalorder %s43, 3
      %p202 = por %p200, %p201
      %p203 = scmp.ne.s32.totalorder %s195, %s198
      %p204 = scmp.eq.s32.totalorder %s43, 0
      %p205 = por %p203, %p204
      %p206 = scmp.ne.s32.totalorder %s195, %s198
      %p207 = scmp.eq.s32.totalorder %s48, 3
      %p208 = por %p206, %p207
      %p209 = scmp.ne.s32.totalorder %s198, %s199
      %p210 = scmp.eq.s32.totalorder %s48, 0
      %p211 = por %p209, %p210
      %p212 = scmp.ne.s32.totalorder %s198, %s199
      %p213 = scmp.eq.s32.totalorder %s49, 3
      %p214 = por %p212, %p213
      %p216 = scmp.ne.s32.totalorder %s199, %s215
      %p217 = scmp.eq.s32.totalorder %s49, 0
      %p218 = por %p216, %p217
      %s219 = ssub.s32 %s51, %s58
      %p220 = scmp.eq.s32.totalorder %s219, 0
      %s222 = sadd.s32 %s221, 1
      %s223 = scalar_select %p220, %s221, %s222
      %p226 = pneg %p220
      %p227 = scmp.eq.s32.totalorder %s43, 3
      %p228 = por %p226, %p227
      %p229 = scmp.ne.s32.totalorder %s221, %s224
      %p230 = scmp.eq.s32.totalorder %s43, 0
      %p231 = por %p229, %p230
      %p232 = scmp.ne.s32.totalorder %s221, %s224
      %p233 = scmp.eq.s32.totalorder %s48, 3
      %p234 = por %p232, %p233
      %p235 = scmp.ne.s32.totalorder %s224, %s225
      %p236 = scmp.eq.s32.totalorder %s48, 0
      %p237 = por %p235, %p236
      %p238 = scmp.ne.s32.totalorder %s224, %s225
      %p239 = scmp.eq.s32.totalorder %s49, 3
      %p240 = por %p238, %p239
      %p242 = scmp.ne.s32.totalorder %s225, %s241
      %p243 = scmp.eq.s32.totalorder %s49, 0
      %p244 = por %p242, %p243
      %s245 = ssub.s32 %s51, %s58
      %p246 = scmp.eq.s32.totalorder %s245, 0
      %s248 = sadd.s32 %s247, 1
      %s249 = scalar_select %p246, %s247, %s248
      %p252 = pneg %p246
      %p253 = scmp.eq.s32.totalorder %s43, 3
      %p254 = por %p252, %p253
      %p255 = scmp.ne.s32.totalorder %s247, %s250
      %p256 = scmp.eq.s32.totalorder %s43, 0
      %p257 = por %p255, %p256
      %p258 = scmp.ne.s32.totalorder %s247, %s250
      %p259 = scmp.eq.s32.totalorder %s48, 3
      %p260 = por %p258, %p259
      %p261 = scmp.ne.s32.totalorder %s250, %s251
      %p262 = scmp.eq.s32.totalorder %s48, 0
      %p263 = por %p261, %p262
      %p264 = scmp.ne.s32.totalorder %s250, %s251
      %p265 = scmp.eq.s32.totalorder %s49, 3
      %p266 = por %p264, %p265
      %p268 = scmp.ne.s32.totalorder %s251, %s267
      %p269 = scmp.eq.s32.totalorder %s49, 0
      %p270 = por %p268, %p269
      %s271 = ssub.s32 %s51, %s58
      %p272 = scmp.eq.s32.totalorder %s271, 0
      %s274 = sadd.s32 %s273, 1
      %s275 = scalar_select %p272, %s273, %s274
      %p278 = pneg %p272
      %p279 = scmp.eq.s32.totalorder %s43, 3
      %p280 = por %p278, %p279
      %p281 = scmp.ne.s32.totalorder %s273, %s276
      %p282 = scmp.eq.s32.totalorder %s43, 0
      %p283 = por %p281, %p282
      %p284 = scmp.ne.s32.totalorder %s273, %s276
      %p285 = scmp.eq.s32.totalorder %s48, 3
      %p286 = por %p284, %p285
      %p287 = scmp.ne.s32.totalorder %s276, %s277
      %p288 = scmp.eq.s32.totalorder %s48, 0
      %p289 = por %p287, %p288
      %p290 = scmp.ne.s32.totalorder %s276, %s277
      %p291 = scmp.eq.s32.totalorder %s49, 3
      %p292 = por %p290, %p291
      %p294 = scmp.ne.s32.totalorder %s277, %s293
      %p295 = scmp.eq.s32.totalorder %s49, 0
      %p296 = por %p294, %p295
      %s297 = ssub.s32 %s51, %s58
      %p298 = scmp.eq.s32.totalorder %s297, 0
      %s300 = sadd.s32 %s299, 1
      %s301 = scalar_select %p298, %s299, %s300
      %p304 = pneg %p298
      %p305 = scmp.eq.s32.totalorder %s43, 3
      %p306 = por %p304, %p305
      %p307 = scmp.ne.s32.totalorder %s299, %s302
      %p308 = scmp.eq.s32.totalorder %s43, 0
      %p309 = por %p307, %p308
      %p310 = scmp.ne.s32.totalorder %s299, %s302
      %p311 = scmp.eq.s32.totalorder %s48, 3
      %p312 = por %p310, %p311
      %p313 = scmp.ne.s32.totalorder %s302, %s303
      %p314 = scmp.eq.s32.totalorder %s48, 0
      %p315 = por %p313, %p314
      %p316 = scmp.ne.s32.totalorder %s302, %s303
      %p317 = scmp.eq.s32.totalorder %s49, 3
      %p318 = por %p316, %p317
      %p320 = scmp.ne.s32.totalorder %s303, %s319
      %p321 = scmp.eq.s32.totalorder %s49, 0
      %p322 = por %p320, %p321
      %s323 = ssub.s32 %s51, %s58
      %p324 = scmp.eq.s32.totalorder %s323, 0
      %s326 = sadd.s32 %s325, 1
      %s327 = scalar_select %p324, %s325, %s326
      %p330 = pneg %p324
      %p331 = scmp.eq.s32.totalorder %s43, 3
      %p332 = por %p330, %p331
      %p333 = scmp.ne.s32.totalorder %s325, %s328
      %p334 = scmp.eq.s32.totalorder %s43, 0
      %p335 = por %p333, %p334
      %p336 = scmp.ne.s32.totalorder %s325, %s328
      %p337 = scmp.eq.s32.totalorder %s48, 3
      %p338 = por %p336, %p337
      %p339 = scmp.ne.s32.totalorder %s328, %s329
      %p340 = scmp.eq.s32.totalorder %s48, 0
      %p341 = por %p339, %p340
      %p342 = scmp.ne.s32.totalorder %s328, %s329
      %p343 = scmp.eq.s32.totalorder %s49, 3
      %p344 = por %p342, %p343
      %p346 = scmp.ne.s32.totalorder %s329, %s345
      %p347 = scmp.eq.s32.totalorder %s49, 0
      %p348 = por %p346, %p347
      %s349 = ssub.s32 %s51, %s58
      %p350 = scmp.eq.s32.totalorder %s349, 0
      %s352 = sadd.s32 %s351, 1
      %s353 = scalar_select %p350, %s351, %s352
      %p356 = pneg %p350
      %p357 = scmp.eq.s32.totalorder %s43, 3
      %p358 = por %p356, %p357
      %p359 = scmp.ne.s32.totalorder %s351, %s354
      %p360 = scmp.eq.s32.totalorder %s43, 0
      %p361 = por %p359, %p360
      %p362 = scmp.ne.s32.totalorder %s351, %s354
      %p363 = scmp.eq.s32.totalorder %s48, 3
      %p364 = por %p362, %p363
      %p365 = scmp.ne.s32.totalorder %s354, %s355
      %p366 = scmp.eq.s32.totalorder %s48, 0
      %p367 = por %p365, %p366
      %p368 = scmp.ne.s32.totalorder %s354, %s355
      %p369 = scmp.eq.s32.totalorder %s49, 3
      %p370 = por %p368, %p369
      %p372 = scmp.ne.s32.totalorder %s355, %s371
      %p373 = scmp.eq.s32.totalorder %s49, 0
      %p374 = por %p372, %p373
      %s375 = ssub.s32 %s51, %s58
      %p376 = scmp.eq.s32.totalorder %s375, 0
      %s378 = sadd.s32 %s377, 1
      %s379 = scalar_select %p376, %s377, %s378
      %p382 = pneg %p376
      %p383 = scmp.eq.s32.totalorder %s43, 3
      %p384 = por %p382, %p383
      %p385 = scmp.ne.s32.totalorder %s377, %s380
      %p386 = scmp.eq.s32.totalorder %s43, 0
      %p387 = por %p385, %p386
      %p388 = scmp.ne.s32.totalorder %s377, %s380
      %p389 = scmp.eq.s32.totalorder %s48, 3
      %p390 = por %p388, %p389
      %p391 = scmp.ne.s32.totalorder %s380, %s381
      %p392 = scmp.eq.s32.totalorder %s48, 0
      %p393 = por %p391, %p392
      %p394 = scmp.ne.s32.totalorder %s380, %s381
      %p395 = scmp.eq.s32.totalorder %s49, 3
      %p396 = por %p394, %p395
      %p398 = scmp.ne.s32.totalorder %s381, %s397
      %p399 = scmp.eq.s32.totalorder %s49, 0
      %p400 = por %p398, %p399
      %s401 = ssub.s32 %s51, %s58
      %p402 = scmp.eq.s32.totalorder %s401, 0
      %s404 = sadd.s32 %s403, 1
      %s405 = scalar_select %p402, %s403, %s404
      %p408 = pneg %p402
      %p409 = scmp.eq.s32.totalorder %s43, 3
      %p410 = por %p408, %p409
      %p411 = scmp.ne.s32.totalorder %s403, %s406
      %p412 = scmp.eq.s32.totalorder %s43, 0
      %p413 = por %p411, %p412
      %p414 = scmp.ne.s32.totalorder %s403, %s406
      %p415 = scmp.eq.s32.totalorder %s48, 3
      %p416 = por %p414, %p415
      %p417 = scmp.ne.s32.totalorder %s406, %s407
      %p418 = scmp.eq.s32.totalorder %s48, 0
      %p419 = por %p417, %p418
      %p420 = scmp.ne.s32.totalorder %s406, %s407
      %p421 = scmp.eq.s32.totalorder %s49, 3
      %p422 = por %p420, %p421
      %p424 = scmp.ne.s32.totalorder %s407, %s423
      %p425 = scmp.eq.s32.totalorder %s49, 0
      %p426 = por %p424, %p425
      %s427 = ssub.s32 %s51, %s58
      %p428 = scmp.eq.s32.totalorder %s427, 0
      %s430 = sadd.s32 %s429, 1
      %s431 = scalar_select %p428, %s429, %s430
      %p434 = pneg %p428
      %p435 = scmp.eq.s32.totalorder %s43, 3
      %p436 = por %p434, %p435
      %p437 = scmp.ne.s32.totalorder %s429, %s432
      %p438 = scmp.eq.s32.totalorder %s43, 0
      %p439 = por %p437, %p438
      %p440 = scmp.ne.s32.totalorder %s429, %s432
      %p441 = scmp.eq.s32.totalorder %s48, 3
      %p442 = por %p440, %p441
      %p443 = scmp.ne.s32.totalorder %s432, %s433
      %p444 = scmp.eq.s32.totalorder %s48, 0
      %p445 = por %p443, %p444
      %p446 = scmp.ne.s32.totalorder %s432, %s433
      %p447 = scmp.eq.s32.totalorder %s49, 3
      %p448 = por %p446, %p447
      %p450 = scmp.ne.s32.totalorder %s433, %s449
      %p451 = scmp.eq.s32.totalorder %s49, 0
      %p452 = por %p450, %p451
      %s453 = ssub.s32 %s51, %s58
      %p454 = scmp.eq.s32.totalorder %s453, 0
      %s456 = sadd.s32 %s455, 1
      %s457 = scalar_select %p454, %s455, %s456
      %p460 = pneg %p454
      %p461 = scmp.eq.s32.totalorder %s43, 3
      %p462 = por %p460, %p461
      %p463 = scmp.ne.s32.totalorder %s455, %s458
      %p464 = scmp.eq.s32.totalorder %s43, 0
      %p465 = por %p463, %p464
      %p466 = scmp.ne.s32.totalorder %s455, %s458
      %p467 = scmp.eq.s32.totalorder %s48, 3
      %p468 = por %p466, %p467
      %p469 = scmp.ne.s32.totalorder %s458, %s459
      %p470 = scmp.eq.s32.totalorder %s48, 0
      %p471 = por %p469, %p470
      %p472 = scmp.ne.s32.totalorder %s458, %s459
      %p473 = scmp.eq.s32.totalorder %s49, 3
      %p474 = por %p472, %p473
      %p476 = scmp.ne.s32.totalorder %s459, %s475
      %p477 = scmp.eq.s32.totalorder %s49, 0
      %p478 = por %p476, %p477
      %s479 = ssub.s32 %s51, %s58
      %p480 = scmp.eq.s32.totalorder %s479, 0
      %s482 = sadd.s32 %s481, 1
      %s483 = scalar_select %p480, %s481, %s482
      %p486 = pneg %p480
      %p487 = scmp.eq.s32.totalorder %s43, 3
      %p488 = por %p486, %p487
      %p489 = scmp.ne.s32.totalorder %s481, %s484
      %p490 = scmp.eq.s32.totalorder %s43, 0
      %p491 = por %p489, %p490
      %p492 = scmp.ne.s32.totalorder %s481, %s484
      %p493 = scmp.eq.s32.totalorder %s48, 3
      %p494 = por %p492, %p493
      %p495 = scmp.ne.s32.totalorder %s484, %s485
      %p496 = scmp.eq.s32.totalorder %s48, 0
      %p497 = por %p495, %p496
      %p498 = scmp.ne.s32.totalorder %s484, %s485
      %p499 = scmp.eq.s32.totalorder %s49, 3
      %p500 = por %p498, %p499
      %p502 = scmp.ne.s32.totalorder %s485, %s501
      %p503 = scmp.eq.s32.totalorder %s49, 0
      %p504 = por %p502, %p503
      %s505 = ssub.s32 %s51, %s58
      %p506 = scmp.eq.s32.totalorder %s505, 0
      %s508 = sadd.s32 %s507, 1
      %s509 = scalar_select %p506, %s507, %s508
      %p512 = pneg %p506
      %p513 = scmp.eq.s32.totalorder %s43, 3
      %p514 = por %p512, %p513
      %p515 = scmp.ne.s32.totalorder %s507, %s510
      %p516 = scmp.eq.s32.totalorder %s43, 0
      %p517 = por %p515, %p516
      %p518 = scmp.ne.s32.totalorder %s507, %s510
      %p519 = scmp.eq.s32.totalorder %s48, 3
      %p520 = por %p518, %p519
      %p521 = scmp.ne.s32.totalorder %s510, %s511
      %p522 = scmp.eq.s32.totalorder %s48, 0
      %p523 = por %p521, %p522
      %p524 = scmp.ne.s32.totalorder %s510, %s511
      %p525 = scmp.eq.s32.totalorder %s49, 3
      %p526 = por %p524, %p525
      %p528 = scmp.ne.s32.totalorder %s511, %s527
      %p529 = scmp.eq.s32.totalorder %s49, 0
      %p530 = por %p528, %p529
      %s531 = ssub.s32 %s51, %s58
      %p532 = scmp.eq.s32.totalorder %s531, 0
      %s534 = sadd.s32 %s533, 1
      %s535 = scalar_select %p532, %s533, %s534
      %p538 = pneg %p532
      %p539 = scmp.eq.s32.totalorder %s43, 3
      %p540 = por %p538, %p539
      %p541 = scmp.ne.s32.totalorder %s533, %s536
      %p542 = scmp.eq.s32.totalorder %s43, 0
      %p543 = por %p541, %p542
      %p544 = scmp.ne.s32.totalorder %s533, %s536
      %p545 = scmp.eq.s32.totalorder %s48, 3
      %p546 = por %p544, %p545
      %p547 = scmp.ne.s32.totalorder %s536, %s537
      %p548 = scmp.eq.s32.totalorder %s48, 0
      %p549 = por %p547, %p548
      %p550 = scmp.ne.s32.totalorder %s536, %s537
      %p551 = scmp.eq.s32.totalorder %s49, 3
      %p552 = por %p550, %p551
      %p554 = scmp.ne.s32.totalorder %s537, %s553
      %p555 = scmp.eq.s32.totalorder %s49, 0
      %p556 = por %p554, %p555
      %s557 = ssub.s32 %s51, %s58
      %p558 = scmp.eq.s32.totalorder %s557, 0
      %s560 = sadd.s32 %s559, 1
      %s561 = scalar_select %p558, %s559, %s560
      %p564 = pneg %p558
      %p565 = scmp.eq.s32.totalorder %s43, 3
      %p566 = por %p564, %p565
      %p567 = scmp.ne.s32.totalorder %s559, %s562
      %p568 = scmp.eq.s32.totalorder %s43, 0
      %p569 = por %p567, %p568
      %p570 = scmp.ne.s32.totalorder %s559, %s562
      %p571 = scmp.eq.s32.totalorder %s48, 3
      %p572 = por %p570, %p571
      %p573 = scmp.ne.s32.totalorder %s562, %s563
      %p574 = scmp.eq.s32.totalorder %s48, 0
      %p575 = por %p573, %p574
      %p576 = scmp.ne.s32.totalorder %s562, %s563
      %p577 = scmp.eq.s32.totalorder %s49, 3
      %p578 = por %p576, %p577
      %p580 = scmp.ne.s32.totalorder %s563, %s579
      %p581 = scmp.eq.s32.totalorder %s49, 0
      %p582 = por %p580, %p581
      %s583 = ssub.s32 %s51, %s58
      %p584 = scmp.eq.s32.totalorder %s583, 0
      %s586 = sadd.s32 %s585, 1
      %s587 = scalar_select %p584, %s585, %s586
      %p590 = pneg %p584
      %p591 = scmp.eq.s32.totalorder %s43, 3
      %p592 = por %p590, %p591
      %p593 = scmp.ne.s32.totalorder %s585, %s588
      %p594 = scmp.eq.s32.totalorder %s43, 0
      %p595 = por %p593, %p594
      %p596 = scmp.ne.s32.totalorder %s585, %s588
      %p597 = scmp.eq.s32.totalorder %s48, 3
      %p598 = por %p596, %p597
      %p599 = scmp.ne.s32.totalorder %s588, %s589
      %p600 = scmp.eq.s32.totalorder %s48, 0
      %p601 = por %p599, %p600
      %p602 = scmp.ne.s32.totalorder %s588, %s589
      %p603 = scmp.eq.s32.totalorder %s49, 3
      %p604 = por %p602, %p603
      %p606 = scmp.ne.s32.totalorder %s589, %s605
      %p607 = scmp.eq.s32.totalorder %s49, 0
      %p608 = por %p606, %p607
      %s609 = ssub.s32 %s51, %s58
      %p610 = scmp.eq.s32.totalorder %s609, 0
      %s612 = sadd.s32 %s611, 1
      %s613 = scalar_select %p610, %s611, %s612
      %p616 = pneg %p610
      %p617 = scmp.eq.s32.totalorder %s43, 3
      %p618 = por %p616, %p617
      %p619 = scmp.ne.s32.totalorder %s611, %s614
      %p620 = scmp.eq.s32.totalorder %s43, 0
      %p621 = por %p619, %p620
      %p622 = scmp.ne.s32.totalorder %s611, %s614
      %p623 = scmp.eq.s32.totalorder %s48, 3
      %p624 = por %p622, %p623
      %p625 = scmp.ne.s32.totalorder %s614, %s615
      %p626 = scmp.eq.s32.totalorder %s48, 0
      %p627 = por %p625, %p626
      %p628 = scmp.ne.s32.totalorder %s614, %s615
      %p629 = scmp.eq.s32.totalorder %s49, 3
      %p630 = por %p628, %p629
      %p632 = scmp.ne.s32.totalorder %s615, %s631
      %p633 = scmp.eq.s32.totalorder %s49, 0
      %p634 = por %p632, %p633
      %s635 = ssub.s32 %s50, %s62
      %p636 = scmp.eq.s32.totalorder %s635, 0
      %s638 = sadd.s32 %s637, 1
      %s639 = scalar_select %p636, %s637, %s638
      %p642 = pneg %p636
      %p643 = scmp.eq.s32.totalorder %s43, 3
      %p644 = por %p642, %p643
      %p645 = scmp.ne.s32.totalorder %s637, %s640
      %p646 = scmp.eq.s32.totalorder %s43, 0
      %p647 = por %p645, %p646
      %p648 = scmp.ne.s32.totalorder %s637, %s640
      %p649 = scmp.eq.s32.totalorder %s48, 3
      %p650 = por %p648, %p649
      %p651 = scmp.ne.s32.totalorder %s640, %s641
      %p652 = scmp.eq.s32.totalorder %s48, 0
      %p653 = por %p651, %p652
      %p654 = scmp.ne.s32.totalorder %s640, %s641
      %p655 = scmp.eq.s32.totalorder %s49, 3
      %p656 = por %p654, %p655
      %p658 = scmp.ne.s32.totalorder %s641, %s657
      %p659 = scmp.eq.s32.totalorder %s49, 0
      %p660 = por %p658, %p659
      %p661 = scmp.le.s32.totalorder 1, %s43
      %p662 = scmp.lt.s32.totalorder %s43, 5
      %p663 = pnand %p661, %p662
      %p664 = pneg %p663
      // Predicated region
      $region9: #{_lambda_.1} parent=5 // pred_check
        _
      $region10: #{_lambda_.1} parent=5 // pred_check_branch
        %666 = sbr.rel (%p663) target = $region12
      $region11: #{_lambda_.1} parent=5 // pred_region
        %s667 = ssub.s32 %s43, 1
      $region12: #{_lambda_.1} parent=5 // pred_fallthru
        _
      %p668 = scmp.lt.s32.totalorder %s43, 4
      // Predicated region
      $region13: #{_lambda_.1} parent=5 // pred_check
        %p669 = pneg %p668
      $region14: #{_lambda_.1} parent=5 // pred_check_branch
        %671 = sbr.rel (%p669) target = $region16
      $region15: #{_lambda_.1} parent=5 // pred_region
        // Predicated region
        $region17: #{_lambda_.1} parent=15 // pred_check
          %p672 = pneg %p75
        $region18: #{_lambda_.1} parent=15 // pred_check_branch
          %674 = sbr.rel (%p672) target = $region20
        $region19: #{_lambda_.1} parent=15 // pred_region
          %s675 = smul.u32 4, %s50
          %p676 = scmp.lt.s32.totalorder %s675, 7
          %s677 = scalar_select %p676, %s675, 7
          %s678 = smul.addr %s677, 8
          %s679 = scalar_lea.vmem %s0, %s678
          %s680 = smul.u32 4, %s50
        $region20: #{_lambda_.1} parent=15 // pred_fallthru
          _
        // Predicated region
        $region21: #{_lambda_.1} parent=15 // pred_check
          %p681 = pneg %p101
        $region22: #{_lambda_.1} parent=15 // pred_check_branch
          %683 = sbr.rel (%p681) target = $region24
        $region23: #{_lambda_.1} parent=15 // pred_region
          %s684 = smul.u32 4, %s50
          %p685 = scmp.lt.s32.totalorder %s684, 7
          %s686 = scalar_select %p685, %s684, 7
          %s687 = smul.addr %s686, 8
          %s688 = scalar_lea.vmem %s1, %s687
          %s689 = smul.u32 4, %s50
        $region24: #{_lambda_.1} parent=15 // pred_fallthru
          _
        // Predicated region
        $region25: #{_lambda_.1} parent=15 // pred_check
          %p690 = pneg %p127
        $region26: #{_lambda_.1} parent=15 // pred_check_branch
          %692 = sbr.rel (%p690) target = $region28
        $region27: #{_lambda_.1} parent=15 // pred_region
          %p693 = scmp.lt.s32.totalorder %s51, 1
          %s694 = scalar_select %p693, %s51, 1
          %s695 = smul.addr %s694, 4
          %s696 = smul.addr %s695, 4
          %s697 = scalar_lea.vmem %s2, %s696
        $region28: #{_lambda_.1} parent=15 // pred_fallthru
          _
        // Predicated region
        $region29: #{_lambda_.1} parent=15 // pred_check
          %p698 = pneg %p153
        $region30: #{_lambda_.1} parent=15 // pred_check_branch
          %700 = sbr.rel (%p698) target = $region32
        $region31: #{_lambda_.1} parent=15 // pred_region
          %p701 = scmp.lt.s32.totalorder %s51, 1
          %s702 = scalar_select %p701, %s51, 1
          %s703 = scalar_lea.vmem %s3, %s702
        $region32: #{_lambda_.1} parent=15 // pred_fallthru
          _
        // Predicated region
        $region33: #{_lambda_.1} parent=15 // pred_check
          %p704 = pneg %p179
        $region34: #{_lambda_.1} parent=15 // pred_check_branch
          %706 = sbr.rel (%p704) target = $region36
        $region35: #{_lambda_.1} parent=15 // pred_region
          %p707 = scmp.lt.s32.totalorder %s51, 1
          %s708 = scalar_select %p707, %s51, 1
          %s709 = smul.addr %s708, 4
          %s710 = smul.addr %s709, 4
          %s711 = scalar_lea.vmem %s4, %s710
        $region36: #{_lambda_.1} parent=15 // pred_fallthru
          _
        // Predicated region
        $region37: #{_lambda_.1} parent=15 // pred_check
          %p712 = pneg %p205
        $region38: #{_lambda_.1} parent=15 // pred_check_branch
          %714 = sbr.rel (%p712) target = $region40
        $region39: #{_lambda_.1} parent=15 // pred_region
          %p715 = scmp.lt.s32.totalorder %s51, 1
          %s716 = scalar_select %p715, %s51, 1
          %s717 = scalar_lea.vmem %s5, %s716
        $region40: #{_lambda_.1} parent=15 // pred_fallthru
          _
        // Predicated region
        $region41: #{_lambda_.1} parent=15 // pred_check
          %p718 = pneg %p231
        $region42: #{_lambda_.1} parent=15 // pred_check_branch
          %720 = sbr.rel (%p718) target = $region44
        $region43: #{_lambda_.1} parent=15 // pred_region
          %p721 = scmp.lt.s32.totalorder %s51, 1
          %s722 = scalar_select %p721, %s51, 1
          %s723 = scalar_lea.vmem %s6, %s722
        $region44: #{_lambda_.1} parent=15 // pred_fallthru
          _
        // Predicated region
        $region45: #{_lambda_.1} parent=15 // pred_check
          %p724 = pneg %p257
        $region46: #{_lambda_.1} parent=15 // pred_check_branch
          %726 = sbr.rel (%p724) target = $region48
        $region47: #{_lambda_.1} parent=15 // pred_region
          %p727 = scmp.lt.s32.totalorder %s51, 1
          %s728 = scalar_select %p727, %s51, 1
          %s729 = scalar_lea.vmem %s7, %s728
        $region48: #{_lambda_.1} parent=15 // pred_fallthru
          _
        // Predicated region
        $region49: #{_lambda_.1} parent=15 // pred_check
          %p730 = pneg %p283
        $region50: #{_lambda_.1} parent=15 // pred_check_branch
          %732 = sbr.rel (%p730) target = $region52
        $region51: #{_lambda_.1} parent=15 // pred_region
          %p733 = scmp.lt.s32.totalorder %s51, 1
          %s734 = scalar_select %p733, %s51, 1
          %s735 = smul.addr %s734, 4
          %s736 = smul.addr %s735, 4
          %s737 = scalar_lea.vmem %s8, %s736
        $region52: #{_lambda_.1} parent=15 // pred_fallthru
          _
        // Predicated region
        $region53: #{_lambda_.1} parent=15 // pred_check
          %p738 = pneg %p309
        $region54: #{_lambda_.1} parent=15 // pred_check_branch
          %740 = sbr.rel (%p738) target = $region56
        $region55: #{_lambda_.1} parent=15 // pred_region
          %p741 = scmp.lt.s32.totalorder %s51, 1
          %s742 = scalar_select %p741, %s51, 1
          %s743 = scalar_lea.vmem %s9, %s742
        $region56: #{_lambda_.1} parent=15 // pred_fallthru
          _
        // Predicated region
        $region57: #{_lambda_.1} parent=15 // pred_check
          %p744 = pneg %p335
        $region58: #{_lambda_.1} parent=15 // pred_check_branch
          %746 = sbr.rel (%p744) target = $region60
        $region59: #{_lambda_.1} parent=15 // pred_region
          %p747 = scmp.lt.s32.totalorder %s51, 1
          %s748 = scalar_select %p747, %s51, 1
          %s749 = smul.addr %s748, 4
          %s750 = smul.addr %s749, 4
          %s751 = scalar_lea.vmem %s10, %s750
        $region60: #{_lambda_.1} parent=15 // pred_fallthru
          _
        // Predicated region
        $region61: #{_lambda_.1} parent=15 // pred_check
          %p752 = pneg %p361
        $region62: #{_lambda_.1} parent=15 // pred_check_branch
          %754 = sbr.rel (%p752) target = $region64
        $region63: #{_lambda_.1} parent=15 // pred_region
          %s755 = sand.u32 %s351, 1
          %s756 = scalar_lea.sflag [#allocation4], %s755
          %s757 = sand.u32 %s351, 1
          %s758 = scalar_lea.vmem [#allocation3], %s757
          %s760 = ssub.s32 16, 16
          %761 = vsyncadd %s756, %s760
          %s762 = smul.addr %s51, 16
          %s763 = scalar_lea.hbm %s11, %s762
          %s765 = sshll.u32 %s758, 4
          %s766 = int_to_ptr.vmem [resolvable:$true] %s765
          %768 = dma.hbm_to_vmem [thread:$0]  %s763, 16, %s766, %s756
        $region64: #{_lambda_.1} parent=15 // pred_fallthru
          _
        // Predicated region
        $region65: #{_lambda_.1} parent=15 // pred_check
          %p769 = pneg %p387
        $region66: #{_lambda_.1} parent=15 // pred_check_branch
          %771 = sbr.rel (%p769) target = $region68
        $region67: #{_lambda_.1} parent=15 // pred_region
          %p772 = scmp.lt.s32.totalorder %s51, 1
          %s773 = scalar_select %p772, %s51, 1
          %s774 = smul.addr %s773, 4
          %s775 = smul.addr %s774, 4
          %s776 = scalar_lea.vmem %s12, %s775
        $region68: #{_lambda_.1} parent=15 // pred_fallthru
          _
        // Predicated region
        $region69: #{_lambda_.1} parent=15 // pred_check
          %p777 = pneg %p413
        $region70: #{_lambda_.1} parent=15 // pred_check_branch
          %779 = sbr.rel (%p777) target = $region72
        $region71: #{_lambda_.1} parent=15 // pred_region
          %s780 = sand.u32 %s43, 1
          %s781 = scalar_lea.sflag [#allocation6], %s780
          %s782 = sand.u32 %s403, 1
          %s783 = scalar_lea.vmem [#allocation5], %s782
          %s785 = ssub.s32 16, 16
          %786 = vsyncadd %s781, %s785
          %s787 = smul.addr %s51, 16
          %s788 = scalar_lea.hbm %s13, %s787
          %s790 = sshll.u32 %s783, 4
          %s791 = int_to_ptr.vmem [resolvable:$true] %s790
          %793 = dma.hbm_to_vmem [thread:$0]  %s788, 16, %s791, %s781
        $region72: #{_lambda_.1} parent=15 // pred_fallthru
          _
        // Predicated region
        $region73: #{_lambda_.1} parent=15 // pred_check
          %p794 = pneg %p439
        $region74: #{_lambda_.1} parent=15 // pred_check_branch
          %796 = sbr.rel (%p794) target = $region76
        $region75: #{_lambda_.1} parent=15 // pred_region
          %s797 = sand.u32 %s43, 1
          %s798 = scalar_lea.sflag [#allocation6], %s797
          %s799 = sand.u32 %s429, 1
          %s800 = scalar_lea.vmem [#allocation7], %s799
          %s802 = ssub.s32 16, 16
          %803 = vsyncadd %s798, %s802
          %s804 = smul.addr %s51, 16
          %s805 = scalar_lea.hbm %s14, %s804
          %s807 = sshll.u32 %s800, 4
          %s808 = int_to_ptr.vmem [resolvable:$true] %s807
          %810 = dma.hbm_to_vmem [thread:$0]  %s805, 16, %s808, %s798
        $region76: #{_lambda_.1} parent=15 // pred_fallthru
          _
        // Predicated region
        $region77: #{_lambda_.1} parent=15 // pred_check
          %p811 = pneg %p465
        $region78: #{_lambda_.1} parent=15 // pred_check_branch
          %813 = sbr.rel (%p811) target = $region80
        $region79: #{_lambda_.1} parent=15 // pred_region
          %s814 = sand.u32 %s43, 1
          %s815 = scalar_lea.sflag [#allocation9], %s814
          %s816 = sand.u32 %s455, 1
          %s817 = scalar_lea.vmem [#allocation8], %s816
          %s819 = ssub.s32 16, 16
          %820 = vsyncadd %s815, %s819
          %s821 = smul.addr %s51, 16
          %s822 = scalar_lea.hbm %s15, %s821
          %s824 = sshll.u32 %s817, 4
          %s825 = int_to_ptr.vmem [resolvable:$true] %s824
          %827 = dma.hbm_to_vmem [thread:$0]  %s822, 16, %s825, %s815
        $region80: #{_lambda_.1} parent=15 // pred_fallthru
          _
        // Predicated region
        $region81: #{_lambda_.1} parent=15 // pred_check
          %p828 = pneg %p491
        $region82: #{_lambda_.1} parent=15 // pred_check_branch
          %830 = sbr.rel (%p828) target = $region84
        $region83: #{_lambda_.1} parent=15 // pred_region
          %p831 = scmp.lt.s32.totalorder %s51, 1
          %s832 = scalar_select %p831, %s51, 1
          %s833 = smul.addr %s832, 4
          %s834 = smul.addr %s833, 4
          %s835 = scalar_lea.vmem %s16, %s834
        $region84: #{_lambda_.1} parent=15 // pred_fallthru
          _
        // Predicated region
        $region85: #{_lambda_.1} parent=15 // pred_check
          %p836 = pneg %p517
        $region86: #{_lambda_.1} parent=15 // pred_check_branch
          %838 = sbr.rel (%p836) target = $region88
        $region87: #{_lambda_.1} parent=15 // pred_region
          %s839 = sand.u32 %s43, 1
          %s840 = scalar_lea.sflag [#allocation9], %s839
          %s841 = sand.u32 %s507, 1
          %s842 = scalar_lea.vmem [#allocation10], %s841
          %s844 = ssub.s32 16, 16
          %845 = vsyncadd %s840, %s844
          %s846 = smul.addr %s51, 16
          %s847 = scalar_lea.hbm %s17, %s846
          %s849 = sshll.u32 %s842, 4
          %s850 = int_to_ptr.vmem [resolvable:$true] %s849
          %852 = dma.hbm_to_vmem [thread:$0]  %s847, 16, %s850, %s840
        $region88: #{_lambda_.1} parent=15 // pred_fallthru
          _
        // Predicated region
        $region89: #{_lambda_.1} parent=15 // pred_check
          %p853 = pneg %p543
        $region90: #{_lambda_.1} parent=15 // pred_check_branch
          %855 = sbr.rel (%p853) target = $region92
        $region91: #{_lambda_.1} parent=15 // pred_region
          %p856 = scmp.lt.s32.totalorder %s51, 1
          %s857 = scalar_select %p856, %s51, 1
          %s858 = smul.addr %s857, 16
          %s859 = smul.addr %s858, 4
          %s860 = scalar_lea.vmem %s18, %s859
        $region92: #{_lambda_.1} parent=15 // pred_fallthru
          _
        // Predicated region
        $region93: #{_lambda_.1} parent=15 // pred_check
          %p861 = pneg %p569
        $region94: #{_lambda_.1} parent=15 // pred_check_branch
          %863 = sbr.rel (%p861) target = $region96
        $region95: #{_lambda_.1} parent=15 // pred_region
          %s864 = sand.u32 %s43, 1
          %s865 = scalar_lea.sflag [#allocation12], %s864
          %s866 = sand.u32 %s559, 1
          %s867 = scalar_lea.vmem [#allocation11], %s866
          %s869 = ssub.s32 16, 16
          %870 = vsyncadd %s865, %s869
          %s871 = smul.addr %s51, 16
          %s872 = scalar_lea.hbm %s19, %s871
          %s874 = sshll.u32 %s867, 4
          %s875 = int_to_ptr.vmem [resolvable:$true] %s874
          %877 = dma.hbm_to_vmem [thread:$0]  %s872, 16, %s875, %s865
        $region96: #{_lambda_.1} parent=15 // pred_fallthru
          _
        // Predicated region
        $region97: #{_lambda_.1} parent=15 // pred_check
          %p878 = pneg %p595
        $region98: #{_lambda_.1} parent=15 // pred_check_branch
          %880 = sbr.rel (%p878) target = $region100
        $region99: #{_lambda_.1} parent=15 // pred_region
          %s881 = sand.u32 %s43, 1
          %s882 = scalar_lea.sflag [#allocation12], %s881
          %s883 = sand.u32 %s585, 1
          %s884 = scalar_lea.vmem [#allocation13], %s883
          %s886 = ssub.s32 16, 16
          %887 = vsyncadd %s882, %s886
          %s888 = smul.addr %s51, 16
          %s889 = scalar_lea.hbm %s20, %s888
          %s891 = sshll.u32 %s884, 4
          %s892 = int_to_ptr.vmem [resolvable:$true] %s891
          %894 = dma.hbm_to_vmem [thread:$0]  %s889, 16, %s892, %s882
        $region100: #{_lambda_.1} parent=15 // pred_fallthru
          _
        // Predicated region
        $region101: #{_lambda_.1} parent=15 // pred_check
          %p895 = pneg %p621
        $region102: #{_lambda_.1} parent=15 // pred_check_branch
          %897 = sbr.rel (%p895) target = $region104
        $region103: #{_lambda_.1} parent=15 // pred_region
          %s898 = sand.u32 %s611, 1
          %s899 = scalar_lea.sflag [#allocation15], %s898
          %s900 = sand.u32 %s611, 1
          %s901 = scalar_lea.vmem [#allocation14], %s900
          %s903 = ssub.s32 16, 16
          %904 = vsyncadd %s899, %s903
          %s905 = smul.addr %s51, 16
          %s906 = scalar_lea.hbm %s21, %s905
          %s908 = sshll.u32 %s901, 4
          %s909 = int_to_ptr.vmem [resolvable:$true] %s908
          %911 = dma.hbm_to_vmem [thread:$0]  %s906, 16, %s909, %s899
        $region104: #{_lambda_.1} parent=15 // pred_fallthru
          _
      $region16: #{_lambda_.1} parent=5 // pred_fallthru
        _
      %p912 = scmp.le.s32.totalorder 1, %s43
      %p913 = scmp.lt.s32.totalorder %s43, 5
      %p914 = pnand %p912, %p913
      %p915 = pneg %p914
      // Predicated region
      $region105: #{_lambda_.1} parent=5 // pred_check
        _
      $region106: #{_lambda_.1} parent=5 // pred_check_branch
        %917 = sbr.rel (%p914) target = $region108
      $region107: #{_lambda_.1} parent=5 // pred_region
        %s918 = ssub.s32 %s43, 1
        %s919 = sand.u32 %s354, 1
        %s920 = scalar_lea.sflag [#allocation4], %s919
        %s921 = sand.u32 %s354, 1
        %s922 = scalar_lea.vmem [#allocation3], %s921
        // Predicated region
        $region109: #{_lambda_.1} parent=107 // pred_check
          %p923 = pneg %p367
        $region110: #{_lambda_.1} parent=107 // pred_check_branch
          %925 = sbr.rel (%p923) target = $region112
        $region111: #{_lambda_.1} parent=107 // pred_region
          %926 = dma.done %s920, 16
        $region112: #{_lambda_.1} parent=107 // pred_fallthru
          _
        %s927 = sand.u32 %s48, 1
        %s928 = scalar_lea.sflag [#allocation6], %s927
        %s929 = sand.u32 %s406, 1
        %s930 = scalar_lea.vmem [#allocation5], %s929
        // Predicated region
        $region113: #{_lambda_.1} parent=107 // pred_check
          %p931 = pneg %p419
        $region114: #{_lambda_.1} parent=107 // pred_check_branch
          %933 = sbr.rel (%p931) target = $region116
        $region115: #{_lambda_.1} parent=107 // pred_region
          %934 = dma.done %s928, 16
        $region116: #{_lambda_.1} parent=107 // pred_fallthru
          _
        %s935 = sand.u32 %s48, 1
        %s936 = scalar_lea.sflag [#allocation6], %s935
        %s937 = sand.u32 %s432, 1
        %s938 = scalar_lea.vmem [#allocation7], %s937
        // Predicated region
        $region117: #{_lambda_.1} parent=107 // pred_check
          %p939 = pneg %p445
        $region118: #{_lambda_.1} parent=107 // pred_check_branch
          %941 = sbr.rel (%p939) target = $region120
        $region119: #{_lambda_.1} parent=107 // pred_region
          %942 = dma.done %s936, 16
        $region120: #{_lambda_.1} parent=107 // pred_fallthru
          _
        %s943 = sand.u32 %s48, 1
        %s944 = scalar_lea.sflag [#allocation9], %s943
        %s945 = sand.u32 %s458, 1
        %s946 = scalar_lea.vmem [#allocation8], %s945
        // Predicated region
        $region121: #{_lambda_.1} parent=107 // pred_check
          %p947 = pneg %p471
        $region122: #{_lambda_.1} parent=107 // pred_check_branch
          %949 = sbr.rel (%p947) target = $region124
        $region123: #{_lambda_.1} parent=107 // pred_region
          %950 = dma.done %s944, 16
        $region124: #{_lambda_.1} parent=107 // pred_fallthru
          _
        %s951 = sand.u32 %s48, 1
        %s952 = scalar_lea.sflag [#allocation9], %s951
        %s953 = sand.u32 %s510, 1
        %s954 = scalar_lea.vmem [#allocation10], %s953
        // Predicated region
        $region125: #{_lambda_.1} parent=107 // pred_check
          %p955 = pneg %p523
        $region126: #{_lambda_.1} parent=107 // pred_check_branch
          %957 = sbr.rel (%p955) target = $region128
        $region127: #{_lambda_.1} parent=107 // pred_region
          %958 = dma.done %s952, 16
        $region128: #{_lambda_.1} parent=107 // pred_fallthru
          _
        %s959 = sand.u32 %s48, 1
        %s960 = scalar_lea.sflag [#allocation12], %s959
        %s961 = sand.u32 %s562, 1
        %s962 = scalar_lea.vmem [#allocation11], %s961
        // Predicated region
        $region129: #{_lambda_.1} parent=107 // pred_check
          %p963 = pneg %p575
        $region130: #{_lambda_.1} parent=107 // pred_check_branch
          %965 = sbr.rel (%p963) target = $region132
        $region131: #{_lambda_.1} parent=107 // pred_region
          %966 = dma.done %s960, 16
        $region132: #{_lambda_.1} parent=107 // pred_fallthru
          _
        %s967 = sand.u32 %s48, 1
        %s968 = scalar_lea.sflag [#allocation12], %s967
        %s969 = sand.u32 %s588, 1
        %s970 = scalar_lea.vmem [#allocation13], %s969
        // Predicated region
        $region133: #{_lambda_.1} parent=107 // pred_check
          %p971 = pneg %p601
        $region134: #{_lambda_.1} parent=107 // pred_check_branch
          %973 = sbr.rel (%p971) target = $region136
        $region135: #{_lambda_.1} parent=107 // pred_region
          %974 = dma.done %s968, 16
        $region136: #{_lambda_.1} parent=107 // pred_fallthru
          _
        %s975 = sand.u32 %s614, 1
        %s976 = scalar_lea.sflag [#allocation15], %s975
        %s977 = sand.u32 %s614, 1
        %s978 = scalar_lea.vmem [#allocation14], %s977
        // Predicated region
        $region137: #{_lambda_.1} parent=107 // pred_check
          %p979 = pneg %p627
        $region138: #{_lambda_.1} parent=107 // pred_check_branch
          %981 = sbr.rel (%p979) target = $region140
        $region139: #{_lambda_.1} parent=107 // pred_region
          %982 = dma.done %s976, 16
        $region140: #{_lambda_.1} parent=107 // pred_fallthru
          _
        %s983 = smul.u32 4, %s52
        %p984 = scmp.lt.s32.totalorder %s983, 7
        %s985 = scalar_select %p984, %s983, 7
        %s986 = smul.addr %s985, 8
        %s987 = scalar_lea.vmem %s0, %s986
        %p988 = pneg %p81
        %p989 = pneg %p78
        %s990 = smul.u32 4, %s52
        %p991 = scmp.lt.s32.totalorder %s990, 7
        %s992 = scalar_select %p991, %s990, 7
        %s993 = smul.addr %s992, 8
        %s994 = scalar_lea.vmem %s1, %s993
        %p995 = pneg %p107
        %p996 = pneg %p104
        %p997 = scmp.lt.s32.totalorder %s53, 1
        %s998 = scalar_select %p997, %s53, 1
        %s999 = smul.addr %s998, 4
        %s1000 = smul.addr %s999, 4
        %s1001 = scalar_lea.vmem %s2, %s1000
        %p1002 = pneg %p133
        %p1003 = pneg %p130
        %p1004 = scmp.lt.s32.totalorder %s53, 1
        %s1005 = scalar_select %p1004, %s53, 1
        %s1006 = scalar_lea.vmem %s3, %s1005
        %p1007 = pneg %p159
        %p1008 = pneg %p156
        %p1009 = scmp.lt.s32.totalorder %s53, 1
        %s1010 = scalar_select %p1009, %s53, 1
        %s1011 = smul.addr %s1010, 4
        %s1012 = smul.addr %s1011, 4
        %s1013 = scalar_lea.vmem %s4, %s1012
        %p1014 = pneg %p185
        %p1015 = pneg %p182
        %p1016 = scmp.lt.s32.totalorder %s53, 1
        %s1017 = scalar_select %p1016, %s53, 1
        %s1018 = scalar_lea.vmem %s5, %s1017
        %p1019 = pneg %p211
        %p1020 = pneg %p208
        %p1021 = scmp.lt.s32.totalorder %s53, 1
        %s1022 = scalar_select %p1021, %s53, 1
        %s1023 = scalar_lea.vmem %s6, %s1022
        %p1024 = pneg %p237
        %p1025 = pneg %p234
        %p1026 = scmp.lt.s32.totalorder %s53, 1
        %s1027 = scalar_select %p1026, %s53, 1
        %s1028 = scalar_lea.vmem %s7, %s1027
        %p1029 = pneg %p263
        %p1030 = pneg %p260
        %p1031 = scmp.lt.s32.totalorder %s53, 1
        %s1032 = scalar_select %p1031, %s53, 1
        %s1033 = smul.addr %s1032, 4
        %s1034 = smul.addr %s1033, 4
        %s1035 = scalar_lea.vmem %s8, %s1034
        %p1036 = pneg %p289
        %p1037 = pneg %p286
        %p1038 = scmp.lt.s32.totalorder %s53, 1
        %s1039 = scalar_select %p1038, %s53, 1
        %s1040 = scalar_lea.vmem %s9, %s1039
        %p1041 = pneg %p315
        %p1042 = pneg %p312
        %p1043 = scmp.lt.s32.totalorder %s53, 1
        %s1044 = scalar_select %p1043, %s53, 1
        %s1045 = smul.addr %s1044, 4
        %s1046 = smul.addr %s1045, 4
        %s1047 = scalar_lea.vmem %s10, %s1046
        %p1048 = pneg %p341
        %p1049 = pneg %p338
        %s1050 = sand.u32 %s354, 1
        %s1051 = scalar_lea.sflag [#allocation4], %s1050
        %s1052 = sand.u32 %s354, 1
        %s1053 = scalar_lea.vmem [#allocation3], %s1052
        %p1054 = pneg %p367
        %p1055 = pneg %p364
        %p1056 = scmp.lt.s32.totalorder %s53, 1
        %s1057 = scalar_select %p1056, %s53, 1
        %s1058 = smul.addr %s1057, 4
        %s1059 = smul.addr %s1058, 4
        %s1060 = scalar_lea.vmem %s12, %s1059
        %p1061 = pneg %p393
        %p1062 = pneg %p390
        %s1063 = sand.u32 %s48, 1
        %s1064 = scalar_lea.sflag [#allocation6], %s1063
        %s1065 = sand.u32 %s406, 1
        %s1066 = scalar_lea.vmem [#allocation5], %s1065
        %p1067 = pneg %p419
        %p1068 = pneg %p416
        %s1069 = sand.u32 %s48, 1
        %s1070 = scalar_lea.sflag [#allocation6], %s1069
        %s1071 = sand.u32 %s432, 1
        %s1072 = scalar_lea.vmem [#allocation7], %s1071
        %p1073 = pneg %p445
        %p1074 = pneg %p442
        %s1075 = sand.u32 %s48, 1
        %s1076 = scalar_lea.sflag [#allocation9], %s1075
        %s1077 = sand.u32 %s458, 1
        %s1078 = scalar_lea.vmem [#allocation8], %s1077
        %p1079 = pneg %p471
        %p1080 = pneg %p468
        %p1081 = scmp.lt.s32.totalorder %s53, 1
        %s1082 = scalar_select %p1081, %s53, 1
        %s1083 = smul.addr %s1082, 4
        %s1084 = smul.addr %s1083, 4
        %s1085 = scalar_lea.vmem %s16, %s1084
        %p1086 = pneg %p497
        %p1087 = pneg %p494
        %s1088 = sand.u32 %s48, 1
        %s1089 = scalar_lea.sflag [#allocation9], %s1088
        %s1090 = sand.u32 %s510, 1
        %s1091 = scalar_lea.vmem [#allocation10], %s1090
        %p1092 = pneg %p523
        %p1093 = pneg %p520
        %p1094 = scmp.lt.s32.totalorder %s53, 1
        %s1095 = scalar_select %p1094, %s53, 1
        %s1096 = smul.addr %s1095, 16
        %s1097 = smul.addr %s1096, 4
        %s1098 = scalar_lea.vmem %s18, %s1097
        %p1099 = pneg %p549
        %p1100 = pneg %p546
        %s1101 = sand.u32 %s48, 1
        %s1102 = scalar_lea.sflag [#allocation12], %s1101
        %s1103 = sand.u32 %s562, 1
        %s1104 = scalar_lea.vmem [#allocation11], %s1103
        %p1105 = pneg %p575
        %p1106 = pneg %p572
        %s1107 = sand.u32 %s48, 1
        %s1108 = scalar_lea.sflag [#allocation12], %s1107
        %s1109 = sand.u32 %s588, 1
        %s1110 = scalar_lea.vmem [#allocation13], %s1109
        %p1111 = pneg %p601
        %p1112 = pneg %p598
        %s1113 = sand.u32 %s614, 1
        %s1114 = scalar_lea.sflag [#allocation15], %s1113
        %s1115 = sand.u32 %s614, 1
        %s1116 = scalar_lea.vmem [#allocation14], %s1115
        %p1117 = pneg %p627
        %p1118 = pneg %p624
        %p1119 = pneg %p653
        %p1120 = pneg %p650
        %s1121 = smul.u32 4, %s52
        %p1122 = scmp.lt.s32.totalorder %s1121, 7
        %s1123 = scalar_select %p1122, %s1121, 7
        %s1124 = smul.addr %s1123, 8
        %s1125 = scalar_lea.vmem %s22, %s1124
        %s1126 = smul.u32 4, %s52
        %p1127 = scmp.lt.s32.totalorder %s1126, 7
        %s1128 = scalar_select %p1127, %s1126, 7
        %s1129 = smul.addr %s1128, 8
        %s1130 = scalar_lea.vmem %s0, %s1129
        %s1131 = smul.u32 4, %s52
        %s1132 = smul.u32 4, %s52
        %p1133 = scmp.lt.s32.totalorder %s1132, 7
        %s1134 = scalar_select %p1133, %s1132, 7
        %s1135 = smul.addr %s1134, 8
        %s1136 = scalar_lea.vmem %s1, %s1135
        %s1137 = smul.u32 4, %s52
        %p1138 = scmp.lt.s32.totalorder %s53, 1
        %s1139 = scalar_select %p1138, %s53, 1
        %s1140 = smul.addr %s1139, 4
        %s1141 = smul.addr %s1140, 4
        %s1142 = scalar_lea.vmem %s2, %s1141
        %p1143 = scmp.lt.s32.totalorder %s53, 1
        %s1144 = scalar_select %p1143, %s53, 1
        %s1145 = scalar_lea.vmem %s3, %s1144
        %p1146 = scmp.lt.s32.totalorder %s53, 1
        %s1147 = scalar_select %p1146, %s53, 1
        %s1148 = smul.addr %s1147, 4
        %s1149 = smul.addr %s1148, 4
        %s1150 = scalar_lea.vmem %s4, %s1149
        %p1151 = scmp.lt.s32.totalorder %s53, 1
        %s1152 = scalar_select %p1151, %s53, 1
        %s1153 = scalar_lea.vmem %s5, %s1152
        %p1154 = scmp.lt.s32.totalorder %s53, 1
        %s1155 = scalar_select %p1154, %s53, 1
        %s1156 = scalar_lea.vmem %s6, %s1155
        %p1157 = scmp.lt.s32.totalorder %s53, 1
        %s1158 = scalar_select %p1157, %s53, 1
        %s1159 = scalar_lea.vmem %s7, %s1158
        %p1160 = scmp.lt.s32.totalorder %s53, 1
        %s1161 = scalar_select %p1160, %s53, 1
        %s1162 = smul.addr %s1161, 4
        %s1163 = smul.addr %s1162, 4
        %s1164 = scalar_lea.vmem %s8, %s1163
        %p1165 = scmp.lt.s32.totalorder %s53, 1
        %s1166 = scalar_select %p1165, %s53, 1
        %s1167 = scalar_lea.vmem %s9, %s1166
        %p1168 = scmp.lt.s32.totalorder %s53, 1
        %s1169 = scalar_select %p1168, %s53, 1
        %s1170 = smul.addr %s1169, 4
        %s1171 = smul.addr %s1170, 4
        %s1172 = scalar_lea.vmem %s10, %s1171
        %p1173 = scmp.lt.s32.totalorder %s53, 1
        %s1174 = scalar_select %p1173, %s53, 1
        %s1175 = smul.addr %s1174, 4
        %s1176 = smul.addr %s1175, 4
        %s1177 = scalar_lea.vmem %s12, %s1176
        %p1178 = scmp.lt.s32.totalorder %s53, 1
        %s1179 = scalar_select %p1178, %s53, 1
        %s1180 = smul.addr %s1179, 4
        %s1181 = smul.addr %s1180, 4
        %s1182 = scalar_lea.vmem %s16, %s1181
        %p1183 = scmp.lt.s32.totalorder %s53, 1
        %s1184 = scalar_select %p1183, %s53, 1
        %s1185 = smul.addr %s1184, 16
        %s1186 = smul.addr %s1185, 4
        %s1187 = scalar_lea.vmem %s18, %s1186
        %s1188 = smul.u32 4, %s52
        %p1189 = scmp.lt.s32.totalorder %s1188, 7
        %s1190 = scalar_select %p1189, %s1188, 7
        %s1191 = smul.addr %s1190, 8
        %s1192 = scalar_lea.vmem %s22, %s1191
        %s1193 = smul.u32 4, %s52
        %p1195 = scmp.eq.s32.totalorder %s53, 0
        // Predicated region
        $region141: #{_lambda_.1} parent=107 // pred_check
          %p1196 = pneg %p1195
        $region142: #{_lambda_.1} parent=107 // pred_check_branch
          %1198 = sbr.rel (%p1196) target = $region144
        $region143: #{_lambda_.1} parent=107 // pred_region
          %v1199 = vld [vmem:[%s1130] sm:$0xff]
          %v1200 = vld [vmem:[%s1130 + $0x8] sm:$0xff]
          %v1201 = vld [vmem:[%s1130 + $0x10] sm:$0xff]
          %v1202 = vld [vmem:[%s1130 + $0x18] sm:$0xff]
          %vm1203 = vcmask 261120
          %1204 = vst.msk [vmem:[#allocation2] sm:$0xff] %vm1203, %v1199
          %1205 = vst.msk [vmem:[#allocation2 + $0x8] sm:$0xff] %vm1203, %v1200
          %1206 = vst.msk [vmem:[#allocation2 + $0x10] sm:$0xff] %vm1203, %v1201
          %1207 = vst.msk [vmem:[#allocation2 + $0x18] sm:$0xff] %vm1203, %v1202
        $region144: #{_lambda_.1} parent=107 // pred_fallthru
          _
        %v1208 = vld [vmem:[#allocation2] sm:$0xff]
        %v1209 = vld [vmem:[#allocation2 + $0x8] sm:$0xff]
        %v1210 = vld [vmem:[#allocation2 + $0x10] sm:$0xff]
        %v1211 = vld [vmem:[#allocation2 + $0x18] sm:$0xff]
        %v1212 = vld [vmem:[%s1136] sm:$0xff]
        %v1213 = vld [vmem:[%s1136 + $0x8] sm:$0xff]
        %v1214 = vld [vmem:[%s1136 + $0x10] sm:$0xff]
        %v1215 = vld [vmem:[%s1136 + $0x18] sm:$0xff]
        %v1216 = vlaneseq
        %v1217 = vshrl.u32 %v1216, 7
        %v1218 = vlaneseq
        %v1219 = vand.u32 %v1218, 127
        %vm1220 = vcmp.le.s32.totalorder %v1219, %v1217
        %v1221 = vsel %vm1220, 0.0, -1e+30
        %v1222 = vpack.c.bf16 %v1209, %v1208
        %v1223 = vpack.c.bf16 %v1211, %v1210
        %v1224 = vld [vmem:[%s1142] sm:$0xf]
        %v1225 = vld [vmem:[%s1142 + $0x4] sm:$0xf]
        %v1226 = vld [vmem:[%s1142 + $0x8] sm:$0xf]
        %v1227 = vld [vmem:[%s1142 + $0xc] sm:$0xf]
        %v1228 = vld [vmem:[%s1145] sm:$0x1]
        %v1230 = vlaneseq
        %v1231 = vshrl.u32 %v1230, 7
        %v1232 = vsub.s32 0, %v1231
        %v1233 = vrot.slane %v1228, %v1232
        %v1239 = vunpack.c.l.b16 %v1224
        %v1240 = vunpack.c.l.b16 %v1225
        %v1241 = vunpack.c.l.b16 %v1226
        %v1242 = vunpack.c.l.b16 %v1227
        %v1243 = vpack.c.b16 %v1240, %v1239
        %v1244 = vpack.c.b16 %v1242, %v1241
        %vm1247 = vcmask 261120
        %v1249 = vsel %vm1247, %v1222, 0
        %v1252 = vsel %vm1247, %v1223, 0
        %1254 = vmatprep.subr.bf16.mxu0 0
        %1255 = vmatpush1.bf16.msra.mxu0 %v1243
        %1256 = vmatprep.subr.bf16.mxu0 0
        %1257 = vmatpush1.bf16.msra.mxu0 %v1244
        %1258 = vmatprep.subr.bf16.mxu0 0
        %1259 = vmatpush1.bf16.msra.mxu0 0
        %1260 = vmatprep.subr.bf16.mxu0 0
        %1261 = vmatpush1.bf16.msra.mxu0 0
        %1262 = vmatprep.subr.bf16.mxu0 0
        %1263 = vmatpush1.bf16.msra.mxu0 0
        %1264 = vmatprep.subr.bf16.mxu0 0
        %1265 = vmatpush1.bf16.msra.mxu0 0
        %1266 = vmatprep.subr.bf16.mxu0 0
        %1267 = vmatpush1.bf16.msra.mxu0 0
        %1268 = vmatprep.subr.bf16.mxu0 0
        %1269 = vmatpush1.bf16.msra.mxu0 0
        %1270 = vmatprep.subr.bf16.mxu0 0
        %1271 = vmatpush1.bf16.msra.mxu0 0
        %1272 = vmatprep.subr.bf16.mxu0 0
        %1273 = vmatpush1.bf16.msra.mxu0 0
        %1274 = vmatprep.subr.bf16.mxu0 0
        %1275 = vmatpush1.bf16.msra.mxu0 0
        %1276 = vmatprep.subr.bf16.mxu0 0
        %1277 = vmatpush1.bf16.msra.mxu0 0
        %1278 = vmatprep.subr.bf16.mxu0 0
        %1279 = vmatpush1.bf16.msra.mxu0 0
        %1280 = vmatprep.subr.bf16.mxu0 0
        %1281 = vmatpush1.bf16.msra.mxu0 0
        %1282 = vmatprep.subr.bf16.mxu0 0
        %1283 = vmatpush1.bf16.msra.mxu0 0
        %1284 = vmatprep.subr.bf16.mxu0 0
        %1285 = vmatpush1.bf16.msra.mxu0 0
        %1286 = vmatprep.mubr.bf16.mxu0 0
        %1287 = vmatmul.mubr.bf16.gmra.mrb[0].mxu0 %v1249
        %v1288 = vpop.f32.mrb[0].mxu0
        %v1289 = vadd.f32 %v1233, %v1288
        %v1290 = vpop.f32.mrb[0].mxu0
        %v1291 = vpop.f32.mrb[0].mxu0
        %v1292 = vadd.f32 %v1233, %v1291
        %v1293 = vpop.f32.mrb[0].mxu0
        %1294 = vmatprep.mubr.bf16.mxu0 0
        %1295 = vmatmul.mubr.bf16.gmra.mrb[0].mxu0 %v1252
        %v1296 = vpop.f32.mrb[0].mxu0
        %v1297 = vadd.f32 %v1233, %v1296
        %v1298 = vpop.f32.mrb[0].mxu0
        %v1299 = vpop.f32.mrb[0].mxu0
        %v1300 = vadd.f32 %v1233, %v1299
        %v1301 = vpop.f32.mrb[0].mxu0
        %1302 = vdwg.mxu0
        %v1303 = vld [vmem:[%s1150] sm:$0xf]
        %v1304 = vld [vmem:[%s1150 + $0x4] sm:$0xf]
        %v1305 = vld [vmem:[%s1150 + $0x8] sm:$0xf]
        %v1306 = vld [vmem:[%s1150 + $0xc] sm:$0xf]
        %v1307 = vld [vmem:[%s1153] sm:$0x1]
        %v1308 = vpack.c.bf16 %v1289, %v1289
        %v1309 = vpack.c.bf16 %v1292, %v1292
        %v1310 = vpack.c.bf16 %v1297, %v1297
        %v1311 = vpack.c.bf16 %v1300, %v1300
        %1313 = vrot.lane.b32.xlu0 %v1308, 96
        %v1314 = vpop.permute.xlu0 %1313
        %vm1315 = vcmask 64512
        %v1317 = vsel %vm1315, %v1308, 0
        %v1320 = vsel %vm1315, %v1314, 0
        %1322 = vmatprep.subr.bf16.mxu0 0
        %1323 = vmatpush1.bf16.xpose.msra.mxu0 %v1320
        %1324 = vmatprep.subr.bf16.mxu0 0
        %1325 = vmatpush1.bf16.xpose.msra.mxu0 0
        %1326 = vmatprep.subr.bf16.mxu0 0
        %1327 = vmatpush1.bf16.xpose.msra.mxu0 0
        %1328 = vmatprep.subr.bf16.mxu0 0
        %1329 = vmatpush1.bf16.xpose.msra.mxu0 0
        %1330 = vmatprep.subr.bf16.mxu0 0
        %1331 = vmatpush1.bf16.xpose.msra.mxu0 0
        %1332 = vmatprep.subr.bf16.mxu0 0
        %1333 = vmatpush1.bf16.xpose.msra.mxu0 0
        %1334 = vmatprep.subr.bf16.mxu0 0
        %1335 = vmatpush1.bf16.xpose.msra.mxu0 0
        %1336 = vmatprep.subr.bf16.mxu0 0
        %1337 = vmatpush1.bf16.xpose.msra.mxu0 0
        %1338 = vmatprep.subr.bf16.mxu0 0
        %1339 = vmatpush1.bf16.xpose.msra.mxu0 0
        %1340 = vmatprep.subr.bf16.mxu0 0
        %1341 = vmatpush1.bf16.xpose.msra.mxu0 0
        %1342 = vmatprep.subr.bf16.mxu0 0
        %1343 = vmatpush1.bf16.xpose.msra.mxu0 0
        %1344 = vmatprep.subr.bf16.mxu0 0
        %1345 = vmatpush1.bf16.xpose.msra.mxu0 0
        %1346 = vmatprep.subr.bf16.mxu0 0
        %1347 = vmatpush1.bf16.xpose.msra.mxu0 0
        %1348 = vmatprep.subr.bf16.mxu0 0
        %1349 = vmatpush1.bf16.xpose.msra.mxu0 0
        %1350 = vmatprep.subr.bf16.mxu0 0
        %1351 = vmatpush1.bf16.xpose.msra.mxu0 0
        %1352 = vmatprep.subr.bf16.mxu0 0
        %1353 = vmatpush1.bf16.xpose.msra.mxu0 0
        %1354 = vmatprep.mubr.bf16.mxu0 0
        %1355 = vmatmul.mubr.bf16.gmra.mrb[0].mxu0 %v1317
        %v1356 = vpop.f32.mrb[0].mxu0
        %v1357 = vadd.f32 %v1221, %v1356
        %v1358 = vpop.f32.mrb[0].mxu0
        %v1359 = vpop.f32.mrb[0].mxu0
        %v1360 = vpop.f32.mrb[0].mxu0
        %1361 = vdwg.mxu0
        %1363 = vrot.lane.b32.xlu0 %v1309, 96
        %v1364 = vpop.permute.xlu0 %1363
        %v1366 = vsel %vm1315, %v1309, 0
        %v1369 = vsel %vm1315, %v1364, 0
        %1371 = vmatprep.subr.bf16.mxu0 0
        %1372 = vmatpush1.bf16.xpose.msra.mxu0 %v1369
        %1373 = vmatprep.subr.bf16.mxu0 0
        %1374 = vmatpush1.bf16.xpose.msra.mxu0 0
        %1375 = vmatprep.subr.bf16.mxu0 0
        %1376 = vmatpush1.bf16.xpose.msra.mxu0 0
        %1377 = vmatprep.subr.bf16.mxu0 0
        %1378 = vmatpush1.bf16.xpose.msra.mxu0 0
        %1379 = vmatprep.subr.bf16.mxu0 0
        %1380 = vmatpush1.bf16.xpose.msra.mxu0 0
        %1381 = vmatprep.subr.bf16.mxu0 0
        %1382 = vmatpush1.bf16.xpose.msra.mxu0 0
        %1383 = vmatprep.subr.bf16.mxu0 0
        %1384 = vmatpush1.bf16.xpose.msra.mxu0 0
        %1385 = vmatprep.subr.bf16.mxu0 0
        %1386 = vmatpush1.bf16.xpose.msra.mxu0 0
        %1387 = vmatprep.subr.bf16.mxu0 0
        %1388 = vmatpush1.bf16.xpose.msra.mxu0 0
        %1389 = vmatprep.subr.bf16.mxu0 0
        %1390 = vmatpush1.bf16.xpose.msra.mxu0 0
        %1391 = vmatprep.subr.bf16.mxu0 0
        %1392 = vmatpush1.bf16.xpose.msra.mxu0 0
        %1393 = vmatprep.subr.bf16.mxu0 0
        %1394 = vmatpush1.bf16.xpose.msra.mxu0 0
        %1395 = vmatprep.subr.bf16.mxu0 0
        %1396 = vmatpush1.bf16.xpose.msra.mxu0 0
        %1397 = vmatprep.subr.bf16.mxu0 0
        %1398 = vmatpush1.bf16.xpose.msra.mxu0 0
        %1399 = vmatprep.subr.bf16.mxu0 0
        %1400 = vmatpush1.bf16.xpose.msra.mxu0 0
        %1401 = vmatprep.subr.bf16.mxu0 0
        %1402 = vmatpush1.bf16.xpose.msra.mxu0 0
        %1403 = vmatprep.mubr.bf16.mxu0 0
        %1404 = vmatmul.mubr.bf16.gmra.mrb[0].mxu0 %v1366
        %v1405 = vpop.f32.mrb[0].mxu0
        %v1406 = vadd.f32 %v1221, %v1405
        %v1407 = vpop.f32.mrb[0].mxu0
        %v1408 = vpop.f32.mrb[0].mxu0
        %v1409 = vpop.f32.mrb[0].mxu0
        %1410 = vdwg.mxu0
        %1412 = vrot.lane.b32.xlu0 %v1310, 96
        %v1413 = vpop.permute.xlu0 %1412
        %v1415 = vsel %vm1315, %v1310, 0
        %v1418 = vsel %vm1315, %v1413, 0
        %1420 = vmatprep.subr.bf16.mxu0 0
        %1421 = vmatpush1.bf16.xpose.msra.mxu0 %v1418
        %1422 = vmatprep.subr.bf16.mxu0 0
        %1423 = vmatpush1.bf16.xpose.msra.mxu0 0
        %1424 = vmatprep.subr.bf16.mxu0 0
        %1425 = vmatpush1.bf16.xpose.msra.mxu0 0
        %1426 = vmatprep.subr.bf16.mxu0 0
        %1427 = vmatpush1.bf16.xpose.msra.mxu0 0
        %1428 = vmatprep.subr.bf16.mxu0 0
        %1429 = vmatpush1.bf16.xpose.msra.mxu0 0
        %1430 = vmatprep.subr.bf16.mxu0 0
        %1431 = vmatpush1.bf16.xpose.msra.mxu0 0
        %1432 = vmatprep.subr.bf16.mxu0 0
        %1433 = vmatpush1.bf16.xpose.msra.mxu0 0
        %1434 = vmatprep.subr.bf16.mxu0 0
        %1435 = vmatpush1.bf16.xpose.msra.mxu0 0
        %1436 = vmatprep.subr.bf16.mxu0 0
        %1437 = vmatpush1.bf16.xpose.msra.mxu0 0
        %1438 = vmatprep.subr.bf16.mxu0 0
        %1439 = vmatpush1.bf16.xpose.msra.mxu0 0
        %1440 = vmatprep.subr.bf16.mxu0 0
        %1441 = vmatpush1.bf16.xpose.msra.mxu0 0
        %1442 = vmatprep.subr.bf16.mxu0 0
        %1443 = vmatpush1.bf16.xpose.msra.mxu0 0
        %1444 = vmatprep.subr.bf16.mxu0 0
        %1445 = vmatpush1.bf16.xpose.msra.mxu0 0
        %1446 = vmatprep.subr.bf16.mxu0 0
        %1447 = vmatpush1.bf16.xpose.msra.mxu0 0
        %1448 = vmatprep.subr.bf16.mxu0 0
        %1449 = vmatpush1.bf16.xpose.msra.mxu0 0
        %1450 = vmatprep.subr.bf16.mxu0 0
        %1451 = vmatpush1.bf16.xpose.msra.mxu0 0
        %1452 = vmatprep.mubr.bf16.mxu0 0
        %1453 = vmatmul.mubr.bf16.gmra.mrb[0].mxu0 %v1415
        %v1454 = vpop.f32.mrb[0].mxu0
        %v1455 = vadd.f32 %v1221, %v1454
        %v1456 = vpop.f32.mrb[0].mxu0
        %v1457 = vpop.f32.mrb[0].mxu0
        %v1458 = vpop.f32.mrb[0].mxu0
        %1459 = vdwg.mxu0
        %1461 = vrot.lane.b32.xlu0 %v1311, 96
        %v1462 = vpop.permute.xlu0 %1461
        %v1464 = vsel %vm1315, %v1311, 0
        %v1467 = vsel %vm1315, %v1462, 0
        %1469 = vmatprep.subr.bf16.mxu0 0
        %1470 = vmatpush1.bf16.xpose.msra.mxu0 %v1467
        %1471 = vmatprep.subr.bf16.mxu0 0
        %1472 = vmatpush1.bf16.xpose.msra.mxu0 0
        %1473 = vmatprep.subr.bf16.mxu0 0
        %1474 = vmatpush1.bf16.xpose.msra.mxu0 0
        %1475 = vmatprep.subr.bf16.mxu0 0
        %1476 = vmatpush1.bf16.xpose.msra.mxu0 0
        %1477 = vmatprep.subr.bf16.mxu0 0
        %1478 = vmatpush1.bf16.xpose.msra.mxu0 0
        %1479 = vmatprep.subr.bf16.mxu0 0
        %1480 = vmatpush1.bf16.xpose.msra.mxu0 0
        %1481 = vmatprep.subr.bf16.mxu0 0
        %1482 = vmatpush1.bf16.xpose.msra.mxu0 0
        %1483 = vmatprep.subr.bf16.mxu0 0
        %1484 = vmatpush1.bf16.xpose.msra.mxu0 0
        %1485 = vmatprep.subr.bf16.mxu0 0
        %1486 = vmatpush1.bf16.xpose.msra.mxu0 0
        %1487 = vmatprep.subr.bf16.mxu0 0
        %1488 = vmatpush1.bf16.xpose.msra.mxu0 0
        %1489 = vmatprep.subr.bf16.mxu0 0
        %1490 = vmatpush1.bf16.xpose.msra.mxu0 0
        %1491 = vmatprep.subr.bf16.mxu0 0
        %1492 = vmatpush1.bf16.xpose.msra.mxu0 0
        %1493 = vmatprep.subr.bf16.mxu0 0
        %1494 = vmatpush1.bf16.xpose.msra.mxu0 0
        %1495 = vmatprep.subr.bf16.mxu0 0
        %1496 = vmatpush1.bf16.xpose.msra.mxu0 0
        %1497 = vmatprep.subr.bf16.mxu0 0
        %1498 = vmatpush1.bf16.xpose.msra.mxu0 0
        %1499 = vmatprep.subr.bf16.mxu0 0
        %1500 = vmatpush1.bf16.xpose.msra.mxu0 0
        %1501 = vmatprep.mubr.bf16.mxu0 0
        %1502 = vmatmul.mubr.bf16.gmra.mrb[0].mxu0 %v1464
        %v1503 = vpop.f32.mrb[0].mxu0
        %v1504 = vadd.f32 %v1221, %v1503
        %v1505 = vpop.f32.mrb[0].mxu0
        %v1506 = vpop.f32.mrb[0].mxu0
        %v1507 = vpop.f32.mrb[0].mxu0
        %1508 = vdwg.mxu0
        %v1509 = vsel %vm1315, %v1357, -inf
        %1510 = vmax.xlane.f32.xlu0 %v1509
        %v1511 = vpop.xlane.xlu0 %1510
        %v1512 = vsel %vm1315, %v1406, -inf
        %1513 = vmax.xlane.f32.xlu0 %v1512
        %v1514 = vpop.xlane.xlu0 %1513
        %v1515 = vsel %vm1315, %v1455, -inf
        %1516 = vmax.xlane.f32.xlu0 %v1515
        %v1517 = vpop.xlane.xlu0 %1516
        %v1518 = vsel %vm1315, %v1504, -inf
        %1519 = vmax.xlane.f32.xlu0 %v1518
        %v1520 = vpop.xlane.xlu0 %1519
        %v1521 = vsub.f32 %v1357, %v1511
        %v1522 = vsub.f32 %v1406, %v1514
        %v1523 = vsub.f32 %v1455, %v1517
        %v1524 = vsub.f32 %v1504, %v1520
        %v1525 = vmul.f32 %v1521, 1.442695
        %v1526 = vpow.pop %v1525
        %v1527 = vmul.f32 %v1522, 1.442695
        %v1528 = vpow.pop %v1527
        %v1529 = vmul.f32 %v1523, 1.442695
        %v1530 = vpow.pop %v1529
        %v1531 = vmul.f32 %v1524, 1.442695
        %v1532 = vpow.pop %v1531
        %v1533 = vsel %vm1315, %v1526, 0.0
        %1534 = vadd.xlane.f32.xlu0 %v1533
        %v1535 = vpop.xlane.xlu0 %1534
        %v1536 = vsel %vm1315, %v1528, 0.0
        %1537 = vadd.xlane.f32.xlu0 %v1536
        %v1538 = vpop.xlane.xlu0 %1537
        %v1539 = vsel %vm1315, %v1530, 0.0
        %1540 = vadd.xlane.f32.xlu0 %v1539
        %v1541 = vpop.xlane.xlu0 %1540
        %v1542 = vsel %vm1315, %v1532, 0.0
        %1543 = vadd.xlane.f32.xlu0 %v1542
        %v1544 = vpop.xlane.xlu0 %1543
        %v1545 = vrcp.pop %v1535
        %v1546 = vrcp.pop %v1538
        %v1547 = vrcp.pop %v1541
        %v1548 = vrcp.pop %v1544
        %v1549 = vmul.f32 %v1526, %v1545
        %v1550 = vmul.f32 %v1528, %v1546
        %v1551 = vmul.f32 %v1530, %v1547
        %v1552 = vmul.f32 %v1532, %v1548
        %v1553 = vpack.c.bf16 %v1549, %v1549
        %v1554 = vpack.c.bf16 %v1550, %v1550
        %v1555 = vpack.c.bf16 %v1551, %v1551
        %v1556 = vpack.c.bf16 %v1552, %v1552
        %1557 = vrot.lane.b32.xlu0 %v1308, 64
        %v1558 = vpop.permute.xlu0 %1557
        %v1560 = vsel %vm1315, %v1553, 0
        %vm1562 = vcmask 1043456
        %v1564 = vsel %vm1562, %v1558, 0
        %1566 = vmatprep.subr.bf16.mxu0 0
        %1567 = vmatpush1.bf16.msra.mxu0 %v1564
        %1568 = vmatprep.subr.bf16.mxu0 0
        %1569 = vmatpush1.bf16.msra.mxu0 0
        %1570 = vmatprep.subr.bf16.mxu0 0
        %1571 = vmatpush1.bf16.msra.mxu0 0
        %1572 = vmatprep.subr.bf16.mxu0 0
        %1573 = vmatpush1.bf16.msra.mxu0 0
        %1574 = vmatprep.subr.bf16.mxu0 0
        %1575 = vmatpush1.bf16.msra.mxu0 0
        %1576 = vmatprep.subr.bf16.mxu0 0
        %1577 = vmatpush1.bf16.msra.mxu0 0
        %1578 = vmatprep.subr.bf16.mxu0 0
        %1579 = vmatpush1.bf16.msra.mxu0 0
        %1580 = vmatprep.subr.bf16.mxu0 0
        %1581 = vmatpush1.bf16.msra.mxu0 0
        %1582 = vmatprep.subr.bf16.mxu0 0
        %1583 = vmatpush1.bf16.msra.mxu0 0
        %1584 = vmatprep.subr.bf16.mxu0 0
        %1585 = vmatpush1.bf16.msra.mxu0 0
        %1586 = vmatprep.subr.bf16.mxu0 0
        %1587 = vmatpush1.bf16.msra.mxu0 0
        %1588 = vmatprep.subr.bf16.mxu0 0
        %1589 = vmatpush1.bf16.msra.mxu0 0
        %1590 = vmatprep.subr.bf16.mxu0 0
        %1591 = vmatpush1.bf16.msra.mxu0 0
        %1592 = vmatprep.subr.bf16.mxu0 0
        %1593 = vmatpush1.bf16.msra.mxu0 0
        %1594 = vmatprep.subr.bf16.mxu0 0
        %1595 = vmatpush1.bf16.msra.mxu0 0
        %1596 = vmatprep.subr.bf16.mxu0 0
        %1597 = vmatpush1.bf16.msra.mxu0 0
        %1598 = vmatprep.mubr.bf16.mxu0 0
        %1599 = vmatmul.mubr.bf16.gmra.mrb[0].mxu0 %v1560
        %v1600 = vpop.f32.mrb[0].mxu0
        %v1601 = vadd.f32 0.0, %v1600
        %v1602 = vpop.f32.mrb[0].mxu0
        %v1603 = vpop.f32.mrb[0].mxu0
        %v1604 = vpop.f32.mrb[0].mxu0
        %1605 = vdwg.mxu0
        %1606 = vrot.lane.b32.xlu0 %v1309, 64
        %v1607 = vpop.permute.xlu0 %1606
        %v1609 = vsel %vm1315, %v1554, 0
        %v1612 = vsel %vm1562, %v1607, 0
        %1614 = vmatprep.subr.bf16.mxu0 0
        %1615 = vmatpush1.bf16.msra.mxu0 %v1612
        %1616 = vmatprep.subr.bf16.mxu0 0
        %1617 = vmatpush1.bf16.msra.mxu0 0
        %1618 = vmatprep.subr.bf16.mxu0 0
        %1619 = vmatpush1.bf16.msra.mxu0 0
        %1620 = vmatprep.subr.bf16.mxu0 0
        %1621 = vmatpush1.bf16.msra.mxu0 0
        %1622 = vmatprep.subr.bf16.mxu0 0
        %1623 = vmatpush1.bf16.msra.mxu0 0
        %1624 = vmatprep.subr.bf16.mxu0 0
        %1625 = vmatpush1.bf16.msra.mxu0 0
        %1626 = vmatprep.subr.bf16.mxu0 0
        %1627 = vmatpush1.bf16.msra.mxu0 0
        %1628 = vmatprep.subr.bf16.mxu0 0
        %1629 = vmatpush1.bf16.msra.mxu0 0
        %1630 = vmatprep.subr.bf16.mxu0 0
        %1631 = vmatpush1.bf16.msra.mxu0 0
        %1632 = vmatprep.subr.bf16.mxu0 0
        %1633 = vmatpush1.bf16.msra.mxu0 0
        %1634 = vmatprep.subr.bf16.mxu0 0
        %1635 = vmatpush1.bf16.msra.mxu0 0
        %1636 = vmatprep.subr.bf16.mxu0 0
        %1637 = vmatpush1.bf16.msra.mxu0 0
        %1638 = vmatprep.subr.bf16.mxu0 0
        %1639 = vmatpush1.bf16.msra.mxu0 0
        %1640 = vmatprep.subr.bf16.mxu0 0
        %1641 = vmatpush1.bf16.msra.mxu0 0
        %1642 = vmatprep.subr.bf16.mxu0 0
        %1643 = vmatpush1.bf16.msra.mxu0 0
        %1644 = vmatprep.subr.bf16.mxu0 0
        %1645 = vmatpush1.bf16.msra.mxu0 0
        %1646 = vmatprep.mubr.bf16.mxu0 0
        %1647 = vmatmul.mubr.bf16.gmra.mrb[0].mxu0 %v1609
        %v1648 = vpop.f32.mrb[0].mxu0
        %v1649 = vadd.f32 0.0, %v1648
        %v1650 = vpop.f32.mrb[0].mxu0
        %v1651 = vpop.f32.mrb[0].mxu0
        %v1652 = vpop.f32.mrb[0].mxu0
        %1653 = vdwg.mxu0
        %1654 = vrot.lane.b32.xlu0 %v1310, 64
        %v1655 = vpop.permute.xlu0 %1654
        %v1657 = vsel %vm1315, %v1555, 0
        %v1660 = vsel %vm1562, %v1655, 0
        %1662 = vmatprep.subr.bf16.mxu0 0
        %1663 = vmatpush1.bf16.msra.mxu0 %v1660
        %1664 = vmatprep.subr.bf16.mxu0 0
        %1665 = vmatpush1.bf16.msra.mxu0 0
        %1666 = vmatprep.subr.bf16.mxu0 0
        %1667 = vmatpush1.bf16.msra.mxu0 0
        %1668 = vmatprep.subr.bf16.mxu0 0
        %1669 = vmatpush1.bf16.msra.mxu0 0
        %1670 = vmatprep.subr.bf16.mxu0 0
        %1671 = vmatpush1.bf16.msra.mxu0 0
        %1672 = vmatprep.subr.bf16.mxu0 0
        %1673 = vmatpush1.bf16.msra.mxu0 0
        %1674 = vmatprep.subr.bf16.mxu0 0
        %1675 = vmatpush1.bf16.msra.mxu0 0
        %1676 = vmatprep.subr.bf16.mxu0 0
        %1677 = vmatpush1.bf16.msra.mxu0 0
        %1678 = vmatprep.subr.bf16.mxu0 0
        %1679 = vmatpush1.bf16.msra.mxu0 0
        %1680 = vmatprep.subr.bf16.mxu0 0
        %1681 = vmatpush1.bf16.msra.mxu0 0
        %1682 = vmatprep.subr.bf16.mxu0 0
        %1683 = vmatpush1.bf16.msra.mxu0 0
        %1684 = vmatprep.subr.bf16.mxu0 0
        %1685 = vmatpush1.bf16.msra.mxu0 0
        %1686 = vmatprep.subr.bf16.mxu0 0
        %1687 = vmatpush1.bf16.msra.mxu0 0
        %1688 = vmatprep.subr.bf16.mxu0 0
        %1689 = vmatpush1.bf16.msra.mxu0 0
        %1690 = vmatprep.subr.bf16.mxu0 0
        %1691 = vmatpush1.bf16.msra.mxu0 0
        %1692 = vmatprep.subr.bf16.mxu0 0
        %1693 = vmatpush1.bf16.msra.mxu0 0
        %1694 = vmatprep.mubr.bf16.mxu0 0
        %1695 = vmatmul.mubr.bf16.gmra.mrb[0].mxu0 %v1657
        %v1696 = vpop.f32.mrb[0].mxu0
        %v1697 = vadd.f32 0.0, %v1696
        %v1698 = vpop.f32.mrb[0].mxu0
        %v1699 = vpop.f32.mrb[0].mxu0
        %v1700 = vpop.f32.mrb[0].mxu0
        %1701 = vdwg.mxu0
        %1702 = vrot.lane.b32.xlu0 %v1311, 64
        %v1703 = vpop.permute.xlu0 %1702
        %v1705 = vsel %vm1315, %v1556, 0
        %v1708 = vsel %vm1562, %v1703, 0
        %1710 = vmatprep.subr.bf16.mxu0 0
        %1711 = vmatpush1.bf16.msra.mxu0 %v1708
        %1712 = vmatprep.subr.bf16.mxu0 0
        %1713 = vmatpush1.bf16.msra.mxu0 0
        %1714 = vmatprep.subr.bf16.mxu0 0
        %1715 = vmatpush1.bf16.msra.mxu0 0
        %1716 = vmatprep.subr.bf16.mxu0 0
        %1717 = vmatpush1.bf16.msra.mxu0 0
        %1718 = vmatprep.subr.bf16.mxu0 0
        %1719 = vmatpush1.bf16.msra.mxu0 0
        %1720 = vmatprep.subr.bf16.mxu0 0
        %1721 = vmatpush1.bf16.msra.mxu0 0
        %1722 = vmatprep.subr.bf16.mxu0 0
        %1723 = vmatpush1.bf16.msra.mxu0 0
        %1724 = vmatprep.subr.bf16.mxu0 0
        %1725 = vmatpush1.bf16.msra.mxu0 0
        %1726 = vmatprep.subr.bf16.mxu0 0
        %1727 = vmatpush1.bf16.msra.mxu0 0
        %1728 = vmatprep.subr.bf16.mxu0 0
        %1729 = vmatpush1.bf16.msra.mxu0 0
        %1730 = vmatprep.subr.bf16.mxu0 0
        %1731 = vmatpush1.bf16.msra.mxu0 0
        %1732 = vmatprep.subr.bf16.mxu0 0
        %1733 = vmatpush1.bf16.msra.mxu0 0
        %1734 = vmatprep.subr.bf16.mxu0 0
        %1735 = vmatpush1.bf16.msra.mxu0 0
        %1736 = vmatprep.subr.bf16.mxu0 0
        %1737 = vmatpush1.bf16.msra.mxu0 0
        %1738 = vmatprep.subr.bf16.mxu0 0
        %1739 = vmatpush1.bf16.msra.mxu0 0
        %1740 = vmatprep.subr.bf16.mxu0 0
        %1741 = vmatpush1.bf16.msra.mxu0 0
        %1742 = vmatprep.mubr.bf16.mxu0 0
        %1743 = vmatmul.mubr.bf16.gmra.mrb[0].mxu0 %v1705
        %v1744 = vpop.f32.mrb[0].mxu0
        %v1745 = vadd.f32 0.0, %v1744
        %v1746 = vpop.f32.mrb[0].mxu0
        %v1747 = vpop.f32.mrb[0].mxu0
        %v1748 = vpop.f32.mrb[0].mxu0
        %1749 = vdwg.mxu0
        %1750 = vrot.lane.b32.xlu0 %v1308, 120
        %v1751 = vpop.permute.xlu0 %1750
        %1752 = vrot.lane.b32.xlu0 %v1308, 88
        %v1753 = vpop.permute.xlu0 %1752
        %v1755 = vsel %vm1315, %v1751, 0
        %v1758 = vsel %vm1315, %v1753, 0
        %1760 = vmatprep.subr.bf16.mxu0 0
        %1761 = vmatpush1.bf16.xpose.msra.mxu0 %v1758
        %1762 = vmatprep.subr.bf16.mxu0 0
        %1763 = vmatpush1.bf16.xpose.msra.mxu0 0
        %1764 = vmatprep.subr.bf16.mxu0 0
        %1765 = vmatpush1.bf16.xpose.msra.mxu0 0
        %1766 = vmatprep.subr.bf16.mxu0 0
        %1767 = vmatpush1.bf16.xpose.msra.mxu0 0
        %1768 = vmatprep.subr.bf16.mxu0 0
        %1769 = vmatpush1.bf16.xpose.msra.mxu0 0
        %1770 = vmatprep.subr.bf16.mxu0 0
        %1771 = vmatpush1.bf16.xpose.msra.mxu0 0
        %1772 = vmatprep.subr.bf16.mxu0 0
        %1773 = vmatpush1.bf16.xpose.msra.mxu0 0
        %1774 = vmatprep.subr.bf16.mxu0 0
        %1775 = vmatpush1.bf16.xpose.msra.mxu0 0
        %1776 = vmatprep.subr.bf16.mxu0 0
        %1777 = vmatpush1.bf16.xpose.msra.mxu0 0
        %1778 = vmatprep.subr.bf16.mxu0 0
        %1779 = vmatpush1.bf16.xpose.msra.mxu0 0
        %1780 = vmatprep.subr.bf16.mxu0 0
        %1781 = vmatpush1.bf16.xpose.msra.mxu0 0
        %1782 = vmatprep.subr.bf16.mxu0 0
        %1783 = vmatpush1.bf16.xpose.msra.mxu0 0
        %1784 = vmatprep.subr.bf16.mxu0 0
        %1785 = vmatpush1.bf16.xpose.msra.mxu0 0
        %1786 = vmatprep.subr.bf16.mxu0 0
        %1787 = vmatpush1.bf16.xpose.msra.mxu0 0
        %1788 = vmatprep.subr.bf16.mxu0 0
        %1789 = vmatpush1.bf16.xpose.msra.mxu0 0
        %1790 = vmatprep.subr.bf16.mxu0 0
        %1791 = vmatpush1.bf16.xpose.msra.mxu0 0
        %1792 = vmatprep.mubr.bf16.mxu0 0
        %1793 = vmatmul.mubr.bf16.gmra.mrb[0].mxu0 %v1755
        %v1794 = vpop.f32.mrb[0].mxu0
        %v1795 = vadd.f32 %v1221, %v1794
        %v1796 = vpop.f32.mrb[0].mxu0
        %v1797 = vpop.f32.mrb[0].mxu0
        %v1798 = vpop.f32.mrb[0].mxu0
        %1799 = vdwg.mxu0
        %1800 = vrot.lane.b32.xlu0 %v1309, 120
        %v1801 = vpop.permute.xlu0 %1800
        %1802 = vrot.lane.b32.xlu0 %v1309, 88
        %v1803 = vpop.permute.xlu0 %1802
        %v1805 = vsel %vm1315, %v1801, 0
        %v1808 = vsel %vm1315, %v1803, 0
        %1810 = vmatprep.subr.bf16.mxu0 0
        %1811 = vmatpush1.bf16.xpose.msra.mxu0 %v1808
        %1812 = vmatprep.subr.bf16.mxu0 0
        %1813 = vmatpush1.bf16.xpose.msra.mxu0 0
        %1814 = vmatprep.subr.bf16.mxu0 0
        %1815 = vmatpush1.bf16.xpose.msra.mxu0 0
        %1816 = vmatprep.subr.bf16.mxu0 0
        %1817 = vmatpush1.bf16.xpose.msra.mxu0 0
        %1818 = vmatprep.subr.bf16.mxu0 0
        %1819 = vmatpush1.bf16.xpose.msra.mxu0 0
        %1820 = vmatprep.subr.bf16.mxu0 0
        %1821 = vmatpush1.bf16.xpose.msra.mxu0 0
        %1822 = vmatprep.subr.bf16.mxu0 0
        %1823 = vmatpush1.bf16.xpose.msra.mxu0 0
        %1824 = vmatprep.subr.bf16.mxu0 0
        %1825 = vmatpush1.bf16.xpose.msra.mxu0 0
        %1826 = vmatprep.subr.bf16.mxu0 0
        %1827 = vmatpush1.bf16.xpose.msra.mxu0 0
        %1828 = vmatprep.subr.bf16.mxu0 0
        %1829 = vmatpush1.bf16.xpose.msra.mxu0 0
        %1830 = vmatprep.subr.bf16.mxu0 0
        %1831 = vmatpush1.bf16.xpose.msra.mxu0 0
        %1832 = vmatprep.subr.bf16.mxu0 0
        %1833 = vmatpush1.bf16.xpose.msra.mxu0 0
        %1834 = vmatprep.subr.bf16.mxu0 0
        %1835 = vmatpush1.bf16.xpose.msra.mxu0 0
        %1836 = vmatprep.subr.bf16.mxu0 0
        %1837 = vmatpush1.bf16.xpose.msra.mxu0 0
        %1838 = vmatprep.subr.bf16.mxu0 0
        %1839 = vmatpush1.bf16.xpose.msra.mxu0 0
        %1840 = vmatprep.subr.bf16.mxu0 0
        %1841 = vmatpush1.bf16.xpose.msra.mxu0 0
        %1842 = vmatprep.mubr.bf16.mxu0 0
        %1843 = vmatmul.mubr.bf16.gmra.mrb[0].mxu0 %v1805
        %v1844 = vpop.f32.mrb[0].mxu0
        %v1845 = vadd.f32 %v1221, %v1844
        %v1846 = vpop.f32.mrb[0].mxu0
        %v1847 = vpop.f32.mrb[0].mxu0
        %v1848 = vpop.f32.mrb[0].mxu0
        %1849 = vdwg.mxu0
        %1850 = vrot.lane.b32.xlu0 %v1310, 120
        %v1851 = vpop.permute.xlu0 %1850
        %1852 = vrot.lane.b32.xlu0 %v1310, 88
        %v1853 = vpop.permute.xlu0 %1852
        %v1855 = vsel %vm1315, %v1851, 0
        %v1858 = vsel %vm1315, %v1853, 0
        %1860 = vmatprep.subr.bf16.mxu0 0
        %1861 = vmatpush1.bf16.xpose.msra.mxu0 %v1858
        %1862 = vmatprep.subr.bf16.mxu0 0
        %1863 = vmatpush1.bf16.xpose.msra.mxu0 0
        %1864 = vmatprep.subr.bf16.mxu0 0
        %1865 = vmatpush1.bf16.xpose.msra.mxu0 0
        %1866 = vmatprep.subr.bf16.mxu0 0
        %1867 = vmatpush1.bf16.xpose.msra.mxu0 0
        %1868 = vmatprep.subr.bf16.mxu0 0
        %1869 = vmatpush1.bf16.xpose.msra.mxu0 0
        %1870 = vmatprep.subr.bf16.mxu0 0
        %1871 = vmatpush1.bf16.xpose.msra.mxu0 0
        %1872 = vmatprep.subr.bf16.mxu0 0
        %1873 = vmatpush1.bf16.xpose.msra.mxu0 0
        %1874 = vmatprep.subr.bf16.mxu0 0
        %1875 = vmatpush1.bf16.xpose.msra.mxu0 0
        %1876 = vmatprep.subr.bf16.mxu0 0
        %1877 = vmatpush1.bf16.xpose.msra.mxu0 0
        %1878 = vmatprep.subr.bf16.mxu0 0
        %1879 = vmatpush1.bf16.xpose.msra.mxu0 0
        %1880 = vmatprep.subr.bf16.mxu0 0
        %1881 = vmatpush1.bf16.xpose.msra.mxu0 0
        %1882 = vmatprep.subr.bf16.mxu0 0
        %1883 = vmatpush1.bf16.xpose.msra.mxu0 0
        %1884 = vmatprep.subr.bf16.mxu0 0
        %1885 = vmatpush1.bf16.xpose.msra.mxu0 0
        %1886 = vmatprep.subr.bf16.mxu0 0
        %1887 = vmatpush1.bf16.xpose.msra.mxu0 0
        %1888 = vmatprep.subr.bf16.mxu0 0
        %1889 = vmatpush1.bf16.xpose.msra.mxu0 0
        %1890 = vmatprep.subr.bf16.mxu0 0
        %1891 = vmatpush1.bf16.xpose.msra.mxu0 0
        %1892 = vmatprep.mubr.bf16.mxu0 0
        %1893 = vmatmul.mubr.bf16.gmra.mrb[0].mxu0 %v1855
        %v1894 = vpop.f32.mrb[0].mxu0
        %v1895 = vadd.f32 %v1221, %v1894
        %v1896 = vpop.f32.mrb[0].mxu0
        %v1897 = vpop.f32.mrb[0].mxu0
        %v1898 = vpop.f32.mrb[0].mxu0
        %1899 = vdwg.mxu0
        %1900 = vrot.lane.b32.xlu0 %v1311, 120
        %v1901 = vpop.permute.xlu0 %1900
        %1902 = vrot.lane.b32.xlu0 %v1311, 88
        %v1903 = vpop.permute.xlu0 %1902
        %v1905 = vsel %vm1315, %v1901, 0
        %v1908 = vsel %vm1315, %v1903, 0
        %1910 = vmatprep.subr.bf16.mxu0 0
        %1911 = vmatpush1.bf16.xpose.msra.mxu0 %v1908
        %1912 = vmatprep.subr.bf16.mxu0 0
        %1913 = vmatpush1.bf16.xpose.msra.mxu0 0
        %1914 = vmatprep.subr.bf16.mxu0 0
        %1915 = vmatpush1.bf16.xpose.msra.mxu0 0
        %1916 = vmatprep.subr.bf16.mxu0 0
        %1917 = vmatpush1.bf16.xpose.msra.mxu0 0
        %1918 = vmatprep.subr.bf16.mxu0 0
        %1919 = vmatpush1.bf16.xpose.msra.mxu0 0
        %1920 = vmatprep.subr.bf16.mxu0 0
        %1921 = vmatpush1.bf16.xpose.msra.mxu0 0
        %1922 = vmatprep.subr.bf16.mxu0 0
        %1923 = vmatpush1.bf16.xpose.msra.mxu0 0
        %1924 = vmatprep.subr.bf16.mxu0 0
        %1925 = vmatpush1.bf16.xpose.msra.mxu0 0
        %1926 = vmatprep.subr.bf16.mxu0 0
        %1927 = vmatpush1.bf16.xpose.msra.mxu0 0
        %1928 = vmatprep.subr.bf16.mxu0 0
        %1929 = vmatpush1.bf16.xpose.msra.mxu0 0
        %1930 = vmatprep.subr.bf16.mxu0 0
        %1931 = vmatpush1.bf16.xpose.msra.mxu0 0
        %1932 = vmatprep.subr.bf16.mxu0 0
        %1933 = vmatpush1.bf16.xpose.msra.mxu0 0
        %1934 = vmatprep.subr.bf16.mxu0 0
        %1935 = vmatpush1.bf16.xpose.msra.mxu0 0
        %1936 = vmatprep.subr.bf16.mxu0 0
        %1937 = vmatpush1.bf16.xpose.msra.mxu0 0
        %1938 = vmatprep.subr.bf16.mxu0 0
        %1939 = vmatpush1.bf16.xpose.msra.mxu0 0
        %1940 = vmatprep.subr.bf16.mxu0 0
        %1941 = vmatpush1.bf16.xpose.msra.mxu0 0
        %1942 = vmatprep.mubr.bf16.mxu0 0
        %1943 = vmatmul.mubr.bf16.gmra.mrb[0].mxu0 %v1905
        %v1944 = vpop.f32.mrb[0].mxu0
        %v1945 = vadd.f32 %v1221, %v1944
        %v1946 = vpop.f32.mrb[0].mxu0
        %v1947 = vpop.f32.mrb[0].mxu0
        %v1948 = vpop.f32.mrb[0].mxu0
        %1949 = vdwg.mxu0
        %v1950 = vsel %vm1315, %v1795, -inf
        %1951 = vmax.xlane.f32.xlu0 %v1950
        %v1952 = vpop.xlane.xlu0 %1951
        %v1953 = vsel %vm1315, %v1845, -inf
        %1954 = vmax.xlane.f32.xlu0 %v1953
        %v1955 = vpop.xlane.xlu0 %1954
        %v1956 = vsel %vm1315, %v1895, -inf
        %1957 = vmax.xlane.f32.xlu0 %v1956
        %v1958 = vpop.xlane.xlu0 %1957
        %v1959 = vsel %vm1315, %v1945, -inf
        %1960 = vmax.xlane.f32.xlu0 %v1959
        %v1961 = vpop.xlane.xlu0 %1960
        %v1962 = vsub.f32 %v1795, %v1952
        %v1963 = vsub.f32 %v1845, %v1955
        %v1964 = vsub.f32 %v1895, %v1958
        %v1965 = vsub.f32 %v1945, %v1961
        %v1966 = vmul.f32 %v1962, 1.442695
        %v1967 = vpow.pop %v1966
        %v1968 = vmul.f32 %v1963, 1.442695
        %v1969 = vpow.pop %v1968
        %v1970 = vmul.f32 %v1964, 1.442695
        %v1971 = vpow.pop %v1970
        %v1972 = vmul.f32 %v1965, 1.442695
        %v1973 = vpow.pop %v1972
        %v1974 = vsel %vm1315, %v1967, 0.0
        %1975 = vadd.xlane.f32.xlu0 %v1974
        %v1976 = vpop.xlane.xlu0 %1975
        %v1977 = vsel %vm1315, %v1969, 0.0
        %1978 = vadd.xlane.f32.xlu0 %v1977
        %v1979 = vpop.xlane.xlu0 %1978
        %v1980 = vsel %vm1315, %v1971, 0.0
        %1981 = vadd.xlane.f32.xlu0 %v1980
        %v1982 = vpop.xlane.xlu0 %1981
        %v1983 = vsel %vm1315, %v1973, 0.0
        %1984 = vadd.xlane.f32.xlu0 %v1983
        %v1985 = vpop.xlane.xlu0 %1984
        %v1986 = vrcp.pop %v1976
        %v1987 = vrcp.pop %v1979
        %v1988 = vrcp.pop %v1982
        %v1989 = vrcp.pop %v1985
        %v1990 = vmul.f32 %v1967, %v1986
        %v1991 = vmul.f32 %v1969, %v1987
        %v1992 = vmul.f32 %v1971, %v1988
        %v1993 = vmul.f32 %v1973, %v1989
        %v1994 = vpack.c.bf16 %v1990, %v1990
        %v1995 = vpack.c.bf16 %v1991, %v1991
        %v1996 = vpack.c.bf16 %v1992, %v1992
        %v1997 = vpack.c.bf16 %v1993, %v1993
        %1998 = vrot.lane.b32.xlu0 %v1308, 56
        %v1999 = vpop.permute.xlu0 %1998
        %v2001 = vsel %vm1315, %v1994, 0
        %v2004 = vsel %vm1562, %v1999, 0
        %2006 = vmatprep.subr.bf16.mxu0 0
        %2007 = vmatpush1.bf16.msra.mxu0 %v2004
        %2008 = vmatprep.subr.bf16.mxu0 0
        %2009 = vmatpush1.bf16.msra.mxu0 0
        %2010 = vmatprep.subr.bf16.mxu0 0
        %2011 = vmatpush1.bf16.msra.mxu0 0
        %2012 = vmatprep.subr.bf16.mxu0 0
        %2013 = vmatpush1.bf16.msra.mxu0 0
        %2014 = vmatprep.subr.bf16.mxu0 0
        %2015 = vmatpush1.bf16.msra.mxu0 0
        %2016 = vmatprep.subr.bf16.mxu0 0
        %2017 = vmatpush1.bf16.msra.mxu0 0
        %2018 = vmatprep.subr.bf16.mxu0 0
        %2019 = vmatpush1.bf16.msra.mxu0 0
        %2020 = vmatprep.subr.bf16.mxu0 0
        %2021 = vmatpush1.bf16.msra.mxu0 0
        %2022 = vmatprep.subr.bf16.mxu0 0
        %2023 = vmatpush1.bf16.msra.mxu0 0
        %2024 = vmatprep.subr.bf16.mxu0 0
        %2025 = vmatpush1.bf16.msra.mxu0 0
        %2026 = vmatprep.subr.bf16.mxu0 0
        %2027 = vmatpush1.bf16.msra.mxu0 0
        %2028 = vmatprep.subr.bf16.mxu0 0
        %2029 = vmatpush1.bf16.msra.mxu0 0
        %2030 = vmatprep.subr.bf16.mxu0 0
        %2031 = vmatpush1.bf16.msra.mxu0 0
        %2032 = vmatprep.subr.bf16.mxu0 0
        %2033 = vmatpush1.bf16.msra.mxu0 0
        %2034 = vmatprep.subr.bf16.mxu0 0
        %2035 = vmatpush1.bf16.msra.mxu0 0
        %2036 = vmatprep.subr.bf16.mxu0 0
        %2037 = vmatpush1.bf16.msra.mxu0 0
        %2038 = vmatprep.mubr.bf16.mxu0 0
        %2039 = vmatmul.mubr.bf16.gmra.mrb[0].mxu0 %v2001
        %v2040 = vpop.f32.mrb[0].mxu0
        %v2041 = vadd.f32 0.0, %v2040
        %v2042 = vpop.f32.mrb[0].mxu0
        %v2043 = vpop.f32.mrb[0].mxu0
        %v2044 = vpop.f32.mrb[0].mxu0
        %2045 = vdwg.mxu0
        %2046 = vrot.lane.b32.xlu0 %v1309, 56
        %v2047 = vpop.permute.xlu0 %2046
        %v2049 = vsel %vm1315, %v1995, 0
        %v2052 = vsel %vm1562, %v2047, 0
        %2054 = vmatprep.subr.bf16.mxu0 0
        %2055 = vmatpush1.bf16.msra.mxu0 %v2052
        %2056 = vmatprep.subr.bf16.mxu0 0
        %2057 = vmatpush1.bf16.msra.mxu0 0
        %2058 = vmatprep.subr.bf16.mxu0 0
        %2059 = vmatpush1.bf16.msra.mxu0 0
        %2060 = vmatprep.subr.bf16.mxu0 0
        %2061 = vmatpush1.bf16.msra.mxu0 0
        %2062 = vmatprep.subr.bf16.mxu0 0
        %2063 = vmatpush1.bf16.msra.mxu0 0
        %2064 = vmatprep.subr.bf16.mxu0 0
        %2065 = vmatpush1.bf16.msra.mxu0 0
        %2066 = vmatprep.subr.bf16.mxu0 0
        %2067 = vmatpush1.bf16.msra.mxu0 0
        %2068 = vmatprep.subr.bf16.mxu0 0
        %2069 = vmatpush1.bf16.msra.mxu0 0
        %2070 = vmatprep.subr.bf16.mxu0 0
        %2071 = vmatpush1.bf16.msra.mxu0 0
        %2072 = vmatprep.subr.bf16.mxu0 0
        %2073 = vmatpush1.bf16.msra.mxu0 0
        %2074 = vmatprep.subr.bf16.mxu0 0
        %2075 = vmatpush1.bf16.msra.mxu0 0
        %2076 = vmatprep.subr.bf16.mxu0 0
        %2077 = vmatpush1.bf16.msra.mxu0 0
        %2078 = vmatprep.subr.bf16.mxu0 0
        %2079 = vmatpush1.bf16.msra.mxu0 0
        %2080 = vmatprep.subr.bf16.mxu0 0
        %2081 = vmatpush1.bf16.msra.mxu0 0
        %2082 = vmatprep.subr.bf16.mxu0 0
        %2083 = vmatpush1.bf16.msra.mxu0 0
        %2084 = vmatprep.subr.bf16.mxu0 0
        %2085 = vmatpush1.bf16.msra.mxu0 0
        %2086 = vmatprep.mubr.bf16.mxu0 0
        %2087 = vmatmul.mubr.bf16.gmra.mrb[0].mxu0 %v2049
        %v2088 = vpop.f32.mrb[0].mxu0
        %v2089 = vadd.f32 0.0, %v2088
        %v2090 = vpop.f32.mrb[0].mxu0
        %v2091 = vpop.f32.mrb[0].mxu0
        %v2092 = vpop.f32.mrb[0].mxu0
        %2093 = vdwg.mxu0
        %2094 = vrot.lane.b32.xlu0 %v1310, 56
        %v2095 = vpop.permute.xlu0 %2094
        %v2097 = vsel %vm1315, %v1996, 0
        %v2100 = vsel %vm1562, %v2095, 0
        %2102 = vmatprep.subr.bf16.mxu0 0
        %2103 = vmatpush1.bf16.msra.mxu0 %v2100
        %2104 = vmatprep.subr.bf16.mxu0 0
        %2105 = vmatpush1.bf16.msra.mxu0 0
        %2106 = vmatprep.subr.bf16.mxu0 0
        %2107 = vmatpush1.bf16.msra.mxu0 0
        %2108 = vmatprep.subr.bf16.mxu0 0
        %2109 = vmatpush1.bf16.msra.mxu0 0
        %2110 = vmatprep.subr.bf16.mxu0 0
        %2111 = vmatpush1.bf16.msra.mxu0 0
        %2112 = vmatprep.subr.bf16.mxu0 0
        %2113 = vmatpush1.bf16.msra.mxu0 0
        %2114 = vmatprep.subr.bf16.mxu0 0
        %2115 = vmatpush1.bf16.msra.mxu0 0
        %2116 = vmatprep.subr.bf16.mxu0 0
        %2117 = vmatpush1.bf16.msra.mxu0 0
        %2118 = vmatprep.subr.bf16.mxu0 0
        %2119 = vmatpush1.bf16.msra.mxu0 0
        %2120 = vmatprep.subr.bf16.mxu0 0
        %2121 = vmatpush1.bf16.msra.mxu0 0
        %2122 = vmatprep.subr.bf16.mxu0 0
        %2123 = vmatpush1.bf16.msra.mxu0 0
        %2124 = vmatprep.subr.bf16.mxu0 0
        %2125 = vmatpush1.bf16.msra.mxu0 0
        %2126 = vmatprep.subr.bf16.mxu0 0
        %2127 = vmatpush1.bf16.msra.mxu0 0
        %2128 = vmatprep.subr.bf16.mxu0 0
        %2129 = vmatpush1.bf16.msra.mxu0 0
        %2130 = vmatprep.subr.bf16.mxu0 0
        %2131 = vmatpush1.bf16.msra.mxu0 0
        %2132 = vmatprep.subr.bf16.mxu0 0
        %2133 = vmatpush1.bf16.msra.mxu0 0
        %2134 = vmatprep.mubr.bf16.mxu0 0
        %2135 = vmatmul.mubr.bf16.gmra.mrb[0].mxu0 %v2097
        %v2136 = vpop.f32.mrb[0].mxu0
        %v2137 = vadd.f32 0.0, %v2136
        %v2138 = vpop.f32.mrb[0].mxu0
        %v2139 = vpop.f32.mrb[0].mxu0
        %v2140 = vpop.f32.mrb[0].mxu0
        %2141 = vdwg.mxu0
        %2142 = vrot.lane.b32.xlu0 %v1311, 56
        %v2143 = vpop.permute.xlu0 %2142
        %v2145 = vsel %vm1315, %v1997, 0
        %v2148 = vsel %vm1562, %v2143, 0
        %2150 = vmatprep.subr.bf16.mxu0 0
        %2151 = vmatpush1.bf16.msra.mxu0 %v2148
        %2152 = vmatprep.subr.bf16.mxu0 0
        %2153 = vmatpush1.bf16.msra.mxu0 0
        %2154 = vmatprep.subr.bf16.mxu0 0
        %2155 = vmatpush1.bf16.msra.mxu0 0
        %2156 = vmatprep.subr.bf16.mxu0 0
        %2157 = vmatpush1.bf16.msra.mxu0 0
        %2158 = vmatprep.subr.bf16.mxu0 0
        %2159 = vmatpush1.bf16.msra.mxu0 0
        %2160 = vmatprep.subr.bf16.mxu0 0
        %2161 = vmatpush1.bf16.msra.mxu0 0
        %2162 = vmatprep.subr.bf16.mxu0 0
        %2163 = vmatpush1.bf16.msra.mxu0 0
        %2164 = vmatprep.subr.bf16.mxu0 0
        %2165 = vmatpush1.bf16.msra.mxu0 0
        %2166 = vmatprep.subr.bf16.mxu0 0
        %2167 = vmatpush1.bf16.msra.mxu0 0
        %2168 = vmatprep.subr.bf16.mxu0 0
        %2169 = vmatpush1.bf16.msra.mxu0 0
        %2170 = vmatprep.subr.bf16.mxu0 0
        %2171 = vmatpush1.bf16.msra.mxu0 0
        %2172 = vmatprep.subr.bf16.mxu0 0
        %2173 = vmatpush1.bf16.msra.mxu0 0
        %2174 = vmatprep.subr.bf16.mxu0 0
        %2175 = vmatpush1.bf16.msra.mxu0 0
        %2176 = vmatprep.subr.bf16.mxu0 0
        %2177 = vmatpush1.bf16.msra.mxu0 0
        %2178 = vmatprep.subr.bf16.mxu0 0
        %2179 = vmatpush1.bf16.msra.mxu0 0
        %2180 = vmatprep.subr.bf16.mxu0 0
        %2181 = vmatpush1.bf16.msra.mxu0 0
        %2182 = vmatprep.mubr.bf16.mxu0 0
        %2183 = vmatmul.mubr.bf16.gmra.mrb[0].mxu0 %v2145
        %v2184 = vpop.f32.mrb[0].mxu0
        %v2185 = vadd.f32 0.0, %v2184
        %v2186 = vpop.f32.mrb[0].mxu0
        %v2187 = vpop.f32.mrb[0].mxu0
        %v2188 = vpop.f32.mrb[0].mxu0
        %2189 = vdwg.mxu0
        %2190 = vrot.lane.b32.xlu0 %v1308, 112
        %v2191 = vpop.permute.xlu0 %2190
        %2192 = vrot.lane.b32.xlu0 %v1308, 80
        %v2193 = vpop.permute.xlu0 %2192
        %v2195 = vsel %vm1315, %v2191, 0
        %v2198 = vsel %vm1315, %v2193, 0
        %2200 = vmatprep.subr.bf16.mxu0 0
        %2201 = vmatpush1.bf16.xpose.msra.mxu0 %v2198
        %2202 = vmatprep.subr.bf16.mxu0 0
        %2203 = vmatpush1.bf16.xpose.msra.mxu0 0
        %2204 = vmatprep.subr.bf16.mxu0 0
        %2205 = vmatpush1.bf16.xpose.msra.mxu0 0
        %2206 = vmatprep.subr.bf16.mxu0 0
        %2207 = vmatpush1.bf16.xpose.msra.mxu0 0
        %2208 = vmatprep.subr.bf16.mxu0 0
        %2209 = vmatpush1.bf16.xpose.msra.mxu0 0
        %2210 = vmatprep.subr.bf16.mxu0 0
        %2211 = vmatpush1.bf16.xpose.msra.mxu0 0
        %2212 = vmatprep.subr.bf16.mxu0 0
        %2213 = vmatpush1.bf16.xpose.msra.mxu0 0
        %2214 = vmatprep.subr.bf16.mxu0 0
        %2215 = vmatpush1.bf16.xpose.msra.mxu0 0
        %2216 = vmatprep.subr.bf16.mxu0 0
        %2217 = vmatpush1.bf16.xpose.msra.mxu0 0
        %2218 = vmatprep.subr.bf16.mxu0 0
        %2219 = vmatpush1.bf16.xpose.msra.mxu0 0
        %2220 = vmatprep.subr.bf16.mxu0 0
        %2221 = vmatpush1.bf16.xpose.msra.mxu0 0
        %2222 = vmatprep.subr.bf16.mxu0 0
        %2223 = vmatpush1.bf16.xpose.msra.mxu0 0
        %2224 = vmatprep.subr.bf16.mxu0 0
        %2225 = vmatpush1.bf16.xpose.msra.mxu0 0
        %2226 = vmatprep.subr.bf16.mxu0 0
        %2227 = vmatpush1.bf16.xpose.msra.mxu0 0
        %2228 = vmatprep.subr.bf16.mxu0 0
        %2229 = vmatpush1.bf16.xpose.msra.mxu0 0
        %2230 = vmatprep.subr.bf16.mxu0 0
        %2231 = vmatpush1.bf16.xpose.msra.mxu0 0
        %2232 = vmatprep.mubr.bf16.mxu0 0
        %2233 = vmatmul.mubr.bf16.gmra.mrb[0].mxu0 %v2195
        %v2234 = vpop.f32.mrb[0].mxu0
        %v2235 = vadd.f32 %v1221, %v2234
        %v2236 = vpop.f32.mrb[0].mxu0
        %v2237 = vpop.f32.mrb[0].mxu0
        %v2238 = vpop.f32.mrb[0].mxu0
        %2239 = vdwg.mxu0
        %2240 = vrot.lane.b32.xlu0 %v1309, 112
        %v2241 = vpop.permute.xlu0 %2240
        %2242 = vrot.lane.b32.xlu0 %v1309, 80
        %v2243 = vpop.permute.xlu0 %2242
        %v2245 = vsel %vm1315, %v2241, 0
        %v2248 = vsel %vm1315, %v2243, 0
        %2250 = vmatprep.subr.bf16.mxu0 0
        %2251 = vmatpush1.bf16.xpose.msra.mxu0 %v2248
        %2252 = vmatprep.subr.bf16.mxu0 0
        %2253 = vmatpush1.bf16.xpose.msra.mxu0 0
        %2254 = vmatprep.subr.bf16.mxu0 0
        %2255 = vmatpush1.bf16.xpose.msra.mxu0 0
        %2256 = vmatprep.subr.bf16.mxu0 0
        %2257 = vmatpush1.bf16.xpose.msra.mxu0 0
        %2258 = vmatprep.subr.bf16.mxu0 0
        %2259 = vmatpush1.bf16.xpose.msra.mxu0 0
        %2260 = vmatprep.subr.bf16.mxu0 0
        %2261 = vmatpush1.bf16.xpose.msra.mxu0 0
        %2262 = vmatprep.subr.bf16.mxu0 0
        %2263 = vmatpush1.bf16.xpose.msra.mxu0 0
        %2264 = vmatprep.subr.bf16.mxu0 0
        %2265 = vmatpush1.bf16.xpose.msra.mxu0 0
        %2266 = vmatprep.subr.bf16.mxu0 0
        %2267 = vmatpush1.bf16.xpose.msra.mxu0 0
        %2268 = vmatprep.subr.bf16.mxu0 0
        %2269 = vmatpush1.bf16.xpose.msra.mxu0 0
        %2270 = vmatprep.subr.bf16.mxu0 0
        %2271 = vmatpush1.bf16.xpose.msra.mxu0 0
        %2272 = vmatprep.subr.bf16.mxu0 0
        %2273 = vmatpush1.bf16.xpose.msra.mxu0 0
        %2274 = vmatprep.subr.bf16.mxu0 0
        %2275 = vmatpush1.bf16.xpose.msra.mxu0 0
        %2276 = vmatprep.subr.bf16.mxu0 0
        %2277 = vmatpush1.bf16.xpose.msra.mxu0 0
        %2278 = vmatprep.subr.bf16.mxu0 0
        %2279 = vmatpush1.bf16.xpose.msra.mxu0 0
        %2280 = vmatprep.subr.bf16.mxu0 0
        %2281 = vmatpush1.bf16.xpose.msra.mxu0 0
        %2282 = vmatprep.mubr.bf16.mxu0 0
        %2283 = vmatmul.mubr.bf16.gmra.mrb[0].mxu0 %v2245
        %v2284 = vpop.f32.mrb[0].mxu0
        %v2285 = vadd.f32 %v1221, %v2284
        %v2286 = vpop.f32.mrb[0].mxu0
        %v2287 = vpop.f32.mrb[0].mxu0
        %v2288 = vpop.f32.mrb[0].mxu0
        %2289 = vdwg.mxu0
        %2290 = vrot.lane.b32.xlu0 %v1310, 112
        %v2291 = vpop.permute.xlu0 %2290
        %2292 = vrot.lane.b32.xlu0 %v1310, 80
        %v2293 = vpop.permute.xlu0 %2292
        %v2295 = vsel %vm1315, %v2291, 0
        %v2298 = vsel %vm1315, %v2293, 0
        %2300 = vmatprep.subr.bf16.mxu0 0
        %2301 = vmatpush1.bf16.xpose.msra.mxu0 %v2298
        %2302 = vmatprep.subr.bf16.mxu0 0
        %2303 = vmatpush1.bf16.xpose.msra.mxu0 0
        %2304 = vmatprep.subr.bf16.mxu0 0
        %2305 = vmatpush1.bf16.xpose.msra.mxu0 0
        %2306 = vmatprep.subr.bf16.mxu0 0
        %2307 = vmatpush1.bf16.xpose.msra.mxu0 0
        %2308 = vmatprep.subr.bf16.mxu0 0
        %2309 = vmatpush1.bf16.xpose.msra.mxu0 0
        %2310 = vmatprep.subr.bf16.mxu0 0
        %2311 = vmatpush1.bf16.xpose.msra.mxu0 0
        %2312 = vmatprep.subr.bf16.mxu0 0
        %2313 = vmatpush1.bf16.xpose.msra.mxu0 0
        %2314 = vmatprep.subr.bf16.mxu0 0
        %2315 = vmatpush1.bf16.xpose.msra.mxu0 0
        %2316 = vmatprep.subr.bf16.mxu0 0
        %2317 = vmatpush1.bf16.xpose.msra.mxu0 0
        %2318 = vmatprep.subr.bf16.mxu0 0
        %2319 = vmatpush1.bf16.xpose.msra.mxu0 0
        %2320 = vmatprep.subr.bf16.mxu0 0
        %2321 = vmatpush1.bf16.xpose.msra.mxu0 0
        %2322 = vmatprep.subr.bf16.mxu0 0
        %2323 = vmatpush1.bf16.xpose.msra.mxu0 0
        %2324 = vmatprep.subr.bf16.mxu0 0
        %2325 = vmatpush1.bf16.xpose.msra.mxu0 0
        %2326 = vmatprep.subr.bf16.mxu0 0
        %2327 = vmatpush1.bf16.xpose.msra.mxu0 0
        %2328 = vmatprep.subr.bf16.mxu0 0
        %2329 = vmatpush1.bf16.xpose.msra.mxu0 0
        %2330 = vmatprep.subr.bf16.mxu0 0
        %2331 = vmatpush1.bf16.xpose.msra.mxu0 0
        %2332 = vmatprep.mubr.bf16.mxu0 0
        %2333 = vmatmul.mubr.bf16.gmra.mrb[0].mxu0 %v2295
        %v2334 = vpop.f32.mrb[0].mxu0
        %v2335 = vadd.f32 %v1221, %v2334
        %v2336 = vpop.f32.mrb[0].mxu0
        %v2337 = vpop.f32.mrb[0].mxu0
        %v2338 = vpop.f32.mrb[0].mxu0
        %2339 = vdwg.mxu0
        %2340 = vrot.lane.b32.xlu0 %v1311, 112
        %v2341 = vpop.permute.xlu0 %2340
        %2342 = vrot.lane.b32.xlu0 %v1311, 80
        %v2343 = vpop.permute.xlu0 %2342
        %v2345 = vsel %vm1315, %v2341, 0
        %v2348 = vsel %vm1315, %v2343, 0
        %2350 = vmatprep.subr.bf16.mxu0 0
        %2351 = vmatpush1.bf16.xpose.msra.mxu0 %v2348
        %2352 = vmatprep.subr.bf16.mxu0 0
        %2353 = vmatpush1.bf16.xpose.msra.mxu0 0
        %2354 = vmatprep.subr.bf16.mxu0 0
        %2355 = vmatpush1.bf16.xpose.msra.mxu0 0
        %2356 = vmatprep.subr.bf16.mxu0 0
        %2357 = vmatpush1.bf16.xpose.msra.mxu0 0
        %2358 = vmatprep.subr.bf16.mxu0 0
        %2359 = vmatpush1.bf16.xpose.msra.mxu0 0
        %2360 = vmatprep.subr.bf16.mxu0 0
        %2361 = vmatpush1.bf16.xpose.msra.mxu0 0
        %2362 = vmatprep.subr.bf16.mxu0 0
        %2363 = vmatpush1.bf16.xpose.msra.mxu0 0
        %2364 = vmatprep.subr.bf16.mxu0 0
        %2365 = vmatpush1.bf16.xpose.msra.mxu0 0
        %2366 = vmatprep.subr.bf16.mxu0 0
        %2367 = vmatpush1.bf16.xpose.msra.mxu0 0
        %2368 = vmatprep.subr.bf16.mxu0 0
        %2369 = vmatpush1.bf16.xpose.msra.mxu0 0
        %2370 = vmatprep.subr.bf16.mxu0 0
        %2371 = vmatpush1.bf16.xpose.msra.mxu0 0
        %2372 = vmatprep.subr.bf16.mxu0 0
        %2373 = vmatpush1.bf16.xpose.msra.mxu0 0
        %2374 = vmatprep.subr.bf16.mxu0 0
        %2375 = vmatpush1.bf16.xpose.msra.mxu0 0
        %2376 = vmatprep.subr.bf16.mxu0 0
        %2377 = vmatpush1.bf16.xpose.msra.mxu0 0
        %2378 = vmatprep.subr.bf16.mxu0 0
        %2379 = vmatpush1.bf16.xpose.msra.mxu0 0
        %2380 = vmatprep.subr.bf16.mxu0 0
        %2381 = vmatpush1.bf16.xpose.msra.mxu0 0
        %2382 = vmatprep.mubr.bf16.mxu0 0
        %2383 = vmatmul.mubr.bf16.gmra.mrb[0].mxu0 %v2345
        %v2384 = vpop.f32.mrb[0].mxu0
        %v2385 = vadd.f32 %v1221, %v2384
        %v2386 = vpop.f32.mrb[0].mxu0
        %v2387 = vpop.f32.mrb[0].mxu0
        %v2388 = vpop.f32.mrb[0].mxu0
        %2389 = vdwg.mxu0
        %v2390 = vsel %vm1315, %v2235, -inf
        %2391 = vmax.xlane.f32.xlu0 %v2390
        %v2392 = vpop.xlane.xlu0 %2391
        %v2393 = vsel %vm1315, %v2285, -inf
        %2394 = vmax.xlane.f32.xlu0 %v2393
        %v2395 = vpop.xlane.xlu0 %2394
        %v2396 = vsel %vm1315, %v2335, -inf
        %2397 = vmax.xlane.f32.xlu0 %v2396
        %v2398 = vpop.xlane.xlu0 %2397
        %v2399 = vsel %vm1315, %v2385, -inf
        %2400 = vmax.xlane.f32.xlu0 %v2399
        %v2401 = vpop.xlane.xlu0 %2400
        %v2402 = vsub.f32 %v2235, %v2392
        %v2403 = vsub.f32 %v2285, %v2395
        %v2404 = vsub.f32 %v2335, %v2398
        %v2405 = vsub.f32 %v2385, %v2401
        %v2406 = vmul.f32 %v2402, 1.442695
        %v2407 = vpow.pop %v2406
        %v2408 = vmul.f32 %v2403, 1.442695
        %v2409 = vpow.pop %v2408
        %v2410 = vmul.f32 %v2404, 1.442695
        %v2411 = vpow.pop %v2410
        %v2412 = vmul.f32 %v2405, 1.442695
        %v2413 = vpow.pop %v2412
        %v2414 = vsel %vm1315, %v2407, 0.0
        %2415 = vadd.xlane.f32.xlu0 %v2414
        %v2416 = vpop.xlane.xlu0 %2415
        %v2417 = vsel %vm1315, %v2409, 0.0
        %2418 = vadd.xlane.f32.xlu0 %v2417
        %v2419 = vpop.xlane.xlu0 %2418
        %v2420 = vsel %vm1315, %v2411, 0.0
        %2421 = vadd.xlane.f32.xlu0 %v2420
        %v2422 = vpop.xlane.xlu0 %2421
        %v2423 = vsel %vm1315, %v2413, 0.0
        %2424 = vadd.xlane.f32.xlu0 %v2423
        %v2425 = vpop.xlane.xlu0 %2424
        %v2426 = vrcp.pop %v2416
        %v2427 = vrcp.pop %v2419
        %v2428 = vrcp.pop %v2422
        %v2429 = vrcp.pop %v2425
        %v2430 = vmul.f32 %v2407, %v2426
        %v2431 = vmul.f32 %v2409, %v2427
        %v2432 = vmul.f32 %v2411, %v2428
        %v2433 = vmul.f32 %v2413, %v2429
        %v2434 = vpack.c.bf16 %v2430, %v2430
        %v2435 = vpack.c.bf16 %v2431, %v2431
        %v2436 = vpack.c.bf16 %v2432, %v2432
        %v2437 = vpack.c.bf16 %v2433, %v2433
        %2438 = vrot.lane.b32.xlu0 %v1308, 48
        %v2439 = vpop.permute.xlu0 %2438
        %v2441 = vsel %vm1315, %v2434, 0
        %v2444 = vsel %vm1562, %v2439, 0
        %2446 = vmatprep.subr.bf16.mxu0 0
        %2447 = vmatpush1.bf16.msra.mxu0 %v2444
        %2448 = vmatprep.subr.bf16.mxu0 0
        %2449 = vmatpush1.bf16.msra.mxu0 0
        %2450 = vmatprep.subr.bf16.mxu0 0
        %2451 = vmatpush1.bf16.msra.mxu0 0
        %2452 = vmatprep.subr.bf16.mxu0 0
        %2453 = vmatpush1.bf16.msra.mxu0 0
        %2454 = vmatprep.subr.bf16.mxu0 0
        %2455 = vmatpush1.bf16.msra.mxu0 0
        %2456 = vmatprep.subr.bf16.mxu0 0
        %2457 = vmatpush1.bf16.msra.mxu0 0
        %2458 = vmatprep.subr.bf16.mxu0 0
        %2459 = vmatpush1.bf16.msra.mxu0 0
        %2460 = vmatprep.subr.bf16.mxu0 0
        %2461 = vmatpush1.bf16.msra.mxu0 0
        %2462 = vmatprep.subr.bf16.mxu0 0
        %2463 = vmatpush1.bf16.msra.mxu0 0
        %2464 = vmatprep.subr.bf16.mxu0 0
        %2465 = vmatpush1.bf16.msra.mxu0 0
        %2466 = vmatprep.subr.bf16.mxu0 0
        %2467 = vmatpush1.bf16.msra.mxu0 0
        %2468 = vmatprep.subr.bf16.mxu0 0
        %2469 = vmatpush1.bf16.msra.mxu0 0
        %2470 = vmatprep.subr.bf16.mxu0 0
        %2471 = vmatpush1.bf16.msra.mxu0 0
        %2472 = vmatprep.subr.bf16.mxu0 0
        %2473 = vmatpush1.bf16.msra.mxu0 0
        %2474 = vmatprep.subr.bf16.mxu0 0
        %2475 = vmatpush1.bf16.msra.mxu0 0
        %2476 = vmatprep.subr.bf16.mxu0 0
        %2477 = vmatpush1.bf16.msra.mxu0 0
        %2478 = vmatprep.mubr.bf16.mxu0 0
        %2479 = vmatmul.mubr.bf16.gmra.mrb[0].mxu0 %v2441
        %v2480 = vpop.f32.mrb[0].mxu0
        %v2481 = vadd.f32 0.0, %v2480
        %v2482 = vpop.f32.mrb[0].mxu0
        %v2483 = vpop.f32.mrb[0].mxu0
        %v2484 = vpop.f32.mrb[0].mxu0
        %2485 = vdwg.mxu0
        %2486 = vrot.lane.b32.xlu0 %v1309, 48
        %v2487 = vpop.permute.xlu0 %2486
        %v2489 = vsel %vm1315, %v2435, 0
        %v2492 = vsel %vm1562, %v2487, 0
        %2494 = vmatprep.subr.bf16.mxu0 0
        %2495 = vmatpush1.bf16.msra.mxu0 %v2492
        %2496 = vmatprep.subr.bf16.mxu0 0
        %2497 = vmatpush1.bf16.msra.mxu0 0
        %2498 = vmatprep.subr.bf16.mxu0 0
        %2499 = vmatpush1.bf16.msra.mxu0 0
        %2500 = vmatprep.subr.bf16.mxu0 0
        %2501 = vmatpush1.bf16.msra.mxu0 0
        %2502 = vmatprep.subr.bf16.mxu0 0
        %2503 = vmatpush1.bf16.msra.mxu0 0
        %2504 = vmatprep.subr.bf16.mxu0 0
        %2505 = vmatpush1.bf16.msra.mxu0 0
        %2506 = vmatprep.subr.bf16.mxu0 0
        %2507 = vmatpush1.bf16.msra.mxu0 0
        %2508 = vmatprep.subr.bf16.mxu0 0
        %2509 = vmatpush1.bf16.msra.mxu0 0
        %2510 = vmatprep.subr.bf16.mxu0 0
        %2511 = vmatpush1.bf16.msra.mxu0 0
        %2512 = vmatprep.subr.bf16.mxu0 0
        %2513 = vmatpush1.bf16.msra.mxu0 0
        %2514 = vmatprep.subr.bf16.mxu0 0
        %2515 = vmatpush1.bf16.msra.mxu0 0
        %2516 = vmatprep.subr.bf16.mxu0 0
        %2517 = vmatpush1.bf16.msra.mxu0 0
        %2518 = vmatprep.subr.bf16.mxu0 0
        %2519 = vmatpush1.bf16.msra.mxu0 0
        %2520 = vmatprep.subr.bf16.mxu0 0
        %2521 = vmatpush1.bf16.msra.mxu0 0
        %2522 = vmatprep.subr.bf16.mxu0 0
        %2523 = vmatpush1.bf16.msra.mxu0 0
        %2524 = vmatprep.subr.bf16.mxu0 0
        %2525 = vmatpush1.bf16.msra.mxu0 0
        %2526 = vmatprep.mubr.bf16.mxu0 0
        %2527 = vmatmul.mubr.bf16.gmra.mrb[0].mxu0 %v2489
        %v2528 = vpop.f32.mrb[0].mxu0
        %v2529 = vadd.f32 0.0, %v2528
        %v2530 = vpop.f32.mrb[0].mxu0
        %v2531 = vpop.f32.mrb[0].mxu0
        %v2532 = vpop.f32.mrb[0].mxu0
        %2533 = vdwg.mxu0
        %2534 = vrot.lane.b32.xlu0 %v1310, 48
        %v2535 = vpop.permute.xlu0 %2534
        %v2537 = vsel %vm1315, %v2436, 0
        %v2540 = vsel %vm1562, %v2535, 0
        %2542 = vmatprep.subr.bf16.mxu0 0
        %2543 = vmatpush1.bf16.msra.mxu0 %v2540
        %2544 = vmatprep.subr.bf16.mxu0 0
        %2545 = vmatpush1.bf16.msra.mxu0 0
        %2546 = vmatprep.subr.bf16.mxu0 0
        %2547 = vmatpush1.bf16.msra.mxu0 0
        %2548 = vmatprep.subr.bf16.mxu0 0
        %2549 = vmatpush1.bf16.msra.mxu0 0
        %2550 = vmatprep.subr.bf16.mxu0 0
        %2551 = vmatpush1.bf16.msra.mxu0 0
        %2552 = vmatprep.subr.bf16.mxu0 0
        %2553 = vmatpush1.bf16.msra.mxu0 0
        %2554 = vmatprep.subr.bf16.mxu0 0
        %2555 = vmatpush1.bf16.msra.mxu0 0
        %2556 = vmatprep.subr.bf16.mxu0 0
        %2557 = vmatpush1.bf16.msra.mxu0 0
        %2558 = vmatprep.subr.bf16.mxu0 0
        %2559 = vmatpush1.bf16.msra.mxu0 0
        %2560 = vmatprep.subr.bf16.mxu0 0
        %2561 = vmatpush1.bf16.msra.mxu0 0
        %2562 = vmatprep.subr.bf16.mxu0 0
        %2563 = vmatpush1.bf16.msra.mxu0 0
        %2564 = vmatprep.subr.bf16.mxu0 0
        %2565 = vmatpush1.bf16.msra.mxu0 0
        %2566 = vmatprep.subr.bf16.mxu0 0
        %2567 = vmatpush1.bf16.msra.mxu0 0
        %2568 = vmatprep.subr.bf16.mxu0 0
        %2569 = vmatpush1.bf16.msra.mxu0 0
        %2570 = vmatprep.subr.bf16.mxu0 0
        %2571 = vmatpush1.bf16.msra.mxu0 0
        %2572 = vmatprep.subr.bf16.mxu0 0
        %2573 = vmatpush1.bf16.msra.mxu0 0
        %2574 = vmatprep.mubr.bf16.mxu0 0
        %2575 = vmatmul.mubr.bf16.gmra.mrb[0].mxu0 %v2537
        %v2576 = vpop.f32.mrb[0].mxu0
        %v2577 = vadd.f32 0.0, %v2576
        %v2578 = vpop.f32.mrb[0].mxu0
        %v2579 = vpop.f32.mrb[0].mxu0
        %v2580 = vpop.f32.mrb[0].mxu0
        %2581 = vdwg.mxu0
        %2582 = vrot.lane.b32.xlu0 %v1311, 48
        %v2583 = vpop.permute.xlu0 %2582
        %v2585 = vsel %vm1315, %v2437, 0
        %v2588 = vsel %vm1562, %v2583, 0
        %2590 = vmatprep.subr.bf16.mxu0 0
        %2591 = vmatpush1.bf16.msra.mxu0 %v2588
        %2592 = vmatprep.subr.bf16.mxu0 0
        %2593 = vmatpush1.bf16.msra.mxu0 0
        %2594 = vmatprep.subr.bf16.mxu0 0
        %2595 = vmatpush1.bf16.msra.mxu0 0
        %2596 = vmatprep.subr.bf16.mxu0 0
        %2597 = vmatpush1.bf16.msra.mxu0 0
        %2598 = vmatprep.subr.bf16.mxu0 0
        %2599 = vmatpush1.bf16.msra.mxu0 0
        %2600 = vmatprep.subr.bf16.mxu0 0
        %2601 = vmatpush1.bf16.msra.mxu0 0
        %2602 = vmatprep.subr.bf16.mxu0 0
        %2603 = vmatpush1.bf16.msra.mxu0 0
        %2604 = vmatprep.subr.bf16.mxu0 0
        %2605 = vmatpush1.bf16.msra.mxu0 0
        %2606 = vmatprep.subr.bf16.mxu0 0
        %2607 = vmatpush1.bf16.msra.mxu0 0
        %2608 = vmatprep.subr.bf16.mxu0 0
        %2609 = vmatpush1.bf16.msra.mxu0 0
        %2610 = vmatprep.subr.bf16.mxu0 0
        %2611 = vmatpush1.bf16.msra.mxu0 0
        %2612 = vmatprep.subr.bf16.mxu0 0
        %2613 = vmatpush1.bf16.msra.mxu0 0
        %2614 = vmatprep.subr.bf16.mxu0 0
        %2615 = vmatpush1.bf16.msra.mxu0 0
        %2616 = vmatprep.subr.bf16.mxu0 0
        %2617 = vmatpush1.bf16.msra.mxu0 0
        %2618 = vmatprep.subr.bf16.mxu0 0
        %2619 = vmatpush1.bf16.msra.mxu0 0
        %2620 = vmatprep.subr.bf16.mxu0 0
        %2621 = vmatpush1.bf16.msra.mxu0 0
        %2622 = vmatprep.mubr.bf16.mxu0 0
        %2623 = vmatmul.mubr.bf16.gmra.mrb[0].mxu0 %v2585
        %v2624 = vpop.f32.mrb[0].mxu0
        %v2625 = vadd.f32 0.0, %v2624
        %v2626 = vpop.f32.mrb[0].mxu0
        %v2627 = vpop.f32.mrb[0].mxu0
        %v2628 = vpop.f32.mrb[0].mxu0
        %2629 = vdwg.mxu0
        %2630 = vrot.lane.b32.xlu0 %v1308, 104
        %v2631 = vpop.permute.xlu0 %2630
        %2632 = vrot.lane.b32.xlu0 %v1308, 72
        %v2633 = vpop.permute.xlu0 %2632
        %v2635 = vsel %vm1315, %v2631, 0
        %v2638 = vsel %vm1315, %v2633, 0
        %2640 = vmatprep.subr.bf16.mxu0 0
        %2641 = vmatpush1.bf16.xpose.msra.mxu0 %v2638
        %2642 = vmatprep.subr.bf16.mxu0 0
        %2643 = vmatpush1.bf16.xpose.msra.mxu0 0
        %2644 = vmatprep.subr.bf16.mxu0 0
        %2645 = vmatpush1.bf16.xpose.msra.mxu0 0
        %2646 = vmatprep.subr.bf16.mxu0 0
        %2647 = vmatpush1.bf16.xpose.msra.mxu0 0
        %2648 = vmatprep.subr.bf16.mxu0 0
        %2649 = vmatpush1.bf16.xpose.msra.mxu0 0
        %2650 = vmatprep.subr.bf16.mxu0 0
        %2651 = vmatpush1.bf16.xpose.msra.mxu0 0
        %2652 = vmatprep.subr.bf16.mxu0 0
        %2653 = vmatpush1.bf16.xpose.msra.mxu0 0
        %2654 = vmatprep.subr.bf16.mxu0 0
        %2655 = vmatpush1.bf16.xpose.msra.mxu0 0
        %2656 = vmatprep.subr.bf16.mxu0 0
        %2657 = vmatpush1.bf16.xpose.msra.mxu0 0
        %2658 = vmatprep.subr.bf16.mxu0 0
        %2659 = vmatpush1.bf16.xpose.msra.mxu0 0
        %2660 = vmatprep.subr.bf16.mxu0 0
        %2661 = vmatpush1.bf16.xpose.msra.mxu0 0
        %2662 = vmatprep.subr.bf16.mxu0 0
        %2663 = vmatpush1.bf16.xpose.msra.mxu0 0
        %2664 = vmatprep.subr.bf16.mxu0 0
        %2665 = vmatpush1.bf16.xpose.msra.mxu0 0
        %2666 = vmatprep.subr.bf16.mxu0 0
        %2667 = vmatpush1.bf16.xpose.msra.mxu0 0
        %2668 = vmatprep.subr.bf16.mxu0 0
        %2669 = vmatpush1.bf16.xpose.msra.mxu0 0
        %2670 = vmatprep.subr.bf16.mxu0 0
        %2671 = vmatpush1.bf16.xpose.msra.mxu0 0
        %2672 = vmatprep.mubr.bf16.mxu0 0
        %2673 = vmatmul.mubr.bf16.gmra.mrb[0].mxu0 %v2635
        %v2674 = vpop.f32.mrb[0].mxu0
        %v2675 = vadd.f32 %v1221, %v2674
        %v2676 = vpop.f32.mrb[0].mxu0
        %v2677 = vpop.f32.mrb[0].mxu0
        %v2678 = vpop.f32.mrb[0].mxu0
        %2679 = vdwg.mxu0
        %2680 = vrot.lane.b32.xlu0 %v1309, 104
        %v2681 = vpop.permute.xlu0 %2680
        %2682 = vrot.lane.b32.xlu0 %v1309, 72
        %v2683 = vpop.permute.xlu0 %2682
        %v2685 = vsel %vm1315, %v2681, 0
        %v2688 = vsel %vm1315, %v2683, 0
        %2690 = vmatprep.subr.bf16.mxu0 0
        %2691 = vmatpush1.bf16.xpose.msra.mxu0 %v2688
        %2692 = vmatprep.subr.bf16.mxu0 0
        %2693 = vmatpush1.bf16.xpose.msra.mxu0 0
        %2694 = vmatprep.subr.bf16.mxu0 0
        %2695 = vmatpush1.bf16.xpose.msra.mxu0 0
        %2696 = vmatprep.subr.bf16.mxu0 0
        %2697 = vmatpush1.bf16.xpose.msra.mxu0 0
        %2698 = vmatprep.subr.bf16.mxu0 0
        %2699 = vmatpush1.bf16.xpose.msra.mxu0 0
        %2700 = vmatprep.subr.bf16.mxu0 0
        %2701 = vmatpush1.bf16.xpose.msra.mxu0 0
        %2702 = vmatprep.subr.bf16.mxu0 0
        %2703 = vmatpush1.bf16.xpose.msra.mxu0 0
        %2704 = vmatprep.subr.bf16.mxu0 0
        %2705 = vmatpush1.bf16.xpose.msra.mxu0 0
        %2706 = vmatprep.subr.bf16.mxu0 0
        %2707 = vmatpush1.bf16.xpose.msra.mxu0 0
        %2708 = vmatprep.subr.bf16.mxu0 0
        %2709 = vmatpush1.bf16.xpose.msra.mxu0 0
        %2710 = vmatprep.subr.bf16.mxu0 0
        %2711 = vmatpush1.bf16.xpose.msra.mxu0 0
        %2712 = vmatprep.subr.bf16.mxu0 0
        %2713 = vmatpush1.bf16.xpose.msra.mxu0 0
        %2714 = vmatprep.subr.bf16.mxu0 0
        %2715 = vmatpush1.bf16.xpose.msra.mxu0 0
        %2716 = vmatprep.subr.bf16.mxu0 0
        %2717 = vmatpush1.bf16.xpose.msra.mxu0 0
        %2718 = vmatprep.subr.bf16.mxu0 0
        %2719 = vmatpush1.bf16.xpose.msra.mxu0 0
        %2720 = vmatprep.subr.bf16.mxu0 0
        %2721 = vmatpush1.bf16.xpose.msra.mxu0 0
        %2722 = vmatprep.mubr.bf16.mxu0 0
        %2723 = vmatmul.mubr.bf16.gmra.mrb[0].mxu0 %v2685
        %v2724 = vpop.f32.mrb[0].mxu0
        %v2725 = vadd.f32 %v1221, %v2724
        %v2726 = vpop.f32.mrb[0].mxu0
        %v2727 = vpop.f32.mrb[0].mxu0
        %v2728 = vpop.f32.mrb[0].mxu0
        %2729 = vdwg.mxu0
        %2730 = vrot.lane.b32.xlu0 %v1310, 104
        %v2731 = vpop.permute.xlu0 %2730
        %2732 = vrot.lane.b32.xlu0 %v1310, 72
        %v2733 = vpop.permute.xlu0 %2732
        %v2735 = vsel %vm1315, %v2731, 0
        %v2738 = vsel %vm1315, %v2733, 0
        %2740 = vmatprep.subr.bf16.mxu0 0
        %2741 = vmatpush1.bf16.xpose.msra.mxu0 %v2738
        %2742 = vmatprep.subr.bf16.mxu0 0
        %2743 = vmatpush1.bf16.xpose.msra.mxu0 0
        %2744 = vmatprep.subr.bf16.mxu0 0
        %2745 = vmatpush1.bf16.xpose.msra.mxu0 0
        %2746 = vmatprep.subr.bf16.mxu0 0
        %2747 = vmatpush1.bf16.xpose.msra.mxu0 0
        %2748 = vmatprep.subr.bf16.mxu0 0
        %2749 = vmatpush1.bf16.xpose.msra.mxu0 0
        %2750 = vmatprep.subr.bf16.mxu0 0
        %2751 = vmatpush1.bf16.xpose.msra.mxu0 0
        %2752 = vmatprep.subr.bf16.mxu0 0
        %2753 = vmatpush1.bf16.xpose.msra.mxu0 0
        %2754 = vmatprep.subr.bf16.mxu0 0
        %2755 = vmatpush1.bf16.xpose.msra.mxu0 0
        %2756 = vmatprep.subr.bf16.mxu0 0
        %2757 = vmatpush1.bf16.xpose.msra.mxu0 0
        %2758 = vmatprep.subr.bf16.mxu0 0
        %2759 = vmatpush1.bf16.xpose.msra.mxu0 0
        %2760 = vmatprep.subr.bf16.mxu0 0
        %2761 = vmatpush1.bf16.xpose.msra.mxu0 0
        %2762 = vmatprep.subr.bf16.mxu0 0
        %2763 = vmatpush1.bf16.xpose.msra.mxu0 0
        %2764 = vmatprep.subr.bf16.mxu0 0
        %2765 = vmatpush1.bf16.xpose.msra.mxu0 0
        %2766 = vmatprep.subr.bf16.mxu0 0
        %2767 = vmatpush1.bf16.xpose.msra.mxu0 0
        %2768 = vmatprep.subr.bf16.mxu0 0
        %2769 = vmatpush1.bf16.xpose.msra.mxu0 0
        %2770 = vmatprep.subr.bf16.mxu0 0
        %2771 = vmatpush1.bf16.xpose.msra.mxu0 0
        %2772 = vmatprep.mubr.bf16.mxu0 0
        %2773 = vmatmul.mubr.bf16.gmra.mrb[0].mxu0 %v2735
        %v2774 = vpop.f32.mrb[0].mxu0
        %v2775 = vadd.f32 %v1221, %v2774
        %v2776 = vpop.f32.mrb[0].mxu0
        %v2777 = vpop.f32.mrb[0].mxu0
        %v2778 = vpop.f32.mrb[0].mxu0
        %2779 = vdwg.mxu0
        %2780 = vrot.lane.b32.xlu0 %v1311, 104
        %v2781 = vpop.permute.xlu0 %2780
        %2782 = vrot.lane.b32.xlu0 %v1311, 72
        %v2783 = vpop.permute.xlu0 %2782
        %v2785 = vsel %vm1315, %v2781, 0
        %v2788 = vsel %vm1315, %v2783, 0
        %2790 = vmatprep.subr.bf16.mxu0 0
        %2791 = vmatpush1.bf16.xpose.msra.mxu0 %v2788
        %2792 = vmatprep.subr.bf16.mxu0 0
        %2793 = vmatpush1.bf16.xpose.msra.mxu0 0
        %2794 = vmatprep.subr.bf16.mxu0 0
        %2795 = vmatpush1.bf16.xpose.msra.mxu0 0
        %2796 = vmatprep.subr.bf16.mxu0 0
        %2797 = vmatpush1.bf16.xpose.msra.mxu0 0
        %2798 = vmatprep.subr.bf16.mxu0 0
        %2799 = vmatpush1.bf16.xpose.msra.mxu0 0
        %2800 = vmatprep.subr.bf16.mxu0 0
        %2801 = vmatpush1.bf16.xpose.msra.mxu0 0
        %2802 = vmatprep.subr.bf16.mxu0 0
        %2803 = vmatpush1.bf16.xpose.msra.mxu0 0
        %2804 = vmatprep.subr.bf16.mxu0 0
        %2805 = vmatpush1.bf16.xpose.msra.mxu0 0
        %2806 = vmatprep.subr.bf16.mxu0 0
        %2807 = vmatpush1.bf16.xpose.msra.mxu0 0
        %2808 = vmatprep.subr.bf16.mxu0 0
        %2809 = vmatpush1.bf16.xpose.msra.mxu0 0
        %2810 = vmatprep.subr.bf16.mxu0 0
        %2811 = vmatpush1.bf16.xpose.msra.mxu0 0
        %2812 = vmatprep.subr.bf16.mxu0 0
        %2813 = vmatpush1.bf16.xpose.msra.mxu0 0
        %2814 = vmatprep.subr.bf16.mxu0 0
        %2815 = vmatpush1.bf16.xpose.msra.mxu0 0
        %2816 = vmatprep.subr.bf16.mxu0 0
        %2817 = vmatpush1.bf16.xpose.msra.mxu0 0
        %2818 = vmatprep.subr.bf16.mxu0 0
        %2819 = vmatpush1.bf16.xpose.msra.mxu0 0
        %2820 = vmatprep.subr.bf16.mxu0 0
        %2821 = vmatpush1.bf16.xpose.msra.mxu0 0
        %2822 = vmatprep.mubr.bf16.mxu0 0
        %2823 = vmatmul.mubr.bf16.gmra.mrb[0].mxu0 %v2785
        %v2824 = vpop.f32.mrb[0].mxu0
        %v2825 = vadd.f32 %v1221, %v2824
        %v2826 = vpop.f32.mrb[0].mxu0
        %v2827 = vpop.f32.mrb[0].mxu0
        %v2828 = vpop.f32.mrb[0].mxu0
        %2829 = vdwg.mxu0
        %v2830 = vsel %vm1315, %v2675, -inf
        %2831 = vmax.xlane.f32.xlu0 %v2830
        %v2832 = vpop.xlane.xlu0 %2831
        %v2833 = vsel %vm1315, %v2725, -inf
        %2834 = vmax.xlane.f32.xlu0 %v2833
        %v2835 = vpop.xlane.xlu0 %2834
        %v2836 = vsel %vm1315, %v2775, -inf
        %2837 = vmax.xlane.f32.xlu0 %v2836
        %v2838 = vpop.xlane.xlu0 %2837
        %v2839 = vsel %vm1315, %v2825, -inf
        %2840 = vmax.xlane.f32.xlu0 %v2839
        %v2841 = vpop.xlane.xlu0 %2840
        %v2842 = vsub.f32 %v2675, %v2832
        %v2843 = vsub.f32 %v2725, %v2835
        %v2844 = vsub.f32 %v2775, %v2838
        %v2845 = vsub.f32 %v2825, %v2841
        %v2846 = vmul.f32 %v2842, 1.442695
        %v2847 = vpow.pop %v2846
        %v2848 = vmul.f32 %v2843, 1.442695
        %v2849 = vpow.pop %v2848
        %v2850 = vmul.f32 %v2844, 1.442695
        %v2851 = vpow.pop %v2850
        %v2852 = vmul.f32 %v2845, 1.442695
        %v2853 = vpow.pop %v2852
        %v2854 = vsel %vm1315, %v2847, 0.0
        %2855 = vadd.xlane.f32.xlu0 %v2854
        %v2856 = vpop.xlane.xlu0 %2855
        %v2857 = vsel %vm1315, %v2849, 0.0
        %2858 = vadd.xlane.f32.xlu0 %v2857
        %v2859 = vpop.xlane.xlu0 %2858
        %v2860 = vsel %vm1315, %v2851, 0.0
        %2861 = vadd.xlane.f32.xlu0 %v2860
        %v2862 = vpop.xlane.xlu0 %2861
        %v2863 = vsel %vm1315, %v2853, 0.0
        %2864 = vadd.xlane.f32.xlu0 %v2863
        %v2865 = vpop.xlane.xlu0 %2864
        %v2866 = vrcp.pop %v2856
        %v2867 = vrcp.pop %v2859
        %v2868 = vrcp.pop %v2862
        %v2869 = vrcp.pop %v2865
        %v2870 = vmul.f32 %v2847, %v2866
        %v2871 = vmul.f32 %v2849, %v2867
        %v2872 = vmul.f32 %v2851, %v2868
        %v2873 = vmul.f32 %v2853, %v2869
        %v2874 = vpack.c.bf16 %v2870, %v2870
        %v2875 = vpack.c.bf16 %v2871, %v2871
        %v2876 = vpack.c.bf16 %v2872, %v2872
        %v2877 = vpack.c.bf16 %v2873, %v2873
        %2878 = vrot.lane.b32.xlu0 %v1308, 40
        %v2879 = vpop.permute.xlu0 %2878
        %v2881 = vsel %vm1315, %v2874, 0
        %v2884 = vsel %vm1562, %v2879, 0
        %2886 = vmatprep.subr.bf16.mxu0 0
        %2887 = vmatpush1.bf16.msra.mxu0 %v2884
        %2888 = vmatprep.subr.bf16.mxu0 0
        %2889 = vmatpush1.bf16.msra.mxu0 0
        %2890 = vmatprep.subr.bf16.mxu0 0
        %2891 = vmatpush1.bf16.msra.mxu0 0
        %2892 = vmatprep.subr.bf16.mxu0 0
        %2893 = vmatpush1.bf16.msra.mxu0 0
        %2894 = vmatprep.subr.bf16.mxu0 0
        %2895 = vmatpush1.bf16.msra.mxu0 0
        %2896 = vmatprep.subr.bf16.mxu0 0
        %2897 = vmatpush1.bf16.msra.mxu0 0
        %2898 = vmatprep.subr.bf16.mxu0 0
        %2899 = vmatpush1.bf16.msra.mxu0 0
        %2900 = vmatprep.subr.bf16.mxu0 0
        %2901 = vmatpush1.bf16.msra.mxu0 0
        %2902 = vmatprep.subr.bf16.mxu0 0
        %2903 = vmatpush1.bf16.msra.mxu0 0
        %2904 = vmatprep.subr.bf16.mxu0 0
        %2905 = vmatpush1.bf16.msra.mxu0 0
        %2906 = vmatprep.subr.bf16.mxu0 0
        %2907 = vmatpush1.bf16.msra.mxu0 0
        %2908 = vmatprep.subr.bf16.mxu0 0
        %2909 = vmatpush1.bf16.msra.mxu0 0
        %2910 = vmatprep.subr.bf16.mxu0 0
        %2911 = vmatpush1.bf16.msra.mxu0 0
        %2912 = vmatprep.subr.bf16.mxu0 0
        %2913 = vmatpush1.bf16.msra.mxu0 0
        %2914 = vmatprep.subr.bf16.mxu0 0
        %2915 = vmatpush1.bf16.msra.mxu0 0
        %2916 = vmatprep.subr.bf16.mxu0 0
        %2917 = vmatpush1.bf16.msra.mxu0 0
        %2918 = vmatprep.mubr.bf16.mxu0 0
        %2919 = vmatmul.mubr.bf16.gmra.mrb[0].mxu0 %v2881
        %v2920 = vpop.f32.mrb[0].mxu0
        %v2921 = vadd.f32 0.0, %v2920
        %v2922 = vpop.f32.mrb[0].mxu0
        %v2923 = vpop.f32.mrb[0].mxu0
        %v2924 = vpop.f32.mrb[0].mxu0
        %2925 = vdwg.mxu0
        %2926 = vrot.lane.b32.xlu0 %v1309, 40
        %v2927 = vpop.permute.xlu0 %2926
        %v2929 = vsel %vm1315, %v2875, 0
        %v2932 = vsel %vm1562, %v2927, 0
        %2934 = vmatprep.subr.bf16.mxu0 0
        %2935 = vmatpush1.bf16.msra.mxu0 %v2932
        %2936 = vmatprep.subr.bf16.mxu0 0
        %2937 = vmatpush1.bf16.msra.mxu0 0
        %2938 = vmatprep.subr.bf16.mxu0 0
        %2939 = vmatpush1.bf16.msra.mxu0 0
        %2940 = vmatprep.subr.bf16.mxu0 0
        %2941 = vmatpush1.bf16.msra.mxu0 0
        %2942 = vmatprep.subr.bf16.mxu0 0
        %2943 = vmatpush1.bf16.msra.mxu0 0
        %2944 = vmatprep.subr.bf16.mxu0 0
        %2945 = vmatpush1.bf16.msra.mxu0 0
        %2946 = vmatprep.subr.bf16.mxu0 0
        %2947 = vmatpush1.bf16.msra.mxu0 0
        %2948 = vmatprep.subr.bf16.mxu0 0
        %2949 = vmatpush1.bf16.msra.mxu0 0
        %2950 = vmatprep.subr.bf16.mxu0 0
        %2951 = vmatpush1.bf16.msra.mxu0 0
        %2952 = vmatprep.subr.bf16.mxu0 0
        %2953 = vmatpush1.bf16.msra.mxu0 0
        %2954 = vmatprep.subr.bf16.mxu0 0
        %2955 = vmatpush1.bf16.msra.mxu0 0
        %2956 = vmatprep.subr.bf16.mxu0 0
        %2957 = vmatpush1.bf16.msra.mxu0 0
        %2958 = vmatprep.subr.bf16.mxu0 0
        %2959 = vmatpush1.bf16.msra.mxu0 0
        %2960 = vmatprep.subr.bf16.mxu0 0
        %2961 = vmatpush1.bf16.msra.mxu0 0
        %2962 = vmatprep.subr.bf16.mxu0 0
        %2963 = vmatpush1.bf16.msra.mxu0 0
        %2964 = vmatprep.subr.bf16.mxu0 0
        %2965 = vmatpush1.bf16.msra.mxu0 0
        %2966 = vmatprep.mubr.bf16.mxu0 0
        %2967 = vmatmul.mubr.bf16.gmra.mrb[0].mxu0 %v2929
        %v2968 = vpop.f32.mrb[0].mxu0
        %v2969 = vadd.f32 0.0, %v2968
        %v2970 = vpop.f32.mrb[0].mxu0
        %v2971 = vpop.f32.mrb[0].mxu0
        %v2972 = vpop.f32.mrb[0].mxu0
        %2973 = vdwg.mxu0
        %2974 = vrot.lane.b32.xlu0 %v1310, 40
        %v2975 = vpop.permute.xlu0 %2974
        %v2977 = vsel %vm1315, %v2876, 0
        %v2980 = vsel %vm1562, %v2975, 0
        %2982 = vmatprep.subr.bf16.mxu0 0
        %2983 = vmatpush1.bf16.msra.mxu0 %v2980
        %2984 = vmatprep.subr.bf16.mxu0 0
        %2985 = vmatpush1.bf16.msra.mxu0 0
        %2986 = vmatprep.subr.bf16.mxu0 0
        %2987 = vmatpush1.bf16.msra.mxu0 0
        %2988 = vmatprep.subr.bf16.mxu0 0
        %2989 = vmatpush1.bf16.msra.mxu0 0
        %2990 = vmatprep.subr.bf16.mxu0 0
        %2991 = vmatpush1.bf16.msra.mxu0 0
        %2992 = vmatprep.subr.bf16.mxu0 0
        %2993 = vmatpush1.bf16.msra.mxu0 0
        %2994 = vmatprep.subr.bf16.mxu0 0
        %2995 = vmatpush1.bf16.msra.mxu0 0
        %2996 = vmatprep.subr.bf16.mxu0 0
        %2997 = vmatpush1.bf16.msra.mxu0 0
        %2998 = vmatprep.subr.bf16.mxu0 0
        %2999 = vmatpush1.bf16.msra.mxu0 0
        %3000 = vmatprep.subr.bf16.mxu0 0
        %3001 = vmatpush1.bf16.msra.mxu0 0
        %3002 = vmatprep.subr.bf16.mxu0 0
        %3003 = vmatpush1.bf16.msra.mxu0 0
        %3004 = vmatprep.subr.bf16.mxu0 0
        %3005 = vmatpush1.bf16.msra.mxu0 0
        %3006 = vmatprep.subr.bf16.mxu0 0
        %3007 = vmatpush1.bf16.msra.mxu0 0
        %3008 = vmatprep.subr.bf16.mxu0 0
        %3009 = vmatpush1.bf16.msra.mxu0 0
        %3010 = vmatprep.subr.bf16.mxu0 0
        %3011 = vmatpush1.bf16.msra.mxu0 0
        %3012 = vmatprep.subr.bf16.mxu0 0
        %3013 = vmatpush1.bf16.msra.mxu0 0
        %3014 = vmatprep.mubr.bf16.mxu0 0
        %3015 = vmatmul.mubr.bf16.gmra.mrb[0].mxu0 %v2977
        %v3016 = vpop.f32.mrb[0].mxu0
        %v3017 = vadd.f32 0.0, %v3016
        %v3018 = vpop.f32.mrb[0].mxu0
        %v3019 = vpop.f32.mrb[0].mxu0
        %v3020 = vpop.f32.mrb[0].mxu0
        %3021 = vdwg.mxu0
        %3022 = vrot.lane.b32.xlu0 %v1311, 40
        %v3023 = vpop.permute.xlu0 %3022
        %v3025 = vsel %vm1315, %v2877, 0
        %v3028 = vsel %vm1562, %v3023, 0
        %3030 = vmatprep.subr.bf16.mxu0 0
        %3031 = vmatpush1.bf16.msra.mxu0 %v3028
        %3032 = vmatprep.subr.bf16.mxu0 0
        %3033 = vmatpush1.bf16.msra.mxu0 0
        %3034 = vmatprep.subr.bf16.mxu0 0
        %3035 = vmatpush1.bf16.msra.mxu0 0
        %3036 = vmatprep.subr.bf16.mxu0 0
        %3037 = vmatpush1.bf16.msra.mxu0 0
        %3038 = vmatprep.subr.bf16.mxu0 0
        %3039 = vmatpush1.bf16.msra.mxu0 0
        %3040 = vmatprep.subr.bf16.mxu0 0
        %3041 = vmatpush1.bf16.msra.mxu0 0
        %3042 = vmatprep.subr.bf16.mxu0 0
        %3043 = vmatpush1.bf16.msra.mxu0 0
        %3044 = vmatprep.subr.bf16.mxu0 0
        %3045 = vmatpush1.bf16.msra.mxu0 0
        %3046 = vmatprep.subr.bf16.mxu0 0
        %3047 = vmatpush1.bf16.msra.mxu0 0
        %3048 = vmatprep.subr.bf16.mxu0 0
        %3049 = vmatpush1.bf16.msra.mxu0 0
        %3050 = vmatprep.subr.bf16.mxu0 0
        %3051 = vmatpush1.bf16.msra.mxu0 0
        %3052 = vmatprep.subr.bf16.mxu0 0
        %3053 = vmatpush1.bf16.msra.mxu0 0
        %3054 = vmatprep.subr.bf16.mxu0 0
        %3055 = vmatpush1.bf16.msra.mxu0 0
        %3056 = vmatprep.subr.bf16.mxu0 0
        %3057 = vmatpush1.bf16.msra.mxu0 0
        %3058 = vmatprep.subr.bf16.mxu0 0
        %3059 = vmatpush1.bf16.msra.mxu0 0
        %3060 = vmatprep.subr.bf16.mxu0 0
        %3061 = vmatpush1.bf16.msra.mxu0 0
        %3062 = vmatprep.mubr.bf16.mxu0 0
        %3063 = vmatmul.mubr.bf16.gmra.mrb[0].mxu0 %v3025
        %v3064 = vpop.f32.mrb[0].mxu0
        %v3065 = vadd.f32 0.0, %v3064
        %v3066 = vpop.f32.mrb[0].mxu0
        %v3067 = vpop.f32.mrb[0].mxu0
        %v3068 = vpop.f32.mrb[0].mxu0
        %3069 = vdwg.mxu0
        %3074 = vrot.lane.b32.xlu0 %v2041, 8
        %v3075 = vpop.permute.xlu0 %3074
        %3076 = vrot.lane.b32.xlu0 %v2089, 8
        %v3077 = vpop.permute.xlu0 %3076
        %3078 = vrot.lane.b32.xlu0 %v2137, 8
        %v3079 = vpop.permute.xlu0 %3078
        %3080 = vrot.lane.b32.xlu0 %v2185, 8
        %v3081 = vpop.permute.xlu0 %3080
        %3090 = vrot.lane.b32.xlu0 %v2481, 16
        %v3091 = vpop.permute.xlu0 %3090
        %3092 = vrot.lane.b32.xlu0 %v2529, 16
        %v3093 = vpop.permute.xlu0 %3092
        %3094 = vrot.lane.b32.xlu0 %v2577, 16
        %v3095 = vpop.permute.xlu0 %3094
        %3096 = vrot.lane.b32.xlu0 %v2625, 16
        %v3097 = vpop.permute.xlu0 %3096
        %3106 = vrot.lane.b32.xlu0 %v2921, 24
        %v3107 = vpop.permute.xlu0 %3106
        %3108 = vrot.lane.b32.xlu0 %v2969, 24
        %v3109 = vpop.permute.xlu0 %3108
        %3110 = vrot.lane.b32.xlu0 %v3017, 24
        %v3111 = vpop.permute.xlu0 %3110
        %3112 = vrot.lane.b32.xlu0 %v3065, 24
        %v3113 = vpop.permute.xlu0 %3112
        %v3118 = vsel %vm1315, %v1601, %v3075
        %v3119 = vsel %vm1315, %v1649, %v3077
        %v3120 = vsel %vm1315, %v1697, %v3079
        %v3121 = vsel %vm1315, %v1745, %v3081
        %vm3122 = vcmask 130048
        %v3123 = vsel %vm3122, %v3118, %v3091
        %v3124 = vsel %vm3122, %v3119, %v3093
        %v3125 = vsel %vm3122, %v3120, %v3095
        %v3126 = vsel %vm3122, %v3121, %v3097
        %vm3127 = vcmask 195584
        %v3128 = vsel %vm3127, %v3123, %v3107
        %v3129 = vsel %vm3127, %v3124, %v3109
        %v3130 = vsel %vm3127, %v3125, %v3111
        %v3131 = vsel %vm3127, %v3126, %v3113
        %v3132 = vpack.c.bf16 %v3129, %v3128
        %v3133 = vpack.c.bf16 %v3131, %v3130
        %v3135 = vlaneseq
        %v3136 = vshrl.u32 %v3135, 7
        %v3137 = vsub.s32 0, %v3136
        %v3138 = vrot.slane %v1307, %v3137
        %v3144 = vunpack.c.l.b16 %v1303
        %v3145 = vunpack.c.l.b16 %v1304
        %v3146 = vunpack.c.l.b16 %v1305
        %v3147 = vunpack.c.l.b16 %v1306
        %v3148 = vpack.c.b16 %v3145, %v3144
        %v3149 = vpack.c.b16 %v3147, %v3146
        %v3153 = vsel %vm1247, %v3132, 0
        %v3156 = vsel %vm1247, %v3133, 0
        %3158 = vmatprep.subr.bf16.mxu0 0
        %3159 = vmatpush1.bf16.msra.mxu0 %v3148
        %3160 = vmatprep.subr.bf16.mxu0 0
        %3161 = vmatpush1.bf16.msra.mxu0 %v3149
        %3162 = vmatprep.subr.bf16.mxu0 0
        %3163 = vmatpush1.bf16.msra.mxu0 0
        %3164 = vmatprep.subr.bf16.mxu0 0
        %3165 = vmatpush1.bf16.msra.mxu0 0
        %3166 = vmatprep.subr.bf16.mxu0 0
        %3167 = vmatpush1.bf16.msra.mxu0 0
        %3168 = vmatprep.subr.bf16.mxu0 0
        %3169 = vmatpush1.bf16.msra.mxu0 0
        %3170 = vmatprep.subr.bf16.mxu0 0
        %3171 = vmatpush1.bf16.msra.mxu0 0
        %3172 = vmatprep.subr.bf16.mxu0 0
        %3173 = vmatpush1.bf16.msra.mxu0 0
        %3174 = vmatprep.subr.bf16.mxu0 0
        %3175 = vmatpush1.bf16.msra.mxu0 0
        %3176 = vmatprep.subr.bf16.mxu0 0
        %3177 = vmatpush1.bf16.msra.mxu0 0
        %3178 = vmatprep.subr.bf16.mxu0 0
        %3179 = vmatpush1.bf16.msra.mxu0 0
        %3180 = vmatprep.subr.bf16.mxu0 0
        %3181 = vmatpush1.bf16.msra.mxu0 0
        %3182 = vmatprep.subr.bf16.mxu0 0
        %3183 = vmatpush1.bf16.msra.mxu0 0
        %3184 = vmatprep.subr.bf16.mxu0 0
        %3185 = vmatpush1.bf16.msra.mxu0 0
        %3186 = vmatprep.subr.bf16.mxu0 0
        %3187 = vmatpush1.bf16.msra.mxu0 0
        %3188 = vmatprep.subr.bf16.mxu0 0
        %3189 = vmatpush1.bf16.msra.mxu0 0
        %3190 = vmatprep.mubr.bf16.mxu0 0
        %3191 = vmatmul.mubr.bf16.gmra.mrb[0].mxu0 %v3153
        %v3192 = vpop.f32.mrb[0].mxu0
        %v3193 = vadd.f32 %v3138, %v3192
        %v3194 = vpop.f32.mrb[0].mxu0
        %v3195 = vpop.f32.mrb[0].mxu0
        %v3196 = vadd.f32 %v3138, %v3195
        %v3197 = vpop.f32.mrb[0].mxu0
        %3198 = vmatprep.mubr.bf16.mxu0 0
        %3199 = vmatmul.mubr.bf16.gmra.mrb[0].mxu0 %v3156
        %v3200 = vpop.f32.mrb[0].mxu0
        %v3201 = vadd.f32 %v3138, %v3200
        %v3202 = vpop.f32.mrb[0].mxu0
        %v3203 = vpop.f32.mrb[0].mxu0
        %v3204 = vadd.f32 %v3138, %v3203
        %v3205 = vpop.f32.mrb[0].mxu0
        %3206 = vdwg.mxu0
        %v3207 = vadd.f32 %v3193, %v1208
        %v3208 = vadd.f32 %v3196, %v1209
        %v3209 = vadd.f32 %v3201, %v1210
        %v3210 = vadd.f32 %v3204, %v1211
        %v3211 = vld [vmem:[%s1156] sm:$0x1]
        %v3212 = vld [vmem:[%s1159] sm:$0x1]
        %v3213 = vsel %vm1247, %v3207, 0.0
        %3214 = vadd.xlane.f32.xlu0 %v3213
        %v3215 = vpop.xlane.xlu0 %3214
        %v3216 = vsel %vm1247, %v3208, 0.0
        %3217 = vadd.xlane.f32.xlu0 %v3216
        %v3218 = vpop.xlane.xlu0 %3217
        %v3219 = vsel %vm1247, %v3209, 0.0
        %3220 = vadd.xlane.f32.xlu0 %v3219
        %v3221 = vpop.xlane.xlu0 %3220
        %v3222 = vsel %vm1247, %v3210, 0.0
        %3223 = vadd.xlane.f32.xlu0 %v3222
        %v3224 = vpop.xlane.xlu0 %3223
        %v3225 = vrcp.pop 32.0
        %v3226 = vmul.f32 %v3215, %v3225
        %v3227 = vmul.f32 %v3218, %v3225
        %v3228 = vmul.f32 %v3221, %v3225
        %v3229 = vmul.f32 %v3224, %v3225
        %v3230 = vsub.f32 %v3207, %v3226
        %v3231 = vsub.f32 %v3208, %v3227
        %v3232 = vsub.f32 %v3209, %v3228
        %v3233 = vsub.f32 %v3210, %v3229
        %v3234 = vmul.f32 %v3230, %v3230
        %v3235 = vmul.f32 %v3231, %v3231
        %v3236 = vmul.f32 %v3232, %v3232
        %v3237 = vmul.f32 %v3233, %v3233
        %v3238 = vsel %vm1247, %v3234, 0.0
        %3239 = vadd.xlane.f32.xlu0 %v3238
        %v3240 = vpop.xlane.xlu0 %3239
        %v3241 = vsel %vm1247, %v3235, 0.0
        %3242 = vadd.xlane.f32.xlu0 %v3241
        %v3243 = vpop.xlane.xlu0 %3242
        %v3244 = vsel %vm1247, %v3236, 0.0
        %3245 = vadd.xlane.f32.xlu0 %v3244
        %v3246 = vpop.xlane.xlu0 %3245
        %v3247 = vsel %vm1247, %v3237, 0.0
        %3248 = vadd.xlane.f32.xlu0 %v3247
        %v3249 = vpop.xlane.xlu0 %3248
        %v3250 = vmul.f32 %v3240, %v3225
        %v3251 = vmul.f32 %v3243, %v3225
        %v3252 = vmul.f32 %v3246, %v3225
        %v3253 = vmul.f32 %v3249, %v3225
        %v3254 = vadd.f32 %v3250, 1e-05
        %v3255 = vadd.f32 %v3251, 1e-05
        %v3256 = vadd.f32 %v3252, 1e-05
        %v3257 = vadd.f32 %v3253, 1e-05
        %v3258 = vrsqrt.pop %v3254
        %v3259 = vrsqrt.pop %v3255
        %v3260 = vrsqrt.pop %v3256
        %v3261 = vrsqrt.pop %v3257
        %v3262 = vmul.f32 %v3230, %v3258
        %v3263 = vmul.f32 %v3231, %v3259
        %v3264 = vmul.f32 %v3232, %v3260
        %v3265 = vmul.f32 %v3233, %v3261
        %v3267 = vlaneseq
        %v3268 = vshrl.u32 %v3267, 7
        %v3269 = vsub.s32 0, %v3268
        %v3270 = vrot.slane %v3211, %v3269
        %v3272 = vmul.f32 %v3262, %v3270
        %v3273 = vmul.f32 %v3263, %v3270
        %v3274 = vmul.f32 %v3264, %v3270
        %v3275 = vmul.f32 %v3265, %v3270
        %v3277 = vlaneseq
        %v3278 = vshrl.u32 %v3277, 7
        %v3279 = vsub.s32 0, %v3278
        %v3280 = vrot.slane %v3212, %v3279
        %v3282 = vadd.f32 %v3272, %v3280
        %v3283 = vadd.f32 %v3273, %v3280
        %v3284 = vadd.f32 %v3274, %v3280
        %v3285 = vadd.f32 %v3275, %v3280
        %v3286 = vpack.c.bf16 %v3283, %v3282
        %v3287 = vpack.c.bf16 %v3285, %v3284
        %v3288 = vld [vmem:[%s1164] sm:$0xf]
        %v3289 = vld [vmem:[%s1164 + $0x4] sm:$0xf]
        %v3290 = vld [vmem:[%s1164 + $0x8] sm:$0xf]
        %v3291 = vld [vmem:[%s1164 + $0xc] sm:$0xf]
        %v3292 = vld [vmem:[%s1167] sm:$0x1]
        %v3294 = vlaneseq
        %v3295 = vshrl.u32 %v3294, 7
        %v3296 = vsub.s32 0, %v3295
        %v3297 = vrot.slane %v3292, %v3296
        %v3303 = vunpack.c.l.b16 %v3288
        %v3304 = vunpack.c.l.b16 %v3289
        %v3305 = vunpack.c.l.b16 %v3290
        %v3306 = vunpack.c.l.b16 %v3291
        %v3307 = vpack.c.b16 %v3304, %v3303
        %v3308 = vpack.c.b16 %v3306, %v3305
        %v3312 = vsel %vm1247, %v3286, 0
        %v3315 = vsel %vm1247, %v3287, 0
        %3317 = vmatprep.subr.bf16.mxu0 0
        %3318 = vmatpush1.bf16.msra.mxu0 %v3307
        %3319 = vmatprep.subr.bf16.mxu0 0
        %3320 = vmatpush1.bf16.msra.mxu0 %v3308
        %3321 = vmatprep.subr.bf16.mxu0 0
        %3322 = vmatpush1.bf16.msra.mxu0 0
        %3323 = vmatprep.subr.bf16.mxu0 0
        %3324 = vmatpush1.bf16.msra.mxu0 0
        %3325 = vmatprep.subr.bf16.mxu0 0
        %3326 = vmatpush1.bf16.msra.mxu0 0
        %3327 = vmatprep.subr.bf16.mxu0 0
        %3328 = vmatpush1.bf16.msra.mxu0 0
        %3329 = vmatprep.subr.bf16.mxu0 0
        %3330 = vmatpush1.bf16.msra.mxu0 0
        %3331 = vmatprep.subr.bf16.mxu0 0
        %3332 = vmatpush1.bf16.msra.mxu0 0
        %3333 = vmatprep.subr.bf16.mxu0 0
        %3334 = vmatpush1.bf16.msra.mxu0 0
        %3335 = vmatprep.subr.bf16.mxu0 0
        %3336 = vmatpush1.bf16.msra.mxu0 0
        %3337 = vmatprep.subr.bf16.mxu0 0
        %3338 = vmatpush1.bf16.msra.mxu0 0
        %3339 = vmatprep.subr.bf16.mxu0 0
        %3340 = vmatpush1.bf16.msra.mxu0 0
        %3341 = vmatprep.subr.bf16.mxu0 0
        %3342 = vmatpush1.bf16.msra.mxu0 0
        %3343 = vmatprep.subr.bf16.mxu0 0
        %3344 = vmatpush1.bf16.msra.mxu0 0
        %3345 = vmatprep.subr.bf16.mxu0 0
        %3346 = vmatpush1.bf16.msra.mxu0 0
        %3347 = vmatprep.subr.bf16.mxu0 0
        %3348 = vmatpush1.bf16.msra.mxu0 0
        %3349 = vmatprep.mubr.bf16.mxu0 0
        %3350 = vmatmul.mubr.bf16.gmra.mrb[0].mxu0 %v3312
        %v3351 = vpop.f32.mrb[0].mxu0
        %v3352 = vadd.f32 %v3297, %v3351
        %v3353 = vpop.f32.mrb[0].mxu0
        %v3354 = vpop.f32.mrb[0].mxu0
        %v3355 = vadd.f32 %v3297, %v3354
        %v3356 = vpop.f32.mrb[0].mxu0
        %3357 = vmatprep.mubr.bf16.mxu0 0
        %3358 = vmatmul.mubr.bf16.gmra.mrb[0].mxu0 %v3315
        %v3359 = vpop.f32.mrb[0].mxu0
        %v3360 = vadd.f32 %v3297, %v3359
        %v3361 = vpop.f32.mrb[0].mxu0
        %v3362 = vpop.f32.mrb[0].mxu0
        %v3363 = vadd.f32 %v3297, %v3362
        %v3364 = vpop.f32.mrb[0].mxu0
        %3365 = vdwg.mxu0
        %v3366 = vpack.c.bf16 %v1213, %v1212
        %v3367 = vpack.c.bf16 %v1215, %v1214
        %v3368 = vld [vmem:[%s1172] sm:$0xf]
        %v3369 = vld [vmem:[%s1172 + $0x4] sm:$0xf]
        %v3370 = vld [vmem:[%s1172 + $0x8] sm:$0xf]
        %v3371 = vld [vmem:[%s1172 + $0xc] sm:$0xf]
        %v3372 = vld [vmem:[%s922] sm:$0x1]
        %v3374 = vlaneseq
        %v3375 = vshrl.u32 %v3374, 7
        %v3376 = vsub.s32 0, %v3375
        %v3377 = vrot.slane %v3372, %v3376
        %v3383 = vunpack.c.l.b16 %v3368
        %v3384 = vunpack.c.l.b16 %v3369
        %v3385 = vunpack.c.l.b16 %v3370
        %v3386 = vunpack.c.l.b16 %v3371
        %v3387 = vpack.c.b16 %v3384, %v3383
        %v3388 = vpack.c.b16 %v3386, %v3385
        %v3392 = vsel %vm1247, %v3366, 0
        %v3395 = vsel %vm1247, %v3367, 0
        %3397 = vmatprep.subr.bf16.mxu0 0
        %3398 = vmatpush1.bf16.msra.mxu0 %v3387
        %3399 = vmatprep.subr.bf16.mxu0 0
        %3400 = vmatpush1.bf16.msra.mxu0 %v3388
        %3401 = vmatprep.subr.bf16.mxu0 0
        %3402 = vmatpush1.bf16.msra.mxu0 0
        %3403 = vmatprep.subr.bf16.mxu0 0
        %3404 = vmatpush1.bf16.msra.mxu0 0
        %3405 = vmatprep.subr.bf16.mxu0 0
        %3406 = vmatpush1.bf16.msra.mxu0 0
        %3407 = vmatprep.subr.bf16.mxu0 0
        %3408 = vmatpush1.bf16.msra.mxu0 0
        %3409 = vmatprep.subr.bf16.mxu0 0
        %3410 = vmatpush1.bf16.msra.mxu0 0
        %3411 = vmatprep.subr.bf16.mxu0 0
        %3412 = vmatpush1.bf16.msra.mxu0 0
        %3413 = vmatprep.subr.bf16.mxu0 0
        %3414 = vmatpush1.bf16.msra.mxu0 0
        %3415 = vmatprep.subr.bf16.mxu0 0
        %3416 = vmatpush1.bf16.msra.mxu0 0
        %3417 = vmatprep.subr.bf16.mxu0 0
        %3418 = vmatpush1.bf16.msra.mxu0 0
        %3419 = vmatprep.subr.bf16.mxu0 0
        %3420 = vmatpush1.bf16.msra.mxu0 0
        %3421 = vmatprep.subr.bf16.mxu0 0
        %3422 = vmatpush1.bf16.msra.mxu0 0
        %3423 = vmatprep.subr.bf16.mxu0 0
        %3424 = vmatpush1.bf16.msra.mxu0 0
        %3425 = vmatprep.subr.bf16.mxu0 0
        %3426 = vmatpush1.bf16.msra.mxu0 0
        %3427 = vmatprep.subr.bf16.mxu0 0
        %3428 = vmatpush1.bf16.msra.mxu0 0
        %3429 = vmatprep.mubr.bf16.mxu0 0
        %3430 = vmatmul.mubr.bf16.gmra.mrb[0].mxu0 %v3392
        %v3431 = vpop.f32.mrb[0].mxu0
        %v3432 = vadd.f32 %v3377, %v3431
        %v3433 = vpop.f32.mrb[0].mxu0
        %v3434 = vpop.f32.mrb[0].mxu0
        %v3435 = vadd.f32 %v3377, %v3434
        %v3436 = vpop.f32.mrb[0].mxu0
        %3437 = vmatprep.mubr.bf16.mxu0 0
        %3438 = vmatmul.mubr.bf16.gmra.mrb[0].mxu0 %v3395
        %v3439 = vpop.f32.mrb[0].mxu0
        %v3440 = vadd.f32 %v3377, %v3439
        %v3441 = vpop.f32.mrb[0].mxu0
        %v3442 = vpop.f32.mrb[0].mxu0
        %v3443 = vadd.f32 %v3377, %v3442
        %v3444 = vpop.f32.mrb[0].mxu0
        %3445 = vdwg.mxu0
        %v3446 = vld [vmem:[%s1177] sm:$0xf]
        %v3447 = vld [vmem:[%s1177 + $0x4] sm:$0xf]
        %v3448 = vld [vmem:[%s1177 + $0x8] sm:$0xf]
        %v3449 = vld [vmem:[%s1177 + $0xc] sm:$0xf]
        %v3450 = vld [vmem:[%s930] sm:$0x1]
        %v3451 = vpack.c.bf16 %v3352, %v3352
        %v3452 = vpack.c.bf16 %v3355, %v3355
        %v3453 = vpack.c.bf16 %v3360, %v3360
        %v3454 = vpack.c.bf16 %v3363, %v3363
        %v3455 = vpack.c.bf16 %v3432, %v3432
        %v3456 = vpack.c.bf16 %v3435, %v3435
        %v3457 = vpack.c.bf16 %v3440, %v3440
        %v3458 = vpack.c.bf16 %v3443, %v3443
        %v3460 = vsel %vm1315, %v3451, 0
        %v3463 = vsel %vm1315, %v3455, 0
        %3465 = vmatprep.subr.bf16.mxu0 0
        %3466 = vmatpush1.bf16.xpose.msra.mxu0 %v3463
        %3467 = vmatprep.subr.bf16.mxu0 0
        %3468 = vmatpush1.bf16.xpose.msra.mxu0 0
        %3469 = vmatprep.subr.bf16.mxu0 0
        %3470 = vmatpush1.bf16.xpose.msra.mxu0 0
        %3471 = vmatprep.subr.bf16.mxu0 0
        %3472 = vmatpush1.bf16.xpose.msra.mxu0 0
        %3473 = vmatprep.subr.bf16.mxu0 0
        %3474 = vmatpush1.bf16.xpose.msra.mxu0 0
        %3475 = vmatprep.subr.bf16.mxu0 0
        %3476 = vmatpush1.bf16.xpose.msra.mxu0 0
        %3477 = vmatprep.subr.bf16.mxu0 0
        %3478 = vmatpush1.bf16.xpose.msra.mxu0 0
        %3479 = vmatprep.subr.bf16.mxu0 0
        %3480 = vmatpush1.bf16.xpose.msra.mxu0 0
        %3481 = vmatprep.subr.bf16.mxu0 0
        %3482 = vmatpush1.bf16.xpose.msra.mxu0 0
        %3483 = vmatprep.subr.bf16.mxu0 0
        %3484 = vmatpush1.bf16.xpose.msra.mxu0 0
        %3485 = vmatprep.subr.bf16.mxu0 0
        %3486 = vmatpush1.bf16.xpose.msra.mxu0 0
        %3487 = vmatprep.subr.bf16.mxu0 0
        %3488 = vmatpush1.bf16.xpose.msra.mxu0 0
        %3489 = vmatprep.subr.bf16.mxu0 0
        %3490 = vmatpush1.bf16.xpose.msra.mxu0 0
        %3491 = vmatprep.subr.bf16.mxu0 0
        %3492 = vmatpush1.bf16.xpose.msra.mxu0 0
        %3493 = vmatprep.subr.bf16.mxu0 0
        %3494 = vmatpush1.bf16.xpose.msra.mxu0 0
        %3495 = vmatprep.subr.bf16.mxu0 0
        %3496 = vmatpush1.bf16.xpose.msra.mxu0 0
        %3497 = vmatprep.mubr.bf16.mxu0 0
        %3498 = vmatmul.mubr.bf16.gmra.mrb[0].mxu0 %v3460
        %v3499 = vpop.f32.mrb[0].mxu0
        %v3500 = vadd.f32 0.0, %v3499
        %v3501 = vpop.f32.mrb[0].mxu0
        %v3502 = vpop.f32.mrb[0].mxu0
        %v3503 = vpop.f32.mrb[0].mxu0
        %3504 = vdwg.mxu0
        %v3506 = vsel %vm1315, %v3452, 0
        %v3509 = vsel %vm1315, %v3456, 0
        %3511 = vmatprep.subr.bf16.mxu0 0
        %3512 = vmatpush1.bf16.xpose.msra.mxu0 %v3509
        %3513 = vmatprep.subr.bf16.mxu0 0
        %3514 = vmatpush1.bf16.xpose.msra.mxu0 0
        %3515 = vmatprep.subr.bf16.mxu0 0
        %3516 = vmatpush1.bf16.xpose.msra.mxu0 0
        %3517 = vmatprep.subr.bf16.mxu0 0
        %3518 = vmatpush1.bf16.xpose.msra.mxu0 0
        %3519 = vmatprep.subr.bf16.mxu0 0
        %3520 = vmatpush1.bf16.xpose.msra.mxu0 0
        %3521 = vmatprep.subr.bf16.mxu0 0
        %3522 = vmatpush1.bf16.xpose.msra.mxu0 0
        %3523 = vmatprep.subr.bf16.mxu0 0
        %3524 = vmatpush1.bf16.xpose.msra.mxu0 0
        %3525 = vmatprep.subr.bf16.mxu0 0
        %3526 = vmatpush1.bf16.xpose.msra.mxu0 0
        %3527 = vmatprep.subr.bf16.mxu0 0
        %3528 = vmatpush1.bf16.xpose.msra.mxu0 0
        %3529 = vmatprep.subr.bf16.mxu0 0
        %3530 = vmatpush1.bf16.xpose.msra.mxu0 0
        %3531 = vmatprep.subr.bf16.mxu0 0
        %3532 = vmatpush1.bf16.xpose.msra.mxu0 0
        %3533 = vmatprep.subr.bf16.mxu0 0
        %3534 = vmatpush1.bf16.xpose.msra.mxu0 0
        %3535 = vmatprep.subr.bf16.mxu0 0
        %3536 = vmatpush1.bf16.xpose.msra.mxu0 0
        %3537 = vmatprep.subr.bf16.mxu0 0
        %3538 = vmatpush1.bf16.xpose.msra.mxu0 0
        %3539 = vmatprep.subr.bf16.mxu0 0
        %3540 = vmatpush1.bf16.xpose.msra.mxu0 0
        %3541 = vmatprep.subr.bf16.mxu0 0
        %3542 = vmatpush1.bf16.xpose.msra.mxu0 0
        %3543 = vmatprep.mubr.bf16.mxu0 0
        %3544 = vmatmul.mubr.bf16.gmra.mrb[0].mxu0 %v3506
        %v3545 = vpop.f32.mrb[0].mxu0
        %v3546 = vadd.f32 0.0, %v3545
        %v3547 = vpop.f32.mrb[0].mxu0
        %v3548 = vpop.f32.mrb[0].mxu0
        %v3549 = vpop.f32.mrb[0].mxu0
        %3550 = vdwg.mxu0
        %v3552 = vsel %vm1315, %v3453, 0
        %v3555 = vsel %vm1315, %v3457, 0
        %3557 = vmatprep.subr.bf16.mxu0 0
        %3558 = vmatpush1.bf16.xpose.msra.mxu0 %v3555
        %3559 = vmatprep.subr.bf16.mxu0 0
        %3560 = vmatpush1.bf16.xpose.msra.mxu0 0
        %3561 = vmatprep.subr.bf16.mxu0 0
        %3562 = vmatpush1.bf16.xpose.msra.mxu0 0
        %3563 = vmatprep.subr.bf16.mxu0 0
        %3564 = vmatpush1.bf16.xpose.msra.mxu0 0
        %3565 = vmatprep.subr.bf16.mxu0 0
        %3566 = vmatpush1.bf16.xpose.msra.mxu0 0
        %3567 = vmatprep.subr.bf16.mxu0 0
        %3568 = vmatpush1.bf16.xpose.msra.mxu0 0
        %3569 = vmatprep.subr.bf16.mxu0 0
        %3570 = vmatpush1.bf16.xpose.msra.mxu0 0
        %3571 = vmatprep.subr.bf16.mxu0 0
        %3572 = vmatpush1.bf16.xpose.msra.mxu0 0
        %3573 = vmatprep.subr.bf16.mxu0 0
        %3574 = vmatpush1.bf16.xpose.msra.mxu0 0
        %3575 = vmatprep.subr.bf16.mxu0 0
        %3576 = vmatpush1.bf16.xpose.msra.mxu0 0
        %3577 = vmatprep.subr.bf16.mxu0 0
        %3578 = vmatpush1.bf16.xpose.msra.mxu0 0
        %3579 = vmatprep.subr.bf16.mxu0 0
        %3580 = vmatpush1.bf16.xpose.msra.mxu0 0
        %3581 = vmatprep.subr.bf16.mxu0 0
        %3582 = vmatpush1.bf16.xpose.msra.mxu0 0
        %3583 = vmatprep.subr.bf16.mxu0 0
        %3584 = vmatpush1.bf16.xpose.msra.mxu0 0
        %3585 = vmatprep.subr.bf16.mxu0 0
        %3586 = vmatpush1.bf16.xpose.msra.mxu0 0
        %3587 = vmatprep.subr.bf16.mxu0 0
        %3588 = vmatpush1.bf16.xpose.msra.mxu0 0
        %3589 = vmatprep.mubr.bf16.mxu0 0
        %3590 = vmatmul.mubr.bf16.gmra.mrb[0].mxu0 %v3552
        %v3591 = vpop.f32.mrb[0].mxu0
        %v3592 = vadd.f32 0.0, %v3591
        %v3593 = vpop.f32.mrb[0].mxu0
        %v3594 = vpop.f32.mrb[0].mxu0
        %v3595 = vpop.f32.mrb[0].mxu0
        %3596 = vdwg.mxu0
        %v3598 = vsel %vm1315, %v3454, 0
        %v3601 = vsel %vm1315, %v3458, 0
        %3603 = vmatprep.subr.bf16.mxu0 0
        %3604 = vmatpush1.bf16.xpose.msra.mxu0 %v3601
        %3605 = vmatprep.subr.bf16.mxu0 0
        %3606 = vmatpush1.bf16.xpose.msra.mxu0 0
        %3607 = vmatprep.subr.bf16.mxu0 0
        %3608 = vmatpush1.bf16.xpose.msra.mxu0 0
        %3609 = vmatprep.subr.bf16.mxu0 0
        %3610 = vmatpush1.bf16.xpose.msra.mxu0 0
        %3611 = vmatprep.subr.bf16.mxu0 0
        %3612 = vmatpush1.bf16.xpose.msra.mxu0 0
        %3613 = vmatprep.subr.bf16.mxu0 0
        %3614 = vmatpush1.bf16.xpose.msra.mxu0 0
        %3615 = vmatprep.subr.bf16.mxu0 0
        %3616 = vmatpush1.bf16.xpose.msra.mxu0 0
        %3617 = vmatprep.subr.bf16.mxu0 0
        %3618 = vmatpush1.bf16.xpose.msra.mxu0 0
        %3619 = vmatprep.subr.bf16.mxu0 0
        %3620 = vmatpush1.bf16.xpose.msra.mxu0 0
        %3621 = vmatprep.subr.bf16.mxu0 0
        %3622 = vmatpush1.bf16.xpose.msra.mxu0 0
        %3623 = vmatprep.subr.bf16.mxu0 0
        %3624 = vmatpush1.bf16.xpose.msra.mxu0 0
        %3625 = vmatprep.subr.bf16.mxu0 0
        %3626 = vmatpush1.bf16.xpose.msra.mxu0 0
        %3627 = vmatprep.subr.bf16.mxu0 0
        %3628 = vmatpush1.bf16.xpose.msra.mxu0 0
        %3629 = vmatprep.subr.bf16.mxu0 0
        %3630 = vmatpush1.bf16.xpose.msra.mxu0 0
        %3631 = vmatprep.subr.bf16.mxu0 0
        %3632 = vmatpush1.bf16.xpose.msra.mxu0 0
        %3633 = vmatprep.subr.bf16.mxu0 0
        %3634 = vmatpush1.bf16.xpose.msra.mxu0 0
        %3635 = vmatprep.mubr.bf16.mxu0 0
        %3636 = vmatmul.mubr.bf16.gmra.mrb[0].mxu0 %v3598
        %v3637 = vpop.f32.mrb[0].mxu0
        %v3638 = vadd.f32 0.0, %v3637
        %v3639 = vpop.f32.mrb[0].mxu0
        %v3640 = vpop.f32.mrb[0].mxu0
        %v3641 = vpop.f32.mrb[0].mxu0
        %3642 = vdwg.mxu0
        %v3643 = vsel %vm1315, %v3500, -inf
        %3644 = vmax.xlane.f32.xlu0 %v3643
        %v3645 = vpop.xlane.xlu0 %3644
        %v3646 = vsel %vm1315, %v3546, -inf
        %3647 = vmax.xlane.f32.xlu0 %v3646
        %v3648 = vpop.xlane.xlu0 %3647
        %v3649 = vsel %vm1315, %v3592, -inf
        %3650 = vmax.xlane.f32.xlu0 %v3649
        %v3651 = vpop.xlane.xlu0 %3650
        %v3652 = vsel %vm1315, %v3638, -inf
        %3653 = vmax.xlane.f32.xlu0 %v3652
        %v3654 = vpop.xlane.xlu0 %3653
        %v3655 = vsub.f32 %v3500, %v3645
        %v3656 = vsub.f32 %v3546, %v3648
        %v3657 = vsub.f32 %v3592, %v3651
        %v3658 = vsub.f32 %v3638, %v3654
        %v3659 = vmul.f32 %v3655, 1.442695
        %v3660 = vpow.pop %v3659
        %v3661 = vmul.f32 %v3656, 1.442695
        %v3662 = vpow.pop %v3661
        %v3663 = vmul.f32 %v3657, 1.442695
        %v3664 = vpow.pop %v3663
        %v3665 = vmul.f32 %v3658, 1.442695
        %v3666 = vpow.pop %v3665
        %v3667 = vsel %vm1315, %v3660, 0.0
        %3668 = vadd.xlane.f32.xlu0 %v3667
        %v3669 = vpop.xlane.xlu0 %3668
        %v3670 = vsel %vm1315, %v3662, 0.0
        %3671 = vadd.xlane.f32.xlu0 %v3670
        %v3672 = vpop.xlane.xlu0 %3671
        %v3673 = vsel %vm1315, %v3664, 0.0
        %3674 = vadd.xlane.f32.xlu0 %v3673
        %v3675 = vpop.xlane.xlu0 %3674
        %v3676 = vsel %vm1315, %v3666, 0.0
        %3677 = vadd.xlane.f32.xlu0 %v3676
        %v3678 = vpop.xlane.xlu0 %3677
        %v3679 = vrcp.pop %v3669
        %v3680 = vrcp.pop %v3672
        %v3681 = vrcp.pop %v3675
        %v3682 = vrcp.pop %v3678
        %v3683 = vmul.f32 %v3660, %v3679
        %v3684 = vmul.f32 %v3662, %v3680
        %v3685 = vmul.f32 %v3664, %v3681
        %v3686 = vmul.f32 %v3666, %v3682
        %v3687 = vpack.c.bf16 %v3683, %v3683
        %v3688 = vpack.c.bf16 %v3684, %v3684
        %v3689 = vpack.c.bf16 %v3685, %v3685
        %v3690 = vpack.c.bf16 %v3686, %v3686
        %3692 = vrot.lane.b32.xlu0 %v3455, 96
        %v3693 = vpop.permute.xlu0 %3692
        %v3695 = vsel %vm1315, %v3687, 0
        %v3698 = vsel %vm1562, %v3693, 0
        %3700 = vmatprep.subr.bf16.mxu0 0
        %3701 = vmatpush1.bf16.msra.mxu0 %v3698
        %3702 = vmatprep.subr.bf16.mxu0 0
        %3703 = vmatpush1.bf16.msra.mxu0 0
        %3704 = vmatprep.subr.bf16.mxu0 0
        %3705 = vmatpush1.bf16.msra.mxu0 0
        %3706 = vmatprep.subr.bf16.mxu0 0
        %3707 = vmatpush1.bf16.msra.mxu0 0
        %3708 = vmatprep.subr.bf16.mxu0 0
        %3709 = vmatpush1.bf16.msra.mxu0 0
        %3710 = vmatprep.subr.bf16.mxu0 0
        %3711 = vmatpush1.bf16.msra.mxu0 0
        %3712 = vmatprep.subr.bf16.mxu0 0
        %3713 = vmatpush1.bf16.msra.mxu0 0
        %3714 = vmatprep.subr.bf16.mxu0 0
        %3715 = vmatpush1.bf16.msra.mxu0 0
        %3716 = vmatprep.subr.bf16.mxu0 0
        %3717 = vmatpush1.bf16.msra.mxu0 0
        %3718 = vmatprep.subr.bf16.mxu0 0
        %3719 = vmatpush1.bf16.msra.mxu0 0
        %3720 = vmatprep.subr.bf16.mxu0 0
        %3721 = vmatpush1.bf16.msra.mxu0 0
        %3722 = vmatprep.subr.bf16.mxu0 0
        %3723 = vmatpush1.bf16.msra.mxu0 0
        %3724 = vmatprep.subr.bf16.mxu0 0
        %3725 = vmatpush1.bf16.msra.mxu0 0
        %3726 = vmatprep.subr.bf16.mxu0 0
        %3727 = vmatpush1.bf16.msra.mxu0 0
        %3728 = vmatprep.subr.bf16.mxu0 0
        %3729 = vmatpush1.bf16.msra.mxu0 0
        %3730 = vmatprep.subr.bf16.mxu0 0
        %3731 = vmatpush1.bf16.msra.mxu0 0
        %3732 = vmatprep.mubr.bf16.mxu0 0
        %3733 = vmatmul.mubr.bf16.gmra.mrb[0].mxu0 %v3695
        %v3734 = vpop.f32.mrb[0].mxu0
        %v3735 = vadd.f32 0.0, %v3734
        %v3736 = vpop.f32.mrb[0].mxu0
        %v3737 = vpop.f32.mrb[0].mxu0
        %v3738 = vpop.f32.mrb[0].mxu0
        %3739 = vdwg.mxu0
        %3741 = vrot.lane.b32.xlu0 %v3456, 96
        %v3742 = vpop.permute.xlu0 %3741
        %v3744 = vsel %vm1315, %v3688, 0
        %v3747 = vsel %vm1562, %v3742, 0
        %3749 = vmatprep.subr.bf16.mxu0 0
        %3750 = vmatpush1.bf16.msra.mxu0 %v3747
        %3751 = vmatprep.subr.bf16.mxu0 0
        %3752 = vmatpush1.bf16.msra.mxu0 0
        %3753 = vmatprep.subr.bf16.mxu0 0
        %3754 = vmatpush1.bf16.msra.mxu0 0
        %3755 = vmatprep.subr.bf16.mxu0 0
        %3756 = vmatpush1.bf16.msra.mxu0 0
        %3757 = vmatprep.subr.bf16.mxu0 0
        %3758 = vmatpush1.bf16.msra.mxu0 0
        %3759 = vmatprep.subr.bf16.mxu0 0
        %3760 = vmatpush1.bf16.msra.mxu0 0
        %3761 = vmatprep.subr.bf16.mxu0 0
        %3762 = vmatpush1.bf16.msra.mxu0 0
        %3763 = vmatprep.subr.bf16.mxu0 0
        %3764 = vmatpush1.bf16.msra.mxu0 0
        %3765 = vmatprep.subr.bf16.mxu0 0
        %3766 = vmatpush1.bf16.msra.mxu0 0
        %3767 = vmatprep.subr.bf16.mxu0 0
        %3768 = vmatpush1.bf16.msra.mxu0 0
        %3769 = vmatprep.subr.bf16.mxu0 0
        %3770 = vmatpush1.bf16.msra.mxu0 0
        %3771 = vmatprep.subr.bf16.mxu0 0
        %3772 = vmatpush1.bf16.msra.mxu0 0
        %3773 = vmatprep.subr.bf16.mxu0 0
        %3774 = vmatpush1.bf16.msra.mxu0 0
        %3775 = vmatprep.subr.bf16.mxu0 0
        %3776 = vmatpush1.bf16.msra.mxu0 0
        %3777 = vmatprep.subr.bf16.mxu0 0
        %3778 = vmatpush1.bf16.msra.mxu0 0
        %3779 = vmatprep.subr.bf16.mxu0 0
        %3780 = vmatpush1.bf16.msra.mxu0 0
        %3781 = vmatprep.mubr.bf16.mxu0 0
        %3782 = vmatmul.mubr.bf16.gmra.mrb[0].mxu0 %v3744
        %v3783 = vpop.f32.mrb[0].mxu0
        %v3784 = vadd.f32 0.0, %v3783
        %v3785 = vpop.f32.mrb[0].mxu0
        %v3786 = vpop.f32.mrb[0].mxu0
        %v3787 = vpop.f32.mrb[0].mxu0
        %3788 = vdwg.mxu0
        %3790 = vrot.lane.b32.xlu0 %v3457, 96
        %v3791 = vpop.permute.xlu0 %3790
        %v3793 = vsel %vm1315, %v3689, 0
        %v3796 = vsel %vm1562, %v3791, 0
        %3798 = vmatprep.subr.bf16.mxu0 0
        %3799 = vmatpush1.bf16.msra.mxu0 %v3796
        %3800 = vmatprep.subr.bf16.mxu0 0
        %3801 = vmatpush1.bf16.msra.mxu0 0
        %3802 = vmatprep.subr.bf16.mxu0 0
        %3803 = vmatpush1.bf16.msra.mxu0 0
        %3804 = vmatprep.subr.bf16.mxu0 0
        %3805 = vmatpush1.bf16.msra.mxu0 0
        %3806 = vmatprep.subr.bf16.mxu0 0
        %3807 = vmatpush1.bf16.msra.mxu0 0
        %3808 = vmatprep.subr.bf16.mxu0 0
        %3809 = vmatpush1.bf16.msra.mxu0 0
        %3810 = vmatprep.subr.bf16.mxu0 0
        %3811 = vmatpush1.bf16.msra.mxu0 0
        %3812 = vmatprep.subr.bf16.mxu0 0
        %3813 = vmatpush1.bf16.msra.mxu0 0
        %3814 = vmatprep.subr.bf16.mxu0 0
        %3815 = vmatpush1.bf16.msra.mxu0 0
        %3816 = vmatprep.subr.bf16.mxu0 0
        %3817 = vmatpush1.bf16.msra.mxu0 0
        %3818 = vmatprep.subr.bf16.mxu0 0
        %3819 = vmatpush1.bf16.msra.mxu0 0
        %3820 = vmatprep.subr.bf16.mxu0 0
        %3821 = vmatpush1.bf16.msra.mxu0 0
        %3822 = vmatprep.subr.bf16.mxu0 0
        %3823 = vmatpush1.bf16.msra.mxu0 0
        %3824 = vmatprep.subr.bf16.mxu0 0
        %3825 = vmatpush1.bf16.msra.mxu0 0
        %3826 = vmatprep.subr.bf16.mxu0 0
        %3827 = vmatpush1.bf16.msra.mxu0 0
        %3828 = vmatprep.subr.bf16.mxu0 0
        %3829 = vmatpush1.bf16.msra.mxu0 0
        %3830 = vmatprep.mubr.bf16.mxu0 0
        %3831 = vmatmul.mubr.bf16.gmra.mrb[0].mxu0 %v3793
        %v3832 = vpop.f32.mrb[0].mxu0
        %v3833 = vadd.f32 0.0, %v3832
        %v3834 = vpop.f32.mrb[0].mxu0
        %v3835 = vpop.f32.mrb[0].mxu0
        %v3836 = vpop.f32.mrb[0].mxu0
        %3837 = vdwg.mxu0
        %3839 = vrot.lane.b32.xlu0 %v3458, 96
        %v3840 = vpop.permute.xlu0 %3839
        %v3842 = vsel %vm1315, %v3690, 0
        %v3845 = vsel %vm1562, %v3840, 0
        %3847 = vmatprep.subr.bf16.mxu0 0
        %3848 = vmatpush1.bf16.msra.mxu0 %v3845
        %3849 = vmatprep.subr.bf16.mxu0 0
        %3850 = vmatpush1.bf16.msra.mxu0 0
        %3851 = vmatprep.subr.bf16.mxu0 0
        %3852 = vmatpush1.bf16.msra.mxu0 0
        %3853 = vmatprep.subr.bf16.mxu0 0
        %3854 = vmatpush1.bf16.msra.mxu0 0
        %3855 = vmatprep.subr.bf16.mxu0 0
        %3856 = vmatpush1.bf16.msra.mxu0 0
        %3857 = vmatprep.subr.bf16.mxu0 0
        %3858 = vmatpush1.bf16.msra.mxu0 0
        %3859 = vmatprep.subr.bf16.mxu0 0
        %3860 = vmatpush1.bf16.msra.mxu0 0
        %3861 = vmatprep.subr.bf16.mxu0 0
        %3862 = vmatpush1.bf16.msra.mxu0 0
        %3863 = vmatprep.subr.bf16.mxu0 0
        %3864 = vmatpush1.bf16.msra.mxu0 0
        %3865 = vmatprep.subr.bf16.mxu0 0
        %3866 = vmatpush1.bf16.msra.mxu0 0
        %3867 = vmatprep.subr.bf16.mxu0 0
        %3868 = vmatpush1.bf16.msra.mxu0 0
        %3869 = vmatprep.subr.bf16.mxu0 0
        %3870 = vmatpush1.bf16.msra.mxu0 0
        %3871 = vmatprep.subr.bf16.mxu0 0
        %3872 = vmatpush1.bf16.msra.mxu0 0
        %3873 = vmatprep.subr.bf16.mxu0 0
        %3874 = vmatpush1.bf16.msra.mxu0 0
        %3875 = vmatprep.subr.bf16.mxu0 0
        %3876 = vmatpush1.bf16.msra.mxu0 0
        %3877 = vmatprep.subr.bf16.mxu0 0
        %3878 = vmatpush1.bf16.msra.mxu0 0
        %3879 = vmatprep.mubr.bf16.mxu0 0
        %3880 = vmatmul.mubr.bf16.gmra.mrb[0].mxu0 %v3842
        %v3881 = vpop.f32.mrb[0].mxu0
        %v3882 = vadd.f32 0.0, %v3881
        %v3883 = vpop.f32.mrb[0].mxu0
        %v3884 = vpop.f32.mrb[0].mxu0
        %v3885 = vpop.f32.mrb[0].mxu0
        %3886 = vdwg.mxu0
        %3888 = vrot.lane.b32.xlu0 %v3451, 120
        %v3889 = vpop.permute.xlu0 %3888
        %3890 = vrot.lane.b32.xlu0 %v3455, 120
        %v3891 = vpop.permute.xlu0 %3890
        %v3893 = vsel %vm1315, %v3889, 0
        %v3896 = vsel %vm1315, %v3891, 0
        %3898 = vmatprep.subr.bf16.mxu0 0
        %3899 = vmatpush1.bf16.xpose.msra.mxu0 %v3896
        %3900 = vmatprep.subr.bf16.mxu0 0
        %3901 = vmatpush1.bf16.xpose.msra.mxu0 0
        %3902 = vmatprep.subr.bf16.mxu0 0
        %3903 = vmatpush1.bf16.xpose.msra.mxu0 0
        %3904 = vmatprep.subr.bf16.mxu0 0
        %3905 = vmatpush1.bf16.xpose.msra.mxu0 0
        %3906 = vmatprep.subr.bf16.mxu0 0
        %3907 = vmatpush1.bf16.xpose.msra.mxu0 0
        %3908 = vmatprep.subr.bf16.mxu0 0
        %3909 = vmatpush1.bf16.xpose.msra.mxu0 0
        %3910 = vmatprep.subr.bf16.mxu0 0
        %3911 = vmatpush1.bf16.xpose.msra.mxu0 0
        %3912 = vmatprep.subr.bf16.mxu0 0
        %3913 = vmatpush1.bf16.xpose.msra.mxu0 0
        %3914 = vmatprep.subr.bf16.mxu0 0
        %3915 = vmatpush1.bf16.xpose.msra.mxu0 0
        %3916 = vmatprep.subr.bf16.mxu0 0
        %3917 = vmatpush1.bf16.xpose.msra.mxu0 0
        %3918 = vmatprep.subr.bf16.mxu0 0
        %3919 = vmatpush1.bf16.xpose.msra.mxu0 0
        %3920 = vmatprep.subr.bf16.mxu0 0
        %3921 = vmatpush1.bf16.xpose.msra.mxu0 0
        %3922 = vmatprep.subr.bf16.mxu0 0
        %3923 = vmatpush1.bf16.xpose.msra.mxu0 0
        %3924 = vmatprep.subr.bf16.mxu0 0
        %3925 = vmatpush1.bf16.xpose.msra.mxu0 0
        %3926 = vmatprep.subr.bf16.mxu0 0
        %3927 = vmatpush1.bf16.xpose.msra.mxu0 0
        %3928 = vmatprep.subr.bf16.mxu0 0
        %3929 = vmatpush1.bf16.xpose.msra.mxu0 0
        %3930 = vmatprep.mubr.bf16.mxu0 0
        %3931 = vmatmul.mubr.bf16.gmra.mrb[0].mxu0 %v3893
        %v3932 = vpop.f32.mrb[0].mxu0
        %v3933 = vadd.f32 0.0, %v3932
        %v3934 = vpop.f32.mrb[0].mxu0
        %v3935 = vpop.f32.mrb[0].mxu0
        %v3936 = vpop.f32.mrb[0].mxu0
        %3937 = vdwg.mxu0
        %3939 = vrot.lane.b32.xlu0 %v3452, 120
        %v3940 = vpop.permute.xlu0 %3939
        %3941 = vrot.lane.b32.xlu0 %v3456, 120
        %v3942 = vpop.permute.xlu0 %3941
        %v3944 = vsel %vm1315, %v3940, 0
        %v3947 = vsel %vm1315, %v3942, 0
        %3949 = vmatprep.subr.bf16.mxu0 0
        %3950 = vmatpush1.bf16.xpose.msra.mxu0 %v3947
        %3951 = vmatprep.subr.bf16.mxu0 0
        %3952 = vmatpush1.bf16.xpose.msra.mxu0 0
        %3953 = vmatprep.subr.bf16.mxu0 0
        %3954 = vmatpush1.bf16.xpose.msra.mxu0 0
        %3955 = vmatprep.subr.bf16.mxu0 0
        %3956 = vmatpush1.bf16.xpose.msra.mxu0 0
        %3957 = vmatprep.subr.bf16.mxu0 0
        %3958 = vmatpush1.bf16.xpose.msra.mxu0 0
        %3959 = vmatprep.subr.bf16.mxu0 0
        %3960 = vmatpush1.bf16.xpose.msra.mxu0 0
        %3961 = vmatprep.subr.bf16.mxu0 0
        %3962 = vmatpush1.bf16.xpose.msra.mxu0 0
        %3963 = vmatprep.subr.bf16.mxu0 0
        %3964 = vmatpush1.bf16.xpose.msra.mxu0 0
        %3965 = vmatprep.subr.bf16.mxu0 0
        %3966 = vmatpush1.bf16.xpose.msra.mxu0 0
        %3967 = vmatprep.subr.bf16.mxu0 0
        %3968 = vmatpush1.bf16.xpose.msra.mxu0 0
        %3969 = vmatprep.subr.bf16.mxu0 0
        %3970 = vmatpush1.bf16.xpose.msra.mxu0 0
        %3971 = vmatprep.subr.bf16.mxu0 0
        %3972 = vmatpush1.bf16.xpose.msra.mxu0 0
        %3973 = vmatprep.subr.bf16.mxu0 0
        %3974 = vmatpush1.bf16.xpose.msra.mxu0 0
        %3975 = vmatprep.subr.bf16.mxu0 0
        %3976 = vmatpush1.bf16.xpose.msra.mxu0 0
        %3977 = vmatprep.subr.bf16.mxu0 0
        %3978 = vmatpush1.bf16.xpose.msra.mxu0 0
        %3979 = vmatprep.subr.bf16.mxu0 0
        %3980 = vmatpush1.bf16.xpose.msra.mxu0 0
        %3981 = vmatprep.mubr.bf16.mxu0 0
        %3982 = vmatmul.mubr.bf16.gmra.mrb[0].mxu0 %v3944
        %v3983 = vpop.f32.mrb[0].mxu0
        %v3984 = vadd.f32 0.0, %v3983
        %v3985 = vpop.f32.mrb[0].mxu0
        %v3986 = vpop.f32.mrb[0].mxu0
        %v3987 = vpop.f32.mrb[0].mxu0
        %3988 = vdwg.mxu0
        %3990 = vrot.lane.b32.xlu0 %v3453, 120
        %v3991 = vpop.permute.xlu0 %3990
        %3992 = vrot.lane.b32.xlu0 %v3457, 120
        %v3993 = vpop.permute.xlu0 %3992
        %v3995 = vsel %vm1315, %v3991, 0
        %v3998 = vsel %vm1315, %v3993, 0
        %4000 = vmatprep.subr.bf16.mxu0 0
        %4001 = vmatpush1.bf16.xpose.msra.mxu0 %v3998
        %4002 = vmatprep.subr.bf16.mxu0 0
        %4003 = vmatpush1.bf16.xpose.msra.mxu0 0
        %4004 = vmatprep.subr.bf16.mxu0 0
        %4005 = vmatpush1.bf16.xpose.msra.mxu0 0
        %4006 = vmatprep.subr.bf16.mxu0 0
        %4007 = vmatpush1.bf16.xpose.msra.mxu0 0
        %4008 = vmatprep.subr.bf16.mxu0 0
        %4009 = vmatpush1.bf16.xpose.msra.mxu0 0
        %4010 = vmatprep.subr.bf16.mxu0 0
        %4011 = vmatpush1.bf16.xpose.msra.mxu0 0
        %4012 = vmatprep.subr.bf16.mxu0 0
        %4013 = vmatpush1.bf16.xpose.msra.mxu0 0
        %4014 = vmatprep.subr.bf16.mxu0 0
        %4015 = vmatpush1.bf16.xpose.msra.mxu0 0
        %4016 = vmatprep.subr.bf16.mxu0 0
        %4017 = vmatpush1.bf16.xpose.msra.mxu0 0
        %4018 = vmatprep.subr.bf16.mxu0 0
        %4019 = vmatpush1.bf16.xpose.msra.mxu0 0
        %4020 = vmatprep.subr.bf16.mxu0 0
        %4021 = vmatpush1.bf16.xpose.msra.mxu0 0
        %4022 = vmatprep.subr.bf16.mxu0 0
        %4023 = vmatpush1.bf16.xpose.msra.mxu0 0
        %4024 = vmatprep.subr.bf16.mxu0 0
        %4025 = vmatpush1.bf16.xpose.msra.mxu0 0
        %4026 = vmatprep.subr.bf16.mxu0 0
        %4027 = vmatpush1.bf16.xpose.msra.mxu0 0
        %4028 = vmatprep.subr.bf16.mxu0 0
        %4029 = vmatpush1.bf16.xpose.msra.mxu0 0
        %4030 = vmatprep.subr.bf16.mxu0 0
        %4031 = vmatpush1.bf16.xpose.msra.mxu0 0
        %4032 = vmatprep.mubr.bf16.mxu0 0
        %4033 = vmatmul.mubr.bf16.gmra.mrb[0].mxu0 %v3995
        %v4034 = vpop.f32.mrb[0].mxu0
        %v4035 = vadd.f32 0.0, %v4034
        %v4036 = vpop.f32.mrb[0].mxu0
        %v4037 = vpop.f32.mrb[0].mxu0
        %v4038 = vpop.f32.mrb[0].mxu0
        %4039 = vdwg.mxu0
        %4041 = vrot.lane.b32.xlu0 %v3454, 120
        %v4042 = vpop.permute.xlu0 %4041
        %4043 = vrot.lane.b32.xlu0 %v3458, 120
        %v4044 = vpop.permute.xlu0 %4043
        %v4046 = vsel %vm1315, %v4042, 0
        %v4049 = vsel %vm1315, %v4044, 0
        %4051 = vmatprep.subr.bf16.mxu0 0
        %4052 = vmatpush1.bf16.xpose.msra.mxu0 %v4049
        %4053 = vmatprep.subr.bf16.mxu0 0
        %4054 = vmatpush1.bf16.xpose.msra.mxu0 0
        %4055 = vmatprep.subr.bf16.mxu0 0
        %4056 = vmatpush1.bf16.xpose.msra.mxu0 0
        %4057 = vmatprep.subr.bf16.mxu0 0
        %4058 = vmatpush1.bf16.xpose.msra.mxu0 0
        %4059 = vmatprep.subr.bf16.mxu0 0
        %4060 = vmatpush1.bf16.xpose.msra.mxu0 0
        %4061 = vmatprep.subr.bf16.mxu0 0
        %4062 = vmatpush1.bf16.xpose.msra.mxu0 0
        %4063 = vmatprep.subr.bf16.mxu0 0
        %4064 = vmatpush1.bf16.xpose.msra.mxu0 0
        %4065 = vmatprep.subr.bf16.mxu0 0
        %4066 = vmatpush1.bf16.xpose.msra.mxu0 0
        %4067 = vmatprep.subr.bf16.mxu0 0
        %4068 = vmatpush1.bf16.xpose.msra.mxu0 0
        %4069 = vmatprep.subr.bf16.mxu0 0
        %4070 = vmatpush1.bf16.xpose.msra.mxu0 0
        %4071 = vmatprep.subr.bf16.mxu0 0
        %4072 = vmatpush1.bf16.xpose.msra.mxu0 0
        %4073 = vmatprep.subr.bf16.mxu0 0
        %4074 = vmatpush1.bf16.xpose.msra.mxu0 0
        %4075 = vmatprep.subr.bf16.mxu0 0
        %4076 = vmatpush1.bf16.xpose.msra.mxu0 0
        %4077 = vmatprep.subr.bf16.mxu0 0
        %4078 = vmatpush1.bf16.xpose.msra.mxu0 0
        %4079 = vmatprep.subr.bf16.mxu0 0
        %4080 = vmatpush1.bf16.xpose.msra.mxu0 0
        %4081 = vmatprep.subr.bf16.mxu0 0
        %4082 = vmatpush1.bf16.xpose.msra.mxu0 0
        %4083 = vmatprep.mubr.bf16.mxu0 0
        %4084 = vmatmul.mubr.bf16.gmra.mrb[0].mxu0 %v4046
        %v4085 = vpop.f32.mrb[0].mxu0
        %v4086 = vadd.f32 0.0, %v4085
        %v4087 = vpop.f32.mrb[0].mxu0
        %v4088 = vpop.f32.mrb[0].mxu0
        %v4089 = vpop.f32.mrb[0].mxu0
        %4090 = vdwg.mxu0
        %v4091 = vsel %vm1315, %v3933, -inf
        %4092 = vmax.xlane.f32.xlu0 %v4091
        %v4093 = vpop.xlane.xlu0 %4092
        %v4094 = vsel %vm1315, %v3984, -inf
        %4095 = vmax.xlane.f32.xlu0 %v4094
        %v4096 = vpop.xlane.xlu0 %4095
        %v4097 = vsel %vm1315, %v4035, -inf
        %4098 = vmax.xlane.f32.xlu0 %v4097
        %v4099 = vpop.xlane.xlu0 %4098
        %v4100 = vsel %vm1315, %v4086, -inf
        %4101 = vmax.xlane.f32.xlu0 %v4100
        %v4102 = vpop.xlane.xlu0 %4101
        %v4103 = vsub.f32 %v3933, %v4093
        %v4104 = vsub.f32 %v3984, %v4096
        %v4105 = vsub.f32 %v4035, %v4099
        %v4106 = vsub.f32 %v4086, %v4102
        %v4107 = vmul.f32 %v4103, 1.442695
        %v4108 = vpow.pop %v4107
        %v4109 = vmul.f32 %v4104, 1.442695
        %v4110 = vpow.pop %v4109
        %v4111 = vmul.f32 %v4105, 1.442695
        %v4112 = vpow.pop %v4111
        %v4113 = vmul.f32 %v4106, 1.442695
        %v4114 = vpow.pop %v4113
        %v4115 = vsel %vm1315, %v4108, 0.0
        %4116 = vadd.xlane.f32.xlu0 %v4115
        %v4117 = vpop.xlane.xlu0 %4116
        %v4118 = vsel %vm1315, %v4110, 0.0
        %4119 = vadd.xlane.f32.xlu0 %v4118
        %v4120 = vpop.xlane.xlu0 %4119
        %v4121 = vsel %vm1315, %v4112, 0.0
        %4122 = vadd.xlane.f32.xlu0 %v4121
        %v4123 = vpop.xlane.xlu0 %4122
        %v4124 = vsel %vm1315, %v4114, 0.0
        %4125 = vadd.xlane.f32.xlu0 %v4124
        %v4126 = vpop.xlane.xlu0 %4125
        %v4127 = vrcp.pop %v4117
        %v4128 = vrcp.pop %v4120
        %v4129 = vrcp.pop %v4123
        %v4130 = vrcp.pop %v4126
        %v4131 = vmul.f32 %v4108, %v4127
        %v4132 = vmul.f32 %v4110, %v4128
        %v4133 = vmul.f32 %v4112, %v4129
        %v4134 = vmul.f32 %v4114, %v4130
        %v4135 = vpack.c.bf16 %v4131, %v4131
        %v4136 = vpack.c.bf16 %v4132, %v4132
        %v4137 = vpack.c.bf16 %v4133, %v4133
        %v4138 = vpack.c.bf16 %v4134, %v4134
        %4139 = vrot.lane.b32.xlu0 %v3455, 88
        %v4140 = vpop.permute.xlu0 %4139
        %v4142 = vsel %vm1315, %v4135, 0
        %v4145 = vsel %vm1562, %v4140, 0
        %4147 = vmatprep.subr.bf16.mxu0 0
        %4148 = vmatpush1.bf16.msra.mxu0 %v4145
        %4149 = vmatprep.subr.bf16.mxu0 0
        %4150 = vmatpush1.bf16.msra.mxu0 0
        %4151 = vmatprep.subr.bf16.mxu0 0
        %4152 = vmatpush1.bf16.msra.mxu0 0
        %4153 = vmatprep.subr.bf16.mxu0 0
        %4154 = vmatpush1.bf16.msra.mxu0 0
        %4155 = vmatprep.subr.bf16.mxu0 0
        %4156 = vmatpush1.bf16.msra.mxu0 0
        %4157 = vmatprep.subr.bf16.mxu0 0
        %4158 = vmatpush1.bf16.msra.mxu0 0
        %4159 = vmatprep.subr.bf16.mxu0 0
        %4160 = vmatpush1.bf16.msra.mxu0 0
        %4161 = vmatprep.subr.bf16.mxu0 0
        %4162 = vmatpush1.bf16.msra.mxu0 0
        %4163 = vmatprep.subr.bf16.mxu0 0
        %4164 = vmatpush1.bf16.msra.mxu0 0
        %4165 = vmatprep.subr.bf16.mxu0 0
        %4166 = vmatpush1.bf16.msra.mxu0 0
        %4167 = vmatprep.subr.bf16.mxu0 0
        %4168 = vmatpush1.bf16.msra.mxu0 0
        %4169 = vmatprep.subr.bf16.mxu0 0
        %4170 = vmatpush1.bf16.msra.mxu0 0
        %4171 = vmatprep.subr.bf16.mxu0 0
        %4172 = vmatpush1.bf16.msra.mxu0 0
        %4173 = vmatprep.subr.bf16.mxu0 0
        %4174 = vmatpush1.bf16.msra.mxu0 0
        %4175 = vmatprep.subr.bf16.mxu0 0
        %4176 = vmatpush1.bf16.msra.mxu0 0
        %4177 = vmatprep.subr.bf16.mxu0 0
        %4178 = vmatpush1.bf16.msra.mxu0 0
        %4179 = vmatprep.mubr.bf16.mxu0 0
        %4180 = vmatmul.mubr.bf16.gmra.mrb[0].mxu0 %v4142
        %v4181 = vpop.f32.mrb[0].mxu0
        %v4182 = vadd.f32 0.0, %v4181
        %v4183 = vpop.f32.mrb[0].mxu0
        %v4184 = vpop.f32.mrb[0].mxu0
        %v4185 = vpop.f32.mrb[0].mxu0
        %4186 = vdwg.mxu0
        %4187 = vrot.lane.b32.xlu0 %v3456, 88
        %v4188 = vpop.permute.xlu0 %4187
        %v4190 = vsel %vm1315, %v4136, 0
        %v4193 = vsel %vm1562, %v4188, 0
        %4195 = vmatprep.subr.bf16.mxu0 0
        %4196 = vmatpush1.bf16.msra.mxu0 %v4193
        %4197 = vmatprep.subr.bf16.mxu0 0
        %4198 = vmatpush1.bf16.msra.mxu0 0
        %4199 = vmatprep.subr.bf16.mxu0 0
        %4200 = vmatpush1.bf16.msra.mxu0 0
        %4201 = vmatprep.subr.bf16.mxu0 0
        %4202 = vmatpush1.bf16.msra.mxu0 0
        %4203 = vmatprep.subr.bf16.mxu0 0
        %4204 = vmatpush1.bf16.msra.mxu0 0
        %4205 = vmatprep.subr.bf16.mxu0 0
        %4206 = vmatpush1.bf16.msra.mxu0 0
        %4207 = vmatprep.subr.bf16.mxu0 0
        %4208 = vmatpush1.bf16.msra.mxu0 0
        %4209 = vmatprep.subr.bf16.mxu0 0
        %4210 = vmatpush1.bf16.msra.mxu0 0
        %4211 = vmatprep.subr.bf16.mxu0 0
        %4212 = vmatpush1.bf16.msra.mxu0 0
        %4213 = vmatprep.subr.bf16.mxu0 0
        %4214 = vmatpush1.bf16.msra.mxu0 0
        %4215 = vmatprep.subr.bf16.mxu0 0
        %4216 = vmatpush1.bf16.msra.mxu0 0
        %4217 = vmatprep.subr.bf16.mxu0 0
        %4218 = vmatpush1.bf16.msra.mxu0 0
        %4219 = vmatprep.subr.bf16.mxu0 0
        %4220 = vmatpush1.bf16.msra.mxu0 0
        %4221 = vmatprep.subr.bf16.mxu0 0
        %4222 = vmatpush1.bf16.msra.mxu0 0
        %4223 = vmatprep.subr.bf16.mxu0 0
        %4224 = vmatpush1.bf16.msra.mxu0 0
        %4225 = vmatprep.subr.bf16.mxu0 0
        %4226 = vmatpush1.bf16.msra.mxu0 0
        %4227 = vmatprep.mubr.bf16.mxu0 0
        %4228 = vmatmul.mubr.bf16.gmra.mrb[0].mxu0 %v4190
        %v4229 = vpop.f32.mrb[0].mxu0
        %v4230 = vadd.f32 0.0, %v4229
        %v4231 = vpop.f32.mrb[0].mxu0
        %v4232 = vpop.f32.mrb[0].mxu0
        %v4233 = vpop.f32.mrb[0].mxu0
        %4234 = vdwg.mxu0
        %4235 = vrot.lane.b32.xlu0 %v3457, 88
        %v4236 = vpop.permute.xlu0 %4235
        %v4238 = vsel %vm1315, %v4137, 0
        %v4241 = vsel %vm1562, %v4236, 0
        %4243 = vmatprep.subr.bf16.mxu0 0
        %4244 = vmatpush1.bf16.msra.mxu0 %v4241
        %4245 = vmatprep.subr.bf16.mxu0 0
        %4246 = vmatpush1.bf16.msra.mxu0 0
        %4247 = vmatprep.subr.bf16.mxu0 0
        %4248 = vmatpush1.bf16.msra.mxu0 0
        %4249 = vmatprep.subr.bf16.mxu0 0
        %4250 = vmatpush1.bf16.msra.mxu0 0
        %4251 = vmatprep.subr.bf16.mxu0 0
        %4252 = vmatpush1.bf16.msra.mxu0 0
        %4253 = vmatprep.subr.bf16.mxu0 0
        %4254 = vmatpush1.bf16.msra.mxu0 0
        %4255 = vmatprep.subr.bf16.mxu0 0
        %4256 = vmatpush1.bf16.msra.mxu0 0
        %4257 = vmatprep.subr.bf16.mxu0 0
        %4258 = vmatpush1.bf16.msra.mxu0 0
        %4259 = vmatprep.subr.bf16.mxu0 0
        %4260 = vmatpush1.bf16.msra.mxu0 0
        %4261 = vmatprep.subr.bf16.mxu0 0
        %4262 = vmatpush1.bf16.msra.mxu0 0
        %4263 = vmatprep.subr.bf16.mxu0 0
        %4264 = vmatpush1.bf16.msra.mxu0 0
        %4265 = vmatprep.subr.bf16.mxu0 0
        %4266 = vmatpush1.bf16.msra.mxu0 0
        %4267 = vmatprep.subr.bf16.mxu0 0
        %4268 = vmatpush1.bf16.msra.mxu0 0
        %4269 = vmatprep.subr.bf16.mxu0 0
        %4270 = vmatpush1.bf16.msra.mxu0 0
        %4271 = vmatprep.subr.bf16.mxu0 0
        %4272 = vmatpush1.bf16.msra.mxu0 0
        %4273 = vmatprep.subr.bf16.mxu0 0
        %4274 = vmatpush1.bf16.msra.mxu0 0
        %4275 = vmatprep.mubr.bf16.mxu0 0
        %4276 = vmatmul.mubr.bf16.gmra.mrb[0].mxu0 %v4238
        %v4277 = vpop.f32.mrb[0].mxu0
        %v4278 = vadd.f32 0.0, %v4277
        %v4279 = vpop.f32.mrb[0].mxu0
        %v4280 = vpop.f32.mrb[0].mxu0
        %v4281 = vpop.f32.mrb[0].mxu0
        %4282 = vdwg.mxu0
        %4283 = vrot.lane.b32.xlu0 %v3458, 88
        %v4284 = vpop.permute.xlu0 %4283
        %v4286 = vsel %vm1315, %v4138, 0
        %v4289 = vsel %vm1562, %v4284, 0
        %4291 = vmatprep.subr.bf16.mxu0 0
        %4292 = vmatpush1.bf16.msra.mxu0 %v4289
        %4293 = vmatprep.subr.bf16.mxu0 0
        %4294 = vmatpush1.bf16.msra.mxu0 0
        %4295 = vmatprep.subr.bf16.mxu0 0
        %4296 = vmatpush1.bf16.msra.mxu0 0
        %4297 = vmatprep.subr.bf16.mxu0 0
        %4298 = vmatpush1.bf16.msra.mxu0 0
        %4299 = vmatprep.subr.bf16.mxu0 0
        %4300 = vmatpush1.bf16.msra.mxu0 0
        %4301 = vmatprep.subr.bf16.mxu0 0
        %4302 = vmatpush1.bf16.msra.mxu0 0
        %4303 = vmatprep.subr.bf16.mxu0 0
        %4304 = vmatpush1.bf16.msra.mxu0 0
        %4305 = vmatprep.subr.bf16.mxu0 0
        %4306 = vmatpush1.bf16.msra.mxu0 0
        %4307 = vmatprep.subr.bf16.mxu0 0
        %4308 = vmatpush1.bf16.msra.mxu0 0
        %4309 = vmatprep.subr.bf16.mxu0 0
        %4310 = vmatpush1.bf16.msra.mxu0 0
        %4311 = vmatprep.subr.bf16.mxu0 0
        %4312 = vmatpush1.bf16.msra.mxu0 0
        %4313 = vmatprep.subr.bf16.mxu0 0
        %4314 = vmatpush1.bf16.msra.mxu0 0
        %4315 = vmatprep.subr.bf16.mxu0 0
        %4316 = vmatpush1.bf16.msra.mxu0 0
        %4317 = vmatprep.subr.bf16.mxu0 0
        %4318 = vmatpush1.bf16.msra.mxu0 0
        %4319 = vmatprep.subr.bf16.mxu0 0
        %4320 = vmatpush1.bf16.msra.mxu0 0
        %4321 = vmatprep.subr.bf16.mxu0 0
        %4322 = vmatpush1.bf16.msra.mxu0 0
        %4323 = vmatprep.mubr.bf16.mxu0 0
        %4324 = vmatmul.mubr.bf16.gmra.mrb[0].mxu0 %v4286
        %v4325 = vpop.f32.mrb[0].mxu0
        %v4326 = vadd.f32 0.0, %v4325
        %v4327 = vpop.f32.mrb[0].mxu0
        %v4328 = vpop.f32.mrb[0].mxu0
        %v4329 = vpop.f32.mrb[0].mxu0
        %4330 = vdwg.mxu0
        %4331 = vrot.lane.b32.xlu0 %v3451, 112
        %v4332 = vpop.permute.xlu0 %4331
        %4333 = vrot.lane.b32.xlu0 %v3455, 112
        %v4334 = vpop.permute.xlu0 %4333
        %v4336 = vsel %vm1315, %v4332, 0
        %v4339 = vsel %vm1315, %v4334, 0
        %4341 = vmatprep.subr.bf16.mxu0 0
        %4342 = vmatpush1.bf16.xpose.msra.mxu0 %v4339
        %4343 = vmatprep.subr.bf16.mxu0 0
        %4344 = vmatpush1.bf16.xpose.msra.mxu0 0
        %4345 = vmatprep.subr.bf16.mxu0 0
        %4346 = vmatpush1.bf16.xpose.msra.mxu0 0
        %4347 = vmatprep.subr.bf16.mxu0 0
        %4348 = vmatpush1.bf16.xpose.msra.mxu0 0
        %4349 = vmatprep.subr.bf16.mxu0 0
        %4350 = vmatpush1.bf16.xpose.msra.mxu0 0
        %4351 = vmatprep.subr.bf16.mxu0 0
        %4352 = vmatpush1.bf16.xpose.msra.mxu0 0
        %4353 = vmatprep.subr.bf16.mxu0 0
        %4354 = vmatpush1.bf16.xpose.msra.mxu0 0
        %4355 = vmatprep.subr.bf16.mxu0 0
        %4356 = vmatpush1.bf16.xpose.msra.mxu0 0
        %4357 = vmatprep.subr.bf16.mxu0 0
        %4358 = vmatpush1.bf16.xpose.msra.mxu0 0
        %4359 = vmatprep.subr.bf16.mxu0 0
        %4360 = vmatpush1.bf16.xpose.msra.mxu0 0
        %4361 = vmatprep.subr.bf16.mxu0 0
        %4362 = vmatpush1.bf16.xpose.msra.mxu0 0
        %4363 = vmatprep.subr.bf16.mxu0 0
        %4364 = vmatpush1.bf16.xpose.msra.mxu0 0
        %4365 = vmatprep.subr.bf16.mxu0 0
        %4366 = vmatpush1.bf16.xpose.msra.mxu0 0
        %4367 = vmatprep.subr.bf16.mxu0 0
        %4368 = vmatpush1.bf16.xpose.msra.mxu0 0
        %4369 = vmatprep.subr.bf16.mxu0 0
        %4370 = vmatpush1.bf16.xpose.msra.mxu0 0
        %4371 = vmatprep.subr.bf16.mxu0 0
        %4372 = vmatpush1.bf16.xpose.msra.mxu0 0
        %4373 = vmatprep.mubr.bf16.mxu0 0
        %4374 = vmatmul.mubr.bf16.gmra.mrb[0].mxu0 %v4336
        %v4375 = vpop.f32.mrb[0].mxu0
        %v4376 = vadd.f32 0.0, %v4375
        %v4377 = vpop.f32.mrb[0].mxu0
        %v4378 = vpop.f32.mrb[0].mxu0
        %v4379 = vpop.f32.mrb[0].mxu0
        %4380 = vdwg.mxu0
        %4381 = vrot.lane.b32.xlu0 %v3452, 112
        %v4382 = vpop.permute.xlu0 %4381
        %4383 = vrot.lane.b32.xlu0 %v3456, 112
        %v4384 = vpop.permute.xlu0 %4383
        %v4386 = vsel %vm1315, %v4382, 0
        %v4389 = vsel %vm1315, %v4384, 0
        %4391 = vmatprep.subr.bf16.mxu0 0
        %4392 = vmatpush1.bf16.xpose.msra.mxu0 %v4389
        %4393 = vmatprep.subr.bf16.mxu0 0
        %4394 = vmatpush1.bf16.xpose.msra.mxu0 0
        %4395 = vmatprep.subr.bf16.mxu0 0
        %4396 = vmatpush1.bf16.xpose.msra.mxu0 0
        %4397 = vmatprep.subr.bf16.mxu0 0
        %4398 = vmatpush1.bf16.xpose.msra.mxu0 0
        %4399 = vmatprep.subr.bf16.mxu0 0
        %4400 = vmatpush1.bf16.xpose.msra.mxu0 0
        %4401 = vmatprep.subr.bf16.mxu0 0
        %4402 = vmatpush1.bf16.xpose.msra.mxu0 0
        %4403 = vmatprep.subr.bf16.mxu0 0
        %4404 = vmatpush1.bf16.xpose.msra.mxu0 0
        %4405 = vmatprep.subr.bf16.mxu0 0
        %4406 = vmatpush1.bf16.xpose.msra.mxu0 0
        %4407 = vmatprep.subr.bf16.mxu0 0
        %4408 = vmatpush1.bf16.xpose.msra.mxu0 0
        %4409 = vmatprep.subr.bf16.mxu0 0
        %4410 = vmatpush1.bf16.xpose.msra.mxu0 0
        %4411 = vmatprep.subr.bf16.mxu0 0
        %4412 = vmatpush1.bf16.xpose.msra.mxu0 0
        %4413 = vmatprep.subr.bf16.mxu0 0
        %4414 = vmatpush1.bf16.xpose.msra.mxu0 0
        %4415 = vmatprep.subr.bf16.mxu0 0
        %4416 = vmatpush1.bf16.xpose.msra.mxu0 0
        %4417 = vmatprep.subr.bf16.mxu0 0
        %4418 = vmatpush1.bf16.xpose.msra.mxu0 0
        %4419 = vmatprep.subr.bf16.mxu0 0
        %4420 = vmatpush1.bf16.xpose.msra.mxu0 0
        %4421 = vmatprep.subr.bf16.mxu0 0
        %4422 = vmatpush1.bf16.xpose.msra.mxu0 0
        %4423 = vmatprep.mubr.bf16.mxu0 0
        %4424 = vmatmul.mubr.bf16.gmra.mrb[0].mxu0 %v4386
        %v4425 = vpop.f32.mrb[0].mxu0
        %v4426 = vadd.f32 0.0, %v4425
        %v4427 = vpop.f32.mrb[0].mxu0
        %v4428 = vpop.f32.mrb[0].mxu0
        %v4429 = vpop.f32.mrb[0].mxu0
        %4430 = vdwg.mxu0
        %4431 = vrot.lane.b32.xlu0 %v3453, 112
        %v4432 = vpop.permute.xlu0 %4431
        %4433 = vrot.lane.b32.xlu0 %v3457, 112
        %v4434 = vpop.permute.xlu0 %4433
        %v4436 = vsel %vm1315, %v4432, 0
        %v4439 = vsel %vm1315, %v4434, 0
        %4441 = vmatprep.subr.bf16.mxu0 0
        %4442 = vmatpush1.bf16.xpose.msra.mxu0 %v4439
        %4443 = vmatprep.subr.bf16.mxu0 0
        %4444 = vmatpush1.bf16.xpose.msra.mxu0 0
        %4445 = vmatprep.subr.bf16.mxu0 0
        %4446 = vmatpush1.bf16.xpose.msra.mxu0 0
        %4447 = vmatprep.subr.bf16.mxu0 0
        %4448 = vmatpush1.bf16.xpose.msra.mxu0 0
        %4449 = vmatprep.subr.bf16.mxu0 0
        %4450 = vmatpush1.bf16.xpose.msra.mxu0 0
        %4451 = vmatprep.subr.bf16.mxu0 0
        %4452 = vmatpush1.bf16.xpose.msra.mxu0 0
        %4453 = vmatprep.subr.bf16.mxu0 0
        %4454 = vmatpush1.bf16.xpose.msra.mxu0 0
        %4455 = vmatprep.subr.bf16.mxu0 0
        %4456 = vmatpush1.bf16.xpose.msra.mxu0 0
        %4457 = vmatprep.subr.bf16.mxu0 0
        %4458 = vmatpush1.bf16.xpose.msra.mxu0 0
        %4459 = vmatprep.subr.bf16.mxu0 0
        %4460 = vmatpush1.bf16.xpose.msra.mxu0 0
        %4461 = vmatprep.subr.bf16.mxu0 0
        %4462 = vmatpush1.bf16.xpose.msra.mxu0 0
        %4463 = vmatprep.subr.bf16.mxu0 0
        %4464 = vmatpush1.bf16.xpose.msra.mxu0 0
        %4465 = vmatprep.subr.bf16.mxu0 0
        %4466 = vmatpush1.bf16.xpose.msra.mxu0 0
        %4467 = vmatprep.subr.bf16.mxu0 0
        %4468 = vmatpush1.bf16.xpose.msra.mxu0 0
        %4469 = vmatprep.subr.bf16.mxu0 0
        %4470 = vmatpush1.bf16.xpose.msra.mxu0 0
        %4471 = vmatprep.subr.bf16.mxu0 0
        %4472 = vmatpush1.bf16.xpose.msra.mxu0 0
        %4473 = vmatprep.mubr.bf16.mxu0 0
        %4474 = vmatmul.mubr.bf16.gmra.mrb[0].mxu0 %v4436
        %v4475 = vpop.f32.mrb[0].mxu0
        %v4476 = vadd.f32 0.0, %v4475
        %v4477 = vpop.f32.mrb[0].mxu0
        %v4478 = vpop.f32.mrb[0].mxu0
        %v4479 = vpop.f32.mrb[0].mxu0
        %4480 = vdwg.mxu0
        %4481 = vrot.lane.b32.xlu0 %v3454, 112
        %v4482 = vpop.permute.xlu0 %4481
        %4483 = vrot.lane.b32.xlu0 %v3458, 112
        %v4484 = vpop.permute.xlu0 %4483
        %v4486 = vsel %vm1315, %v4482, 0
        %v4489 = vsel %vm1315, %v4484, 0
        %4491 = vmatprep.subr.bf16.mxu0 0
        %4492 = vmatpush1.bf16.xpose.msra.mxu0 %v4489
        %4493 = vmatprep.subr.bf16.mxu0 0
        %4494 = vmatpush1.bf16.xpose.msra.mxu0 0
        %4495 = vmatprep.subr.bf16.mxu0 0
        %4496 = vmatpush1.bf16.xpose.msra.mxu0 0
        %4497 = vmatprep.subr.bf16.mxu0 0
        %4498 = vmatpush1.bf16.xpose.msra.mxu0 0
        %4499 = vmatprep.subr.bf16.mxu0 0
        %4500 = vmatpush1.bf16.xpose.msra.mxu0 0
        %4501 = vmatprep.subr.bf16.mxu0 0
        %4502 = vmatpush1.bf16.xpose.msra.mxu0 0
        %4503 = vmatprep.subr.bf16.mxu0 0
        %4504 = vmatpush1.bf16.xpose.msra.mxu0 0
        %4505 = vmatprep.subr.bf16.mxu0 0
        %4506 = vmatpush1.bf16.xpose.msra.mxu0 0
        %4507 = vmatprep.subr.bf16.mxu0 0
        %4508 = vmatpush1.bf16.xpose.msra.mxu0 0
        %4509 = vmatprep.subr.bf16.mxu0 0
        %4510 = vmatpush1.bf16.xpose.msra.mxu0 0
        %4511 = vmatprep.subr.bf16.mxu0 0
        %4512 = vmatpush1.bf16.xpose.msra.mxu0 0
        %4513 = vmatprep.subr.bf16.mxu0 0
        %4514 = vmatpush1.bf16.xpose.msra.mxu0 0
        %4515 = vmatprep.subr.bf16.mxu0 0
        %4516 = vmatpush1.bf16.xpose.msra.mxu0 0
        %4517 = vmatprep.subr.bf16.mxu0 0
        %4518 = vmatpush1.bf16.xpose.msra.mxu0 0
        %4519 = vmatprep.subr.bf16.mxu0 0
        %4520 = vmatpush1.bf16.xpose.msra.mxu0 0
        %4521 = vmatprep.subr.bf16.mxu0 0
        %4522 = vmatpush1.bf16.xpose.msra.mxu0 0
        %4523 = vmatprep.mubr.bf16.mxu0 0
        %4524 = vmatmul.mubr.bf16.gmra.mrb[0].mxu0 %v4486
        %v4525 = vpop.f32.mrb[0].mxu0
        %v4526 = vadd.f32 0.0, %v4525
        %v4527 = vpop.f32.mrb[0].mxu0
        %v4528 = vpop.f32.mrb[0].mxu0
        %v4529 = vpop.f32.mrb[0].mxu0
        %4530 = vdwg.mxu0
        %v4531 = vsel %vm1315, %v4376, -inf
        %4532 = vmax.xlane.f32.xlu0 %v4531
        %v4533 = vpop.xlane.xlu0 %4532
        %v4534 = vsel %vm1315, %v4426, -inf
        %4535 = vmax.xlane.f32.xlu0 %v4534
        %v4536 = vpop.xlane.xlu0 %4535
        %v4537 = vsel %vm1315, %v4476, -inf
        %4538 = vmax.xlane.f32.xlu0 %v4537
        %v4539 = vpop.xlane.xlu0 %4538
        %v4540 = vsel %vm1315, %v4526, -inf
        %4541 = vmax.xlane.f32.xlu0 %v4540
        %v4542 = vpop.xlane.xlu0 %4541
        %v4543 = vsub.f32 %v4376, %v4533
        %v4544 = vsub.f32 %v4426, %v4536
        %v4545 = vsub.f32 %v4476, %v4539
        %v4546 = vsub.f32 %v4526, %v4542
        %v4547 = vmul.f32 %v4543, 1.442695
        %v4548 = vpow.pop %v4547
        %v4549 = vmul.f32 %v4544, 1.442695
        %v4550 = vpow.pop %v4549
        %v4551 = vmul.f32 %v4545, 1.442695
        %v4552 = vpow.pop %v4551
        %v4553 = vmul.f32 %v4546, 1.442695
        %v4554 = vpow.pop %v4553
        %v4555 = vsel %vm1315, %v4548, 0.0
        %4556 = vadd.xlane.f32.xlu0 %v4555
        %v4557 = vpop.xlane.xlu0 %4556
        %v4558 = vsel %vm1315, %v4550, 0.0
        %4559 = vadd.xlane.f32.xlu0 %v4558
        %v4560 = vpop.xlane.xlu0 %4559
        %v4561 = vsel %vm1315, %v4552, 0.0
        %4562 = vadd.xlane.f32.xlu0 %v4561
        %v4563 = vpop.xlane.xlu0 %4562
        %v4564 = vsel %vm1315, %v4554, 0.0
        %4565 = vadd.xlane.f32.xlu0 %v4564
        %v4566 = vpop.xlane.xlu0 %4565
        %v4567 = vrcp.pop %v4557
        %v4568 = vrcp.pop %v4560
        %v4569 = vrcp.pop %v4563
        %v4570 = vrcp.pop %v4566
        %v4571 = vmul.f32 %v4548, %v4567
        %v4572 = vmul.f32 %v4550, %v4568
        %v4573 = vmul.f32 %v4552, %v4569
        %v4574 = vmul.f32 %v4554, %v4570
        %v4575 = vpack.c.bf16 %v4571, %v4571
        %v4576 = vpack.c.bf16 %v4572, %v4572
        %v4577 = vpack.c.bf16 %v4573, %v4573
        %v4578 = vpack.c.bf16 %v4574, %v4574
        %4579 = vrot.lane.b32.xlu0 %v3455, 80
        %v4580 = vpop.permute.xlu0 %4579
        %v4582 = vsel %vm1315, %v4575, 0
        %v4585 = vsel %vm1562, %v4580, 0
        %4587 = vmatprep.subr.bf16.mxu0 0
        %4588 = vmatpush1.bf16.msra.mxu0 %v4585
        %4589 = vmatprep.subr.bf16.mxu0 0
        %4590 = vmatpush1.bf16.msra.mxu0 0
        %4591 = vmatprep.subr.bf16.mxu0 0
        %4592 = vmatpush1.bf16.msra.mxu0 0
        %4593 = vmatprep.subr.bf16.mxu0 0
        %4594 = vmatpush1.bf16.msra.mxu0 0
        %4595 = vmatprep.subr.bf16.mxu0 0
        %4596 = vmatpush1.bf16.msra.mxu0 0
        %4597 = vmatprep.subr.bf16.mxu0 0
        %4598 = vmatpush1.bf16.msra.mxu0 0
        %4599 = vmatprep.subr.bf16.mxu0 0
        %4600 = vmatpush1.bf16.msra.mxu0 0
        %4601 = vmatprep.subr.bf16.mxu0 0
        %4602 = vmatpush1.bf16.msra.mxu0 0
        %4603 = vmatprep.subr.bf16.mxu0 0
        %4604 = vmatpush1.bf16.msra.mxu0 0
        %4605 = vmatprep.subr.bf16.mxu0 0
        %4606 = vmatpush1.bf16.msra.mxu0 0
        %4607 = vmatprep.subr.bf16.mxu0 0
        %4608 = vmatpush1.bf16.msra.mxu0 0
        %4609 = vmatprep.subr.bf16.mxu0 0
        %4610 = vmatpush1.bf16.msra.mxu0 0
        %4611 = vmatprep.subr.bf16.mxu0 0
        %4612 = vmatpush1.bf16.msra.mxu0 0
        %4613 = vmatprep.subr.bf16.mxu0 0
        %4614 = vmatpush1.bf16.msra.mxu0 0
        %4615 = vmatprep.subr.bf16.mxu0 0
        %4616 = vmatpush1.bf16.msra.mxu0 0
        %4617 = vmatprep.subr.bf16.mxu0 0
        %4618 = vmatpush1.bf16.msra.mxu0 0
        %4619 = vmatprep.mubr.bf16.mxu0 0
        %4620 = vmatmul.mubr.bf16.gmra.mrb[0].mxu0 %v4582
        %v4621 = vpop.f32.mrb[0].mxu0
        %v4622 = vadd.f32 0.0, %v4621
        %v4623 = vpop.f32.mrb[0].mxu0
        %v4624 = vpop.f32.mrb[0].mxu0
        %v4625 = vpop.f32.mrb[0].mxu0
        %4626 = vdwg.mxu0
        %4627 = vrot.lane.b32.xlu0 %v3456, 80
        %v4628 = vpop.permute.xlu0 %4627
        %v4630 = vsel %vm1315, %v4576, 0
        %v4633 = vsel %vm1562, %v4628, 0
        %4635 = vmatprep.subr.bf16.mxu0 0
        %4636 = vmatpush1.bf16.msra.mxu0 %v4633
        %4637 = vmatprep.subr.bf16.mxu0 0
        %4638 = vmatpush1.bf16.msra.mxu0 0
        %4639 = vmatprep.subr.bf16.mxu0 0
        %4640 = vmatpush1.bf16.msra.mxu0 0
        %4641 = vmatprep.subr.bf16.mxu0 0
        %4642 = vmatpush1.bf16.msra.mxu0 0
        %4643 = vmatprep.subr.bf16.mxu0 0
        %4644 = vmatpush1.bf16.msra.mxu0 0
        %4645 = vmatprep.subr.bf16.mxu0 0
        %4646 = vmatpush1.bf16.msra.mxu0 0
        %4647 = vmatprep.subr.bf16.mxu0 0
        %4648 = vmatpush1.bf16.msra.mxu0 0
        %4649 = vmatprep.subr.bf16.mxu0 0
        %4650 = vmatpush1.bf16.msra.mxu0 0
        %4651 = vmatprep.subr.bf16.mxu0 0
        %4652 = vmatpush1.bf16.msra.mxu0 0
        %4653 = vmatprep.subr.bf16.mxu0 0
        %4654 = vmatpush1.bf16.msra.mxu0 0
        %4655 = vmatprep.subr.bf16.mxu0 0
        %4656 = vmatpush1.bf16.msra.mxu0 0
        %4657 = vmatprep.subr.bf16.mxu0 0
        %4658 = vmatpush1.bf16.msra.mxu0 0
        %4659 = vmatprep.subr.bf16.mxu0 0
        %4660 = vmatpush1.bf16.msra.mxu0 0
        %4661 = vmatprep.subr.bf16.mxu0 0
        %4662 = vmatpush1.bf16.msra.mxu0 0
        %4663 = vmatprep.subr.bf16.mxu0 0
        %4664 = vmatpush1.bf16.msra.mxu0 0
        %4665 = vmatprep.subr.bf16.mxu0 0
        %4666 = vmatpush1.bf16.msra.mxu0 0
        %4667 = vmatprep.mubr.bf16.mxu0 0
        %4668 = vmatmul.mubr.bf16.gmra.mrb[0].mxu0 %v4630
        %v4669 = vpop.f32.mrb[0].mxu0
        %v4670 = vadd.f32 0.0, %v4669
        %v4671 = vpop.f32.mrb[0].mxu0
        %v4672 = vpop.f32.mrb[0].mxu0
        %v4673 = vpop.f32.mrb[0].mxu0
        %4674 = vdwg.mxu0
        %4675 = vrot.lane.b32.xlu0 %v3457, 80
        %v4676 = vpop.permute.xlu0 %4675
        %v4678 = vsel %vm1315, %v4577, 0
        %v4681 = vsel %vm1562, %v4676, 0
        %4683 = vmatprep.subr.bf16.mxu0 0
        %4684 = vmatpush1.bf16.msra.mxu0 %v4681
        %4685 = vmatprep.subr.bf16.mxu0 0
        %4686 = vmatpush1.bf16.msra.mxu0 0
        %4687 = vmatprep.subr.bf16.mxu0 0
        %4688 = vmatpush1.bf16.msra.mxu0 0
        %4689 = vmatprep.subr.bf16.mxu0 0
        %4690 = vmatpush1.bf16.msra.mxu0 0
        %4691 = vmatprep.subr.bf16.mxu0 0
        %4692 = vmatpush1.bf16.msra.mxu0 0
        %4693 = vmatprep.subr.bf16.mxu0 0
        %4694 = vmatpush1.bf16.msra.mxu0 0
        %4695 = vmatprep.subr.bf16.mxu0 0
        %4696 = vmatpush1.bf16.msra.mxu0 0
        %4697 = vmatprep.subr.bf16.mxu0 0
        %4698 = vmatpush1.bf16.msra.mxu0 0
        %4699 = vmatprep.subr.bf16.mxu0 0
        %4700 = vmatpush1.bf16.msra.mxu0 0
        %4701 = vmatprep.subr.bf16.mxu0 0
        %4702 = vmatpush1.bf16.msra.mxu0 0
        %4703 = vmatprep.subr.bf16.mxu0 0
        %4704 = vmatpush1.bf16.msra.mxu0 0
        %4705 = vmatprep.subr.bf16.mxu0 0
        %4706 = vmatpush1.bf16.msra.mxu0 0
        %4707 = vmatprep.subr.bf16.mxu0 0
        %4708 = vmatpush1.bf16.msra.mxu0 0
        %4709 = vmatprep.subr.bf16.mxu0 0
        %4710 = vmatpush1.bf16.msra.mxu0 0
        %4711 = vmatprep.subr.bf16.mxu0 0
        %4712 = vmatpush1.bf16.msra.mxu0 0
        %4713 = vmatprep.subr.bf16.mxu0 0
        %4714 = vmatpush1.bf16.msra.mxu0 0
        %4715 = vmatprep.mubr.bf16.mxu0 0
        %4716 = vmatmul.mubr.bf16.gmra.mrb[0].mxu0 %v4678
        %v4717 = vpop.f32.mrb[0].mxu0
        %v4718 = vadd.f32 0.0, %v4717
        %v4719 = vpop.f32.mrb[0].mxu0
        %v4720 = vpop.f32.mrb[0].mxu0
        %v4721 = vpop.f32.mrb[0].mxu0
        %4722 = vdwg.mxu0
        %4723 = vrot.lane.b32.xlu0 %v3458, 80
        %v4724 = vpop.permute.xlu0 %4723
        %v4726 = vsel %vm1315, %v4578, 0
        %v4729 = vsel %vm1562, %v4724, 0
        %4731 = vmatprep.subr.bf16.mxu0 0
        %4732 = vmatpush1.bf16.msra.mxu0 %v4729
        %4733 = vmatprep.subr.bf16.mxu0 0
        %4734 = vmatpush1.bf16.msra.mxu0 0
        %4735 = vmatprep.subr.bf16.mxu0 0
        %4736 = vmatpush1.bf16.msra.mxu0 0
        %4737 = vmatprep.subr.bf16.mxu0 0
        %4738 = vmatpush1.bf16.msra.mxu0 0
        %4739 = vmatprep.subr.bf16.mxu0 0
        %4740 = vmatpush1.bf16.msra.mxu0 0
        %4741 = vmatprep.subr.bf16.mxu0 0
        %4742 = vmatpush1.bf16.msra.mxu0 0
        %4743 = vmatprep.subr.bf16.mxu0 0
        %4744 = vmatpush1.bf16.msra.mxu0 0
        %4745 = vmatprep.subr.bf16.mxu0 0
        %4746 = vmatpush1.bf16.msra.mxu0 0
        %4747 = vmatprep.subr.bf16.mxu0 0
        %4748 = vmatpush1.bf16.msra.mxu0 0
        %4749 = vmatprep.subr.bf16.mxu0 0
        %4750 = vmatpush1.bf16.msra.mxu0 0
        %4751 = vmatprep.subr.bf16.mxu0 0
        %4752 = vmatpush1.bf16.msra.mxu0 0
        %4753 = vmatprep.subr.bf16.mxu0 0
        %4754 = vmatpush1.bf16.msra.mxu0 0
        %4755 = vmatprep.subr.bf16.mxu0 0
        %4756 = vmatpush1.bf16.msra.mxu0 0
        %4757 = vmatprep.subr.bf16.mxu0 0
        %4758 = vmatpush1.bf16.msra.mxu0 0
        %4759 = vmatprep.subr.bf16.mxu0 0
        %4760 = vmatpush1.bf16.msra.mxu0 0
        %4761 = vmatprep.subr.bf16.mxu0 0
        %4762 = vmatpush1.bf16.msra.mxu0 0
        %4763 = vmatprep.mubr.bf16.mxu0 0
        %4764 = vmatmul.mubr.bf16.gmra.mrb[0].mxu0 %v4726
        %v4765 = vpop.f32.mrb[0].mxu0
        %v4766 = vadd.f32 0.0, %v4765
        %v4767 = vpop.f32.mrb[0].mxu0
        %v4768 = vpop.f32.mrb[0].mxu0
        %v4769 = vpop.f32.mrb[0].mxu0
        %4770 = vdwg.mxu0
        %4771 = vrot.lane.b32.xlu0 %v3451, 104
        %v4772 = vpop.permute.xlu0 %4771
        %4773 = vrot.lane.b32.xlu0 %v3455, 104
        %v4774 = vpop.permute.xlu0 %4773
        %v4776 = vsel %vm1315, %v4772, 0
        %v4779 = vsel %vm1315, %v4774, 0
        %4781 = vmatprep.subr.bf16.mxu0 0
        %4782 = vmatpush1.bf16.xpose.msra.mxu0 %v4779
        %4783 = vmatprep.subr.bf16.mxu0 0
        %4784 = vmatpush1.bf16.xpose.msra.mxu0 0
        %4785 = vmatprep.subr.bf16.mxu0 0
        %4786 = vmatpush1.bf16.xpose.msra.mxu0 0
        %4787 = vmatprep.subr.bf16.mxu0 0
        %4788 = vmatpush1.bf16.xpose.msra.mxu0 0
        %4789 = vmatprep.subr.bf16.mxu0 0
        %4790 = vmatpush1.bf16.xpose.msra.mxu0 0
        %4791 = vmatprep.subr.bf16.mxu0 0
        %4792 = vmatpush1.bf16.xpose.msra.mxu0 0
        %4793 = vmatprep.subr.bf16.mxu0 0
        %4794 = vmatpush1.bf16.xpose.msra.mxu0 0
        %4795 = vmatprep.subr.bf16.mxu0 0
        %4796 = vmatpush1.bf16.xpose.msra.mxu0 0
        %4797 = vmatprep.subr.bf16.mxu0 0
        %4798 = vmatpush1.bf16.xpose.msra.mxu0 0
        %4799 = vmatprep.subr.bf16.mxu0 0
        %4800 = vmatpush1.bf16.xpose.msra.mxu0 0
        %4801 = vmatprep.subr.bf16.mxu0 0
        %4802 = vmatpush1.bf16.xpose.msra.mxu0 0
        %4803 = vmatprep.subr.bf16.mxu0 0
        %4804 = vmatpush1.bf16.xpose.msra.mxu0 0
        %4805 = vmatprep.subr.bf16.mxu0 0
        %4806 = vmatpush1.bf16.xpose.msra.mxu0 0
        %4807 = vmatprep.subr.bf16.mxu0 0
        %4808 = vmatpush1.bf16.xpose.msra.mxu0 0
        %4809 = vmatprep.subr.bf16.mxu0 0
        %4810 = vmatpush1.bf16.xpose.msra.mxu0 0
        %4811 = vmatprep.subr.bf16.mxu0 0
        %4812 = vmatpush1.bf16.xpose.msra.mxu0 0
        %4813 = vmatprep.mubr.bf16.mxu0 0
        %4814 = vmatmul.mubr.bf16.gmra.mrb[0].mxu0 %v4776
        %v4815 = vpop.f32.mrb[0].mxu0
        %v4816 = vadd.f32 0.0, %v4815
        %v4817 = vpop.f32.mrb[0].mxu0
        %v4818 = vpop.f32.mrb[0].mxu0
        %v4819 = vpop.f32.mrb[0].mxu0
        %4820 = vdwg.mxu0
        %4821 = vrot.lane.b32.xlu0 %v3452, 104
        %v4822 = vpop.permute.xlu0 %4821
        %4823 = vrot.lane.b32.xlu0 %v3456, 104
        %v4824 = vpop.permute.xlu0 %4823
        %v4826 = vsel %vm1315, %v4822, 0
        %v4829 = vsel %vm1315, %v4824, 0
        %4831 = vmatprep.subr.bf16.mxu0 0
        %4832 = vmatpush1.bf16.xpose.msra.mxu0 %v4829
        %4833 = vmatprep.subr.bf16.mxu0 0
        %4834 = vmatpush1.bf16.xpose.msra.mxu0 0
        %4835 = vmatprep.subr.bf16.mxu0 0
        %4836 = vmatpush1.bf16.xpose.msra.mxu0 0
        %4837 = vmatprep.subr.bf16.mxu0 0
        %4838 = vmatpush1.bf16.xpose.msra.mxu0 0
        %4839 = vmatprep.subr.bf16.mxu0 0
        %4840 = vmatpush1.bf16.xpose.msra.mxu0 0
        %4841 = vmatprep.subr.bf16.mxu0 0
        %4842 = vmatpush1.bf16.xpose.msra.mxu0 0
        %4843 = vmatprep.subr.bf16.mxu0 0
        %4844 = vmatpush1.bf16.xpose.msra.mxu0 0
        %4845 = vmatprep.subr.bf16.mxu0 0
        %4846 = vmatpush1.bf16.xpose.msra.mxu0 0
        %4847 = vmatprep.subr.bf16.mxu0 0
        %4848 = vmatpush1.bf16.xpose.msra.mxu0 0
        %4849 = vmatprep.subr.bf16.mxu0 0
        %4850 = vmatpush1.bf16.xpose.msra.mxu0 0
        %4851 = vmatprep.subr.bf16.mxu0 0
        %4852 = vmatpush1.bf16.xpose.msra.mxu0 0
        %4853 = vmatprep.subr.bf16.mxu0 0
        %4854 = vmatpush1.bf16.xpose.msra.mxu0 0
        %4855 = vmatprep.subr.bf16.mxu0 0
        %4856 = vmatpush1.bf16.xpose.msra.mxu0 0
        %4857 = vmatprep.subr.bf16.mxu0 0
        %4858 = vmatpush1.bf16.xpose.msra.mxu0 0
        %4859 = vmatprep.subr.bf16.mxu0 0
        %4860 = vmatpush1.bf16.xpose.msra.mxu0 0
        %4861 = vmatprep.subr.bf16.mxu0 0
        %4862 = vmatpush1.bf16.xpose.msra.mxu0 0
        %4863 = vmatprep.mubr.bf16.mxu0 0
        %4864 = vmatmul.mubr.bf16.gmra.mrb[0].mxu0 %v4826
        %v4865 = vpop.f32.mrb[0].mxu0
        %v4866 = vadd.f32 0.0, %v4865
        %v4867 = vpop.f32.mrb[0].mxu0
        %v4868 = vpop.f32.mrb[0].mxu0
        %v4869 = vpop.f32.mrb[0].mxu0
        %4870 = vdwg.mxu0
        %4871 = vrot.lane.b32.xlu0 %v3453, 104
        %v4872 = vpop.permute.xlu0 %4871
        %4873 = vrot.lane.b32.xlu0 %v3457, 104
        %v4874 = vpop.permute.xlu0 %4873
        %v4876 = vsel %vm1315, %v4872, 0
        %v4879 = vsel %vm1315, %v4874, 0
        %4881 = vmatprep.subr.bf16.mxu0 0
        %4882 = vmatpush1.bf16.xpose.msra.mxu0 %v4879
        %4883 = vmatprep.subr.bf16.mxu0 0
        %4884 = vmatpush1.bf16.xpose.msra.mxu0 0
        %4885 = vmatprep.subr.bf16.mxu0 0
        %4886 = vmatpush1.bf16.xpose.msra.mxu0 0
        %4887 = vmatprep.subr.bf16.mxu0 0
        %4888 = vmatpush1.bf16.xpose.msra.mxu0 0
        %4889 = vmatprep.subr.bf16.mxu0 0
        %4890 = vmatpush1.bf16.xpose.msra.mxu0 0
        %4891 = vmatprep.subr.bf16.mxu0 0
        %4892 = vmatpush1.bf16.xpose.msra.mxu0 0
        %4893 = vmatprep.subr.bf16.mxu0 0
        %4894 = vmatpush1.bf16.xpose.msra.mxu0 0
        %4895 = vmatprep.subr.bf16.mxu0 0
        %4896 = vmatpush1.bf16.xpose.msra.mxu0 0
        %4897 = vmatprep.subr.bf16.mxu0 0
        %4898 = vmatpush1.bf16.xpose.msra.mxu0 0
        %4899 = vmatprep.subr.bf16.mxu0 0
        %4900 = vmatpush1.bf16.xpose.msra.mxu0 0
        %4901 = vmatprep.subr.bf16.mxu0 0
        %4902 = vmatpush1.bf16.xpose.msra.mxu0 0
        %4903 = vmatprep.subr.bf16.mxu0 0
        %4904 = vmatpush1.bf16.xpose.msra.mxu0 0
        %4905 = vmatprep.subr.bf16.mxu0 0
        %4906 = vmatpush1.bf16.xpose.msra.mxu0 0
        %4907 = vmatprep.subr.bf16.mxu0 0
        %4908 = vmatpush1.bf16.xpose.msra.mxu0 0
        %4909 = vmatprep.subr.bf16.mxu0 0
        %4910 = vmatpush1.bf16.xpose.msra.mxu0 0
        %4911 = vmatprep.subr.bf16.mxu0 0
        %4912 = vmatpush1.bf16.xpose.msra.mxu0 0
        %4913 = vmatprep.mubr.bf16.mxu0 0
        %4914 = vmatmul.mubr.bf16.gmra.mrb[0].mxu0 %v4876
        %v4915 = vpop.f32.mrb[0].mxu0
        %v4916 = vadd.f32 0.0, %v4915
        %v4917 = vpop.f32.mrb[0].mxu0
        %v4918 = vpop.f32.mrb[0].mxu0
        %v4919 = vpop.f32.mrb[0].mxu0
        %4920 = vdwg.mxu0
        %4921 = vrot.lane.b32.xlu0 %v3454, 104
        %v4922 = vpop.permute.xlu0 %4921
        %4923 = vrot.lane.b32.xlu0 %v3458, 104
        %v4924 = vpop.permute.xlu0 %4923
        %v4926 = vsel %vm1315, %v4922, 0
        %v4929 = vsel %vm1315, %v4924, 0
        %4931 = vmatprep.subr.bf16.mxu0 0
        %4932 = vmatpush1.bf16.xpose.msra.mxu0 %v4929
        %4933 = vmatprep.subr.bf16.mxu0 0
        %4934 = vmatpush1.bf16.xpose.msra.mxu0 0
        %4935 = vmatprep.subr.bf16.mxu0 0
        %4936 = vmatpush1.bf16.xpose.msra.mxu0 0
        %4937 = vmatprep.subr.bf16.mxu0 0
        %4938 = vmatpush1.bf16.xpose.msra.mxu0 0
        %4939 = vmatprep.subr.bf16.mxu0 0
        %4940 = vmatpush1.bf16.xpose.msra.mxu0 0
        %4941 = vmatprep.subr.bf16.mxu0 0
        %4942 = vmatpush1.bf16.xpose.msra.mxu0 0
        %4943 = vmatprep.subr.bf16.mxu0 0
        %4944 = vmatpush1.bf16.xpose.msra.mxu0 0
        %4945 = vmatprep.subr.bf16.mxu0 0
        %4946 = vmatpush1.bf16.xpose.msra.mxu0 0
        %4947 = vmatprep.subr.bf16.mxu0 0
        %4948 = vmatpush1.bf16.xpose.msra.mxu0 0
        %4949 = vmatprep.subr.bf16.mxu0 0
        %4950 = vmatpush1.bf16.xpose.msra.mxu0 0
        %4951 = vmatprep.subr.bf16.mxu0 0
        %4952 = vmatpush1.bf16.xpose.msra.mxu0 0
        %4953 = vmatprep.subr.bf16.mxu0 0
        %4954 = vmatpush1.bf16.xpose.msra.mxu0 0
        %4955 = vmatprep.subr.bf16.mxu0 0
        %4956 = vmatpush1.bf16.xpose.msra.mxu0 0
        %4957 = vmatprep.subr.bf16.mxu0 0
        %4958 = vmatpush1.bf16.xpose.msra.mxu0 0
        %4959 = vmatprep.subr.bf16.mxu0 0
        %4960 = vmatpush1.bf16.xpose.msra.mxu0 0
        %4961 = vmatprep.subr.bf16.mxu0 0
        %4962 = vmatpush1.bf16.xpose.msra.mxu0 0
        %4963 = vmatprep.mubr.bf16.mxu0 0
        %4964 = vmatmul.mubr.bf16.gmra.mrb[0].mxu0 %v4926
        %v4965 = vpop.f32.mrb[0].mxu0
        %v4966 = vadd.f32 0.0, %v4965
        %v4967 = vpop.f32.mrb[0].mxu0
        %v4968 = vpop.f32.mrb[0].mxu0
        %v4969 = vpop.f32.mrb[0].mxu0
        %4970 = vdwg.mxu0
        %v4971 = vsel %vm1315, %v4816, -inf
        %4972 = vmax.xlane.f32.xlu0 %v4971
        %v4973 = vpop.xlane.xlu0 %4972
        %v4974 = vsel %vm1315, %v4866, -inf
        %4975 = vmax.xlane.f32.xlu0 %v4974
        %v4976 = vpop.xlane.xlu0 %4975
        %v4977 = vsel %vm1315, %v4916, -inf
        %4978 = vmax.xlane.f32.xlu0 %v4977
        %v4979 = vpop.xlane.xlu0 %4978
        %v4980 = vsel %vm1315, %v4966, -inf
        %4981 = vmax.xlane.f32.xlu0 %v4980
        %v4982 = vpop.xlane.xlu0 %4981
        %v4983 = vsub.f32 %v4816, %v4973
        %v4984 = vsub.f32 %v4866, %v4976
        %v4985 = vsub.f32 %v4916, %v4979
        %v4986 = vsub.f32 %v4966, %v4982
        %v4987 = vmul.f32 %v4983, 1.442695
        %v4988 = vpow.pop %v4987
        %v4989 = vmul.f32 %v4984, 1.442695
        %v4990 = vpow.pop %v4989
        %v4991 = vmul.f32 %v4985, 1.442695
        %v4992 = vpow.pop %v4991
        %v4993 = vmul.f32 %v4986, 1.442695
        %v4994 = vpow.pop %v4993
        %v4995 = vsel %vm1315, %v4988, 0.0
        %4996 = vadd.xlane.f32.xlu0 %v4995
        %v4997 = vpop.xlane.xlu0 %4996
        %v4998 = vsel %vm1315, %v4990, 0.0
        %4999 = vadd.xlane.f32.xlu0 %v4998
        %v5000 = vpop.xlane.xlu0 %4999
        %v5001 = vsel %vm1315, %v4992, 0.0
        %5002 = vadd.xlane.f32.xlu0 %v5001
        %v5003 = vpop.xlane.xlu0 %5002
        %v5004 = vsel %vm1315, %v4994, 0.0
        %5005 = vadd.xlane.f32.xlu0 %v5004
        %v5006 = vpop.xlane.xlu0 %5005
        %v5007 = vrcp.pop %v4997
        %v5008 = vrcp.pop %v5000
        %v5009 = vrcp.pop %v5003
        %v5010 = vrcp.pop %v5006
        %v5011 = vmul.f32 %v4988, %v5007
        %v5012 = vmul.f32 %v4990, %v5008
        %v5013 = vmul.f32 %v4992, %v5009
        %v5014 = vmul.f32 %v4994, %v5010
        %v5015 = vpack.c.bf16 %v5011, %v5011
        %v5016 = vpack.c.bf16 %v5012, %v5012
        %v5017 = vpack.c.bf16 %v5013, %v5013
        %v5018 = vpack.c.bf16 %v5014, %v5014
        %5019 = vrot.lane.b32.xlu0 %v3455, 72
        %v5020 = vpop.permute.xlu0 %5019
        %v5022 = vsel %vm1315, %v5015, 0
        %v5025 = vsel %vm1562, %v5020, 0
        %5027 = vmatprep.subr.bf16.mxu0 0
        %5028 = vmatpush1.bf16.msra.mxu0 %v5025
        %5029 = vmatprep.subr.bf16.mxu0 0
        %5030 = vmatpush1.bf16.msra.mxu0 0
        %5031 = vmatprep.subr.bf16.mxu0 0
        %5032 = vmatpush1.bf16.msra.mxu0 0
        %5033 = vmatprep.subr.bf16.mxu0 0
        %5034 = vmatpush1.bf16.msra.mxu0 0
        %5035 = vmatprep.subr.bf16.mxu0 0
        %5036 = vmatpush1.bf16.msra.mxu0 0
        %5037 = vmatprep.subr.bf16.mxu0 0
        %5038 = vmatpush1.bf16.msra.mxu0 0
        %5039 = vmatprep.subr.bf16.mxu0 0
        %5040 = vmatpush1.bf16.msra.mxu0 0
        %5041 = vmatprep.subr.bf16.mxu0 0
        %5042 = vmatpush1.bf16.msra.mxu0 0
        %5043 = vmatprep.subr.bf16.mxu0 0
        %5044 = vmatpush1.bf16.msra.mxu0 0
        %5045 = vmatprep.subr.bf16.mxu0 0
        %5046 = vmatpush1.bf16.msra.mxu0 0
        %5047 = vmatprep.subr.bf16.mxu0 0
        %5048 = vmatpush1.bf16.msra.mxu0 0
        %5049 = vmatprep.subr.bf16.mxu0 0
        %5050 = vmatpush1.bf16.msra.mxu0 0
        %5051 = vmatprep.subr.bf16.mxu0 0
        %5052 = vmatpush1.bf16.msra.mxu0 0
        %5053 = vmatprep.subr.bf16.mxu0 0
        %5054 = vmatpush1.bf16.msra.mxu0 0
        %5055 = vmatprep.subr.bf16.mxu0 0
        %5056 = vmatpush1.bf16.msra.mxu0 0
        %5057 = vmatprep.subr.bf16.mxu0 0
        %5058 = vmatpush1.bf16.msra.mxu0 0
        %5059 = vmatprep.mubr.bf16.mxu0 0
        %5060 = vmatmul.mubr.bf16.gmra.mrb[0].mxu0 %v5022
        %v5061 = vpop.f32.mrb[0].mxu0
        %v5062 = vadd.f32 0.0, %v5061
        %v5063 = vpop.f32.mrb[0].mxu0
        %v5064 = vpop.f32.mrb[0].mxu0
        %v5065 = vpop.f32.mrb[0].mxu0
        %5066 = vdwg.mxu0
        %5067 = vrot.lane.b32.xlu0 %v3456, 72
        %v5068 = vpop.permute.xlu0 %5067
        %v5070 = vsel %vm1315, %v5016, 0
        %v5073 = vsel %vm1562, %v5068, 0
        %5075 = vmatprep.subr.bf16.mxu0 0
        %5076 = vmatpush1.bf16.msra.mxu0 %v5073
        %5077 = vmatprep.subr.bf16.mxu0 0
        %5078 = vmatpush1.bf16.msra.mxu0 0
        %5079 = vmatprep.subr.bf16.mxu0 0
        %5080 = vmatpush1.bf16.msra.mxu0 0
        %5081 = vmatprep.subr.bf16.mxu0 0
        %5082 = vmatpush1.bf16.msra.mxu0 0
        %5083 = vmatprep.subr.bf16.mxu0 0
        %5084 = vmatpush1.bf16.msra.mxu0 0
        %5085 = vmatprep.subr.bf16.mxu0 0
        %5086 = vmatpush1.bf16.msra.mxu0 0
        %5087 = vmatprep.subr.bf16.mxu0 0
        %5088 = vmatpush1.bf16.msra.mxu0 0
        %5089 = vmatprep.subr.bf16.mxu0 0
        %5090 = vmatpush1.bf16.msra.mxu0 0
        %5091 = vmatprep.subr.bf16.mxu0 0
        %5092 = vmatpush1.bf16.msra.mxu0 0
        %5093 = vmatprep.subr.bf16.mxu0 0
        %5094 = vmatpush1.bf16.msra.mxu0 0
        %5095 = vmatprep.subr.bf16.mxu0 0
        %5096 = vmatpush1.bf16.msra.mxu0 0
        %5097 = vmatprep.subr.bf16.mxu0 0
        %5098 = vmatpush1.bf16.msra.mxu0 0
        %5099 = vmatprep.subr.bf16.mxu0 0
        %5100 = vmatpush1.bf16.msra.mxu0 0
        %5101 = vmatprep.subr.bf16.mxu0 0
        %5102 = vmatpush1.bf16.msra.mxu0 0
        %5103 = vmatprep.subr.bf16.mxu0 0
        %5104 = vmatpush1.bf16.msra.mxu0 0
        %5105 = vmatprep.subr.bf16.mxu0 0
        %5106 = vmatpush1.bf16.msra.mxu0 0
        %5107 = vmatprep.mubr.bf16.mxu0 0
        %5108 = vmatmul.mubr.bf16.gmra.mrb[0].mxu0 %v5070
        %v5109 = vpop.f32.mrb[0].mxu0
        %v5110 = vadd.f32 0.0, %v5109
        %v5111 = vpop.f32.mrb[0].mxu0
        %v5112 = vpop.f32.mrb[0].mxu0
        %v5113 = vpop.f32.mrb[0].mxu0
        %5114 = vdwg.mxu0
        %5115 = vrot.lane.b32.xlu0 %v3457, 72
        %v5116 = vpop.permute.xlu0 %5115
        %v5118 = vsel %vm1315, %v5017, 0
        %v5121 = vsel %vm1562, %v5116, 0
        %5123 = vmatprep.subr.bf16.mxu0 0
        %5124 = vmatpush1.bf16.msra.mxu0 %v5121
        %5125 = vmatprep.subr.bf16.mxu0 0
        %5126 = vmatpush1.bf16.msra.mxu0 0
        %5127 = vmatprep.subr.bf16.mxu0 0
        %5128 = vmatpush1.bf16.msra.mxu0 0
        %5129 = vmatprep.subr.bf16.mxu0 0
        %5130 = vmatpush1.bf16.msra.mxu0 0
        %5131 = vmatprep.subr.bf16.mxu0 0
        %5132 = vmatpush1.bf16.msra.mxu0 0
        %5133 = vmatprep.subr.bf16.mxu0 0
        %5134 = vmatpush1.bf16.msra.mxu0 0
        %5135 = vmatprep.subr.bf16.mxu0 0
        %5136 = vmatpush1.bf16.msra.mxu0 0
        %5137 = vmatprep.subr.bf16.mxu0 0
        %5138 = vmatpush1.bf16.msra.mxu0 0
        %5139 = vmatprep.subr.bf16.mxu0 0
        %5140 = vmatpush1.bf16.msra.mxu0 0
        %5141 = vmatprep.subr.bf16.mxu0 0
        %5142 = vmatpush1.bf16.msra.mxu0 0
        %5143 = vmatprep.subr.bf16.mxu0 0
        %5144 = vmatpush1.bf16.msra.mxu0 0
        %5145 = vmatprep.subr.bf16.mxu0 0
        %5146 = vmatpush1.bf16.msra.mxu0 0
        %5147 = vmatprep.subr.bf16.mxu0 0
        %5148 = vmatpush1.bf16.msra.mxu0 0
        %5149 = vmatprep.subr.bf16.mxu0 0
        %5150 = vmatpush1.bf16.msra.mxu0 0
        %5151 = vmatprep.subr.bf16.mxu0 0
        %5152 = vmatpush1.bf16.msra.mxu0 0
        %5153 = vmatprep.subr.bf16.mxu0 0
        %5154 = vmatpush1.bf16.msra.mxu0 0
        %5155 = vmatprep.mubr.bf16.mxu0 0
        %5156 = vmatmul.mubr.bf16.gmra.mrb[0].mxu0 %v5118
        %v5157 = vpop.f32.mrb[0].mxu0
        %v5158 = vadd.f32 0.0, %v5157
        %v5159 = vpop.f32.mrb[0].mxu0
        %v5160 = vpop.f32.mrb[0].mxu0
        %v5161 = vpop.f32.mrb[0].mxu0
        %5162 = vdwg.mxu0
        %5163 = vrot.lane.b32.xlu0 %v3458, 72
        %v5164 = vpop.permute.xlu0 %5163
        %v5166 = vsel %vm1315, %v5018, 0
        %v5169 = vsel %vm1562, %v5164, 0
        %5171 = vmatprep.subr.bf16.mxu0 0
        %5172 = vmatpush1.bf16.msra.mxu0 %v5169
        %5173 = vmatprep.subr.bf16.mxu0 0
        %5174 = vmatpush1.bf16.msra.mxu0 0
        %5175 = vmatprep.subr.bf16.mxu0 0
        %5176 = vmatpush1.bf16.msra.mxu0 0
        %5177 = vmatprep.subr.bf16.mxu0 0
        %5178 = vmatpush1.bf16.msra.mxu0 0
        %5179 = vmatprep.subr.bf16.mxu0 0
        %5180 = vmatpush1.bf16.msra.mxu0 0
        %5181 = vmatprep.subr.bf16.mxu0 0
        %5182 = vmatpush1.bf16.msra.mxu0 0
        %5183 = vmatprep.subr.bf16.mxu0 0
        %5184 = vmatpush1.bf16.msra.mxu0 0
        %5185 = vmatprep.subr.bf16.mxu0 0
        %5186 = vmatpush1.bf16.msra.mxu0 0
        %5187 = vmatprep.subr.bf16.mxu0 0
        %5188 = vmatpush1.bf16.msra.mxu0 0
        %5189 = vmatprep.subr.bf16.mxu0 0
        %5190 = vmatpush1.bf16.msra.mxu0 0
        %5191 = vmatprep.subr.bf16.mxu0 0
        %5192 = vmatpush1.bf16.msra.mxu0 0
        %5193 = vmatprep.subr.bf16.mxu0 0
        %5194 = vmatpush1.bf16.msra.mxu0 0
        %5195 = vmatprep.subr.bf16.mxu0 0
        %5196 = vmatpush1.bf16.msra.mxu0 0
        %5197 = vmatprep.subr.bf16.mxu0 0
        %5198 = vmatpush1.bf16.msra.mxu0 0
        %5199 = vmatprep.subr.bf16.mxu0 0
        %5200 = vmatpush1.bf16.msra.mxu0 0
        %5201 = vmatprep.subr.bf16.mxu0 0
        %5202 = vmatpush1.bf16.msra.mxu0 0
        %5203 = vmatprep.mubr.bf16.mxu0 0
        %5204 = vmatmul.mubr.bf16.gmra.mrb[0].mxu0 %v5166
        %v5205 = vpop.f32.mrb[0].mxu0
        %v5206 = vadd.f32 0.0, %v5205
        %v5207 = vpop.f32.mrb[0].mxu0
        %v5208 = vpop.f32.mrb[0].mxu0
        %v5209 = vpop.f32.mrb[0].mxu0
        %5210 = vdwg.mxu0
        %5215 = vrot.lane.b32.xlu0 %v4182, 8
        %v5216 = vpop.permute.xlu0 %5215
        %5217 = vrot.lane.b32.xlu0 %v4230, 8
        %v5218 = vpop.permute.xlu0 %5217
        %5219 = vrot.lane.b32.xlu0 %v4278, 8
        %v5220 = vpop.permute.xlu0 %5219
        %5221 = vrot.lane.b32.xlu0 %v4326, 8
        %v5222 = vpop.permute.xlu0 %5221
        %5231 = vrot.lane.b32.xlu0 %v4622, 16
        %v5232 = vpop.permute.xlu0 %5231
        %5233 = vrot.lane.b32.xlu0 %v4670, 16
        %v5234 = vpop.permute.xlu0 %5233
        %5235 = vrot.lane.b32.xlu0 %v4718, 16
        %v5236 = vpop.permute.xlu0 %5235
        %5237 = vrot.lane.b32.xlu0 %v4766, 16
        %v5238 = vpop.permute.xlu0 %5237
        %5247 = vrot.lane.b32.xlu0 %v5062, 24
        %v5248 = vpop.permute.xlu0 %5247
        %5249 = vrot.lane.b32.xlu0 %v5110, 24
        %v5250 = vpop.permute.xlu0 %5249
        %5251 = vrot.lane.b32.xlu0 %v5158, 24
        %v5252 = vpop.permute.xlu0 %5251
        %5253 = vrot.lane.b32.xlu0 %v5206, 24
        %v5254 = vpop.permute.xlu0 %5253
        %v5259 = vsel %vm1315, %v3735, %v5216
        %v5260 = vsel %vm1315, %v3784, %v5218
        %v5261 = vsel %vm1315, %v3833, %v5220
        %v5262 = vsel %vm1315, %v3882, %v5222
        %v5263 = vsel %vm3122, %v5259, %v5232
        %v5264 = vsel %vm3122, %v5260, %v5234
        %v5265 = vsel %vm3122, %v5261, %v5236
        %v5266 = vsel %vm3122, %v5262, %v5238
        %v5267 = vsel %vm3127, %v5263, %v5248
        %v5268 = vsel %vm3127, %v5264, %v5250
        %v5269 = vsel %vm3127, %v5265, %v5252
        %v5270 = vsel %vm3127, %v5266, %v5254
        %v5271 = vpack.c.bf16 %v5268, %v5267
        %v5272 = vpack.c.bf16 %v5270, %v5269
        %v5274 = vlaneseq
        %v5275 = vshrl.u32 %v5274, 7
        %v5276 = vsub.s32 0, %v5275
        %v5277 = vrot.slane %v3450, %v5276
        %v5283 = vunpack.c.l.b16 %v3446
        %v5284 = vunpack.c.l.b16 %v3447
        %v5285 = vunpack.c.l.b16 %v3448
        %v5286 = vunpack.c.l.b16 %v3449
        %v5287 = vpack.c.b16 %v5284, %v5283
        %v5288 = vpack.c.b16 %v5286, %v5285
        %v5292 = vsel %vm1247, %v5271, 0
        %v5295 = vsel %vm1247, %v5272, 0
        %5297 = vmatprep.subr.bf16.mxu0 0
        %5298 = vmatpush1.bf16.msra.mxu0 %v5287
        %5299 = vmatprep.subr.bf16.mxu0 0
        %5300 = vmatpush1.bf16.msra.mxu0 %v5288
        %5301 = vmatprep.subr.bf16.mxu0 0
        %5302 = vmatpush1.bf16.msra.mxu0 0
        %5303 = vmatprep.subr.bf16.mxu0 0
        %5304 = vmatpush1.bf16.msra.mxu0 0
        %5305 = vmatprep.subr.bf16.mxu0 0
        %5306 = vmatpush1.bf16.msra.mxu0 0
        %5307 = vmatprep.subr.bf16.mxu0 0
        %5308 = vmatpush1.bf16.msra.mxu0 0
        %5309 = vmatprep.subr.bf16.mxu0 0
        %5310 = vmatpush1.bf16.msra.mxu0 0
        %5311 = vmatprep.subr.bf16.mxu0 0
        %5312 = vmatpush1.bf16.msra.mxu0 0
        %5313 = vmatprep.subr.bf16.mxu0 0
        %5314 = vmatpush1.bf16.msra.mxu0 0
        %5315 = vmatprep.subr.bf16.mxu0 0
        %5316 = vmatpush1.bf16.msra.mxu0 0
        %5317 = vmatprep.subr.bf16.mxu0 0
        %5318 = vmatpush1.bf16.msra.mxu0 0
        %5319 = vmatprep.subr.bf16.mxu0 0
        %5320 = vmatpush1.bf16.msra.mxu0 0
        %5321 = vmatprep.subr.bf16.mxu0 0
        %5322 = vmatpush1.bf16.msra.mxu0 0
        %5323 = vmatprep.subr.bf16.mxu0 0
        %5324 = vmatpush1.bf16.msra.mxu0 0
        %5325 = vmatprep.subr.bf16.mxu0 0
        %5326 = vmatpush1.bf16.msra.mxu0 0
        %5327 = vmatprep.subr.bf16.mxu0 0
        %5328 = vmatpush1.bf16.msra.mxu0 0
        %5329 = vmatprep.mubr.bf16.mxu0 0
        %5330 = vmatmul.mubr.bf16.gmra.mrb[0].mxu0 %v5292
        %v5331 = vpop.f32.mrb[0].mxu0
        %v5332 = vadd.f32 %v5277, %v5331
        %v5333 = vpop.f32.mrb[0].mxu0
        %v5334 = vpop.f32.mrb[0].mxu0
        %v5335 = vadd.f32 %v5277, %v5334
        %v5336 = vpop.f32.mrb[0].mxu0
        %5337 = vmatprep.mubr.bf16.mxu0 0
        %5338 = vmatmul.mubr.bf16.gmra.mrb[0].mxu0 %v5295
        %v5339 = vpop.f32.mrb[0].mxu0
        %v5340 = vadd.f32 %v5277, %v5339
        %v5341 = vpop.f32.mrb[0].mxu0
        %v5342 = vpop.f32.mrb[0].mxu0
        %v5343 = vadd.f32 %v5277, %v5342
        %v5344 = vpop.f32.mrb[0].mxu0
        %5345 = vdwg.mxu0
        %v5346 = vadd.f32 %v5332, %v3282
        %v5347 = vadd.f32 %v5335, %v3283
        %v5348 = vadd.f32 %v5340, %v3284
        %v5349 = vadd.f32 %v5343, %v3285
        %v5350 = vld [vmem:[%s938] sm:$0x1]
        %v5351 = vld [vmem:[%s946] sm:$0x1]
        %v5352 = vsel %vm1247, %v5346, 0.0
        %5353 = vadd.xlane.f32.xlu0 %v5352
        %v5354 = vpop.xlane.xlu0 %5353
        %v5355 = vsel %vm1247, %v5347, 0.0
        %5356 = vadd.xlane.f32.xlu0 %v5355
        %v5357 = vpop.xlane.xlu0 %5356
        %v5358 = vsel %vm1247, %v5348, 0.0
        %5359 = vadd.xlane.f32.xlu0 %v5358
        %v5360 = vpop.xlane.xlu0 %5359
        %v5361 = vsel %vm1247, %v5349, 0.0
        %5362 = vadd.xlane.f32.xlu0 %v5361
        %v5363 = vpop.xlane.xlu0 %5362
        %v5364 = vmul.f32 %v5354, %v3225
        %v5365 = vmul.f32 %v5357, %v3225
        %v5366 = vmul.f32 %v5360, %v3225
        %v5367 = vmul.f32 %v5363, %v3225
        %v5368 = vsub.f32 %v5346, %v5364
        %v5369 = vsub.f32 %v5347, %v5365
        %v5370 = vsub.f32 %v5348, %v5366
        %v5371 = vsub.f32 %v5349, %v5367
        %v5372 = vmul.f32 %v5368, %v5368
        %v5373 = vmul.f32 %v5369, %v5369
        %v5374 = vmul.f32 %v5370, %v5370
        %v5375 = vmul.f32 %v5371, %v5371
        %v5376 = vsel %vm1247, %v5372, 0.0
        %5377 = vadd.xlane.f32.xlu0 %v5376
        %v5378 = vpop.xlane.xlu0 %5377
        %v5379 = vsel %vm1247, %v5373, 0.0
        %5380 = vadd.xlane.f32.xlu0 %v5379
        %v5381 = vpop.xlane.xlu0 %5380
        %v5382 = vsel %vm1247, %v5374, 0.0
        %5383 = vadd.xlane.f32.xlu0 %v5382
        %v5384 = vpop.xlane.xlu0 %5383
        %v5385 = vsel %vm1247, %v5375, 0.0
        %5386 = vadd.xlane.f32.xlu0 %v5385
        %v5387 = vpop.xlane.xlu0 %5386
        %v5388 = vmul.f32 %v5378, %v3225
        %v5389 = vmul.f32 %v5381, %v3225
        %v5390 = vmul.f32 %v5384, %v3225
        %v5391 = vmul.f32 %v5387, %v3225
        %v5392 = vadd.f32 %v5388, 1e-05
        %v5393 = vadd.f32 %v5389, 1e-05
        %v5394 = vadd.f32 %v5390, 1e-05
        %v5395 = vadd.f32 %v5391, 1e-05
        %v5396 = vrsqrt.pop %v5392
        %v5397 = vrsqrt.pop %v5393
        %v5398 = vrsqrt.pop %v5394
        %v5399 = vrsqrt.pop %v5395
        %v5400 = vmul.f32 %v5368, %v5396
        %v5401 = vmul.f32 %v5369, %v5397
        %v5402 = vmul.f32 %v5370, %v5398
        %v5403 = vmul.f32 %v5371, %v5399
        %v5405 = vlaneseq
        %v5406 = vshrl.u32 %v5405, 7
        %v5407 = vsub.s32 0, %v5406
        %v5408 = vrot.slane %v5350, %v5407
        %v5410 = vmul.f32 %v5400, %v5408
        %v5411 = vmul.f32 %v5401, %v5408
        %v5412 = vmul.f32 %v5402, %v5408
        %v5413 = vmul.f32 %v5403, %v5408
        %v5415 = vlaneseq
        %v5416 = vshrl.u32 %v5415, 7
        %v5417 = vsub.s32 0, %v5416
        %v5418 = vrot.slane %v5351, %v5417
        %v5420 = vadd.f32 %v5410, %v5418
        %v5421 = vadd.f32 %v5411, %v5418
        %v5422 = vadd.f32 %v5412, %v5418
        %v5423 = vadd.f32 %v5413, %v5418
        %v5424 = vpack.c.bf16 %v5421, %v5420
        %v5425 = vpack.c.bf16 %v5423, %v5422
        %v5426 = vld [vmem:[%s1182] sm:$0xf]
        %v5427 = vld [vmem:[%s1182 + $0x4] sm:$0xf]
        %v5428 = vld [vmem:[%s1182 + $0x8] sm:$0xf]
        %v5429 = vld [vmem:[%s1182 + $0xc] sm:$0xf]
        %v5430 = vld [vmem:[%s954] sm:$0x1]
        %v5432 = vlaneseq
        %v5433 = vshrl.u32 %v5432, 7
        %v5434 = vsub.s32 0, %v5433
        %v5435 = vrot.slane %v5430, %v5434
        %v5441 = vunpack.c.l.b16 %v5426
        %v5442 = vunpack.c.l.b16 %v5427
        %v5443 = vunpack.c.l.b16 %v5428
        %v5444 = vunpack.c.l.b16 %v5429
        %v5445 = vpack.c.b16 %v5442, %v5441
        %v5446 = vpack.c.b16 %v5444, %v5443
        %v5450 = vsel %vm1247, %v5424, 0
        %v5453 = vsel %vm1247, %v5425, 0
        %5455 = vmatprep.subr.bf16.mxu0 0
        %5456 = vmatpush1.bf16.msra.mxu0 %v5445
        %5457 = vmatprep.subr.bf16.mxu0 0
        %5458 = vmatpush1.bf16.msra.mxu0 %v5446
        %5459 = vmatprep.subr.bf16.mxu0 0
        %5460 = vmatpush1.bf16.msra.mxu0 0
        %5461 = vmatprep.subr.bf16.mxu0 0
        %5462 = vmatpush1.bf16.msra.mxu0 0
        %5463 = vmatprep.subr.bf16.mxu0 0
        %5464 = vmatpush1.bf16.msra.mxu0 0
        %5465 = vmatprep.subr.bf16.mxu0 0
        %5466 = vmatpush1.bf16.msra.mxu0 0
        %5467 = vmatprep.subr.bf16.mxu0 0
        %5468 = vmatpush1.bf16.msra.mxu0 0
        %5469 = vmatprep.subr.bf16.mxu0 0
        %5470 = vmatpush1.bf16.msra.mxu0 0
        %5471 = vmatprep.subr.bf16.mxu0 0
        %5472 = vmatpush1.bf16.msra.mxu0 0
        %5473 = vmatprep.subr.bf16.mxu0 0
        %5474 = vmatpush1.bf16.msra.mxu0 0
        %5475 = vmatprep.subr.bf16.mxu0 0
        %5476 = vmatpush1.bf16.msra.mxu0 0
        %5477 = vmatprep.subr.bf16.mxu0 0
        %5478 = vmatpush1.bf16.msra.mxu0 0
        %5479 = vmatprep.subr.bf16.mxu0 0
        %5480 = vmatpush1.bf16.msra.mxu0 0
        %5481 = vmatprep.subr.bf16.mxu0 0
        %5482 = vmatpush1.bf16.msra.mxu0 0
        %5483 = vmatprep.subr.bf16.mxu0 0
        %5484 = vmatpush1.bf16.msra.mxu0 0
        %5485 = vmatprep.subr.bf16.mxu0 0
        %5486 = vmatpush1.bf16.msra.mxu0 0
        %5487 = vmatprep.mubr.bf16.mxu0 0
        %5488 = vmatmul.mubr.bf16.gmra.mrb[0].mxu0 %v5450
        %v5489 = vpop.f32.mrb[0].mxu0
        %v5490 = vadd.f32 %v5435, %v5489
        %v5491 = vpop.f32.mrb[0].mxu0
        %v5492 = vpop.f32.mrb[0].mxu0
        %v5493 = vadd.f32 %v5435, %v5492
        %v5494 = vpop.f32.mrb[0].mxu0
        %5495 = vmatprep.mubr.bf16.mxu0 0
        %5496 = vmatmul.mubr.bf16.gmra.mrb[0].mxu0 %v5453
        %v5497 = vpop.f32.mrb[0].mxu0
        %v5498 = vadd.f32 %v5435, %v5497
        %v5499 = vpop.f32.mrb[0].mxu0
        %v5500 = vpop.f32.mrb[0].mxu0
        %v5501 = vadd.f32 %v5435, %v5500
        %v5502 = vpop.f32.mrb[0].mxu0
        %5503 = vdwg.mxu0
        %v5504 = vmax.f32 %v5490, 0.0
        %v5505 = vmax.f32 %v5493, 0.0
        %v5506 = vmax.f32 %v5498, 0.0
        %v5507 = vmax.f32 %v5501, 0.0
        %v5508 = vpack.c.bf16 %v5505, %v5504
        %v5509 = vpack.c.bf16 %v5507, %v5506
        %v5510 = vld [vmem:[%s1187] sm:$0xf]
        %v5511 = vld [vmem:[%s1187 + $0x4] sm:$0xf]
        %v5512 = vld [vmem:[%s1187 + $0x8] sm:$0xf]
        %v5513 = vld [vmem:[%s1187 + $0xc] sm:$0xf]
        %v5514 = vld [vmem:[%s1187 + $0x10] sm:$0xf]
        %v5515 = vld [vmem:[%s1187 + $0x14] sm:$0xf]
        %v5516 = vld [vmem:[%s1187 + $0x18] sm:$0xf]
        %v5517 = vld [vmem:[%s1187 + $0x1c] sm:$0xf]
        %v5518 = vld [vmem:[%s1187 + $0x20] sm:$0xf]
        %v5519 = vld [vmem:[%s1187 + $0x24] sm:$0xf]
        %v5520 = vld [vmem:[%s1187 + $0x28] sm:$0xf]
        %v5521 = vld [vmem:[%s1187 + $0x2c] sm:$0xf]
        %v5522 = vld [vmem:[%s1187 + $0x30] sm:$0xf]
        %v5523 = vld [vmem:[%s1187 + $0x34] sm:$0xf]
        %v5524 = vld [vmem:[%s1187 + $0x38] sm:$0xf]
        %v5525 = vld [vmem:[%s1187 + $0x3c] sm:$0xf]
        %v5526 = vld [vmem:[%s962] sm:$0x1]
        %v5528 = vlaneseq
        %v5529 = vshrl.u32 %v5528, 7
        %v5530 = vsub.s32 0, %v5529
        %v5531 = vrot.slane %v5526, %v5530
        %v5549 = vunpack.c.l.b16 %v5510
        %v5550 = vunpack.c.l.b16 %v5511
        %v5551 = vunpack.c.l.b16 %v5512
        %v5552 = vunpack.c.l.b16 %v5513
        %v5553 = vunpack.c.l.b16 %v5514
        %v5554 = vunpack.c.l.b16 %v5515
        %v5555 = vunpack.c.l.b16 %v5516
        %v5556 = vunpack.c.l.b16 %v5517
        %v5557 = vunpack.c.l.b16 %v5518
        %v5558 = vunpack.c.l.b16 %v5519
        %v5559 = vunpack.c.l.b16 %v5520
        %v5560 = vunpack.c.l.b16 %v5521
        %v5561 = vunpack.c.l.b16 %v5522
        %v5562 = vunpack.c.l.b16 %v5523
        %v5563 = vunpack.c.l.b16 %v5524
        %v5564 = vunpack.c.l.b16 %v5525
        %v5565 = vpack.c.b16 %v5550, %v5549
        %v5566 = vpack.c.b16 %v5552, %v5551
        %v5567 = vpack.c.b16 %v5554, %v5553
        %v5568 = vpack.c.b16 %v5556, %v5555
        %v5569 = vpack.c.b16 %v5558, %v5557
        %v5570 = vpack.c.b16 %v5560, %v5559
        %v5571 = vpack.c.b16 %v5562, %v5561
        %v5572 = vpack.c.b16 %v5564, %v5563
        %5581 = vmatprep.subr.bf16.mxu0 0
        %5582 = vmatpush1.bf16.msra.mxu0 %v5565
        %5583 = vmatprep.subr.bf16.mxu0 0
        %5584 = vmatpush1.bf16.msra.mxu0 %v5566
        %5585 = vmatprep.subr.bf16.mxu0 0
        %5586 = vmatpush1.bf16.msra.mxu0 %v5567
        %5587 = vmatprep.subr.bf16.mxu0 0
        %5588 = vmatpush1.bf16.msra.mxu0 %v5568
        %5589 = vmatprep.subr.bf16.mxu0 0
        %5590 = vmatpush1.bf16.msra.mxu0 %v5569
        %5591 = vmatprep.subr.bf16.mxu0 0
        %5592 = vmatpush1.bf16.msra.mxu0 %v5570
        %5593 = vmatprep.subr.bf16.mxu0 0
        %5594 = vmatpush1.bf16.msra.mxu0 %v5571
        %5595 = vmatprep.subr.bf16.mxu0 0
        %5596 = vmatpush1.bf16.msra.mxu0 %v5572
        %5597 = vmatprep.subr.bf16.mxu0 0
        %5598 = vmatpush1.bf16.msra.mxu0 0
        %5599 = vmatprep.subr.bf16.mxu0 0
        %5600 = vmatpush1.bf16.msra.mxu0 0
        %5601 = vmatprep.subr.bf16.mxu0 0
        %5602 = vmatpush1.bf16.msra.mxu0 0
        %5603 = vmatprep.subr.bf16.mxu0 0
        %5604 = vmatpush1.bf16.msra.mxu0 0
        %5605 = vmatprep.subr.bf16.mxu0 0
        %5606 = vmatpush1.bf16.msra.mxu0 0
        %5607 = vmatprep.subr.bf16.mxu0 0
        %5608 = vmatpush1.bf16.msra.mxu0 0
        %5609 = vmatprep.subr.bf16.mxu0 0
        %5610 = vmatpush1.bf16.msra.mxu0 0
        %5611 = vmatprep.subr.bf16.mxu0 0
        %5612 = vmatpush1.bf16.msra.mxu0 0
        %5613 = vmatprep.mubr.bf16.mxu0 0
        %5614 = vmatmul.mubr.bf16.gmra.mrb[0].mxu0 %v5508
        %v5615 = vpop.f32.mrb[0].mxu0
        %v5616 = vadd.f32 %v5531, %v5615
        %v5617 = vpop.f32.mrb[0].mxu0
        %v5618 = vpop.f32.mrb[0].mxu0
        %v5619 = vadd.f32 %v5531, %v5618
        %v5620 = vpop.f32.mrb[0].mxu0
        %5621 = vmatprep.mubr.bf16.mxu0 0
        %5622 = vmatmul.mubr.bf16.gmra.mrb[0].mxu0 %v5509
        %v5623 = vpop.f32.mrb[0].mxu0
        %v5624 = vadd.f32 %v5531, %v5623
        %v5625 = vpop.f32.mrb[0].mxu0
        %v5626 = vpop.f32.mrb[0].mxu0
        %v5627 = vadd.f32 %v5531, %v5626
        %v5628 = vpop.f32.mrb[0].mxu0
        %5629 = vdwg.mxu0
        %v5630 = vadd.f32 %v5616, %v5420
        %v5631 = vadd.f32 %v5619, %v5421
        %v5632 = vadd.f32 %v5624, %v5422
        %v5633 = vadd.f32 %v5627, %v5423
        %v5634 = vld [vmem:[%s970] sm:$0x1]
        %v5635 = vld [vmem:[%s978] sm:$0x1]
        %v5636 = vsel %vm1247, %v5630, 0.0
        %5637 = vadd.xlane.f32.xlu0 %v5636
        %v5638 = vpop.xlane.xlu0 %5637
        %v5639 = vsel %vm1247, %v5631, 0.0
        %5640 = vadd.xlane.f32.xlu0 %v5639
        %v5641 = vpop.xlane.xlu0 %5640
        %v5642 = vsel %vm1247, %v5632, 0.0
        %5643 = vadd.xlane.f32.xlu0 %v5642
        %v5644 = vpop.xlane.xlu0 %5643
        %v5645 = vsel %vm1247, %v5633, 0.0
        %5646 = vadd.xlane.f32.xlu0 %v5645
        %v5647 = vpop.xlane.xlu0 %5646
        %v5648 = vmul.f32 %v5638, %v3225
        %v5649 = vmul.f32 %v5641, %v3225
        %v5650 = vmul.f32 %v5644, %v3225
        %v5651 = vmul.f32 %v5647, %v3225
        %v5652 = vsub.f32 %v5630, %v5648
        %v5653 = vsub.f32 %v5631, %v5649
        %v5654 = vsub.f32 %v5632, %v5650
        %v5655 = vsub.f32 %v5633, %v5651
        %v5656 = vmul.f32 %v5652, %v5652
        %v5657 = vmul.f32 %v5653, %v5653
        %v5658 = vmul.f32 %v5654, %v5654
        %v5659 = vmul.f32 %v5655, %v5655
        %v5660 = vsel %vm1247, %v5656, 0.0
        %5661 = vadd.xlane.f32.xlu0 %v5660
        %v5662 = vpop.xlane.xlu0 %5661
        %v5663 = vsel %vm1247, %v5657, 0.0
        %5664 = vadd.xlane.f32.xlu0 %v5663
        %v5665 = vpop.xlane.xlu0 %5664
        %v5666 = vsel %vm1247, %v5658, 0.0
        %5667 = vadd.xlane.f32.xlu0 %v5666
        %v5668 = vpop.xlane.xlu0 %5667
        %v5669 = vsel %vm1247, %v5659, 0.0
        %5670 = vadd.xlane.f32.xlu0 %v5669
        %v5671 = vpop.xlane.xlu0 %5670
        %v5672 = vmul.f32 %v5662, %v3225
        %v5673 = vmul.f32 %v5665, %v3225
        %v5674 = vmul.f32 %v5668, %v3225
        %v5675 = vmul.f32 %v5671, %v3225
        %v5676 = vadd.f32 %v5672, 1e-05
        %v5677 = vadd.f32 %v5673, 1e-05
        %v5678 = vadd.f32 %v5674, 1e-05
        %v5679 = vadd.f32 %v5675, 1e-05
        %v5680 = vrsqrt.pop %v5676
        %v5681 = vrsqrt.pop %v5677
        %v5682 = vrsqrt.pop %v5678
        %v5683 = vrsqrt.pop %v5679
        %v5684 = vmul.f32 %v5652, %v5680
        %v5685 = vmul.f32 %v5653, %v5681
        %v5686 = vmul.f32 %v5654, %v5682
        %v5687 = vmul.f32 %v5655, %v5683
        %v5689 = vlaneseq
        %v5690 = vshrl.u32 %v5689, 7
        %v5691 = vsub.s32 0, %v5690
        %v5692 = vrot.slane %v5634, %v5691
        %v5694 = vmul.f32 %v5684, %v5692
        %v5695 = vmul.f32 %v5685, %v5692
        %v5696 = vmul.f32 %v5686, %v5692
        %v5697 = vmul.f32 %v5687, %v5692
        %v5699 = vlaneseq
        %v5700 = vshrl.u32 %v5699, 7
        %v5701 = vsub.s32 0, %v5700
        %v5702 = vrot.slane %v5635, %v5701
        %v5704 = vadd.f32 %v5694, %v5702
        %v5705 = vadd.f32 %v5695, %v5702
        %v5706 = vadd.f32 %v5696, %v5702
        %v5707 = vadd.f32 %v5697, %v5702
        %5708 = vst.msk [vmem:[#allocation2] sm:$0xff] %vm1247, %v5704
        %5709 = vst.msk [vmem:[#allocation2 + $0x8] sm:$0xff] %vm1247, %v5705
        %5710 = vst.msk [vmem:[#allocation2 + $0x10] sm:$0xff] %vm1247, %v5706
        %5711 = vst.msk [vmem:[#allocation2 + $0x18] sm:$0xff] %vm1247, %v5707
        %p5712 = scmp.eq.s32.totalorder %s53, 1
        // Predicated region
        $region145: #{_lambda_.1} parent=107 // pred_check
          %p5713 = pneg %p5712
        $region146: #{_lambda_.1} parent=107 // pred_check_branch
          %5715 = sbr.rel (%p5713) target = $region148
        $region147: #{_lambda_.1} parent=107 // pred_region
          %5716 = vst.msk [vmem:[%s1192] sm:$0xff] %vm1247, %v5704
          %5717 = vst.msk [vmem:[%s1192 + $0x8] sm:$0xff] %vm1247, %v5705
          %5718 = vst.msk [vmem:[%s1192 + $0x10] sm:$0xff] %vm1247, %v5706
          %5719 = vst.msk [vmem:[%s1192 + $0x18] sm:$0xff] %vm1247, %v5707
        $region148: #{_lambda_.1} parent=107 // pred_fallthru
          _
        %s5720 = smul.u32 4, %s52
        %p5721 = scmp.lt.s32.totalorder %s5720, 7
        %s5722 = scalar_select %p5721, %s5720, 7
        %s5723 = smul.addr %s5722, 8
        %s5724 = scalar_lea.vmem %s22, %s5723
        // Predicated region
        $region149: #{_lambda_.1} parent=107 // pred_check
          %p5725 = pneg %p650
        $region150: #{_lambda_.1} parent=107 // pred_check_branch
          %5727 = sbr.rel (%p5725) target = $region152
        $region151: #{_lambda_.1} parent=107 // pred_region
          %s5728 = smul.u32 4, %s52
        $region152: #{_lambda_.1} parent=107 // pred_fallthru
          _
      $region108: #{_lambda_.1} parent=5 // pred_fallthru
        _
      %p5729 = scmp.le.s32.totalorder 2, %s43
      // Predicated region
      $region153: #{_lambda_.1} parent=5 // pred_check
        %p5730 = pneg %p5729
      $region154: #{_lambda_.1} parent=5 // pred_check_branch
        %5732 = sbr.rel (%p5730) target = $region156
      $region155: #{_lambda_.1} parent=5 // pred_region
        %s5733 = ssub.s32 %s43, 2
        // Predicated region
        $region157: #{_lambda_.1} parent=155 // pred_check
          %p5734 = pneg %p656
        $region158: #{_lambda_.1} parent=155 // pred_check_branch
          %5736 = sbr.rel (%p5734) target = $region160
        $region159: #{_lambda_.1} parent=155 // pred_region
          %s5737 = smul.u32 4, %s54
          %p5738 = scmp.lt.s32.totalorder %s5737, 7
          %s5739 = scalar_select %p5738, %s5737, 7
          %s5740 = smul.addr %s5739, 8
          %s5741 = scalar_lea.vmem %s22, %s5740
        $region160: #{_lambda_.1} parent=155 // pred_fallthru
          _
      $region156: #{_lambda_.1} parent=5 // pred_fallthru
        _
    $region6: #{_lambda_.1} parent=1 // loop_footer
      %s47 = sadd.s32 1, %s43
    $region7: #{_lambda_.1} parent=1 // loop_footer_branch
      %42 = sbr.rel target = $region3
    $region8: #{_lambda_.1} parent=1 // loop_exit
      _
    %5742 = vsyncpa [#allocation4], 1
    %s5743 = scalar_lea.sflag [#allocation4], 1
    %5744 = vsyncpa %s5743, 1
    %5745 = vsyncpa [#allocation6], 1
    %s5746 = scalar_lea.sflag [#allocation6], 1
    %5747 = vsyncpa %s5746, 1
    %5748 = vsyncpa [#allocation9], 1
    %s5749 = scalar_lea.sflag [#allocation9], 1
    %5750 = vsyncpa %s5749, 1
    %5751 = vsyncpa [#allocation12], 1
    %s5752 = scalar_lea.sflag [#allocation12], 1
    %5753 = vsyncpa %s5752, 1
    %5754 = vsyncpa [#allocation15], 1
    %s5755 = scalar_lea.sflag [#allocation15], 1
    %5756 = vsyncpa %s5755, 1

</llo_original>
